<compile_context>
chip_gen: v5e
topology: v5e:2x2
jax: 0.10.0
libtpu: 0.0.40
codegen_flags: <defaults>
</compile_context>

<pallas_src>
import math
import jax
import jax.numpy as jnp
from jax import lax
from jax.experimental import pallas as pl
from jax.experimental.pallas import tpu as pltpu


def _lrelu(y):
    # LeakyReLU(negative_slope=0.01)
    return jnp.maximum(y, 0.01 * y)


def _fused_kernel(x_ref, w1_ref, s1_ref, w2_ref, s2_ref,
                  wih1_ref, whh1_ref, b1_ref,
                  wih2_ref, whh2_ref, b2_ref,
                  hw_ref, hb_ref,
                  out_ref,
                  out1_scr, out2_scr):
    # ----- hoist every weight load once (nothing re-read in unrolled loops) ---
    x = x_ref[...]                                    # (L, Cin)
    w1 = w1_ref[...]; s1 = s1_ref[...]                # (K1,Cin,C1), (1,C1)
    w2 = w2_ref[...]; s2 = s2_ref[...]                # (K2,C1,C2), (1,C2)
    wih1 = wih1_ref[...]; whh1 = whh1_ref[...]; b1 = b1_ref[...]
    wih2 = wih2_ref[...]; whh2 = whh2_ref[...]; b2 = b2_ref[...]
    hw = hw_ref[...]; hb = hb_ref[...]

    # ----- conv1 + BN1 (scale pre-folded into w1) + LeakyReLU ------------------
    K1, _, C1 = w1.shape
    L = x.shape[0]
    L1 = L - K1 + 1
    acc = jnp.dot(x[0:L1, :], w1[0], preferred_element_type=jnp.float32)
    for k in range(1, K1):
        acc = acc + jnp.dot(x[k:k + L1, :], w1[k],
                            preferred_element_type=jnp.float32)
    h1 = _lrelu(acc + s1)                             # (L1, C1)

    # ----- conv2 + BN2 + LeakyReLU --------------------------------------------
    K2, _, C2 = w2.shape
    L2 = L1 - K2 + 1
    acc = jnp.dot(h1[0:L2, :], w2[0], preferred_element_type=jnp.float32)
    for k in range(1, K2):
        acc = acc + jnp.dot(h1[k:k + L2, :], w2[k],
                            preferred_element_type=jnp.float32)
    h2 = _lrelu(acc + s2)                             # (L2, C2)

    # ----- MaxPool1d(kernel=3, stride=1), fused --------------------------------
    T = L2 - 2
    pooled = jnp.maximum(jnp.maximum(h2[0:T, :], h2[1:T + 1, :]),
                         h2[2:T + 2, :])              # (T, C2)
    # TODO(synk): nn.Dropout(0.1) layers are eval-mode identities (no RNG mask).

    # ----- LSTM layer 1 (input projection hoisted out of the recurrence) -------
    H1 = whh1.shape[0]
    gx1 = jnp.dot(pooled, wih1, preferred_element_type=jnp.float32) + b1  # (T,4H1)
    h = jnp.zeros((1, H1), jnp.float32)
    c = jnp.zeros((1, H1), jnp.float32)
    for t in range(T):                                # fully unrolled recurrence
        gt = gx1[t:t + 1, :] + jnp.dot(h, whh1,
                                       preferred_element_type=jnp.float32)
        ig = jax.nn.sigmoid(gt[:, 0 * H1:1 * H1])
        fg = jax.nn.sigmoid(gt[:, 1 * H1:2 * H1])
        gg = jnp.tanh(gt[:, 2 * H1:3 * H1])
        og = jax.nn.sigmoid(gt[:, 3 * H1:4 * H1])
        c = fg * c + ig * gg
        h = og * jnp.tanh(c)
        out1_scr[t:t + 1, :] = h

    # ----- LSTM layer 2 ---------------------------------------------------------
    H2 = whh2.shape[0]
    gx2 = jnp.dot(out1_scr[...], wih2, preferred_element_type=jnp.float32) + b2
    h = jnp.zeros((1, H2), jnp.float32)
    c = jnp.zeros((1, H2), jnp.float32)
    for t in range(T):
        gt = gx2[t:t + 1, :] + jnp.dot(h, whh2,
                                       preferred_element_type=jnp.float32)
        ig = jax.nn.sigmoid(gt[:, 0 * H2:1 * H2])
        fg = jax.nn.sigmoid(gt[:, 1 * H2:2 * H2])
        gg = jnp.tanh(gt[:, 2 * H2:3 * H2])
        og = jax.nn.sigmoid(gt[:, 3 * H2:4 * H2])
        c = fg * c + ig * gg
        h = og * jnp.tanh(c)
        out2_scr[t:t + 1, :] = h

    # ----- self-attention (query = x; dropout = identity) + Linear head --------
    seq = out2_scr[...]                               # (T, H2)
    scores = lax.dot_general(seq, seq, (((1,), (1,)), ((), ())),
                             preferred_element_type=jnp.float32)      # (T, T)
    scores = scores * (1.0 / math.sqrt(H2))
    scores = scores - jnp.max(scores, axis=-1, keepdims=True)
    e = jnp.exp(scores)
    p = e / jnp.sum(e, axis=-1, keepdims=True)        # softmax over last dim
    # context = (p @ seq).sum(query axis) == (sum_q p[q,:]) @ seq
    ctx = jnp.dot(jnp.sum(p, axis=0, keepdims=True), seq,
                  preferred_element_type=jnp.float32)                 # (1, H2)
    out_ref[...] = jnp.dot(ctx, hw, preferred_element_type=jnp.float32) + hb


# ---------------- one-time parameter preparation (layout + BN folding) --------
def prepare_params(p, eps=1e-5):
    def conv_prep(w, b, gamma, beta, mean, var):
        scale = gamma / jnp.sqrt(var + eps)                       # (Cout,)
        w_kio = jnp.transpose(w, (2, 1, 0)) * scale               # (K, Cin, Cout)
        shift = (b - mean) * scale + beta
        return w_kio.astype(jnp.float32), shift.reshape(1, -1).astype(jnp.float32)

    w1, s1 = conv_prep(p['conv1_w'], p['conv1_b'], p['bn1_gamma'],
                       p['bn1_beta'], p['bn1_mean'], p['bn1_var'])
    w2, s2 = conv_prep(p['conv2_w'], p['conv2_b'], p['bn2_gamma'],
                       p['bn2_beta'], p['bn2_mean'], p['bn2_var'])
    return dict(
        w1=w1, s1=s1, w2=w2, s2=s2,
        wih1=p['lstm1_w_ih'].T, whh1=p['lstm1_w_hh'].T,
        b1=(p['lstm1_b_ih'] + p['lstm1_b_hh']).reshape(1, -1),
        wih2=p['lstm2_w_ih'].T, whh2=p['lstm2_w_hh'].T,
        b2=(p['lstm2_b_ih'] + p['lstm2_b_hh']).reshape(1, -1),
        hw=p['head_w'].T, hb=p['head_b'].reshape(1, -1),
    )


# ---------------- forward: squeeze + single fused pallas_call + reshape -------
def cnn_lstm_forward(x, prep):
    # x: (B, L, input_size, 1); PyTorch does squeeze(-1).permute(0,2,1) -- the
    # NCL permute is absorbed in the pre-transposed conv weights.
    x = jnp.squeeze(x, -1)                           # (B, L, Cin)
    B, L, Cin = x.shape
    K1 = prep['w1'].shape[0]
    K2 = prep['w2'].shape[0]
    T = (L - K1 + 1) - K2 + 1 - 2                    # after conv1, conv2, pool
    H1 = prep['whh1'].shape[0]
    H2 = prep['whh2'].shape[0]
    Dout = prep['hw'].shape[1]

    def _full(shape):
        nd = len(shape)
        return pl.BlockSpec(shape, lambda b, nd=nd: (0,) * nd)

    out = pl.pallas_call(
        _fused_kernel,
        out_shape=jax.ShapeDtypeStruct((B, 1, Dout), jnp.float32),
        grid=(B,),
        in_specs=[
            pl.BlockSpec((None, L, Cin), lambda b: (b, 0, 0)),   # x (per batch)
            _full(prep['w1'].shape), _full(prep['s1'].shape),
            _full(prep['w2'].shape), _full(prep['s2'].shape),
            _full(prep['wih1'].shape), _full(prep['whh1'].shape),
            _full(prep['b1'].shape),
            _full(prep['wih2'].shape), _full(prep['whh2'].shape),
            _full(prep['b2'].shape),
            _full(prep['hw'].shape), _full(prep['hb'].shape),
        ],
        out_specs=pl.BlockSpec((None, 1, Dout), lambda b: (b, 0, 0)),
        scratch_shapes=[pltpu.VMEM((T, H1), jnp.float32),
                        pltpu.VMEM((T, H2), jnp.float32)],
        compiler_params=pltpu.CompilerParams(
            dimension_semantics=("parallel",)),
    )(x, prep['w1'], prep['s1'], prep['w2'], prep['s2'],
      prep['wih1'], prep['whh1'], prep['b1'],
      prep['wih2'], prep['whh2'], prep['b2'],
      prep['hw'], prep['hb'])
    return out.reshape(B, Dout)


# ---------------- pure-JAX reference (uses the ORIGINAL, unfolded params) -----
def reference_forward(x, p, eps=1e-5):
    x = jnp.squeeze(x, -1)                            # (B, L, Cin)

    def conv_bn_lrelu(x_blc, w, b, gamma, beta, mean, var):
        K = w.shape[-1]
        Lout = x_blc.shape[1] - K + 1
        y = sum(jnp.einsum('blc,oc->blo', x_blc[:, k:k + Lout, :], w[:, :, k])
                for k in range(K)) + b
        y = gamma * (y - mean) / jnp.sqrt(var + eps) + beta
        return jnp.where(y > 0, y, 0.01 * y)

    h = conv_bn_lrelu(x, p['conv1_w'], p['conv1_b'], p['bn1_gamma'],
                      p['bn1_beta'], p['bn1_mean'], p['bn1_var'])
    h = conv_bn_lrelu(h, p['conv2_w'], p['conv2_b'], p['bn2_gamma'],
                      p['bn2_beta'], p['bn2_mean'], p['bn2_var'])
    h = jnp.maximum(jnp.maximum(h[:, 0:-2, :], h[:, 1:-1, :]), h[:, 2:, :])

    def lstm(seq, w_ih, w_hh, b_ih, b_hh):
        B = seq.shape[0]
        H = w_hh.shape[1]

        def step(carry, x_t):
            hh, cc = carry
            g = x_t @ w_ih.T + hh @ w_hh.T + b_ih + b_hh
            i = jax.nn.sigmoid(g[:, 0 * H:1 * H])
            f = jax.nn.sigmoid(g[:, 1 * H:2 * H])
            gg = jnp.tanh(g[:, 2 * H:3 * H])
            o = jax.nn.sigmoid(g[:, 3 * H:4 * H])
            cc = f * cc + i * gg
            hh = o * jnp.tanh(cc)
            return (hh, cc), hh

        init = (jnp.zeros((B, H), jnp.float32), jnp.zeros((B, H), jnp.float32))
        _, ys = lax.scan(step, init, jnp.swapaxes(seq, 0, 1))
        return jnp.swapaxes(ys, 0, 1)

    h = lstm(h, p['lstm1_w_ih'], p['lstm1_w_hh'], p['lstm1_b_ih'], p['lstm1_b_hh'])
    h = lstm(h, p['lstm2_w_ih'], p['lstm2_w_hh'], p['lstm2_b_ih'], p['lstm2_b_hh'])
    d_k = h.shape[-1]
    scores = jnp.einsum('bqd,bkd->bqk', h, h) / math.sqrt(d_k)
    pa = jax.nn.softmax(scores, axis=-1)
    ctx = jnp.einsum('bqk,bkd->bqd', pa, h).sum(axis=1)
    return ctx @ p['head_w'].T + p['head_b']


# ---------------- parameter setup (deterministic, synthetic, PyTorch layout) --
def init_params(key):
    ks = iter(jax.random.split(key, 32))
    n = lambda shape, scale: scale * jax.random.normal(next(ks), shape, jnp.float32)
    p = {}
    # conv1: Conv1d(2, 64, 7) + BN(64)
    p['conv1_w'] = n((64, 2, 7), 1.0 / math.sqrt(2 * 7))
    p['conv1_b'] = n((64,), 0.1)
    p['bn1_gamma'] = 1.0 + n((64,), 0.1)
    p['bn1_beta'] = n((64,), 0.1)
    p['bn1_mean'] = n((64,), 0.1)
    p['bn1_var'] = 1.0 + jnp.abs(n((64,), 0.1))
    # conv2: Conv1d(64, 128, 7) + BN(128)
    p['conv2_w'] = n((128, 64, 7), 1.0 / math.sqrt(64 * 7))
    p['conv2_b'] = n((128,), 0.1)
    p['bn2_gamma'] = 1.0 + n((128,), 0.1)
    p['bn2_beta'] = n((128,), 0.1)
    p['bn2_mean'] = n((128,), 0.1)
    p['bn2_var'] = 1.0 + jnp.abs(n((128,), 0.1))
    # lstm1: LSTM(128, 256)
    p['lstm1_w_ih'] = n((4 * 256, 128), 1.0 / math.sqrt(256))
    p['lstm1_w_hh'] = n((4 * 256, 256), 1.0 / math.sqrt(256))
    p['lstm1_b_ih'] = n((4 * 256,), 1.0 / math.sqrt(256))
    p['lstm1_b_hh'] = n((4 * 256,), 1.0 / math.sqrt(256))
    # lstm2: LSTM(256, 128)
    p['lstm2_w_ih'] = n((4 * 128, 256), 1.0 / math.sqrt(128))
    p['lstm2_w_hh'] = n((4 * 128, 128), 1.0 / math.sqrt(128))
    p['lstm2_b_ih'] = n((4 * 128,), 1.0 / math.sqrt(128))
    p['lstm2_b_hh'] = n((4 * 128,), 1.0 / math.sqrt(128))
    # head: Linear(128, 64)
    p['head_w'] = n((64, 128), 1.0 / math.sqrt(128))
    p['head_b'] = n((64,), 1.0 / math.sqrt(128))
    return p


if __name__ == "__main__":
    key = jax.random.PRNGKey(0)
    k_x, k_p = jax.random.split(key)
    # batch=2, seq=24, input_size=2, trailing singleton (squeezed by forward)
    x = jax.random.normal(k_x, (2, 24, 2, 1), jnp.float32)
    params = init_params(k_p)
    prep = prepare_params(params)          # one-time layout change + BN folding

    y = jax.jit(cnn_lstm_forward)(x, prep)
    jax.block_until_ready(y)
    assert y.shape == (2, 64) and y.dtype == jnp.float32

    y_ref = reference_forward(x, params)
    max_err = float(jnp.max(jnp.abs(y - y_ref)))
    assert jnp.allclose(y, y_ref, atol=1e-3, rtol=1e-3), max_err
    print("KERNEL_OK")
</pallas_src>

<mosaic_0001>
module attributes {stable_mosaic.version = 11 : i64} {
  func.func @_fused_kernel(%arg0: i32, %arg1: memref<1x24x2xf32, #tpu.memory_space<vmem>>, %arg2: memref<7x2x64xf32, #tpu.memory_space<vmem>>, %arg3: memref<1x64xf32, #tpu.memory_space<vmem>>, %arg4: memref<7x64x128xf32, #tpu.memory_space<vmem>>, %arg5: memref<1x128xf32, #tpu.memory_space<vmem>>, %arg6: memref<128x1024xf32, #tpu.memory_space<vmem>>, %arg7: memref<256x1024xf32, #tpu.memory_space<vmem>>, %arg8: memref<1x1024xf32, #tpu.memory_space<vmem>>, %arg9: memref<256x512xf32, #tpu.memory_space<vmem>>, %arg10: memref<128x512xf32, #tpu.memory_space<vmem>>, %arg11: memref<1x512xf32, #tpu.memory_space<vmem>>, %arg12: memref<128x64xf32, #tpu.memory_space<vmem>>, %arg13: memref<1x64xf32, #tpu.memory_space<vmem>>, %arg14: memref<1x1x64xf32, #tpu.memory_space<vmem>>, %arg15: memref<10x256xf32, #tpu.memory_space<vmem>>, %arg16: memref<10x128xf32, #tpu.memory_space<vmem>>) attributes {dimension_semantics = [#tpu.dimension_semantics<parallel>], iteration_bounds = array<i64: 2>, scalar_prefetch = 0 : i64, scratch_operands = 2 : i64, tpu.core_type = #tpu.core_type<tc>, window_params = [{transform_indices = @transform_0, window_bounds = array<i64: 1, 24, 2>}, {pipeline_mode = #tpu.pipeline_mode<synchronous>, transform_indices = @transform_1, window_bounds = array<i64: 7, 2, 64>}, {pipeline_mode = #tpu.pipeline_mode<synchronous>, transform_indices = @transform_2, window_bounds = array<i64: 1, 64>}, {pipeline_mode = #tpu.pipeline_mode<synchronous>, transform_indices = @transform_3, window_bounds = array<i64: 7, 64, 128>}, {pipeline_mode = #tpu.pipeline_mode<synchronous>, transform_indices = @transform_4, window_bounds = array<i64: 1, 128>}, {pipeline_mode = #tpu.pipeline_mode<synchronous>, transform_indices = @transform_5, window_bounds = array<i64: 128, 1024>}, {pipeline_mode = #tpu.pipeline_mode<synchronous>, transform_indices = @transform_6, window_bounds = array<i64: 256, 1024>}, {pipeline_mode = #tpu.pipeline_mode<synchronous>, transform_indices = @transform_7, window_bounds = array<i64: 1, 1024>}, {pipeline_mode = #tpu.pipeline_mode<synchronous>, transform_indices = @transform_8, window_bounds = array<i64: 256, 512>}, {pipeline_mode = #tpu.pipeline_mode<synchronous>, transform_indices = @transform_9, window_bounds = array<i64: 128, 512>}, {pipeline_mode = #tpu.pipeline_mode<synchronous>, transform_indices = @transform_10, window_bounds = array<i64: 1, 512>}, {pipeline_mode = #tpu.pipeline_mode<synchronous>, transform_indices = @transform_11, window_bounds = array<i64: 128, 64>}, {pipeline_mode = #tpu.pipeline_mode<synchronous>, transform_indices = @transform_12, window_bounds = array<i64: 1, 64>}, {transform_indices = @transform_13, window_bounds = array<i64: 1, 1, 64>}]} {
    %c0 = arith.constant 0 : index
    %c0_0 = arith.constant 0 : index
    %c0_1 = arith.constant 0 : index
    %0 = vector.load %arg1[%c0, %c0_0, %c0_1] : memref<1x24x2xf32, #tpu.memory_space<vmem>>, vector<1x24x2xf32>
    %1 = vector.shape_cast %0 : vector<1x24x2xf32> to vector<24x2xf32>
    %c0_2 = arith.constant 0 : index
    %c0_3 = arith.constant 0 : index
    %c0_4 = arith.constant 0 : index
    %2 = vector.load %arg2[%c0_2, %c0_3, %c0_4] : memref<7x2x64xf32, #tpu.memory_space<vmem>>, vector<7x2x64xf32>
    %c0_5 = arith.constant 0 : index
    %c0_6 = arith.constant 0 : index
    %3 = vector.load %arg3[%c0_5, %c0_6] : memref<1x64xf32, #tpu.memory_space<vmem>>, vector<1x64xf32>
    %c0_7 = arith.constant 0 : index
    %c0_8 = arith.constant 0 : index
    %c0_9 = arith.constant 0 : index
    %4 = vector.load %arg4[%c0_7, %c0_8, %c0_9] : memref<7x64x128xf32, #tpu.memory_space<vmem>>, vector<7x64x128xf32>
    %c0_10 = arith.constant 0 : index
    %c0_11 = arith.constant 0 : index
    %5 = vector.load %arg5[%c0_10, %c0_11] : memref<1x128xf32, #tpu.memory_space<vmem>>, vector<1x128xf32>
    %c0_12 = arith.constant 0 : index
    %c0_13 = arith.constant 0 : index
    %6 = vector.load %arg6[%c0_12, %c0_13] : memref<128x1024xf32, #tpu.memory_space<vmem>>, vector<128x1024xf32>
    %c0_14 = arith.constant 0 : index
    %c0_15 = arith.constant 0 : index
    %7 = vector.load %arg7[%c0_14, %c0_15] : memref<256x1024xf32, #tpu.memory_space<vmem>>, vector<256x1024xf32>
    %c0_16 = arith.constant 0 : index
    %c0_17 = arith.constant 0 : index
    %8 = vector.load %arg8[%c0_16, %c0_17] : memref<1x1024xf32, #tpu.memory_space<vmem>>, vector<1x1024xf32>
    %c0_18 = arith.constant 0 : index
    %c0_19 = arith.constant 0 : index
    %9 = vector.load %arg9[%c0_18, %c0_19] : memref<256x512xf32, #tpu.memory_space<vmem>>, vector<256x512xf32>
    %c0_20 = arith.constant 0 : index
    %c0_21 = arith.constant 0 : index
    %10 = vector.load %arg10[%c0_20, %c0_21] : memref<128x512xf32, #tpu.memory_space<vmem>>, vector<128x512xf32>
    %c0_22 = arith.constant 0 : index
    %c0_23 = arith.constant 0 : index
    %11 = vector.load %arg11[%c0_22, %c0_23] : memref<1x512xf32, #tpu.memory_space<vmem>>, vector<1x512xf32>
    %c0_24 = arith.constant 0 : index
    %c0_25 = arith.constant 0 : index
    %12 = vector.load %arg12[%c0_24, %c0_25] : memref<128x64xf32, #tpu.memory_space<vmem>>, vector<128x64xf32>
    %c0_26 = arith.constant 0 : index
    %c0_27 = arith.constant 0 : index
    %13 = vector.load %arg13[%c0_26, %c0_27] : memref<1x64xf32, #tpu.memory_space<vmem>>, vector<1x64xf32>
    %14 = vector.extract_strided_slice %1 {offsets = [0, 0], sizes = [18, 2], strides = [1, 1]} : vector<24x2xf32> to vector<18x2xf32>
    %15 = vector.extract_strided_slice %2 {offsets = [0, 0, 0], sizes = [1, 2, 64], strides = [1, 1, 1]} : vector<7x2x64xf32> to vector<1x2x64xf32>
    %16 = vector.shape_cast %15 : vector<1x2x64xf32> to vector<2x64xf32>
    %cst = arith.constant dense<0.000000e+00> : vector<18x64xf32>
    %17 = tpu.matmul %14, %16, %cst {dimension_numbers = #tpu.dot_dimension_numbers<[1], [0], [0], [1], [0, 0, 1, 1], [], []>} : vector<18x2xf32>, vector<2x64xf32>, vector<18x64xf32> -> vector<18x64xf32>
    %18 = vector.extract_strided_slice %1 {offsets = [1, 0], sizes = [18, 2], strides = [1, 1]} : vector<24x2xf32> to vector<18x2xf32>
    %19 = vector.extract_strided_slice %2 {offsets = [1, 0, 0], sizes = [1, 2, 64], strides = [1, 1, 1]} : vector<7x2x64xf32> to vector<1x2x64xf32>
    %20 = vector.shape_cast %19 : vector<1x2x64xf32> to vector<2x64xf32>
    %cst_28 = arith.constant dense<0.000000e+00> : vector<18x64xf32>
    %21 = tpu.matmul %18, %20, %cst_28 {dimension_numbers = #tpu.dot_dimension_numbers<[1], [0], [0], [1], [0, 0, 1, 1], [], []>} : vector<18x2xf32>, vector<2x64xf32>, vector<18x64xf32> -> vector<18x64xf32>
    %22 = arith.addf %17, %21 : vector<18x64xf32>
    %23 = vector.extract_strided_slice %1 {offsets = [2, 0], sizes = [18, 2], strides = [1, 1]} : vector<24x2xf32> to vector<18x2xf32>
    %24 = vector.extract_strided_slice %2 {offsets = [2, 0, 0], sizes = [1, 2, 64], strides = [1, 1, 1]} : vector<7x2x64xf32> to vector<1x2x64xf32>
    %25 = vector.shape_cast %24 : vector<1x2x64xf32> to vector<2x64xf32>
    %cst_29 = arith.constant dense<0.000000e+00> : vector<18x64xf32>
    %26 = tpu.matmul %23, %25, %cst_29 {dimension_numbers = #tpu.dot_dimension_numbers<[1], [0], [0], [1], [0, 0, 1, 1], [], []>} : vector<18x2xf32>, vector<2x64xf32>, vector<18x64xf32> -> vector<18x64xf32>
    %27 = arith.addf %22, %26 : vector<18x64xf32>
    %28 = vector.extract_strided_slice %1 {offsets = [3, 0], sizes = [18, 2], strides = [1, 1]} : vector<24x2xf32> to vector<18x2xf32>
    %29 = vector.extract_strided_slice %2 {offsets = [3, 0, 0], sizes = [1, 2, 64], strides = [1, 1, 1]} : vector<7x2x64xf32> to vector<1x2x64xf32>
    %30 = vector.shape_cast %29 : vector<1x2x64xf32> to vector<2x64xf32>
    %cst_30 = arith.constant dense<0.000000e+00> : vector<18x64xf32>
    %31 = tpu.matmul %28, %30, %cst_30 {dimension_numbers = #tpu.dot_dimension_numbers<[1], [0], [0], [1], [0, 0, 1, 1], [], []>} : vector<18x2xf32>, vector<2x64xf32>, vector<18x64xf32> -> vector<18x64xf32>
    %32 = arith.addf %27, %31 : vector<18x64xf32>
    %33 = vector.extract_strided_slice %1 {offsets = [4, 0], sizes = [18, 2], strides = [1, 1]} : vector<24x2xf32> to vector<18x2xf32>
    %34 = vector.extract_strided_slice %2 {offsets = [4, 0, 0], sizes = [1, 2, 64], strides = [1, 1, 1]} : vector<7x2x64xf32> to vector<1x2x64xf32>
    %35 = vector.shape_cast %34 : vector<1x2x64xf32> to vector<2x64xf32>
    %cst_31 = arith.constant dense<0.000000e+00> : vector<18x64xf32>
    %36 = tpu.matmul %33, %35, %cst_31 {dimension_numbers = #tpu.dot_dimension_numbers<[1], [0], [0], [1], [0, 0, 1, 1], [], []>} : vector<18x2xf32>, vector<2x64xf32>, vector<18x64xf32> -> vector<18x64xf32>
    %37 = arith.addf %32, %36 : vector<18x64xf32>
    %38 = vector.extract_strided_slice %1 {offsets = [5, 0], sizes = [18, 2], strides = [1, 1]} : vector<24x2xf32> to vector<18x2xf32>
    %39 = vector.extract_strided_slice %2 {offsets = [5, 0, 0], sizes = [1, 2, 64], strides = [1, 1, 1]} : vector<7x2x64xf32> to vector<1x2x64xf32>
    %40 = vector.shape_cast %39 : vector<1x2x64xf32> to vector<2x64xf32>
    %cst_32 = arith.constant dense<0.000000e+00> : vector<18x64xf32>
    %41 = tpu.matmul %38, %40, %cst_32 {dimension_numbers = #tpu.dot_dimension_numbers<[1], [0], [0], [1], [0, 0, 1, 1], [], []>} : vector<18x2xf32>, vector<2x64xf32>, vector<18x64xf32> -> vector<18x64xf32>
    %42 = arith.addf %37, %41 : vector<18x64xf32>
    %43 = vector.extract_strided_slice %1 {offsets = [6, 0], sizes = [18, 2], strides = [1, 1]} : vector<24x2xf32> to vector<18x2xf32>
    %44 = vector.extract_strided_slice %2 {offsets = [6, 0, 0], sizes = [1, 2, 64], strides = [1, 1, 1]} : vector<7x2x64xf32> to vector<1x2x64xf32>
    %45 = vector.shape_cast %44 : vector<1x2x64xf32> to vector<2x64xf32>
    %cst_33 = arith.constant dense<0.000000e+00> : vector<18x64xf32>
    %46 = tpu.matmul %43, %45, %cst_33 {dimension_numbers = #tpu.dot_dimension_numbers<[1], [0], [0], [1], [0, 0, 1, 1], [], []>} : vector<18x2xf32>, vector<2x64xf32>, vector<18x64xf32> -> vector<18x64xf32>
    %47 = arith.addf %42, %46 : vector<18x64xf32>
    %48 = vector.broadcast %3 : vector<1x64xf32> to vector<18x64xf32>
    %49 = arith.addf %47, %48 : vector<18x64xf32>
    %cst_34 = arith.constant 0.00999999977 : f32
    %50 = vector.broadcast %cst_34 : f32 to vector<18x64xf32>
    %51 = arith.mulf %50, %49 : vector<18x64xf32>
    %52 = arith.maximumf %49, %51 : vector<18x64xf32>
    %53 = vector.extract_strided_slice %52 {offsets = [0, 0], sizes = [12, 64], strides = [1, 1]} : vector<18x64xf32> to vector<12x64xf32>
    %54 = vector.extract_strided_slice %4 {offsets = [0, 0, 0], sizes = [1, 64, 128], strides = [1, 1, 1]} : vector<7x64x128xf32> to vector<1x64x128xf32>
    %55 = vector.shape_cast %54 : vector<1x64x128xf32> to vector<64x128xf32>
    %cst_35 = arith.constant dense<0.000000e+00> : vector<12x128xf32>
    %56 = tpu.matmul %53, %55, %cst_35 {dimension_numbers = #tpu.dot_dimension_numbers<[1], [0], [0], [1], [0, 0, 1, 1], [], []>} : vector<12x64xf32>, vector<64x128xf32>, vector<12x128xf32> -> vector<12x128xf32>
    %57 = vector.extract_strided_slice %52 {offsets = [1, 0], sizes = [12, 64], strides = [1, 1]} : vector<18x64xf32> to vector<12x64xf32>
    %58 = vector.extract_strided_slice %4 {offsets = [1, 0, 0], sizes = [1, 64, 128], strides = [1, 1, 1]} : vector<7x64x128xf32> to vector<1x64x128xf32>
    %59 = vector.shape_cast %58 : vector<1x64x128xf32> to vector<64x128xf32>
    %cst_36 = arith.constant dense<0.000000e+00> : vector<12x128xf32>
    %60 = tpu.matmul %57, %59, %cst_36 {dimension_numbers = #tpu.dot_dimension_numbers<[1], [0], [0], [1], [0, 0, 1, 1], [], []>} : vector<12x64xf32>, vector<64x128xf32>, vector<12x128xf32> -> vector<12x128xf32>
    %61 = arith.addf %56, %60 : vector<12x128xf32>
    %62 = vector.extract_strided_slice %52 {offsets = [2, 0], sizes = [12, 64], strides = [1, 1]} : vector<18x64xf32> to vector<12x64xf32>
    %63 = vector.extract_strided_slice %4 {offsets = [2, 0, 0], sizes = [1, 64, 128], strides = [1, 1, 1]} : vector<7x64x128xf32> to vector<1x64x128xf32>
    %64 = vector.shape_cast %63 : vector<1x64x128xf32> to vector<64x128xf32>
    %cst_37 = arith.constant dense<0.000000e+00> : vector<12x128xf32>
    %65 = tpu.matmul %62, %64, %cst_37 {dimension_numbers = #tpu.dot_dimension_numbers<[1], [0], [0], [1], [0, 0, 1, 1], [], []>} : vector<12x64xf32>, vector<64x128xf32>, vector<12x128xf32> -> vector<12x128xf32>
    %66 = arith.addf %61, %65 : vector<12x128xf32>
    %67 = vector.extract_strided_slice %52 {offsets = [3, 0], sizes = [12, 64], strides = [1, 1]} : vector<18x64xf32> to vector<12x64xf32>
    %68 = vector.extract_strided_slice %4 {offsets = [3, 0, 0], sizes = [1, 64, 128], strides = [1, 1, 1]} : vector<7x64x128xf32> to vector<1x64x128xf32>
    %69 = vector.shape_cast %68 : vector<1x64x128xf32> to vector<64x128xf32>
    %cst_38 = arith.constant dense<0.000000e+00> : vector<12x128xf32>
    %70 = tpu.matmul %67, %69, %cst_38 {dimension_numbers = #tpu.dot_dimension_numbers<[1], [0], [0], [1], [0, 0, 1, 1], [], []>} : vector<12x64xf32>, vector<64x128xf32>, vector<12x128xf32> -> vector<12x128xf32>
    %71 = arith.addf %66, %70 : vector<12x128xf32>
    %72 = vector.extract_strided_slice %52 {offsets = [4, 0], sizes = [12, 64], strides = [1, 1]} : vector<18x64xf32> to vector<12x64xf32>
    %73 = vector.extract_strided_slice %4 {offsets = [4, 0, 0], sizes = [1, 64, 128], strides = [1, 1, 1]} : vector<7x64x128xf32> to vector<1x64x128xf32>
    %74 = vector.shape_cast %73 : vector<1x64x128xf32> to vector<64x128xf32>
    %cst_39 = arith.constant dense<0.000000e+00> : vector<12x128xf32>
    %75 = tpu.matmul %72, %74, %cst_39 {dimension_numbers = #tpu.dot_dimension_numbers<[1], [0], [0], [1], [0, 0, 1, 1], [], []>} : vector<12x64xf32>, vector<64x128xf32>, vector<12x128xf32> -> vector<12x128xf32>
    %76 = arith.addf %71, %75 : vector<12x128xf32>
    %77 = vector.extract_strided_slice %52 {offsets = [5, 0], sizes = [12, 64], strides = [1, 1]} : vector<18x64xf32> to vector<12x64xf32>
    %78 = vector.extract_strided_slice %4 {offsets = [5, 0, 0], sizes = [1, 64, 128], strides = [1, 1, 1]} : vector<7x64x128xf32> to vector<1x64x128xf32>
    %79 = vector.shape_cast %78 : vector<1x64x128xf32> to vector<64x128xf32>
    %cst_40 = arith.constant dense<0.000000e+00> : vector<12x128xf32>
    %80 = tpu.matmul %77, %79, %cst_40 {dimension_numbers = #tpu.dot_dimension_numbers<[1], [0], [0], [1], [0, 0, 1, 1], [], []>} : vector<12x64xf32>, vector<64x128xf32>, vector<12x128xf32> -> vector<12x128xf32>
    %81 = arith.addf %76, %80 : vector<12x128xf32>
    %82 = vector.extract_strided_slice %52 {offsets = [6, 0], sizes = [12, 64], strides = [1, 1]} : vector<18x64xf32> to vector<12x64xf32>
    %83 = vector.extract_strided_slice %4 {offsets = [6, 0, 0], sizes = [1, 64, 128], strides = [1, 1, 1]} : vector<7x64x128xf32> to vector<1x64x128xf32>
    %84 = vector.shape_cast %83 : vector<1x64x128xf32> to vector<64x128xf32>
    %cst_41 = arith.constant dense<0.000000e+00> : vector<12x128xf32>
    %85 = tpu.matmul %82, %84, %cst_41 {dimension_numbers = #tpu.dot_dimension_numbers<[1], [0], [0], [1], [0, 0, 1, 1], [], []>} : vector<12x64xf32>, vector<64x128xf32>, vector<12x128xf32> -> vector<12x128xf32>
    %86 = arith.addf %81, %85 : vector<12x128xf32>
    %87 = vector.broadcast %5 : vector<1x128xf32> to vector<12x128xf32>
    %88 = arith.addf %86, %87 : vector<12x128xf32>
    %cst_42 = arith.constant 0.00999999977 : f32
    %89 = vector.broadcast %cst_42 : f32 to vector<12x128xf32>
    %90 = arith.mulf %89, %88 : vector<12x128xf32>
    %91 = arith.maximumf %88, %90 : vector<12x128xf32>
    %92 = vector.extract_strided_slice %91 {offsets = [0, 0], sizes = [10, 128], strides = [1, 1]} : vector<12x128xf32> to vector<10x128xf32>
    %93 = vector.extract_strided_slice %91 {offsets = [1, 0], sizes = [10, 128], strides = [1, 1]} : vector<12x128xf32> to vector<10x128xf32>
    %94 = arith.maximumf %92, %93 : vector<10x128xf32>
    %95 = vector.extract_strided_slice %91 {offsets = [2, 0], sizes = [10, 128], strides = [1, 1]} : vector<12x128xf32> to vector<10x128xf32>
    %96 = arith.maximumf %94, %95 : vector<10x128xf32>
    %cst_43 = arith.constant dense<0.000000e+00> : vector<10x1024xf32>
    %97 = tpu.matmul %96, %6, %cst_43 {dimension_numbers = #tpu.dot_dimension_numbers<[1], [0], [0], [1], [0, 0, 1, 1], [], []>} : vector<10x128xf32>, vector<128x1024xf32>, vector<10x1024xf32> -> vector<10x1024xf32>
    %98 = vector.broadcast %8 : vector<1x1024xf32> to vector<10x1024xf32>
    %99 = arith.addf %97, %98 : vector<10x1024xf32>
    %cst_44 = arith.constant 0.000000e+00 : f32
    %100 = vector.broadcast %cst_44 : f32 to vector<1x256xf32>
    %cst_45 = arith.constant 0.000000e+00 : f32
    %101 = vector.broadcast %cst_45 : f32 to vector<1x256xf32>
    %102 = vector.extract_strided_slice %99 {offsets = [0, 0], sizes = [1, 1024], strides = [1, 1]} : vector<10x1024xf32> to vector<1x1024xf32>
    %cst_46 = arith.constant dense<0.000000e+00> : vector<1x1024xf32>
    %103 = tpu.matmul %100, %7, %cst_46 {dimension_numbers = #tpu.dot_dimension_numbers<[1], [0], [0], [1], [0, 0, 1, 1], [], []>} : vector<1x256xf32>, vector<256x1024xf32>, vector<1x1024xf32> -> vector<1x1024xf32>
    %104 = arith.addf %102, %103 : vector<1x1024xf32>
    %105 = vector.extract_strided_slice %104 {offsets = [0, 0], sizes = [1, 256], strides = [1, 1]} : vector<1x1024xf32> to vector<1x256xf32>
    %106 = arith.negf %105 : vector<1x256xf32>
    %107 = math.exp %106 : vector<1x256xf32>
    %cst_47 = arith.constant 1.000000e+00 : f32
    %108 = vector.broadcast %cst_47 : f32 to vector<1x256xf32>
    %109 = arith.addf %108, %107 : vector<1x256xf32>
    %110 = arith.divf %108, %109 : vector<1x256xf32>
    %111 = vector.extract_strided_slice %104 {offsets = [0, 256], sizes = [1, 256], strides = [1, 1]} : vector<1x1024xf32> to vector<1x256xf32>
    %112 = arith.negf %111 : vector<1x256xf32>
    %113 = math.exp %112 : vector<1x256xf32>
    %cst_48 = arith.constant 1.000000e+00 : f32
    %114 = vector.broadcast %cst_48 : f32 to vector<1x256xf32>
    %115 = arith.addf %114, %113 : vector<1x256xf32>
    %116 = arith.divf %114, %115 : vector<1x256xf32>
    %117 = vector.extract_strided_slice %104 {offsets = [0, 512], sizes = [1, 256], strides = [1, 1]} : vector<1x1024xf32> to vector<1x256xf32>
    %118 = math.tanh %117 : vector<1x256xf32>
    %119 = vector.extract_strided_slice %104 {offsets = [0, 768], sizes = [1, 256], strides = [1, 1]} : vector<1x1024xf32> to vector<1x256xf32>
    %120 = arith.negf %119 : vector<1x256xf32>
    %121 = math.exp %120 : vector<1x256xf32>
    %cst_49 = arith.constant 1.000000e+00 : f32
    %122 = vector.broadcast %cst_49 : f32 to vector<1x256xf32>
    %123 = arith.addf %122, %121 : vector<1x256xf32>
    %124 = arith.divf %122, %123 : vector<1x256xf32>
    %125 = arith.mulf %116, %101 : vector<1x256xf32>
    %126 = arith.mulf %110, %118 : vector<1x256xf32>
    %127 = arith.addf %125, %126 : vector<1x256xf32>
    %128 = math.tanh %127 : vector<1x256xf32>
    %129 = arith.mulf %124, %128 : vector<1x256xf32>
    %c0_50 = arith.constant 0 : index
    %c0_51 = arith.constant 0 : index
    %130 = vector.load %arg15[%c0_50, %c0_51] : memref<10x256xf32, #tpu.memory_space<vmem>>, vector<1x256xf32>
    tpu.vector_store %arg15[%c0_50, %c0_51], %129 {strides = array<i32>} : memref<10x256xf32, #tpu.memory_space<vmem>>, vector<1x256xf32>,
    %131 = vector.extract_strided_slice %99 {offsets = [1, 0], sizes = [1, 1024], strides = [1, 1]} : vector<10x1024xf32> to vector<1x1024xf32>
    %cst_52 = arith.constant dense<0.000000e+00> : vector<1x1024xf32>
    %132 = tpu.matmul %129, %7, %cst_52 {dimension_numbers = #tpu.dot_dimension_numbers<[1], [0], [0], [1], [0, 0, 1, 1], [], []>} : vector<1x256xf32>, vector<256x1024xf32>, vector<1x1024xf32> -> vector<1x1024xf32>
    %133 = arith.addf %131, %132 : vector<1x1024xf32>
    %134 = vector.extract_strided_slice %133 {offsets = [0, 0], sizes = [1, 256], strides = [1, 1]} : vector<1x1024xf32> to vector<1x256xf32>
    %135 = arith.negf %134 : vector<1x256xf32>
    %136 = math.exp %135 : vector<1x256xf32>
    %cst_53 = arith.constant 1.000000e+00 : f32
    %137 = vector.broadcast %cst_53 : f32 to vector<1x256xf32>
    %138 = arith.addf %137, %136 : vector<1x256xf32>
    %139 = arith.divf %137, %138 : vector<1x256xf32>
    %140 = vector.extract_strided_slice %133 {offsets = [0, 256], sizes = [1, 256], strides = [1, 1]} : vector<1x1024xf32> to vector<1x256xf32>
    %141 = arith.negf %140 : vector<1x256xf32>
    %142 = math.exp %141 : vector<1x256xf32>
    %cst_54 = arith.constant 1.000000e+00 : f32
    %143 = vector.broadcast %cst_54 : f32 to vector<1x256xf32>
    %144 = arith.addf %143, %142 : vector<1x256xf32>
    %145 = arith.divf %143, %144 : vector<1x256xf32>
    %146 = vector.extract_strided_slice %133 {offsets = [0, 512], sizes = [1, 256], strides = [1, 1]} : vector<1x1024xf32> to vector<1x256xf32>
    %147 = math.tanh %146 : vector<1x256xf32>
    %148 = vector.extract_strided_slice %133 {offsets = [0, 768], sizes = [1, 256], strides = [1, 1]} : vector<1x1024xf32> to vector<1x256xf32>
    %149 = arith.negf %148 : vector<1x256xf32>
    %150 = math.exp %149 : vector<1x256xf32>
    %cst_55 = arith.constant 1.000000e+00 : f32
    %151 = vector.broadcast %cst_55 : f32 to vector<1x256xf32>
    %152 = arith.addf %151, %150 : vector<1x256xf32>
    %153 = arith.divf %151, %152 : vector<1x256xf32>
    %154 = arith.mulf %145, %127 : vector<1x256xf32>
    %155 = arith.mulf %139, %147 : vector<1x256xf32>
    %156 = arith.addf %154, %155 : vector<1x256xf32>
    %157 = math.tanh %156 : vector<1x256xf32>
    %158 = arith.mulf %153, %157 : vector<1x256xf32>
    %c1 = arith.constant 1 : index
    %c0_56 = arith.constant 0 : index
    %159 = vector.load %arg15[%c1, %c0_56] : memref<10x256xf32, #tpu.memory_space<vmem>>, vector<1x256xf32>
    tpu.vector_store %arg15[%c1, %c0_56], %158 {strides = array<i32>} : memref<10x256xf32, #tpu.memory_space<vmem>>, vector<1x256xf32>,
    %160 = vector.extract_strided_slice %99 {offsets = [2, 0], sizes = [1, 1024], strides = [1, 1]} : vector<10x1024xf32> to vector<1x1024xf32>
    %cst_57 = arith.constant dense<0.000000e+00> : vector<1x1024xf32>
    %161 = tpu.matmul %158, %7, %cst_57 {dimension_numbers = #tpu.dot_dimension_numbers<[1], [0], [0], [1], [0, 0, 1, 1], [], []>} : vector<1x256xf32>, vector<256x1024xf32>, vector<1x1024xf32> -> vector<1x1024xf32>
    %162 = arith.addf %160, %161 : vector<1x1024xf32>
    %163 = vector.extract_strided_slice %162 {offsets = [0, 0], sizes = [1, 256], strides = [1, 1]} : vector<1x1024xf32> to vector<1x256xf32>
    %164 = arith.negf %163 : vector<1x256xf32>
    %165 = math.exp %164 : vector<1x256xf32>
    %cst_58 = arith.constant 1.000000e+00 : f32
    %166 = vector.broadcast %cst_58 : f32 to vector<1x256xf32>
    %167 = arith.addf %166, %165 : vector<1x256xf32>
    %168 = arith.divf %166, %167 : vector<1x256xf32>
    %169 = vector.extract_strided_slice %162 {offsets = [0, 256], sizes = [1, 256], strides = [1, 1]} : vector<1x1024xf32> to vector<1x256xf32>
    %170 = arith.negf %169 : vector<1x256xf32>
    %171 = math.exp %170 : vector<1x256xf32>
    %cst_59 = arith.constant 1.000000e+00 : f32
    %172 = vector.broadcast %cst_59 : f32 to vector<1x256xf32>
    %173 = arith.addf %172, %171 : vector<1x256xf32>
    %174 = arith.divf %172, %173 : vector<1x256xf32>
    %175 = vector.extract_strided_slice %162 {offsets = [0, 512], sizes = [1, 256], strides = [1, 1]} : vector<1x1024xf32> to vector<1x256xf32>
    %176 = math.tanh %175 : vector<1x256xf32>
    %177 = vector.extract_strided_slice %162 {offsets = [0, 768], sizes = [1, 256], strides = [1, 1]} : vector<1x1024xf32> to vector<1x256xf32>
    %178 = arith.negf %177 : vector<1x256xf32>
    %179 = math.exp %178 : vector<1x256xf32>
    %cst_60 = arith.constant 1.000000e+00 : f32
    %180 = vector.broadcast %cst_60 : f32 to vector<1x256xf32>
    %181 = arith.addf %180, %179 : vector<1x256xf32>
    %182 = arith.divf %180, %181 : vector<1x256xf32>
    %183 = arith.mulf %174, %156 : vector<1x256xf32>
    %184 = arith.mulf %168, %176 : vector<1x256xf32>
    %185 = arith.addf %183, %184 : vector<1x256xf32>
    %186 = math.tanh %185 : vector<1x256xf32>
    %187 = arith.mulf %182, %186 : vector<1x256xf32>
    %c2 = arith.constant 2 : index
    %c0_61 = arith.constant 0 : index
    %188 = vector.load %arg15[%c2, %c0_61] : memref<10x256xf32, #tpu.memory_space<vmem>>, vector<1x256xf32>
    tpu.vector_store %arg15[%c2, %c0_61], %187 {strides = array<i32>} : memref<10x256xf32, #tpu.memory_space<vmem>>, vector<1x256xf32>,
    %189 = vector.extract_strided_slice %99 {offsets = [3, 0], sizes = [1, 1024], strides = [1, 1]} : vector<10x1024xf32> to vector<1x1024xf32>
    %cst_62 = arith.constant dense<0.000000e+00> : vector<1x1024xf32>
    %190 = tpu.matmul %187, %7, %cst_62 {dimension_numbers = #tpu.dot_dimension_numbers<[1], [0], [0], [1], [0, 0, 1, 1], [], []>} : vector<1x256xf32>, vector<256x1024xf32>, vector<1x1024xf32> -> vector<1x1024xf32>
    %191 = arith.addf %189, %190 : vector<1x1024xf32>
    %192 = vector.extract_strided_slice %191 {offsets = [0, 0], sizes = [1, 256], strides = [1, 1]} : vector<1x1024xf32> to vector<1x256xf32>
    %193 = arith.negf %192 : vector<1x256xf32>
    %194 = math.exp %193 : vector<1x256xf32>
    %cst_63 = arith.constant 1.000000e+00 : f32
    %195 = vector.broadcast %cst_63 : f32 to vector<1x256xf32>
    %196 = arith.addf %195, %194 : vector<1x256xf32>
    %197 = arith.divf %195, %196 : vector<1x256xf32>
    %198 = vector.extract_strided_slice %191 {offsets = [0, 256], sizes = [1, 256], strides = [1, 1]} : vector<1x1024xf32> to vector<1x256xf32>
    %199 = arith.negf %198 : vector<1x256xf32>
    %200 = math.exp %199 : vector<1x256xf32>
    %cst_64 = arith.constant 1.000000e+00 : f32
    %201 = vector.broadcast %cst_64 : f32 to vector<1x256xf32>
    %202 = arith.addf %201, %200 : vector<1x256xf32>
    %203 = arith.divf %201, %202 : vector<1x256xf32>
    %204 = vector.extract_strided_slice %191 {offsets = [0, 512], sizes = [1, 256], strides = [1, 1]} : vector<1x1024xf32> to vector<1x256xf32>
    %205 = math.tanh %204 : vector<1x256xf32>
    %206 = vector.extract_strided_slice %191 {offsets = [0, 768], sizes = [1, 256], strides = [1, 1]} : vector<1x1024xf32> to vector<1x256xf32>
    %207 = arith.negf %206 : vector<1x256xf32>
    %208 = math.exp %207 : vector<1x256xf32>
    %cst_65 = arith.constant 1.000000e+00 : f32
    %209 = vector.broadcast %cst_65 : f32 to vector<1x256xf32>
    %210 = arith.addf %209, %208 : vector<1x256xf32>
    %211 = arith.divf %209, %210 : vector<1x256xf32>
    %212 = arith.mulf %203, %185 : vector<1x256xf32>
    %213 = arith.mulf %197, %205 : vector<1x256xf32>
    %214 = arith.addf %212, %213 : vector<1x256xf32>
    %215 = math.tanh %214 : vector<1x256xf32>
    %216 = arith.mulf %211, %215 : vector<1x256xf32>
    %c3 = arith.constant 3 : index
    %c0_66 = arith.constant 0 : index
    %217 = vector.load %arg15[%c3, %c0_66] : memref<10x256xf32, #tpu.memory_space<vmem>>, vector<1x256xf32>
    tpu.vector_store %arg15[%c3, %c0_66], %216 {strides = array<i32>} : memref<10x256xf32, #tpu.memory_space<vmem>>, vector<1x256xf32>,
    %218 = vector.extract_strided_slice %99 {offsets = [4, 0], sizes = [1, 1024], strides = [1, 1]} : vector<10x1024xf32> to vector<1x1024xf32>
    %cst_67 = arith.constant dense<0.000000e+00> : vector<1x1024xf32>
    %219 = tpu.matmul %216, %7, %cst_67 {dimension_numbers = #tpu.dot_dimension_numbers<[1], [0], [0], [1], [0, 0, 1, 1], [], []>} : vector<1x256xf32>, vector<256x1024xf32>, vector<1x1024xf32> -> vector<1x1024xf32>
    %220 = arith.addf %218, %219 : vector<1x1024xf32>
    %221 = vector.extract_strided_slice %220 {offsets = [0, 0], sizes = [1, 256], strides = [1, 1]} : vector<1x1024xf32> to vector<1x256xf32>
    %222 = arith.negf %221 : vector<1x256xf32>
    %223 = math.exp %222 : vector<1x256xf32>
    %cst_68 = arith.constant 1.000000e+00 : f32
    %224 = vector.broadcast %cst_68 : f32 to vector<1x256xf32>
    %225 = arith.addf %224, %223 : vector<1x256xf32>
    %226 = arith.divf %224, %225 : vector<1x256xf32>
    %227 = vector.extract_strided_slice %220 {offsets = [0, 256], sizes = [1, 256], strides = [1, 1]} : vector<1x1024xf32> to vector<1x256xf32>
    %228 = arith.negf %227 : vector<1x256xf32>
    %229 = math.exp %228 : vector<1x256xf32>
    %cst_69 = arith.constant 1.000000e+00 : f32
    %230 = vector.broadcast %cst_69 : f32 to vector<1x256xf32>
    %231 = arith.addf %230, %229 : vector<1x256xf32>
    %232 = arith.divf %230, %231 : vector<1x256xf32>
    %233 = vector.extract_strided_slice %220 {offsets = [0, 512], sizes = [1, 256], strides = [1, 1]} : vector<1x1024xf32> to vector<1x256xf32>
    %234 = math.tanh %233 : vector<1x256xf32>
    %235 = vector.extract_strided_slice %220 {offsets = [0, 768], sizes = [1, 256], strides = [1, 1]} : vector<1x1024xf32> to vector<1x256xf32>
    %236 = arith.negf %235 : vector<1x256xf32>
    %237 = math.exp %236 : vector<1x256xf32>
    %cst_70 = arith.constant 1.000000e+00 : f32
    %238 = vector.broadcast %cst_70 : f32 to vector<1x256xf32>
    %239 = arith.addf %238, %237 : vector<1x256xf32>
    %240 = arith.divf %238, %239 : vector<1x256xf32>
    %241 = arith.mulf %232, %214 : vector<1x256xf32>
    %242 = arith.mulf %226, %234 : vector<1x256xf32>
    %243 = arith.addf %241, %242 : vector<1x256xf32>
    %244 = math.tanh %243 : vector<1x256xf32>
    %245 = arith.mulf %240, %244 : vector<1x256xf32>
    %c4 = arith.constant 4 : index
    %c0_71 = arith.constant 0 : index
    %246 = vector.load %arg15[%c4, %c0_71] : memref<10x256xf32, #tpu.memory_space<vmem>>, vector<1x256xf32>
    tpu.vector_store %arg15[%c4, %c0_71], %245 {strides = array<i32>} : memref<10x256xf32, #tpu.memory_space<vmem>>, vector<1x256xf32>,
    %247 = vector.extract_strided_slice %99 {offsets = [5, 0], sizes = [1, 1024], strides = [1, 1]} : vector<10x1024xf32> to vector<1x1024xf32>
    %cst_72 = arith.constant dense<0.000000e+00> : vector<1x1024xf32>
    %248 = tpu.matmul %245, %7, %cst_72 {dimension_numbers = #tpu.dot_dimension_numbers<[1], [0], [0], [1], [0, 0, 1, 1], [], []>} : vector<1x256xf32>, vector<256x1024xf32>, vector<1x1024xf32> -> vector<1x1024xf32>
    %249 = arith.addf %247, %248 : vector<1x1024xf32>
    %250 = vector.extract_strided_slice %249 {offsets = [0, 0], sizes = [1, 256], strides = [1, 1]} : vector<1x1024xf32> to vector<1x256xf32>
    %251 = arith.negf %250 : vector<1x256xf32>
    %252 = math.exp %251 : vector<1x256xf32>
    %cst_73 = arith.constant 1.000000e+00 : f32
    %253 = vector.broadcast %cst_73 : f32 to vector<1x256xf32>
    %254 = arith.addf %253, %252 : vector<1x256xf32>
    %255 = arith.divf %253, %254 : vector<1x256xf32>
    %256 = vector.extract_strided_slice %249 {offsets = [0, 256], sizes = [1, 256], strides = [1, 1]} : vector<1x1024xf32> to vector<1x256xf32>
    %257 = arith.negf %256 : vector<1x256xf32>
    %258 = math.exp %257 : vector<1x256xf32>
    %cst_74 = arith.constant 1.000000e+00 : f32
    %259 = vector.broadcast %cst_74 : f32 to vector<1x256xf32>
    %260 = arith.addf %259, %258 : vector<1x256xf32>
    %261 = arith.divf %259, %260 : vector<1x256xf32>
    %262 = vector.extract_strided_slice %249 {offsets = [0, 512], sizes = [1, 256], strides = [1, 1]} : vector<1x1024xf32> to vector<1x256xf32>
    %263 = math.tanh %262 : vector<1x256xf32>
    %264 = vector.extract_strided_slice %249 {offsets = [0, 768], sizes = [1, 256], strides = [1, 1]} : vector<1x1024xf32> to vector<1x256xf32>
    %265 = arith.negf %264 : vector<1x256xf32>
    %266 = math.exp %265 : vector<1x256xf32>
    %cst_75 = arith.constant 1.000000e+00 : f32
    %267 = vector.broadcast %cst_75 : f32 to vector<1x256xf32>
    %268 = arith.addf %267, %266 : vector<1x256xf32>
    %269 = arith.divf %267, %268 : vector<1x256xf32>
    %270 = arith.mulf %261, %243 : vector<1x256xf32>
    %271 = arith.mulf %255, %263 : vector<1x256xf32>
    %272 = arith.addf %270, %271 : vector<1x256xf32>
    %273 = math.tanh %272 : vector<1x256xf32>
    %274 = arith.mulf %269, %273 : vector<1x256xf32>
    %c5 = arith.constant 5 : index
    %c0_76 = arith.constant 0 : index
    %275 = vector.load %arg15[%c5, %c0_76] : memref<10x256xf32, #tpu.memory_space<vmem>>, vector<1x256xf32>
    tpu.vector_store %arg15[%c5, %c0_76], %274 {strides = array<i32>} : memref<10x256xf32, #tpu.memory_space<vmem>>, vector<1x256xf32>,
    %276 = vector.extract_strided_slice %99 {offsets = [6, 0], sizes = [1, 1024], strides = [1, 1]} : vector<10x1024xf32> to vector<1x1024xf32>
    %cst_77 = arith.constant dense<0.000000e+00> : vector<1x1024xf32>
    %277 = tpu.matmul %274, %7, %cst_77 {dimension_numbers = #tpu.dot_dimension_numbers<[1], [0], [0], [1], [0, 0, 1, 1], [], []>} : vector<1x256xf32>, vector<256x1024xf32>, vector<1x1024xf32> -> vector<1x1024xf32>
    %278 = arith.addf %276, %277 : vector<1x1024xf32>
    %279 = vector.extract_strided_slice %278 {offsets = [0, 0], sizes = [1, 256], strides = [1, 1]} : vector<1x1024xf32> to vector<1x256xf32>
    %280 = arith.negf %279 : vector<1x256xf32>
    %281 = math.exp %280 : vector<1x256xf32>
    %cst_78 = arith.constant 1.000000e+00 : f32
    %282 = vector.broadcast %cst_78 : f32 to vector<1x256xf32>
    %283 = arith.addf %282, %281 : vector<1x256xf32>
    %284 = arith.divf %282, %283 : vector<1x256xf32>
    %285 = vector.extract_strided_slice %278 {offsets = [0, 256], sizes = [1, 256], strides = [1, 1]} : vector<1x1024xf32> to vector<1x256xf32>
    %286 = arith.negf %285 : vector<1x256xf32>
    %287 = math.exp %286 : vector<1x256xf32>
    %cst_79 = arith.constant 1.000000e+00 : f32
    %288 = vector.broadcast %cst_79 : f32 to vector<1x256xf32>
    %289 = arith.addf %288, %287 : vector<1x256xf32>
    %290 = arith.divf %288, %289 : vector<1x256xf32>
    %291 = vector.extract_strided_slice %278 {offsets = [0, 512], sizes = [1, 256], strides = [1, 1]} : vector<1x1024xf32> to vector<1x256xf32>
    %292 = math.tanh %291 : vector<1x256xf32>
    %293 = vector.extract_strided_slice %278 {offsets = [0, 768], sizes = [1, 256], strides = [1, 1]} : vector<1x1024xf32> to vector<1x256xf32>
    %294 = arith.negf %293 : vector<1x256xf32>
    %295 = math.exp %294 : vector<1x256xf32>
    %cst_80 = arith.constant 1.000000e+00 : f32
    %296 = vector.broadcast %cst_80 : f32 to vector<1x256xf32>
    %297 = arith.addf %296, %295 : vector<1x256xf32>
    %298 = arith.divf %296, %297 : vector<1x256xf32>
    %299 = arith.mulf %290, %272 : vector<1x256xf32>
    %300 = arith.mulf %284, %292 : vector<1x256xf32>
    %301 = arith.addf %299, %300 : vector<1x256xf32>
    %302 = math.tanh %301 : vector<1x256xf32>
    %303 = arith.mulf %298, %302 : vector<1x256xf32>
    %c6 = arith.constant 6 : index
    %c0_81 = arith.constant 0 : index
    %304 = vector.load %arg15[%c6, %c0_81] : memref<10x256xf32, #tpu.memory_space<vmem>>, vector<1x256xf32>
    tpu.vector_store %arg15[%c6, %c0_81], %303 {strides = array<i32>} : memref<10x256xf32, #tpu.memory_space<vmem>>, vector<1x256xf32>,
    %305 = vector.extract_strided_slice %99 {offsets = [7, 0], sizes = [1, 1024], strides = [1, 1]} : vector<10x1024xf32> to vector<1x1024xf32>
    %cst_82 = arith.constant dense<0.000000e+00> : vector<1x1024xf32>
    %306 = tpu.matmul %303, %7, %cst_82 {dimension_numbers = #tpu.dot_dimension_numbers<[1], [0], [0], [1], [0, 0, 1, 1], [], []>} : vector<1x256xf32>, vector<256x1024xf32>, vector<1x1024xf32> -> vector<1x1024xf32>
    %307 = arith.addf %305, %306 : vector<1x1024xf32>
    %308 = vector.extract_strided_slice %307 {offsets = [0, 0], sizes = [1, 256], strides = [1, 1]} : vector<1x1024xf32> to vector<1x256xf32>
    %309 = arith.negf %308 : vector<1x256xf32>
    %310 = math.exp %309 : vector<1x256xf32>
    %cst_83 = arith.constant 1.000000e+00 : f32
    %311 = vector.broadcast %cst_83 : f32 to vector<1x256xf32>
    %312 = arith.addf %311, %310 : vector<1x256xf32>
    %313 = arith.divf %311, %312 : vector<1x256xf32>
    %314 = vector.extract_strided_slice %307 {offsets = [0, 256], sizes = [1, 256], strides = [1, 1]} : vector<1x1024xf32> to vector<1x256xf32>
    %315 = arith.negf %314 : vector<1x256xf32>
    %316 = math.exp %315 : vector<1x256xf32>
    %cst_84 = arith.constant 1.000000e+00 : f32
    %317 = vector.broadcast %cst_84 : f32 to vector<1x256xf32>
    %318 = arith.addf %317, %316 : vector<1x256xf32>
    %319 = arith.divf %317, %318 : vector<1x256xf32>
    %320 = vector.extract_strided_slice %307 {offsets = [0, 512], sizes = [1, 256], strides = [1, 1]} : vector<1x1024xf32> to vector<1x256xf32>
    %321 = math.tanh %320 : vector<1x256xf32>
    %322 = vector.extract_strided_slice %307 {offsets = [0, 768], sizes = [1, 256], strides = [1, 1]} : vector<1x1024xf32> to vector<1x256xf32>
    %323 = arith.negf %322 : vector<1x256xf32>
    %324 = math.exp %323 : vector<1x256xf32>
    %cst_85 = arith.constant 1.000000e+00 : f32
    %325 = vector.broadcast %cst_85 : f32 to vector<1x256xf32>
    %326 = arith.addf %325, %324 : vector<1x256xf32>
    %327 = arith.divf %325, %326 : vector<1x256xf32>
    %328 = arith.mulf %319, %301 : vector<1x256xf32>
    %329 = arith.mulf %313, %321 : vector<1x256xf32>
    %330 = arith.addf %328, %329 : vector<1x256xf32>
    %331 = math.tanh %330 : vector<1x256xf32>
    %332 = arith.mulf %327, %331 : vector<1x256xf32>
    %c7 = arith.constant 7 : index
    %c0_86 = arith.constant 0 : index
    %333 = vector.load %arg15[%c7, %c0_86] : memref<10x256xf32, #tpu.memory_space<vmem>>, vector<1x256xf32>
    tpu.vector_store %arg15[%c7, %c0_86], %332 {strides = array<i32>} : memref<10x256xf32, #tpu.memory_space<vmem>>, vector<1x256xf32>,
    %334 = vector.extract_strided_slice %99 {offsets = [8, 0], sizes = [1, 1024], strides = [1, 1]} : vector<10x1024xf32> to vector<1x1024xf32>
    %cst_87 = arith.constant dense<0.000000e+00> : vector<1x1024xf32>
    %335 = tpu.matmul %332, %7, %cst_87 {dimension_numbers = #tpu.dot_dimension_numbers<[1], [0], [0], [1], [0, 0, 1, 1], [], []>} : vector<1x256xf32>, vector<256x1024xf32>, vector<1x1024xf32> -> vector<1x1024xf32>
    %336 = arith.addf %334, %335 : vector<1x1024xf32>
    %337 = vector.extract_strided_slice %336 {offsets = [0, 0], sizes = [1, 256], strides = [1, 1]} : vector<1x1024xf32> to vector<1x256xf32>
    %338 = arith.negf %337 : vector<1x256xf32>
    %339 = math.exp %338 : vector<1x256xf32>
    %cst_88 = arith.constant 1.000000e+00 : f32
    %340 = vector.broadcast %cst_88 : f32 to vector<1x256xf32>
    %341 = arith.addf %340, %339 : vector<1x256xf32>
    %342 = arith.divf %340, %341 : vector<1x256xf32>
    %343 = vector.extract_strided_slice %336 {offsets = [0, 256], sizes = [1, 256], strides = [1, 1]} : vector<1x1024xf32> to vector<1x256xf32>
    %344 = arith.negf %343 : vector<1x256xf32>
    %345 = math.exp %344 : vector<1x256xf32>
    %cst_89 = arith.constant 1.000000e+00 : f32
    %346 = vector.broadcast %cst_89 : f32 to vector<1x256xf32>
    %347 = arith.addf %346, %345 : vector<1x256xf32>
    %348 = arith.divf %346, %347 : vector<1x256xf32>
    %349 = vector.extract_strided_slice %336 {offsets = [0, 512], sizes = [1, 256], strides = [1, 1]} : vector<1x1024xf32> to vector<1x256xf32>
    %350 = math.tanh %349 : vector<1x256xf32>
    %351 = vector.extract_strided_slice %336 {offsets = [0, 768], sizes = [1, 256], strides = [1, 1]} : vector<1x1024xf32> to vector<1x256xf32>
    %352 = arith.negf %351 : vector<1x256xf32>
    %353 = math.exp %352 : vector<1x256xf32>
    %cst_90 = arith.constant 1.000000e+00 : f32
    %354 = vector.broadcast %cst_90 : f32 to vector<1x256xf32>
    %355 = arith.addf %354, %353 : vector<1x256xf32>
    %356 = arith.divf %354, %355 : vector<1x256xf32>
    %357 = arith.mulf %348, %330 : vector<1x256xf32>
    %358 = arith.mulf %342, %350 : vector<1x256xf32>
    %359 = arith.addf %357, %358 : vector<1x256xf32>
    %360 = math.tanh %359 : vector<1x256xf32>
    %361 = arith.mulf %356, %360 : vector<1x256xf32>
    %c8 = arith.constant 8 : index
    %c0_91 = arith.constant 0 : index
    %362 = vector.load %arg15[%c8, %c0_91] : memref<10x256xf32, #tpu.memory_space<vmem>>, vector<1x256xf32>
    tpu.vector_store %arg15[%c8, %c0_91], %361 {strides = array<i32>} : memref<10x256xf32, #tpu.memory_space<vmem>>, vector<1x256xf32>,
    %363 = vector.extract_strided_slice %99 {offsets = [9, 0], sizes = [1, 1024], strides = [1, 1]} : vector<10x1024xf32> to vector<1x1024xf32>
    %cst_92 = arith.constant dense<0.000000e+00> : vector<1x1024xf32>
    %364 = tpu.matmul %361, %7, %cst_92 {dimension_numbers = #tpu.dot_dimension_numbers<[1], [0], [0], [1], [0, 0, 1, 1], [], []>} : vector<1x256xf32>, vector<256x1024xf32>, vector<1x1024xf32> -> vector<1x1024xf32>
    %365 = arith.addf %363, %364 : vector<1x1024xf32>
    %366 = vector.extract_strided_slice %365 {offsets = [0, 0], sizes = [1, 256], strides = [1, 1]} : vector<1x1024xf32> to vector<1x256xf32>
    %367 = arith.negf %366 : vector<1x256xf32>
    %368 = math.exp %367 : vector<1x256xf32>
    %cst_93 = arith.constant 1.000000e+00 : f32
    %369 = vector.broadcast %cst_93 : f32 to vector<1x256xf32>
    %370 = arith.addf %369, %368 : vector<1x256xf32>
    %371 = arith.divf %369, %370 : vector<1x256xf32>
    %372 = vector.extract_strided_slice %365 {offsets = [0, 256], sizes = [1, 256], strides = [1, 1]} : vector<1x1024xf32> to vector<1x256xf32>
    %373 = arith.negf %372 : vector<1x256xf32>
    %374 = math.exp %373 : vector<1x256xf32>
    %cst_94 = arith.constant 1.000000e+00 : f32
    %375 = vector.broadcast %cst_94 : f32 to vector<1x256xf32>
    %376 = arith.addf %375, %374 : vector<1x256xf32>
    %377 = arith.divf %375, %376 : vector<1x256xf32>
    %378 = vector.extract_strided_slice %365 {offsets = [0, 512], sizes = [1, 256], strides = [1, 1]} : vector<1x1024xf32> to vector<1x256xf32>
    %379 = math.tanh %378 : vector<1x256xf32>
    %380 = vector.extract_strided_slice %365 {offsets = [0, 768], sizes = [1, 256], strides = [1, 1]} : vector<1x1024xf32> to vector<1x256xf32>
    %381 = arith.negf %380 : vector<1x256xf32>
    %382 = math.exp %381 : vector<1x256xf32>
    %cst_95 = arith.constant 1.000000e+00 : f32
    %383 = vector.broadcast %cst_95 : f32 to vector<1x256xf32>
    %384 = arith.addf %383, %382 : vector<1x256xf32>
    %385 = arith.divf %383, %384 : vector<1x256xf32>
    %386 = arith.mulf %377, %359 : vector<1x256xf32>
    %387 = arith.mulf %371, %379 : vector<1x256xf32>
    %388 = arith.addf %386, %387 : vector<1x256xf32>
    %389 = math.tanh %388 : vector<1x256xf32>
    %390 = arith.mulf %385, %389 : vector<1x256xf32>
    %c9 = arith.constant 9 : index
    %c0_96 = arith.constant 0 : index
    %391 = vector.load %arg15[%c9, %c0_96] : memref<10x256xf32, #tpu.memory_space<vmem>>, vector<1x256xf32>
    tpu.vector_store %arg15[%c9, %c0_96], %390 {strides = array<i32>} : memref<10x256xf32, #tpu.memory_space<vmem>>, vector<1x256xf32>,
    %c0_97 = arith.constant 0 : index
    %c0_98 = arith.constant 0 : index
    %392 = vector.load %arg15[%c0_97, %c0_98] : memref<10x256xf32, #tpu.memory_space<vmem>>, vector<10x256xf32>
    %cst_99 = arith.constant dense<0.000000e+00> : vector<10x512xf32>
    %393 = tpu.matmul %392, %9, %cst_99 {dimension_numbers = #tpu.dot_dimension_numbers<[1], [0], [0], [1], [0, 0, 1, 1], [], []>} : vector<10x256xf32>, vector<256x512xf32>, vector<10x512xf32> -> vector<10x512xf32>
    %394 = vector.broadcast %11 : vector<1x512xf32> to vector<10x512xf32>
    %395 = arith.addf %393, %394 : vector<10x512xf32>
    %cst_100 = arith.constant 0.000000e+00 : f32
    %396 = vector.broadcast %cst_100 : f32 to vector<1x128xf32>
    %cst_101 = arith.constant 0.000000e+00 : f32
    %397 = vector.broadcast %cst_101 : f32 to vector<1x128xf32>
    %398 = vector.extract_strided_slice %395 {offsets = [0, 0], sizes = [1, 512], strides = [1, 1]} : vector<10x512xf32> to vector<1x512xf32>
    %cst_102 = arith.constant dense<0.000000e+00> : vector<1x512xf32>
    %399 = tpu.matmul %396, %10, %cst_102 {dimension_numbers = #tpu.dot_dimension_numbers<[1], [0], [0], [1], [0, 0, 1, 1], [], []>} : vector<1x128xf32>, vector<128x512xf32>, vector<1x512xf32> -> vector<1x512xf32>
    %400 = arith.addf %398, %399 : vector<1x512xf32>
    %401 = vector.extract_strided_slice %400 {offsets = [0, 0], sizes = [1, 128], strides = [1, 1]} : vector<1x512xf32> to vector<1x128xf32>
    %402 = arith.negf %401 : vector<1x128xf32>
    %403 = math.exp %402 : vector<1x128xf32>
    %cst_103 = arith.constant 1.000000e+00 : f32
    %404 = vector.broadcast %cst_103 : f32 to vector<1x128xf32>
    %405 = arith.addf %404, %403 : vector<1x128xf32>
    %406 = arith.divf %404, %405 : vector<1x128xf32>
    %407 = vector.extract_strided_slice %400 {offsets = [0, 128], sizes = [1, 128], strides = [1, 1]} : vector<1x512xf32> to vector<1x128xf32>
    %408 = arith.negf %407 : vector<1x128xf32>
    %409 = math.exp %408 : vector<1x128xf32>
    %cst_104 = arith.constant 1.000000e+00 : f32
    %410 = vector.broadcast %cst_104 : f32 to vector<1x128xf32>
    %411 = arith.addf %410, %409 : vector<1x128xf32>
    %412 = arith.divf %410, %411 : vector<1x128xf32>
    %413 = vector.extract_strided_slice %400 {offsets = [0, 256], sizes = [1, 128], strides = [1, 1]} : vector<1x512xf32> to vector<1x128xf32>
    %414 = math.tanh %413 : vector<1x128xf32>
    %415 = vector.extract_strided_slice %400 {offsets = [0, 384], sizes = [1, 128], strides = [1, 1]} : vector<1x512xf32> to vector<1x128xf32>
    %416 = arith.negf %415 : vector<1x128xf32>
    %417 = math.exp %416 : vector<1x128xf32>
    %cst_105 = arith.constant 1.000000e+00 : f32
    %418 = vector.broadcast %cst_105 : f32 to vector<1x128xf32>
    %419 = arith.addf %418, %417 : vector<1x128xf32>
    %420 = arith.divf %418, %419 : vector<1x128xf32>
    %421 = arith.mulf %412, %397 : vector<1x128xf32>
    %422 = arith.mulf %406, %414 : vector<1x128xf32>
    %423 = arith.addf %421, %422 : vector<1x128xf32>
    %424 = math.tanh %423 : vector<1x128xf32>
    %425 = arith.mulf %420, %424 : vector<1x128xf32>
    %c0_106 = arith.constant 0 : index
    %c0_107 = arith.constant 0 : index
    %426 = vector.load %arg16[%c0_106, %c0_107] : memref<10x128xf32, #tpu.memory_space<vmem>>, vector<1x128xf32>
    tpu.vector_store %arg16[%c0_106, %c0_107], %425 {strides = array<i32>} : memref<10x128xf32, #tpu.memory_space<vmem>>, vector<1x128xf32>,
    %427 = vector.extract_strided_slice %395 {offsets = [1, 0], sizes = [1, 512], strides = [1, 1]} : vector<10x512xf32> to vector<1x512xf32>
    %cst_108 = arith.constant dense<0.000000e+00> : vector<1x512xf32>
    %428 = tpu.matmul %425, %10, %cst_108 {dimension_numbers = #tpu.dot_dimension_numbers<[1], [0], [0], [1], [0, 0, 1, 1], [], []>} : vector<1x128xf32>, vector<128x512xf32>, vector<1x512xf32> -> vector<1x512xf32>
    %429 = arith.addf %427, %428 : vector<1x512xf32>
    %430 = vector.extract_strided_slice %429 {offsets = [0, 0], sizes = [1, 128], strides = [1, 1]} : vector<1x512xf32> to vector<1x128xf32>
    %431 = arith.negf %430 : vector<1x128xf32>
    %432 = math.exp %431 : vector<1x128xf32>
    %cst_109 = arith.constant 1.000000e+00 : f32
    %433 = vector.broadcast %cst_109 : f32 to vector<1x128xf32>
    %434 = arith.addf %433, %432 : vector<1x128xf32>
    %435 = arith.divf %433, %434 : vector<1x128xf32>
    %436 = vector.extract_strided_slice %429 {offsets = [0, 128], sizes = [1, 128], strides = [1, 1]} : vector<1x512xf32> to vector<1x128xf32>
    %437 = arith.negf %436 : vector<1x128xf32>
    %438 = math.exp %437 : vector<1x128xf32>
    %cst_110 = arith.constant 1.000000e+00 : f32
    %439 = vector.broadcast %cst_110 : f32 to vector<1x128xf32>
    %440 = arith.addf %439, %438 : vector<1x128xf32>
    %441 = arith.divf %439, %440 : vector<1x128xf32>
    %442 = vector.extract_strided_slice %429 {offsets = [0, 256], sizes = [1, 128], strides = [1, 1]} : vector<1x512xf32> to vector<1x128xf32>
    %443 = math.tanh %442 : vector<1x128xf32>
    %444 = vector.extract_strided_slice %429 {offsets = [0, 384], sizes = [1, 128], strides = [1, 1]} : vector<1x512xf32> to vector<1x128xf32>
    %445 = arith.negf %444 : vector<1x128xf32>
    %446 = math.exp %445 : vector<1x128xf32>
    %cst_111 = arith.constant 1.000000e+00 : f32
    %447 = vector.broadcast %cst_111 : f32 to vector<1x128xf32>
    %448 = arith.addf %447, %446 : vector<1x128xf32>
    %449 = arith.divf %447, %448 : vector<1x128xf32>
    %450 = arith.mulf %441, %423 : vector<1x128xf32>
    %451 = arith.mulf %435, %443 : vector<1x128xf32>
    %452 = arith.addf %450, %451 : vector<1x128xf32>
    %453 = math.tanh %452 : vector<1x128xf32>
    %454 = arith.mulf %449, %453 : vector<1x128xf32>
    %c1_112 = arith.constant 1 : index
    %c0_113 = arith.constant 0 : index
    %455 = vector.load %arg16[%c1_112, %c0_113] : memref<10x128xf32, #tpu.memory_space<vmem>>, vector<1x128xf32>
    tpu.vector_store %arg16[%c1_112, %c0_113], %454 {strides = array<i32>} : memref<10x128xf32, #tpu.memory_space<vmem>>, vector<1x128xf32>,
    %456 = vector.extract_strided_slice %395 {offsets = [2, 0], sizes = [1, 512], strides = [1, 1]} : vector<10x512xf32> to vector<1x512xf32>
    %cst_114 = arith.constant dense<0.000000e+00> : vector<1x512xf32>
    %457 = tpu.matmul %454, %10, %cst_114 {dimension_numbers = #tpu.dot_dimension_numbers<[1], [0], [0], [1], [0, 0, 1, 1], [], []>} : vector<1x128xf32>, vector<128x512xf32>, vector<1x512xf32> -> vector<1x512xf32>
    %458 = arith.addf %456, %457 : vector<1x512xf32>
    %459 = vector.extract_strided_slice %458 {offsets = [0, 0], sizes = [1, 128], strides = [1, 1]} : vector<1x512xf32> to vector<1x128xf32>
    %460 = arith.negf %459 : vector<1x128xf32>
    %461 = math.exp %460 : vector<1x128xf32>
    %cst_115 = arith.constant 1.000000e+00 : f32
    %462 = vector.broadcast %cst_115 : f32 to vector<1x128xf32>
    %463 = arith.addf %462, %461 : vector<1x128xf32>
    %464 = arith.divf %462, %463 : vector<1x128xf32>
    %465 = vector.extract_strided_slice %458 {offsets = [0, 128], sizes = [1, 128], strides = [1, 1]} : vector<1x512xf32> to vector<1x128xf32>
    %466 = arith.negf %465 : vector<1x128xf32>
    %467 = math.exp %466 : vector<1x128xf32>
    %cst_116 = arith.constant 1.000000e+00 : f32
    %468 = vector.broadcast %cst_116 : f32 to vector<1x128xf32>
    %469 = arith.addf %468, %467 : vector<1x128xf32>
    %470 = arith.divf %468, %469 : vector<1x128xf32>
    %471 = vector.extract_strided_slice %458 {offsets = [0, 256], sizes = [1, 128], strides = [1, 1]} : vector<1x512xf32> to vector<1x128xf32>
    %472 = math.tanh %471 : vector<1x128xf32>
    %473 = vector.extract_strided_slice %458 {offsets = [0, 384], sizes = [1, 128], strides = [1, 1]} : vector<1x512xf32> to vector<1x128xf32>
    %474 = arith.negf %473 : vector<1x128xf32>
    %475 = math.exp %474 : vector<1x128xf32>
    %cst_117 = arith.constant 1.000000e+00 : f32
    %476 = vector.broadcast %cst_117 : f32 to vector<1x128xf32>
    %477 = arith.addf %476, %475 : vector<1x128xf32>
    %478 = arith.divf %476, %477 : vector<1x128xf32>
    %479 = arith.mulf %470, %452 : vector<1x128xf32>
    %480 = arith.mulf %464, %472 : vector<1x128xf32>
    %481 = arith.addf %479, %480 : vector<1x128xf32>
    %482 = math.tanh %481 : vector<1x128xf32>
    %483 = arith.mulf %478, %482 : vector<1x128xf32>
    %c2_118 = arith.constant 2 : index
    %c0_119 = arith.constant 0 : index
    %484 = vector.load %arg16[%c2_118, %c0_119] : memref<10x128xf32, #tpu.memory_space<vmem>>, vector<1x128xf32>
    tpu.vector_store %arg16[%c2_118, %c0_119], %483 {strides = array<i32>} : memref<10x128xf32, #tpu.memory_space<vmem>>, vector<1x128xf32>,
    %485 = vector.extract_strided_slice %395 {offsets = [3, 0], sizes = [1, 512], strides = [1, 1]} : vector<10x512xf32> to vector<1x512xf32>
    %cst_120 = arith.constant dense<0.000000e+00> : vector<1x512xf32>
    %486 = tpu.matmul %483, %10, %cst_120 {dimension_numbers = #tpu.dot_dimension_numbers<[1], [0], [0], [1], [0, 0, 1, 1], [], []>} : vector<1x128xf32>, vector<128x512xf32>, vector<1x512xf32> -> vector<1x512xf32>
    %487 = arith.addf %485, %486 : vector<1x512xf32>
    %488 = vector.extract_strided_slice %487 {offsets = [0, 0], sizes = [1, 128], strides = [1, 1]} : vector<1x512xf32> to vector<1x128xf32>
    %489 = arith.negf %488 : vector<1x128xf32>
    %490 = math.exp %489 : vector<1x128xf32>
    %cst_121 = arith.constant 1.000000e+00 : f32
    %491 = vector.broadcast %cst_121 : f32 to vector<1x128xf32>
    %492 = arith.addf %491, %490 : vector<1x128xf32>
    %493 = arith.divf %491, %492 : vector<1x128xf32>
    %494 = vector.extract_strided_slice %487 {offsets = [0, 128], sizes = [1, 128], strides = [1, 1]} : vector<1x512xf32> to vector<1x128xf32>
    %495 = arith.negf %494 : vector<1x128xf32>
    %496 = math.exp %495 : vector<1x128xf32>
    %cst_122 = arith.constant 1.000000e+00 : f32
    %497 = vector.broadcast %cst_122 : f32 to vector<1x128xf32>
    %498 = arith.addf %497, %496 : vector<1x128xf32>
    %499 = arith.divf %497, %498 : vector<1x128xf32>
    %500 = vector.extract_strided_slice %487 {offsets = [0, 256], sizes = [1, 128], strides = [1, 1]} : vector<1x512xf32> to vector<1x128xf32>
    %501 = math.tanh %500 : vector<1x128xf32>
    %502 = vector.extract_strided_slice %487 {offsets = [0, 384], sizes = [1, 128], strides = [1, 1]} : vector<1x512xf32> to vector<1x128xf32>
    %503 = arith.negf %502 : vector<1x128xf32>
    %504 = math.exp %503 : vector<1x128xf32>
    %cst_123 = arith.constant 1.000000e+00 : f32
    %505 = vector.broadcast %cst_123 : f32 to vector<1x128xf32>
    %506 = arith.addf %505, %504 : vector<1x128xf32>
    %507 = arith.divf %505, %506 : vector<1x128xf32>
    %508 = arith.mulf %499, %481 : vector<1x128xf32>
    %509 = arith.mulf %493, %501 : vector<1x128xf32>
    %510 = arith.addf %508, %509 : vector<1x128xf32>
    %511 = math.tanh %510 : vector<1x128xf32>
    %512 = arith.mulf %507, %511 : vector<1x128xf32>
    %c3_124 = arith.constant 3 : index
    %c0_125 = arith.constant 0 : index
    %513 = vector.load %arg16[%c3_124, %c0_125] : memref<10x128xf32, #tpu.memory_space<vmem>>, vector<1x128xf32>
    tpu.vector_store %arg16[%c3_124, %c0_125], %512 {strides = array<i32>} : memref<10x128xf32, #tpu.memory_space<vmem>>, vector<1x128xf32>,
    %514 = vector.extract_strided_slice %395 {offsets = [4, 0], sizes = [1, 512], strides = [1, 1]} : vector<10x512xf32> to vector<1x512xf32>
    %cst_126 = arith.constant dense<0.000000e+00> : vector<1x512xf32>
    %515 = tpu.matmul %512, %10, %cst_126 {dimension_numbers = #tpu.dot_dimension_numbers<[1], [0], [0], [1], [0, 0, 1, 1], [], []>} : vector<1x128xf32>, vector<128x512xf32>, vector<1x512xf32> -> vector<1x512xf32>
    %516 = arith.addf %514, %515 : vector<1x512xf32>
    %517 = vector.extract_strided_slice %516 {offsets = [0, 0], sizes = [1, 128], strides = [1, 1]} : vector<1x512xf32> to vector<1x128xf32>
    %518 = arith.negf %517 : vector<1x128xf32>
    %519 = math.exp %518 : vector<1x128xf32>
    %cst_127 = arith.constant 1.000000e+00 : f32
    %520 = vector.broadcast %cst_127 : f32 to vector<1x128xf32>
    %521 = arith.addf %520, %519 : vector<1x128xf32>
    %522 = arith.divf %520, %521 : vector<1x128xf32>
    %523 = vector.extract_strided_slice %516 {offsets = [0, 128], sizes = [1, 128], strides = [1, 1]} : vector<1x512xf32> to vector<1x128xf32>
    %524 = arith.negf %523 : vector<1x128xf32>
    %525 = math.exp %524 : vector<1x128xf32>
    %cst_128 = arith.constant 1.000000e+00 : f32
    %526 = vector.broadcast %cst_128 : f32 to vector<1x128xf32>
    %527 = arith.addf %526, %525 : vector<1x128xf32>
    %528 = arith.divf %526, %527 : vector<1x128xf32>
    %529 = vector.extract_strided_slice %516 {offsets = [0, 256], sizes = [1, 128], strides = [1, 1]} : vector<1x512xf32> to vector<1x128xf32>
    %530 = math.tanh %529 : vector<1x128xf32>
    %531 = vector.extract_strided_slice %516 {offsets = [0, 384], sizes = [1, 128], strides = [1, 1]} : vector<1x512xf32> to vector<1x128xf32>
    %532 = arith.negf %531 : vector<1x128xf32>
    %533 = math.exp %532 : vector<1x128xf32>
    %cst_129 = arith.constant 1.000000e+00 : f32
    %534 = vector.broadcast %cst_129 : f32 to vector<1x128xf32>
    %535 = arith.addf %534, %533 : vector<1x128xf32>
    %536 = arith.divf %534, %535 : vector<1x128xf32>
    %537 = arith.mulf %528, %510 : vector<1x128xf32>
    %538 = arith.mulf %522, %530 : vector<1x128xf32>
    %539 = arith.addf %537, %538 : vector<1x128xf32>
    %540 = math.tanh %539 : vector<1x128xf32>
    %541 = arith.mulf %536, %540 : vector<1x128xf32>
    %c4_130 = arith.constant 4 : index
    %c0_131 = arith.constant 0 : index
    %542 = vector.load %arg16[%c4_130, %c0_131] : memref<10x128xf32, #tpu.memory_space<vmem>>, vector<1x128xf32>
    tpu.vector_store %arg16[%c4_130, %c0_131], %541 {strides = array<i32>} : memref<10x128xf32, #tpu.memory_space<vmem>>, vector<1x128xf32>,
    %543 = vector.extract_strided_slice %395 {offsets = [5, 0], sizes = [1, 512], strides = [1, 1]} : vector<10x512xf32> to vector<1x512xf32>
    %cst_132 = arith.constant dense<0.000000e+00> : vector<1x512xf32>
    %544 = tpu.matmul %541, %10, %cst_132 {dimension_numbers = #tpu.dot_dimension_numbers<[1], [0], [0], [1], [0, 0, 1, 1], [], []>} : vector<1x128xf32>, vector<128x512xf32>, vector<1x512xf32> -> vector<1x512xf32>
    %545 = arith.addf %543, %544 : vector<1x512xf32>
    %546 = vector.extract_strided_slice %545 {offsets = [0, 0], sizes = [1, 128], strides = [1, 1]} : vector<1x512xf32> to vector<1x128xf32>
    %547 = arith.negf %546 : vector<1x128xf32>
    %548 = math.exp %547 : vector<1x128xf32>
    %cst_133 = arith.constant 1.000000e+00 : f32
    %549 = vector.broadcast %cst_133 : f32 to vector<1x128xf32>
    %550 = arith.addf %549, %548 : vector<1x128xf32>
    %551 = arith.divf %549, %550 : vector<1x128xf32>
    %552 = vector.extract_strided_slice %545 {offsets = [0, 128], sizes = [1, 128], strides = [1, 1]} : vector<1x512xf32> to vector<1x128xf32>
    %553 = arith.negf %552 : vector<1x128xf32>
    %554 = math.exp %553 : vector<1x128xf32>
    %cst_134 = arith.constant 1.000000e+00 : f32
    %555 = vector.broadcast %cst_134 : f32 to vector<1x128xf32>
    %556 = arith.addf %555, %554 : vector<1x128xf32>
    %557 = arith.divf %555, %556 : vector<1x128xf32>
    %558 = vector.extract_strided_slice %545 {offsets = [0, 256], sizes = [1, 128], strides = [1, 1]} : vector<1x512xf32> to vector<1x128xf32>
    %559 = math.tanh %558 : vector<1x128xf32>
    %560 = vector.extract_strided_slice %545 {offsets = [0, 384], sizes = [1, 128], strides = [1, 1]} : vector<1x512xf32> to vector<1x128xf32>
    %561 = arith.negf %560 : vector<1x128xf32>
    %562 = math.exp %561 : vector<1x128xf32>
    %cst_135 = arith.constant 1.000000e+00 : f32
    %563 = vector.broadcast %cst_135 : f32 to vector<1x128xf32>
    %564 = arith.addf %563, %562 : vector<1x128xf32>
    %565 = arith.divf %563, %564 : vector<1x128xf32>
    %566 = arith.mulf %557, %539 : vector<1x128xf32>
    %567 = arith.mulf %551, %559 : vector<1x128xf32>
    %568 = arith.addf %566, %567 : vector<1x128xf32>
    %569 = math.tanh %568 : vector<1x128xf32>
    %570 = arith.mulf %565, %569 : vector<1x128xf32>
    %c5_136 = arith.constant 5 : index
    %c0_137 = arith.constant 0 : index
    %571 = vector.load %arg16[%c5_136, %c0_137] : memref<10x128xf32, #tpu.memory_space<vmem>>, vector<1x128xf32>
    tpu.vector_store %arg16[%c5_136, %c0_137], %570 {strides = array<i32>} : memref<10x128xf32, #tpu.memory_space<vmem>>, vector<1x128xf32>,
    %572 = vector.extract_strided_slice %395 {offsets = [6, 0], sizes = [1, 512], strides = [1, 1]} : vector<10x512xf32> to vector<1x512xf32>
    %cst_138 = arith.constant dense<0.000000e+00> : vector<1x512xf32>
    %573 = tpu.matmul %570, %10, %cst_138 {dimension_numbers = #tpu.dot_dimension_numbers<[1], [0], [0], [1], [0, 0, 1, 1], [], []>} : vector<1x128xf32>, vector<128x512xf32>, vector<1x512xf32> -> vector<1x512xf32>
    %574 = arith.addf %572, %573 : vector<1x512xf32>
    %575 = vector.extract_strided_slice %574 {offsets = [0, 0], sizes = [1, 128], strides = [1, 1]} : vector<1x512xf32> to vector<1x128xf32>
    %576 = arith.negf %575 : vector<1x128xf32>
    %577 = math.exp %576 : vector<1x128xf32>
    %cst_139 = arith.constant 1.000000e+00 : f32
    %578 = vector.broadcast %cst_139 : f32 to vector<1x128xf32>
    %579 = arith.addf %578, %577 : vector<1x128xf32>
    %580 = arith.divf %578, %579 : vector<1x128xf32>
    %581 = vector.extract_strided_slice %574 {offsets = [0, 128], sizes = [1, 128], strides = [1, 1]} : vector<1x512xf32> to vector<1x128xf32>
    %582 = arith.negf %581 : vector<1x128xf32>
    %583 = math.exp %582 : vector<1x128xf32>
    %cst_140 = arith.constant 1.000000e+00 : f32
    %584 = vector.broadcast %cst_140 : f32 to vector<1x128xf32>
    %585 = arith.addf %584, %583 : vector<1x128xf32>
    %586 = arith.divf %584, %585 : vector<1x128xf32>
    %587 = vector.extract_strided_slice %574 {offsets = [0, 256], sizes = [1, 128], strides = [1, 1]} : vector<1x512xf32> to vector<1x128xf32>
    %588 = math.tanh %587 : vector<1x128xf32>
    %589 = vector.extract_strided_slice %574 {offsets = [0, 384], sizes = [1, 128], strides = [1, 1]} : vector<1x512xf32> to vector<1x128xf32>
    %590 = arith.negf %589 : vector<1x128xf32>
    %591 = math.exp %590 : vector<1x128xf32>
    %cst_141 = arith.constant 1.000000e+00 : f32
    %592 = vector.broadcast %cst_141 : f32 to vector<1x128xf32>
    %593 = arith.addf %592, %591 : vector<1x128xf32>
    %594 = arith.divf %592, %593 : vector<1x128xf32>
    %595 = arith.mulf %586, %568 : vector<1x128xf32>
    %596 = arith.mulf %580, %588 : vector<1x128xf32>
    %597 = arith.addf %595, %596 : vector<1x128xf32>
    %598 = math.tanh %597 : vector<1x128xf32>
    %599 = arith.mulf %594, %598 : vector<1x128xf32>
    %c6_142 = arith.constant 6 : index
    %c0_143 = arith.constant 0 : index
    %600 = vector.load %arg16[%c6_142, %c0_143] : memref<10x128xf32, #tpu.memory_space<vmem>>, vector<1x128xf32>
    tpu.vector_store %arg16[%c6_142, %c0_143], %599 {strides = array<i32>} : memref<10x128xf32, #tpu.memory_space<vmem>>, vector<1x128xf32>,
    %601 = vector.extract_strided_slice %395 {offsets = [7, 0], sizes = [1, 512], strides = [1, 1]} : vector<10x512xf32> to vector<1x512xf32>
    %cst_144 = arith.constant dense<0.000000e+00> : vector<1x512xf32>
    %602 = tpu.matmul %599, %10, %cst_144 {dimension_numbers = #tpu.dot_dimension_numbers<[1], [0], [0], [1], [0, 0, 1, 1], [], []>} : vector<1x128xf32>, vector<128x512xf32>, vector<1x512xf32> -> vector<1x512xf32>
    %603 = arith.addf %601, %602 : vector<1x512xf32>
    %604 = vector.extract_strided_slice %603 {offsets = [0, 0], sizes = [1, 128], strides = [1, 1]} : vector<1x512xf32> to vector<1x128xf32>
    %605 = arith.negf %604 : vector<1x128xf32>
    %606 = math.exp %605 : vector<1x128xf32>
    %cst_145 = arith.constant 1.000000e+00 : f32
    %607 = vector.broadcast %cst_145 : f32 to vector<1x128xf32>
    %608 = arith.addf %607, %606 : vector<1x128xf32>
    %609 = arith.divf %607, %608 : vector<1x128xf32>
    %610 = vector.extract_strided_slice %603 {offsets = [0, 128], sizes = [1, 128], strides = [1, 1]} : vector<1x512xf32> to vector<1x128xf32>
    %611 = arith.negf %610 : vector<1x128xf32>
    %612 = math.exp %611 : vector<1x128xf32>
    %cst_146 = arith.constant 1.000000e+00 : f32
    %613 = vector.broadcast %cst_146 : f32 to vector<1x128xf32>
    %614 = arith.addf %613, %612 : vector<1x128xf32>
    %615 = arith.divf %613, %614 : vector<1x128xf32>
    %616 = vector.extract_strided_slice %603 {offsets = [0, 256], sizes = [1, 128], strides = [1, 1]} : vector<1x512xf32> to vector<1x128xf32>
    %617 = math.tanh %616 : vector<1x128xf32>
    %618 = vector.extract_strided_slice %603 {offsets = [0, 384], sizes = [1, 128], strides = [1, 1]} : vector<1x512xf32> to vector<1x128xf32>
    %619 = arith.negf %618 : vector<1x128xf32>
    %620 = math.exp %619 : vector<1x128xf32>
    %cst_147 = arith.constant 1.000000e+00 : f32
    %621 = vector.broadcast %cst_147 : f32 to vector<1x128xf32>
    %622 = arith.addf %621, %620 : vector<1x128xf32>
    %623 = arith.divf %621, %622 : vector<1x128xf32>
    %624 = arith.mulf %615, %597 : vector<1x128xf32>
    %625 = arith.mulf %609, %617 : vector<1x128xf32>
    %626 = arith.addf %624, %625 : vector<1x128xf32>
    %627 = math.tanh %626 : vector<1x128xf32>
    %628 = arith.mulf %623, %627 : vector<1x128xf32>
    %c7_148 = arith.constant 7 : index
    %c0_149 = arith.constant 0 : index
    %629 = vector.load %arg16[%c7_148, %c0_149] : memref<10x128xf32, #tpu.memory_space<vmem>>, vector<1x128xf32>
    tpu.vector_store %arg16[%c7_148, %c0_149], %628 {strides = array<i32>} : memref<10x128xf32, #tpu.memory_space<vmem>>, vector<1x128xf32>,
    %630 = vector.extract_strided_slice %395 {offsets = [8, 0], sizes = [1, 512], strides = [1, 1]} : vector<10x512xf32> to vector<1x512xf32>
    %cst_150 = arith.constant dense<0.000000e+00> : vector<1x512xf32>
    %631 = tpu.matmul %628, %10, %cst_150 {dimension_numbers = #tpu.dot_dimension_numbers<[1], [0], [0], [1], [0, 0, 1, 1], [], []>} : vector<1x128xf32>, vector<128x512xf32>, vector<1x512xf32> -> vector<1x512xf32>
    %632 = arith.addf %630, %631 : vector<1x512xf32>
    %633 = vector.extract_strided_slice %632 {offsets = [0, 0], sizes = [1, 128], strides = [1, 1]} : vector<1x512xf32> to vector<1x128xf32>
    %634 = arith.negf %633 : vector<1x128xf32>
    %635 = math.exp %634 : vector<1x128xf32>
    %cst_151 = arith.constant 1.000000e+00 : f32
    %636 = vector.broadcast %cst_151 : f32 to vector<1x128xf32>
    %637 = arith.addf %636, %635 : vector<1x128xf32>
    %638 = arith.divf %636, %637 : vector<1x128xf32>
    %639 = vector.extract_strided_slice %632 {offsets = [0, 128], sizes = [1, 128], strides = [1, 1]} : vector<1x512xf32> to vector<1x128xf32>
    %640 = arith.negf %639 : vector<1x128xf32>
    %641 = math.exp %640 : vector<1x128xf32>
    %cst_152 = arith.constant 1.000000e+00 : f32
    %642 = vector.broadcast %cst_152 : f32 to vector<1x128xf32>
    %643 = arith.addf %642, %641 : vector<1x128xf32>
    %644 = arith.divf %642, %643 : vector<1x128xf32>
    %645 = vector.extract_strided_slice %632 {offsets = [0, 256], sizes = [1, 128], strides = [1, 1]} : vector<1x512xf32> to vector<1x128xf32>
    %646 = math.tanh %645 : vector<1x128xf32>
    %647 = vector.extract_strided_slice %632 {offsets = [0, 384], sizes = [1, 128], strides = [1, 1]} : vector<1x512xf32> to vector<1x128xf32>
    %648 = arith.negf %647 : vector<1x128xf32>
    %649 = math.exp %648 : vector<1x128xf32>
    %cst_153 = arith.constant 1.000000e+00 : f32
    %650 = vector.broadcast %cst_153 : f32 to vector<1x128xf32>
    %651 = arith.addf %650, %649 : vector<1x128xf32>
    %652 = arith.divf %650, %651 : vector<1x128xf32>
    %653 = arith.mulf %644, %626 : vector<1x128xf32>
    %654 = arith.mulf %638, %646 : vector<1x128xf32>
    %655 = arith.addf %653, %654 : vector<1x128xf32>
    %656 = math.tanh %655 : vector<1x128xf32>
    %657 = arith.mulf %652, %656 : vector<1x128xf32>
    %c8_154 = arith.constant 8 : index
    %c0_155 = arith.constant 0 : index
    %658 = vector.load %arg16[%c8_154, %c0_155] : memref<10x128xf32, #tpu.memory_space<vmem>>, vector<1x128xf32>
    tpu.vector_store %arg16[%c8_154, %c0_155], %657 {strides = array<i32>} : memref<10x128xf32, #tpu.memory_space<vmem>>, vector<1x128xf32>,
    %659 = vector.extract_strided_slice %395 {offsets = [9, 0], sizes = [1, 512], strides = [1, 1]} : vector<10x512xf32> to vector<1x512xf32>
    %cst_156 = arith.constant dense<0.000000e+00> : vector<1x512xf32>
    %660 = tpu.matmul %657, %10, %cst_156 {dimension_numbers = #tpu.dot_dimension_numbers<[1], [0], [0], [1], [0, 0, 1, 1], [], []>} : vector<1x128xf32>, vector<128x512xf32>, vector<1x512xf32> -> vector<1x512xf32>
    %661 = arith.addf %659, %660 : vector<1x512xf32>
    %662 = vector.extract_strided_slice %661 {offsets = [0, 0], sizes = [1, 128], strides = [1, 1]} : vector<1x512xf32> to vector<1x128xf32>
    %663 = arith.negf %662 : vector<1x128xf32>
    %664 = math.exp %663 : vector<1x128xf32>
    %cst_157 = arith.constant 1.000000e+00 : f32
    %665 = vector.broadcast %cst_157 : f32 to vector<1x128xf32>
    %666 = arith.addf %665, %664 : vector<1x128xf32>
    %667 = arith.divf %665, %666 : vector<1x128xf32>
    %668 = vector.extract_strided_slice %661 {offsets = [0, 128], sizes = [1, 128], strides = [1, 1]} : vector<1x512xf32> to vector<1x128xf32>
    %669 = arith.negf %668 : vector<1x128xf32>
    %670 = math.exp %669 : vector<1x128xf32>
    %cst_158 = arith.constant 1.000000e+00 : f32
    %671 = vector.broadcast %cst_158 : f32 to vector<1x128xf32>
    %672 = arith.addf %671, %670 : vector<1x128xf32>
    %673 = arith.divf %671, %672 : vector<1x128xf32>
    %674 = vector.extract_strided_slice %661 {offsets = [0, 256], sizes = [1, 128], strides = [1, 1]} : vector<1x512xf32> to vector<1x128xf32>
    %675 = math.tanh %674 : vector<1x128xf32>
    %676 = vector.extract_strided_slice %661 {offsets = [0, 384], sizes = [1, 128], strides = [1, 1]} : vector<1x512xf32> to vector<1x128xf32>
    %677 = arith.negf %676 : vector<1x128xf32>
    %678 = math.exp %677 : vector<1x128xf32>
    %cst_159 = arith.constant 1.000000e+00 : f32
    %679 = vector.broadcast %cst_159 : f32 to vector<1x128xf32>
    %680 = arith.addf %679, %678 : vector<1x128xf32>
    %681 = arith.divf %679, %680 : vector<1x128xf32>
    %682 = arith.mulf %673, %655 : vector<1x128xf32>
    %683 = arith.mulf %667, %675 : vector<1x128xf32>
    %684 = arith.addf %682, %683 : vector<1x128xf32>
    %685 = math.tanh %684 : vector<1x128xf32>
    %686 = arith.mulf %681, %685 : vector<1x128xf32>
    %c9_160 = arith.constant 9 : index
    %c0_161 = arith.constant 0 : index
    %687 = vector.load %arg16[%c9_160, %c0_161] : memref<10x128xf32, #tpu.memory_space<vmem>>, vector<1x128xf32>
    tpu.vector_store %arg16[%c9_160, %c0_161], %686 {strides = array<i32>} : memref<10x128xf32, #tpu.memory_space<vmem>>, vector<1x128xf32>,
    %c0_162 = arith.constant 0 : index
    %c0_163 = arith.constant 0 : index
    %688 = vector.load %arg16[%c0_162, %c0_163] : memref<10x128xf32, #tpu.memory_space<vmem>>, vector<10x128xf32>
    %cst_164 = arith.constant dense<0.000000e+00> : vector<10x10xf32>
    %689 = tpu.matmul %688, %688, %cst_164 {dimension_numbers = #tpu.dot_dimension_numbers<[1], [1], [0], [0], [0, 0, 1, 0], [], []>} : vector<10x128xf32>, vector<10x128xf32>, vector<10x10xf32> -> vector<10x10xf32>
    %cst_165 = arith.constant 0.0883883461 : f32
    %690 = vector.broadcast %cst_165 : f32 to vector<10x10xf32>
    %691 = arith.mulf %689, %690 : vector<10x10xf32>
    %cst_166 = arith.constant dense<0xFF800000> : vector<10xf32>
    %692 = vector.multi_reduction <maximumf>, %691, %cst_166 [1] : vector<10x10xf32> to vector<10xf32>
    %693 = vector.shape_cast %692 : vector<10xf32> to vector<10x1xf32>
    %694 = vector.broadcast %693 : vector<10x1xf32> to vector<10x10xf32>
    %695 = arith.subf %691, %694 : vector<10x10xf32>
    %696 = math.exp %695 : vector<10x10xf32>
    %cst_167 = arith.constant dense<0.000000e+00> : vector<10xf32>
    %697 = vector.multi_reduction <add>, %696, %cst_167 [1] : vector<10x10xf32> to vector<10xf32>
    %698 = vector.shape_cast %697 : vector<10xf32> to vector<10x1xf32>
    %699 = vector.broadcast %698 : vector<10x1xf32> to vector<10x10xf32>
    %700 = arith.divf %696, %699 : vector<10x10xf32>
    %cst_168 = arith.constant dense<0.000000e+00> : vector<10xf32>
    %701 = vector.multi_reduction <add>, %700, %cst_168 [0] : vector<10x10xf32> to vector<10xf32>
    %702 = vector.shape_cast %701 : vector<10xf32> to vector<1x10xf32>
    %cst_169 = arith.constant dense<0.000000e+00> : vector<1x128xf32>
    %703 = tpu.matmul %702, %688, %cst_169 {dimension_numbers = #tpu.dot_dimension_numbers<[1], [0], [0], [1], [0, 0, 1, 1], [], []>} : vector<1x10xf32>, vector<10x128xf32>, vector<1x128xf32> -> vector<1x128xf32>
    %cst_170 = arith.constant dense<0.000000e+00> : vector<1x64xf32>
    %704 = tpu.matmul %703, %12, %cst_170 {dimension_numbers = #tpu.dot_dimension_numbers<[1], [0], [0], [1], [0, 0, 1, 1], [], []>} : vector<1x128xf32>, vector<128x64xf32>, vector<1x64xf32> -> vector<1x64xf32>
    %705 = arith.addf %704, %13 : vector<1x64xf32>
    %c0_171 = arith.constant 0 : index
    %c0_172 = arith.constant 0 : index
    %c0_173 = arith.constant 0 : index
    %706 = vector.load %arg14[%c0_171, %c0_172, %c0_173] : memref<1x1x64xf32, #tpu.memory_space<vmem>>, vector<1x1x64xf32>
    %707 = vector.shape_cast %706 : vector<1x1x64xf32> to vector<1x64xf32>
    %708 = vector.shape_cast %705 : vector<1x64xf32> to vector<1x1x64xf32>
    tpu.vector_store %arg14[%c0_171, %c0_172, %c0_173], %708 {strides = array<i32>} : memref<1x1x64xf32, #tpu.memory_space<vmem>>, vector<1x1x64xf32>,
    return
  }
  func.func @transform_0(%arg0: i32) -> (i32, i32, i32) {
    %c0_i32 = arith.constant 0 : i32
    %c0_i32_0 = arith.constant 0 : i32
    %c0_i32_1 = arith.constant 0 : i32
    return %arg0, %c0_i32, %c0_i32_0 : i32, i32, i32
  }
  func.func @transform_1(%arg0: i32) -> (i32, i32, i32) {
    %c0_i32 = arith.constant 0 : i32
    %c0_i32_0 = arith.constant 0 : i32
    %c0_i32_1 = arith.constant 0 : i32
    %c0_i32_2 = arith.constant 0 : i32
    return %c0_i32, %c0_i32_0, %c0_i32_1 : i32, i32, i32
  }
  func.func @transform_2(%arg0: i32) -> (i32, i32) {
    %c0_i32 = arith.constant 0 : i32
    %c0_i32_0 = arith.constant 0 : i32
    %c0_i32_1 = arith.constant 0 : i32
    return %c0_i32, %c0_i32_0 : i32, i32
  }
  func.func @transform_3(%arg0: i32) -> (i32, i32, i32) {
    %c0_i32 = arith.constant 0 : i32
    %c0_i32_0 = arith.constant 0 : i32
    %c0_i32_1 = arith.constant 0 : i32
    %c0_i32_2 = arith.constant 0 : i32
    return %c0_i32, %c0_i32_0, %c0_i32_1 : i32, i32, i32
  }
  func.func @transform_4(%arg0: i32) -> (i32, i32) {
    %c0_i32 = arith.constant 0 : i32
    %c0_i32_0 = arith.constant 0 : i32
    %c0_i32_1 = arith.constant 0 : i32
    return %c0_i32, %c0_i32_0 : i32, i32
  }
  func.func @transform_5(%arg0: i32) -> (i32, i32) {
    %c0_i32 = arith.constant 0 : i32
    %c0_i32_0 = arith.constant 0 : i32
    %c0_i32_1 = arith.constant 0 : i32
    return %c0_i32, %c0_i32_0 : i32, i32
  }
  func.func @transform_6(%arg0: i32) -> (i32, i32) {
    %c0_i32 = arith.constant 0 : i32
    %c0_i32_0 = arith.constant 0 : i32
    %c0_i32_1 = arith.constant 0 : i32
    return %c0_i32, %c0_i32_0 : i32, i32
  }
  func.func @transform_7(%arg0: i32) -> (i32, i32) {
    %c0_i32 = arith.constant 0 : i32
    %c0_i32_0 = arith.constant 0 : i32
    %c0_i32_1 = arith.constant 0 : i32
    return %c0_i32, %c0_i32_0 : i32, i32
  }
  func.func @transform_8(%arg0: i32) -> (i32, i32) {
    %c0_i32 = arith.constant 0 : i32
    %c0_i32_0 = arith.constant 0 : i32
    %c0_i32_1 = arith.constant 0 : i32
    return %c0_i32, %c0_i32_0 : i32, i32
  }
  func.func @transform_9(%arg0: i32) -> (i32, i32) {
    %c0_i32 = arith.constant 0 : i32
    %c0_i32_0 = arith.constant 0 : i32
    %c0_i32_1 = arith.constant 0 : i32
    return %c0_i32, %c0_i32_0 : i32, i32
  }
  func.func @transform_10(%arg0: i32) -> (i32, i32) {
    %c0_i32 = arith.constant 0 : i32
    %c0_i32_0 = arith.constant 0 : i32
    %c0_i32_1 = arith.constant 0 : i32
    return %c0_i32, %c0_i32_0 : i32, i32
  }
  func.func @transform_11(%arg0: i32) -> (i32, i32) {
    %c0_i32 = arith.constant 0 : i32
    %c0_i32_0 = arith.constant 0 : i32
    %c0_i32_1 = arith.constant 0 : i32
    return %c0_i32, %c0_i32_0 : i32, i32
  }
  func.func @transform_12(%arg0: i32) -> (i32, i32) {
    %c0_i32 = arith.constant 0 : i32
    %c0_i32_0 = arith.constant 0 : i32
    %c0_i32_1 = arith.constant 0 : i32
    return %c0_i32, %c0_i32_0 : i32, i32
  }
  func.func @transform_13(%arg0: i32) -> (i32, i32, i32) {
    %c0_i32 = arith.constant 0 : i32
    %c0_i32_0 = arith.constant 0 : i32
    %c0_i32_1 = arith.constant 0 : i32
    return %arg0, %c0_i32, %c0_i32_0 : i32, i32, i32
  }
}

</mosaic_0001>

<llo_original>
// kernel: cnn_lstm_forward.1
$region0: #{cnn_lstm_forward.1}
  #allocation0 [shape = 'u32[]', space=smem, size = 0x4, offset = 0x4, fixed_abs, tag = 'smem constant byte address 0x4 - core index']
  #allocation1 [shape = 'u32[72,128]{1,0:T(1,128)}', space=vmem, size = 0x9000, scoped, tag = 'internal scratch']
  #allocation2 [shape = 'f32[10,256]{1,0:T(8,128)}', space=vmem, size = 0x4000, scoped, tag = 'scratch operand']
  #allocation3 [shape = 'f32[10,128]{1,0:T(8,128)}', space=vmem, size = 0x2000, scoped, tag = 'scratch operand']
  %s0 = inlined_call_operand.vmem [shape: f32[2,24,2], index: 0, kind: input, shape index: {}]
  %s1 = inlined_call_operand.vmem [shape: f32[7,2,64], index: 1, kind: input, shape index: {}]
  %s2 = inlined_call_operand.vmem [shape: f32[1,64], index: 2, kind: input, shape index: {}]
  %s3 = inlined_call_operand.hbm [shape: f32[7,64,128], index: 3, kind: input, shape index: {}]
  %s4 = inlined_call_operand.vmem [shape: f32[1,128], index: 4, kind: input, shape index: {}]
  %s5 = inlined_call_operand.hbm [shape: f32[128,1024], index: 5, kind: input, shape index: {}]
  %s6 = inlined_call_operand.hbm [shape: f32[256,1024], index: 6, kind: input, shape index: {}]
  %s7 = inlined_call_operand.vmem [shape: f32[1,1024], index: 7, kind: input, shape index: {}]
  %s8 = inlined_call_operand.hbm [shape: f32[256,512], index: 8, kind: input, shape index: {}]
  %s9 = inlined_call_operand.hbm [shape: f32[128,512], index: 9, kind: input, shape index: {}]
  %s10 = inlined_call_operand.vmem [shape: f32[1,512], index: 10, kind: input, shape index: {}]
  %s11 = inlined_call_operand.vmem [shape: f32[128,64], index: 11, kind: input, shape index: {}]
  %s12 = inlined_call_operand.vmem [shape: f32[1,64], index: 12, kind: input, shape index: {}]
  %s13 = inlined_call_operand.hbm [shape: f32[2,1,64], index: 13, kind: output, shape index: {}]
  %s14 = sld [smem:[#allocation0]]
  $region105: #{cnn_lstm_forward.1} parent=0
    _
  %s16 = ssub.s32 1, %s14
  %s17 = scalar_select 0, %s16, %s14
  $region1: #{cnn_lstm_forward.1} parent=0
    #allocation4 [shape = 'u8[229376]{0}', space=vmem, size = 0x38000, scoped, tag = 'input window, operand 3, single buffered']
    #allocation5 [shape = 's32[2]{0}', space=sflag, size = 0x8, scoped, tag = 'scoped memory for cnn_lstm_forward.1']
    #allocation6 [shape = 's32[2]{0}', space=sflag, size = 0x8, scoped, tag = 'scoped memory for cnn_lstm_forward.1']
    #allocation7 [shape = 'u8[524288]{0}', space=vmem, size = 0x80000, scoped, tag = 'input window, operand 5, single buffered']
    #allocation8 [shape = 's32[1]{0}', space=sflag, size = 0x4, scoped, tag = 'scoped memory for cnn_lstm_forward.1']
    #allocation9 [shape = 'u8[1048576]{0}', space=vmem, size = 0x100000, scoped, tag = 'input window, operand 6, single buffered']
    #allocation10 [shape = 'u8[524288]{0}', space=vmem, size = 0x80000, scoped, tag = 'input window, operand 8, single buffered']
    #allocation11 [shape = 's32[1]{0}', space=sflag, size = 0x4, scoped, tag = 'scoped memory for cnn_lstm_forward.1']
    #allocation12 [shape = 'u8[262144]{0}', space=vmem, size = 0x40000, scoped, tag = 'input window, operand 9, single buffered']
    #allocation13 [shape = 'u8[1024]{0}', space=vmem, size = 0x400, scoped, tag = 'output window, operand 0']
    %18 = vsyncpa [#allocation5], 0
    %19 = vsyncpa [#allocation8], 0
    %20 = vsyncpa [#allocation11], 0
    %21 = vsyncpa [#allocation6], 0
    %s22 = scalar_lea.sflag [#allocation6], 1
    %23 = vsyncpa %s22, 0
    loop: start=0, step=1, limit=4
    $region2: #{cnn_lstm_forward.1} parent=1 // loop_pre_header
      _
    $region3: #{cnn_lstm_forward.1} parent=1 // loop_header
      %s25 = sphi 0, %s29
      %p26 = scmp.ge.s32.totalorder %s25, 4
      %s35 = sphi 0, %s37
      %s38 = sphi 0, %s35
      %s39 = sphi 0, %s38
      %s55 = sphi 0, %s39
      %s59 = sphi 0, %s59
      %s61 = sphi 0, %s59
      %s62 = sphi 0, %s61
      %s76 = sphi 0, %s62
      %s80 = sphi 0, %s80
      %s82 = sphi 0, %s80
      %s83 = sphi 0, %s82
      %s97 = sphi 0, %s83
      %s101 = sphi 0, %s101
      %s103 = sphi 0, %s101
      %s104 = sphi 0, %s103
      %s118 = sphi 0, %s104
      %s122 = sphi 0, %s122
      %s124 = sphi 0, %s122
      %s125 = sphi 0, %s124
      %s139 = sphi 0, %s125
      %s143 = sphi 0, %s143
      %s145 = sphi 0, %s143
      %s146 = sphi 0, %s145
      %s160 = sphi 0, %s146
      %s164 = sphi 0, %s164
      %s166 = sphi 0, %s164
      %s167 = sphi 0, %s166
      %s181 = sphi 0, %s167
      %s185 = sphi 0, %s185
      %s187 = sphi 0, %s185
      %s188 = sphi 0, %s187
      %s202 = sphi 0, %s188
      %s206 = sphi 0, %s206
      %s208 = sphi 0, %s206
      %s209 = sphi 0, %s208
      %s223 = sphi 0, %s209
      %s227 = sphi 0, %s227
      %s229 = sphi 0, %s227
      %s230 = sphi 0, %s229
      %s244 = sphi 0, %s230
      %s248 = sphi 0, %s248
      %s250 = sphi 0, %s248
      %s251 = sphi 0, %s250
      %s265 = sphi 0, %s251
      %s269 = sphi 0, %s269
      %s271 = sphi 0, %s269
      %s272 = sphi 0, %s271
      %s286 = sphi 0, %s272
      %s290 = sphi 0, %s290
      %s292 = sphi 0, %s290
      %s293 = sphi 0, %s292
      %s307 = sphi 0, %s293
      %s313 = sphi 0, %s315
      %s316 = sphi 0, %s313
      %s317 = sphi 0, %s316
      %s333 = sphi 0, %s317
    $region4: #{cnn_lstm_forward.1} parent=1 // loop_header_branch
      %28 = sbr.rel (%p26) target = $region8
    $region5: #{cnn_lstm_forward.1} parent=1 // loop_body
      %s30 = ssub.s32 %s25, 1
      %s31 = ssub.s32 %s25, 2
      %s32 = sadd.s32 %s25, 1
      %s33 = ssub.s32 %s25, %s32
      %p34 = scmp.eq.s32.totalorder %s33, 0
      %s36 = sadd.s32 %s35, 1
      %s37 = scalar_select %p34, %s35, %s36
      %p40 = pneg %p34
      %p41 = scmp.eq.s32.totalorder %s25, 1
      %p42 = por %p40, %p41
      %p43 = scmp.ne.s32.totalorder %s35, %s38
      %p44 = scmp.eq.s32.totalorder %s25, 0
      %p45 = por %p43, %p44
      %p46 = scmp.ne.s32.totalorder %s35, %s38
      %p47 = scmp.eq.s32.totalorder %s30, 1
      %p48 = por %p46, %p47
      %p49 = scmp.ne.s32.totalorder %s38, %s39
      %p50 = scmp.eq.s32.totalorder %s30, 0
      %p51 = por %p49, %p50
      %p52 = scmp.ne.s32.totalorder %s38, %s39
      %p53 = scmp.eq.s32.totalorder %s31, 1
      %p54 = por %p52, %p53
      %p56 = scmp.ne.s32.totalorder %s39, %s55
      %p57 = scmp.eq.s32.totalorder %s31, 0
      %p58 = por %p56, %p57
      %s60 = sadd.s32 %s59, 1
      %p63 = scmp.eq.s32.totalorder %s25, 1
      %p64 = scmp.ne.s32.totalorder %s59, %s61
      %p65 = scmp.eq.s32.totalorder %s25, 0
      %p66 = por %p64, %p65
      %p67 = scmp.ne.s32.totalorder %s59, %s61
      %p68 = scmp.eq.s32.totalorder %s30, 1
      %p69 = por %p67, %p68
      %p70 = scmp.ne.s32.totalorder %s61, %s62
      %p71 = scmp.eq.s32.totalorder %s30, 0
      %p72 = por %p70, %p71
      %p73 = scmp.ne.s32.totalorder %s61, %s62
      %p74 = scmp.eq.s32.totalorder %s31, 1
      %p75 = por %p73, %p74
      %p77 = scmp.ne.s32.totalorder %s62, %s76
      %p78 = scmp.eq.s32.totalorder %s31, 0
      %p79 = por %p77, %p78
      %s81 = sadd.s32 %s80, 1
      %p84 = scmp.eq.s32.totalorder %s25, 1
      %p85 = scmp.ne.s32.totalorder %s80, %s82
      %p86 = scmp.eq.s32.totalorder %s25, 0
      %p87 = por %p85, %p86
      %p88 = scmp.ne.s32.totalorder %s80, %s82
      %p89 = scmp.eq.s32.totalorder %s30, 1
      %p90 = por %p88, %p89
      %p91 = scmp.ne.s32.totalorder %s82, %s83
      %p92 = scmp.eq.s32.totalorder %s30, 0
      %p93 = por %p91, %p92
      %p94 = scmp.ne.s32.totalorder %s82, %s83
      %p95 = scmp.eq.s32.totalorder %s31, 1
      %p96 = por %p94, %p95
      %p98 = scmp.ne.s32.totalorder %s83, %s97
      %p99 = scmp.eq.s32.totalorder %s31, 0
      %p100 = por %p98, %p99
      %s102 = sadd.s32 %s101, 1
      %p105 = scmp.eq.s32.totalorder %s25, 1
      %p106 = scmp.ne.s32.totalorder %s101, %s103
      %p107 = scmp.eq.s32.totalorder %s25, 0
      %p108 = por %p106, %p107
      %p109 = scmp.ne.s32.totalorder %s101, %s103
      %p110 = scmp.eq.s32.totalorder %s30, 1
      %p111 = por %p109, %p110
      %p112 = scmp.ne.s32.totalorder %s103, %s104
      %p113 = scmp.eq.s32.totalorder %s30, 0
      %p114 = por %p112, %p113
      %p115 = scmp.ne.s32.totalorder %s103, %s104
      %p116 = scmp.eq.s32.totalorder %s31, 1
      %p117 = por %p115, %p116
      %p119 = scmp.ne.s32.totalorder %s104, %s118
      %p120 = scmp.eq.s32.totalorder %s31, 0
      %p121 = por %p119, %p120
      %s123 = sadd.s32 %s122, 1
      %p126 = scmp.eq.s32.totalorder %s25, 1
      %p127 = scmp.ne.s32.totalorder %s122, %s124
      %p128 = scmp.eq.s32.totalorder %s25, 0
      %p129 = por %p127, %p128
      %p130 = scmp.ne.s32.totalorder %s122, %s124
      %p131 = scmp.eq.s32.totalorder %s30, 1
      %p132 = por %p130, %p131
      %p133 = scmp.ne.s32.totalorder %s124, %s125
      %p134 = scmp.eq.s32.totalorder %s30, 0
      %p135 = por %p133, %p134
      %p136 = scmp.ne.s32.totalorder %s124, %s125
      %p137 = scmp.eq.s32.totalorder %s31, 1
      %p138 = por %p136, %p137
      %p140 = scmp.ne.s32.totalorder %s125, %s139
      %p141 = scmp.eq.s32.totalorder %s31, 0
      %p142 = por %p140, %p141
      %s144 = sadd.s32 %s143, 1
      %p147 = scmp.eq.s32.totalorder %s25, 1
      %p148 = scmp.ne.s32.totalorder %s143, %s145
      %p149 = scmp.eq.s32.totalorder %s25, 0
      %p150 = por %p148, %p149
      %p151 = scmp.ne.s32.totalorder %s143, %s145
      %p152 = scmp.eq.s32.totalorder %s30, 1
      %p153 = por %p151, %p152
      %p154 = scmp.ne.s32.totalorder %s145, %s146
      %p155 = scmp.eq.s32.totalorder %s30, 0
      %p156 = por %p154, %p155
      %p157 = scmp.ne.s32.totalorder %s145, %s146
      %p158 = scmp.eq.s32.totalorder %s31, 1
      %p159 = por %p157, %p158
      %p161 = scmp.ne.s32.totalorder %s146, %s160
      %p162 = scmp.eq.s32.totalorder %s31, 0
      %p163 = por %p161, %p162
      %s165 = sadd.s32 %s164, 1
      %p168 = scmp.eq.s32.totalorder %s25, 1
      %p169 = scmp.ne.s32.totalorder %s164, %s166
      %p170 = scmp.eq.s32.totalorder %s25, 0
      %p171 = por %p169, %p170
      %p172 = scmp.ne.s32.totalorder %s164, %s166
      %p173 = scmp.eq.s32.totalorder %s30, 1
      %p174 = por %p172, %p173
      %p175 = scmp.ne.s32.totalorder %s166, %s167
      %p176 = scmp.eq.s32.totalorder %s30, 0
      %p177 = por %p175, %p176
      %p178 = scmp.ne.s32.totalorder %s166, %s167
      %p179 = scmp.eq.s32.totalorder %s31, 1
      %p180 = por %p178, %p179
      %p182 = scmp.ne.s32.totalorder %s167, %s181
      %p183 = scmp.eq.s32.totalorder %s31, 0
      %p184 = por %p182, %p183
      %s186 = sadd.s32 %s185, 1
      %p189 = scmp.eq.s32.totalorder %s25, 1
      %p190 = scmp.ne.s32.totalorder %s185, %s187
      %p191 = scmp.eq.s32.totalorder %s25, 0
      %p192 = por %p190, %p191
      %p193 = scmp.ne.s32.totalorder %s185, %s187
      %p194 = scmp.eq.s32.totalorder %s30, 1
      %p195 = por %p193, %p194
      %p196 = scmp.ne.s32.totalorder %s187, %s188
      %p197 = scmp.eq.s32.totalorder %s30, 0
      %p198 = por %p196, %p197
      %p199 = scmp.ne.s32.totalorder %s187, %s188
      %p200 = scmp.eq.s32.totalorder %s31, 1
      %p201 = por %p199, %p200
      %p203 = scmp.ne.s32.totalorder %s188, %s202
      %p204 = scmp.eq.s32.totalorder %s31, 0
      %p205 = por %p203, %p204
      %s207 = sadd.s32 %s206, 1
      %p210 = scmp.eq.s32.totalorder %s25, 1
      %p211 = scmp.ne.s32.totalorder %s206, %s208
      %p212 = scmp.eq.s32.totalorder %s25, 0
      %p213 = por %p211, %p212
      %p214 = scmp.ne.s32.totalorder %s206, %s208
      %p215 = scmp.eq.s32.totalorder %s30, 1
      %p216 = por %p214, %p215
      %p217 = scmp.ne.s32.totalorder %s208, %s209
      %p218 = scmp.eq.s32.totalorder %s30, 0
      %p219 = por %p217, %p218
      %p220 = scmp.ne.s32.totalorder %s208, %s209
      %p221 = scmp.eq.s32.totalorder %s31, 1
      %p222 = por %p220, %p221
      %p224 = scmp.ne.s32.totalorder %s209, %s223
      %p225 = scmp.eq.s32.totalorder %s31, 0
      %p226 = por %p224, %p225
      %s228 = sadd.s32 %s227, 1
      %p231 = scmp.eq.s32.totalorder %s25, 1
      %p232 = scmp.ne.s32.totalorder %s227, %s229
      %p233 = scmp.eq.s32.totalorder %s25, 0
      %p234 = por %p232, %p233
      %p235 = scmp.ne.s32.totalorder %s227, %s229
      %p236 = scmp.eq.s32.totalorder %s30, 1
      %p237 = por %p235, %p236
      %p238 = scmp.ne.s32.totalorder %s229, %s230
      %p239 = scmp.eq.s32.totalorder %s30, 0
      %p240 = por %p238, %p239
      %p241 = scmp.ne.s32.totalorder %s229, %s230
      %p242 = scmp.eq.s32.totalorder %s31, 1
      %p243 = por %p241, %p242
      %p245 = scmp.ne.s32.totalorder %s230, %s244
      %p246 = scmp.eq.s32.totalorder %s31, 0
      %p247 = por %p245, %p246
      %s249 = sadd.s32 %s248, 1
      %p252 = scmp.eq.s32.totalorder %s25, 1
      %p253 = scmp.ne.s32.totalorder %s248, %s250
      %p254 = scmp.eq.s32.totalorder %s25, 0
      %p255 = por %p253, %p254
      %p256 = scmp.ne.s32.totalorder %s248, %s250
      %p257 = scmp.eq.s32.totalorder %s30, 1
      %p258 = por %p256, %p257
      %p259 = scmp.ne.s32.totalorder %s250, %s251
      %p260 = scmp.eq.s32.totalorder %s30, 0
      %p261 = por %p259, %p260
      %p262 = scmp.ne.s32.totalorder %s250, %s251
      %p263 = scmp.eq.s32.totalorder %s31, 1
      %p264 = por %p262, %p263
      %p266 = scmp.ne.s32.totalorder %s251, %s265
      %p267 = scmp.eq.s32.totalorder %s31, 0
      %p268 = por %p266, %p267
      %s270 = sadd.s32 %s269, 1
      %p273 = scmp.eq.s32.totalorder %s25, 1
      %p274 = scmp.ne.s32.totalorder %s269, %s271
      %p275 = scmp.eq.s32.totalorder %s25, 0
      %p276 = por %p274, %p275
      %p277 = scmp.ne.s32.totalorder %s269, %s271
      %p278 = scmp.eq.s32.totalorder %s30, 1
      %p279 = por %p277, %p278
      %p280 = scmp.ne.s32.totalorder %s271, %s272
      %p281 = scmp.eq.s32.totalorder %s30, 0
      %p282 = por %p280, %p281
      %p283 = scmp.ne.s32.totalorder %s271, %s272
      %p284 = scmp.eq.s32.totalorder %s31, 1
      %p285 = por %p283, %p284
      %p287 = scmp.ne.s32.totalorder %s272, %s286
      %p288 = scmp.eq.s32.totalorder %s31, 0
      %p289 = por %p287, %p288
      %s291 = sadd.s32 %s290, 1
      %p294 = scmp.eq.s32.totalorder %s25, 1
      %p295 = scmp.ne.s32.totalorder %s290, %s292
      %p296 = scmp.eq.s32.totalorder %s25, 0
      %p297 = por %p295, %p296
      %p298 = scmp.ne.s32.totalorder %s290, %s292
      %p299 = scmp.eq.s32.totalorder %s30, 1
      %p300 = por %p298, %p299
      %p301 = scmp.ne.s32.totalorder %s292, %s293
      %p302 = scmp.eq.s32.totalorder %s30, 0
      %p303 = por %p301, %p302
      %p304 = scmp.ne.s32.totalorder %s292, %s293
      %p305 = scmp.eq.s32.totalorder %s31, 1
      %p306 = por %p304, %p305
      %p308 = scmp.ne.s32.totalorder %s293, %s307
      %p309 = scmp.eq.s32.totalorder %s31, 0
      %p310 = por %p308, %p309
      %s311 = ssub.s32 %s25, %s32
      %p312 = scmp.eq.s32.totalorder %s311, 0
      %s314 = sadd.s32 %s313, 1
      %s315 = scalar_select %p312, %s313, %s314
      %p318 = pneg %p312
      %p319 = scmp.eq.s32.totalorder %s25, 1
      %p320 = por %p318, %p319
      %p321 = scmp.ne.s32.totalorder %s313, %s316
      %p322 = scmp.eq.s32.totalorder %s25, 0
      %p323 = por %p321, %p322
      %p324 = scmp.ne.s32.totalorder %s313, %s316
      %p325 = scmp.eq.s32.totalorder %s30, 1
      %p326 = por %p324, %p325
      %p327 = scmp.ne.s32.totalorder %s316, %s317
      %p328 = scmp.eq.s32.totalorder %s30, 0
      %p329 = por %p327, %p328
      %p330 = scmp.ne.s32.totalorder %s316, %s317
      %p331 = scmp.eq.s32.totalorder %s31, 1
      %p332 = por %p330, %p331
      %p334 = scmp.ne.s32.totalorder %s317, %s333
      %p335 = scmp.eq.s32.totalorder %s31, 0
      %p336 = por %p334, %p335
      %p337 = scmp.le.s32.totalorder 1, %s25
      %p338 = scmp.lt.s32.totalorder %s25, 3
      %p339 = pnand %p337, %p338
      %p340 = pneg %p339
      // Predicated region
      $region9: #{cnn_lstm_forward.1} parent=5 // pred_check
        _
      $region10: #{cnn_lstm_forward.1} parent=5 // pred_check_branch
        %342 = sbr.rel (%p339) target = $region12
      $region11: #{cnn_lstm_forward.1} parent=5 // pred_region
        %s343 = ssub.s32 %s25, 1
        // Predicated region
        $region13: #{cnn_lstm_forward.1} parent=11 // pred_check
          %p344 = pneg %p72
        $region14: #{cnn_lstm_forward.1} parent=11 // pred_check_branch
          %346 = sbr.rel (%p344) target = $region16
        $region15: #{cnn_lstm_forward.1} parent=11 // pred_region
          _
        $region16: #{cnn_lstm_forward.1} parent=11 // pred_fallthru
          _
        // Predicated region
        $region17: #{cnn_lstm_forward.1} parent=11 // pred_check
          %p347 = pneg %p93
        $region18: #{cnn_lstm_forward.1} parent=11 // pred_check_branch
          %349 = sbr.rel (%p347) target = $region20
        $region19: #{cnn_lstm_forward.1} parent=11 // pred_region
          _
        $region20: #{cnn_lstm_forward.1} parent=11 // pred_fallthru
          _
        // Predicated region
        $region21: #{cnn_lstm_forward.1} parent=11 // pred_check
          %p350 = pneg %p114
        $region22: #{cnn_lstm_forward.1} parent=11 // pred_check_branch
          %352 = sbr.rel (%p350) target = $region24
        $region23: #{cnn_lstm_forward.1} parent=11 // pred_region
          %354 = vsyncadd [#allocation5], 0
          %s355 = sshll.u32 %s3, 4
          %s356 = int_to_ptr.hbm [resolvable:$true] %s355
          %s357 = sshll.u32 [#allocation4], 4
          %s358 = int_to_ptr.vmem [resolvable:$true] %s357
          %363 = dma.hbm_to_vmem [thread:$0]  %s356, 7168, %s358, [#allocation5], 128, 128, 8
        $region24: #{cnn_lstm_forward.1} parent=11 // pred_fallthru
          _
        // Predicated region
        $region25: #{cnn_lstm_forward.1} parent=11 // pred_check
          %p364 = pneg %p135
        $region26: #{cnn_lstm_forward.1} parent=11 // pred_check_branch
          %366 = sbr.rel (%p364) target = $region28
        $region27: #{cnn_lstm_forward.1} parent=11 // pred_region
          _
        $region28: #{cnn_lstm_forward.1} parent=11 // pred_fallthru
          _
        // Predicated region
        $region29: #{cnn_lstm_forward.1} parent=11 // pred_check
          %p367 = pneg %p156
        $region30: #{cnn_lstm_forward.1} parent=11 // pred_check_branch
          %369 = sbr.rel (%p367) target = $region32
        $region31: #{cnn_lstm_forward.1} parent=11 // pred_region
          %371 = vsyncadd [#allocation8], 0
          %s372 = sshll.u32 %s5, 4
          %s373 = int_to_ptr.hbm [resolvable:$true] %s372
          %s374 = sshll.u32 [#allocation7], 4
          %s375 = int_to_ptr.vmem [resolvable:$true] %s374
          %380 = dma.hbm_to_vmem [thread:$0]  %s373, 16384, %s375, [#allocation8], 1024, 1024, 64
        $region32: #{cnn_lstm_forward.1} parent=11 // pred_fallthru
          _
        // Predicated region
        $region33: #{cnn_lstm_forward.1} parent=11 // pred_check
          %p381 = pneg %p177
        $region34: #{cnn_lstm_forward.1} parent=11 // pred_check_branch
          %383 = sbr.rel (%p381) target = $region36
        $region35: #{cnn_lstm_forward.1} parent=11 // pred_region
          %385 = vsyncadd [#allocation8], 0
          %s386 = sshll.u32 %s6, 4
          %s387 = int_to_ptr.hbm [resolvable:$true] %s386
          %s388 = sshll.u32 [#allocation9], 4
          %s389 = int_to_ptr.vmem [resolvable:$true] %s388
          %394 = dma.hbm_to_vmem [thread:$0]  %s387, 32768, %s389, [#allocation8], 1024, 1024, 64
        $region36: #{cnn_lstm_forward.1} parent=11 // pred_fallthru
          _
        // Predicated region
        $region37: #{cnn_lstm_forward.1} parent=11 // pred_check
          %p395 = pneg %p198
        $region38: #{cnn_lstm_forward.1} parent=11 // pred_check_branch
          %397 = sbr.rel (%p395) target = $region40
        $region39: #{cnn_lstm_forward.1} parent=11 // pred_region
          _
        $region40: #{cnn_lstm_forward.1} parent=11 // pred_fallthru
          _
        // Predicated region
        $region41: #{cnn_lstm_forward.1} parent=11 // pred_check
          %p398 = pneg %p219
        $region42: #{cnn_lstm_forward.1} parent=11 // pred_check_branch
          %400 = sbr.rel (%p398) target = $region44
        $region43: #{cnn_lstm_forward.1} parent=11 // pred_region
          %402 = vsyncadd [#allocation11], 0
          %s403 = sshll.u32 %s8, 4
          %s404 = int_to_ptr.hbm [resolvable:$true] %s403
          %s405 = sshll.u32 [#allocation10], 4
          %s406 = int_to_ptr.vmem [resolvable:$true] %s405
          %411 = dma.hbm_to_vmem [thread:$0]  %s404, 16384, %s406, [#allocation11], 512, 512, 32
        $region44: #{cnn_lstm_forward.1} parent=11 // pred_fallthru
          _
        // Predicated region
        $region45: #{cnn_lstm_forward.1} parent=11 // pred_check
          %p412 = pneg %p240
        $region46: #{cnn_lstm_forward.1} parent=11 // pred_check_branch
          %414 = sbr.rel (%p412) target = $region48
        $region47: #{cnn_lstm_forward.1} parent=11 // pred_region
          %416 = vsyncadd [#allocation11], 0
          %s417 = sshll.u32 %s9, 4
          %s418 = int_to_ptr.hbm [resolvable:$true] %s417
          %s419 = sshll.u32 [#allocation12], 4
          %s420 = int_to_ptr.vmem [resolvable:$true] %s419
          %425 = dma.hbm_to_vmem [thread:$0]  %s418, 8192, %s420, [#allocation11], 512, 512, 32
        $region48: #{cnn_lstm_forward.1} parent=11 // pred_fallthru
          _
        // Predicated region
        $region49: #{cnn_lstm_forward.1} parent=11 // pred_check
          %p426 = pneg %p261
        $region50: #{cnn_lstm_forward.1} parent=11 // pred_check_branch
          %428 = sbr.rel (%p426) target = $region52
        $region51: #{cnn_lstm_forward.1} parent=11 // pred_region
          _
        $region52: #{cnn_lstm_forward.1} parent=11 // pred_fallthru
          _
        // Predicated region
        $region53: #{cnn_lstm_forward.1} parent=11 // pred_check
          %p429 = pneg %p282
        $region54: #{cnn_lstm_forward.1} parent=11 // pred_check_branch
          %431 = sbr.rel (%p429) target = $region56
        $region55: #{cnn_lstm_forward.1} parent=11 // pred_region
          _
        $region56: #{cnn_lstm_forward.1} parent=11 // pred_fallthru
          _
        // Predicated region
        $region57: #{cnn_lstm_forward.1} parent=11 // pred_check
          %p432 = pneg %p303
        $region58: #{cnn_lstm_forward.1} parent=11 // pred_check_branch
          %434 = sbr.rel (%p432) target = $region60
        $region59: #{cnn_lstm_forward.1} parent=11 // pred_region
          _
        $region60: #{cnn_lstm_forward.1} parent=11 // pred_fallthru
          _
      $region12: #{cnn_lstm_forward.1} parent=5 // pred_fallthru
        _
      %p435 = scmp.lt.s32.totalorder %s25, 2
      // Predicated region
      $region61: #{cnn_lstm_forward.1} parent=5 // pred_check
        %p436 = pneg %p435
      $region62: #{cnn_lstm_forward.1} parent=5 // pred_check_branch
        %438 = sbr.rel (%p436) target = $region64
      $region63: #{cnn_lstm_forward.1} parent=5 // pred_region
        // Predicated region
        $region65: #{cnn_lstm_forward.1} parent=63 // pred_check
          %p439 = pneg %p45
        $region66: #{cnn_lstm_forward.1} parent=63 // pred_check_branch
          %441 = sbr.rel (%p439) target = $region68
        $region67: #{cnn_lstm_forward.1} parent=63 // pred_region
          %p442 = scmp.lt.s32.totalorder %s25, 1
          %s443 = scalar_select %p442, %s25, 1
          %s444 = smul.addr %s443, 3
          %s445 = smul.addr %s444, 8
          %s446 = scalar_lea.vmem %s0, %s445
        $region68: #{cnn_lstm_forward.1} parent=63 // pred_fallthru
          _
      $region64: #{cnn_lstm_forward.1} parent=5 // pred_fallthru
        _
      %p447 = scmp.le.s32.totalorder 1, %s25
      %p448 = scmp.lt.s32.totalorder %s25, 3
      %p449 = pnand %p447, %p448
      %p450 = pneg %p449
      // Predicated region
      $region69: #{cnn_lstm_forward.1} parent=5 // pred_check
        _
      $region70: #{cnn_lstm_forward.1} parent=5 // pred_check_branch
        %452 = sbr.rel (%p449) target = $region72
      $region71: #{cnn_lstm_forward.1} parent=5 // pred_region
        %s453 = ssub.s32 %s25, 1
        // Predicated region
        $region73: #{cnn_lstm_forward.1} parent=71 // pred_check
          %p454 = pneg %p114
        $region74: #{cnn_lstm_forward.1} parent=71 // pred_check_branch
          %456 = sbr.rel (%p454) target = $region76
        $region75: #{cnn_lstm_forward.1} parent=71 // pred_region
          %458 = dma.done [#allocation5], 7168
        $region76: #{cnn_lstm_forward.1} parent=71 // pred_fallthru
          _
        // Predicated region
        $region77: #{cnn_lstm_forward.1} parent=71 // pred_check
          %p459 = pneg %p156
        $region78: #{cnn_lstm_forward.1} parent=71 // pred_check_branch
          %461 = sbr.rel (%p459) target = $region80
        $region79: #{cnn_lstm_forward.1} parent=71 // pred_region
          %463 = dma.done [#allocation8], 16384
        $region80: #{cnn_lstm_forward.1} parent=71 // pred_fallthru
          _
        // Predicated region
        $region81: #{cnn_lstm_forward.1} parent=71 // pred_check
          %p464 = pneg %p177
        $region82: #{cnn_lstm_forward.1} parent=71 // pred_check_branch
          %466 = sbr.rel (%p464) target = $region84
        $region83: #{cnn_lstm_forward.1} parent=71 // pred_region
          %468 = dma.done [#allocation8], 32768
        $region84: #{cnn_lstm_forward.1} parent=71 // pred_fallthru
          _
        // Predicated region
        $region85: #{cnn_lstm_forward.1} parent=71 // pred_check
          %p469 = pneg %p219
        $region86: #{cnn_lstm_forward.1} parent=71 // pred_check_branch
          %471 = sbr.rel (%p469) target = $region88
        $region87: #{cnn_lstm_forward.1} parent=71 // pred_region
          %473 = dma.done [#allocation11], 16384
        $region88: #{cnn_lstm_forward.1} parent=71 // pred_fallthru
          _
        // Predicated region
        $region89: #{cnn_lstm_forward.1} parent=71 // pred_check
          %p474 = pneg %p240
        $region90: #{cnn_lstm_forward.1} parent=71 // pred_check_branch
          %476 = sbr.rel (%p474) target = $region92
        $region91: #{cnn_lstm_forward.1} parent=71 // pred_region
          %478 = dma.done [#allocation11], 8192
        $region92: #{cnn_lstm_forward.1} parent=71 // pred_fallthru
          _
        %p479 = scmp.lt.s32.totalorder %s30, 1
        %s480 = scalar_select %p479, %s30, 1
        %s481 = smul.addr %s480, 3
        %s482 = smul.addr %s481, 8
        %s483 = scalar_lea.vmem %s0, %s482
        %p484 = pneg %p51
        %p485 = pneg %p48
        %p486 = pneg %p72
        %p487 = pneg %p69
        %p488 = pneg %p93
        %p489 = pneg %p90
        %p490 = pneg %p114
        %p491 = pneg %p111
        %p492 = pneg %p135
        %p493 = pneg %p132
        %p494 = pneg %p156
        %p495 = pneg %p153
        %p496 = pneg %p177
        %p497 = pneg %p174
        %p498 = pneg %p198
        %p499 = pneg %p195
        %p500 = pneg %p219
        %p501 = pneg %p216
        %p502 = pneg %p240
        %p503 = pneg %p237
        %p504 = pneg %p261
        %p505 = pneg %p258
        %p506 = pneg %p282
        %p507 = pneg %p279
        %p508 = pneg %p303
        %p509 = pneg %p300
        %p510 = pneg %p329
        %p511 = pneg %p326
        %s512 = sand.u32 %s316, 1
        %s513 = scalar_lea.sflag [#allocation6], %s512
        %s514 = sand.u32 %s316, 1
        %s515 = scalar_lea.vmem [#allocation13], %s514
        %p516 = scmp.lt.s32.totalorder %s30, 1
        %s517 = scalar_select %p516, %s30, 1
        %s518 = smul.addr %s517, 3
        %s519 = smul.addr %s518, 8
        %s520 = scalar_lea.vmem %s0, %s519
        %v521 = vld [vmem:[%s520] sm:$0xff]
        %v522 = vld [vmem:[%s520 + $0x8] sm:$0xff]
        %v523 = vld [vmem:[%s520 + $0x10] sm:$0xff]
        %v524 = vld [vmem:[%s1] sm:$0x3]
        %v525 = vld [vmem:[%s1 + $0x2] sm:$0x3]
        %v526 = vld [vmem:[%s1 + $0x4] sm:$0x3]
        %v527 = vld [vmem:[%s1 + $0x6] sm:$0x3]
        %v528 = vld [vmem:[%s1 + $0x8] sm:$0x3]
        %v529 = vld [vmem:[%s1 + $0xa] sm:$0x3]
        %v530 = vld [vmem:[%s1 + $0xc] sm:$0x3]
        %v531 = vld [vmem:[%s2] sm:$0x1]
        %v532 = vld [vmem:[#allocation4] sm:$0xff]
        %v533 = vld [vmem:[#allocation4 + $0x8] sm:$0xff]
        %v534 = vld [vmem:[#allocation4 + $0x10] sm:$0xff]
        %v535 = vld [vmem:[#allocation4 + $0x18] sm:$0xff]
        %v536 = vld [vmem:[#allocation4 + $0x20] sm:$0xff]
        %v537 = vld [vmem:[#allocation4 + $0x28] sm:$0xff]
        %v538 = vld [vmem:[#allocation4 + $0x30] sm:$0xff]
        %v539 = vld [vmem:[#allocation4 + $0x38] sm:$0xff]
        %v540 = vld [vmem:[#allocation4 + $0x40] sm:$0xff]
        %v541 = vld [vmem:[#allocation4 + $0x48] sm:$0xff]
        %v542 = vld [vmem:[#allocation4 + $0x50] sm:$0xff]
        %v543 = vld [vmem:[#allocation4 + $0x58] sm:$0xff]
        %v544 = vld [vmem:[#allocation4 + $0x60] sm:$0xff]
        %v545 = vld [vmem:[#allocation4 + $0x68] sm:$0xff]
        %v546 = vld [vmem:[#allocation4 + $0x70] sm:$0xff]
        %v547 = vld [vmem:[#allocation4 + $0x78] sm:$0xff]
        %v548 = vld [vmem:[#allocation4 + $0x80] sm:$0xff]
        %v549 = vld [vmem:[#allocation4 + $0x88] sm:$0xff]
        %v550 = vld [vmem:[#allocation4 + $0x90] sm:$0xff]
        %v551 = vld [vmem:[#allocation4 + $0x98] sm:$0xff]
        %v552 = vld [vmem:[#allocation4 + $0xa0] sm:$0xff]
        %v553 = vld [vmem:[#allocation4 + $0xa8] sm:$0xff]
        %v554 = vld [vmem:[#allocation4 + $0xb0] sm:$0xff]
        %v555 = vld [vmem:[#allocation4 + $0xb8] sm:$0xff]
        %v556 = vld [vmem:[#allocation4 + $0xc0] sm:$0xff]
        %v557 = vld [vmem:[#allocation4 + $0xc8] sm:$0xff]
        %v558 = vld [vmem:[#allocation4 + $0xd0] sm:$0xff]
        %v559 = vld [vmem:[#allocation4 + $0xd8] sm:$0xff]
        %v560 = vld [vmem:[#allocation4 + $0xe0] sm:$0xff]
        %v561 = vld [vmem:[#allocation4 + $0xe8] sm:$0xff]
        %v562 = vld [vmem:[#allocation4 + $0xf0] sm:$0xff]
        %v563 = vld [vmem:[#allocation4 + $0xf8] sm:$0xff]
        %v564 = vld [vmem:[#allocation4 + $0x100] sm:$0xff]
        %v565 = vld [vmem:[#allocation4 + $0x108] sm:$0xff]
        %v566 = vld [vmem:[#allocation4 + $0x110] sm:$0xff]
        %v567 = vld [vmem:[#allocation4 + $0x118] sm:$0xff]
        %v568 = vld [vmem:[#allocation4 + $0x120] sm:$0xff]
        %v569 = vld [vmem:[#allocation4 + $0x128] sm:$0xff]
        %v570 = vld [vmem:[#allocation4 + $0x130] sm:$0xff]
        %v571 = vld [vmem:[#allocation4 + $0x138] sm:$0xff]
        %v572 = vld [vmem:[#allocation4 + $0x140] sm:$0xff]
        %v573 = vld [vmem:[#allocation4 + $0x148] sm:$0xff]
        %v574 = vld [vmem:[#allocation4 + $0x150] sm:$0xff]
        %v575 = vld [vmem:[#allocation4 + $0x158] sm:$0xff]
        %v576 = vld [vmem:[#allocation4 + $0x160] sm:$0xff]
        %v577 = vld [vmem:[#allocation4 + $0x168] sm:$0xff]
        %v578 = vld [vmem:[#allocation4 + $0x170] sm:$0xff]
        %v579 = vld [vmem:[#allocation4 + $0x178] sm:$0xff]
        %v580 = vld [vmem:[#allocation4 + $0x180] sm:$0xff]
        %v581 = vld [vmem:[#allocation4 + $0x188] sm:$0xff]
        %v582 = vld [vmem:[#allocation4 + $0x190] sm:$0xff]
        %v583 = vld [vmem:[#allocation4 + $0x198] sm:$0xff]
        %v584 = vld [vmem:[#allocation4 + $0x1a0] sm:$0xff]
        %v585 = vld [vmem:[#allocation4 + $0x1a8] sm:$0xff]
        %v586 = vld [vmem:[#allocation4 + $0x1b0] sm:$0xff]
        %v587 = vld [vmem:[#allocation4 + $0x1b8] sm:$0xff]
        %v588 = vld [vmem:[%s4] sm:$0x1]
        %v589 = vld [vmem:[#allocation7] sm:$0xff]
        %v590 = vld [vmem:[#allocation7 + $0x8] sm:$0xff]
        %v591 = vld [vmem:[#allocation7 + $0x10] sm:$0xff]
        %v592 = vld [vmem:[#allocation7 + $0x18] sm:$0xff]
        %v593 = vld [vmem:[#allocation7 + $0x20] sm:$0xff]
        %v594 = vld [vmem:[#allocation7 + $0x28] sm:$0xff]
        %v595 = vld [vmem:[#allocation7 + $0x30] sm:$0xff]
        %v596 = vld [vmem:[#allocation7 + $0x38] sm:$0xff]
        %v597 = vld [vmem:[#allocation7 + $0x40] sm:$0xff]
        %v598 = vld [vmem:[#allocation7 + $0x48] sm:$0xff]
        %v599 = vld [vmem:[#allocation7 + $0x50] sm:$0xff]
        %v600 = vld [vmem:[#allocation7 + $0x58] sm:$0xff]
        %v601 = vld [vmem:[#allocation7 + $0x60] sm:$0xff]
        %v602 = vld [vmem:[#allocation7 + $0x68] sm:$0xff]
        %v603 = vld [vmem:[#allocation7 + $0x70] sm:$0xff]
        %v604 = vld [vmem:[#allocation7 + $0x78] sm:$0xff]
        %v605 = vld [vmem:[#allocation7 + $0x80] sm:$0xff]
        %v606 = vld [vmem:[#allocation7 + $0x88] sm:$0xff]
        %v607 = vld [vmem:[#allocation7 + $0x90] sm:$0xff]
        %v608 = vld [vmem:[#allocation7 + $0x98] sm:$0xff]
        %v609 = vld [vmem:[#allocation7 + $0xa0] sm:$0xff]
        %v610 = vld [vmem:[#allocation7 + $0xa8] sm:$0xff]
        %v611 = vld [vmem:[#allocation7 + $0xb0] sm:$0xff]
        %v612 = vld [vmem:[#allocation7 + $0xb8] sm:$0xff]
        %v613 = vld [vmem:[#allocation7 + $0xc0] sm:$0xff]
        %v614 = vld [vmem:[#allocation7 + $0xc8] sm:$0xff]
        %v615 = vld [vmem:[#allocation7 + $0xd0] sm:$0xff]
        %v616 = vld [vmem:[#allocation7 + $0xd8] sm:$0xff]
        %v617 = vld [vmem:[#allocation7 + $0xe0] sm:$0xff]
        %v618 = vld [vmem:[#allocation7 + $0xe8] sm:$0xff]
        %v619 = vld [vmem:[#allocation7 + $0xf0] sm:$0xff]
        %v620 = vld [vmem:[#allocation7 + $0xf8] sm:$0xff]
        %v621 = vld [vmem:[#allocation7 + $0x100] sm:$0xff]
        %v622 = vld [vmem:[#allocation7 + $0x108] sm:$0xff]
        %v623 = vld [vmem:[#allocation7 + $0x110] sm:$0xff]
        %v624 = vld [vmem:[#allocation7 + $0x118] sm:$0xff]
        %v625 = vld [vmem:[#allocation7 + $0x120] sm:$0xff]
        %v626 = vld [vmem:[#allocation7 + $0x128] sm:$0xff]
        %v627 = vld [vmem:[#allocation7 + $0x130] sm:$0xff]
        %v628 = vld [vmem:[#allocation7 + $0x138] sm:$0xff]
        %v629 = vld [vmem:[#allocation7 + $0x140] sm:$0xff]
        %v630 = vld [vmem:[#allocation7 + $0x148] sm:$0xff]
        %v631 = vld [vmem:[#allocation7 + $0x150] sm:$0xff]
        %v632 = vld [vmem:[#allocation7 + $0x158] sm:$0xff]
        %v633 = vld [vmem:[#allocation7 + $0x160] sm:$0xff]
        %v634 = vld [vmem:[#allocation7 + $0x168] sm:$0xff]
        %v635 = vld [vmem:[#allocation7 + $0x170] sm:$0xff]
        %v636 = vld [vmem:[#allocation7 + $0x178] sm:$0xff]
        %v637 = vld [vmem:[#allocation7 + $0x180] sm:$0xff]
        %v638 = vld [vmem:[#allocation7 + $0x188] sm:$0xff]
        %v639 = vld [vmem:[#allocation7 + $0x190] sm:$0xff]
        %v640 = vld [vmem:[#allocation7 + $0x198] sm:$0xff]
        %v641 = vld [vmem:[#allocation7 + $0x1a0] sm:$0xff]
        %v642 = vld [vmem:[#allocation7 + $0x1a8] sm:$0xff]
        %v643 = vld [vmem:[#allocation7 + $0x1b0] sm:$0xff]
        %v644 = vld [vmem:[#allocation7 + $0x1b8] sm:$0xff]
        %v645 = vld [vmem:[#allocation7 + $0x1c0] sm:$0xff]
        %v646 = vld [vmem:[#allocation7 + $0x1c8] sm:$0xff]
        %v647 = vld [vmem:[#allocation7 + $0x1d0] sm:$0xff]
        %v648 = vld [vmem:[#allocation7 + $0x1d8] sm:$0xff]
        %v649 = vld [vmem:[#allocation7 + $0x1e0] sm:$0xff]
        %v650 = vld [vmem:[#allocation7 + $0x1e8] sm:$0xff]
        %v651 = vld [vmem:[#allocation7 + $0x1f0] sm:$0xff]
        %v652 = vld [vmem:[#allocation7 + $0x1f8] sm:$0xff]
        %v653 = vld [vmem:[#allocation7 + $0x200] sm:$0xff]
        %v654 = vld [vmem:[#allocation7 + $0x208] sm:$0xff]
        %v655 = vld [vmem:[#allocation7 + $0x210] sm:$0xff]
        %v656 = vld [vmem:[#allocation7 + $0x218] sm:$0xff]
        %v657 = vld [vmem:[#allocation7 + $0x220] sm:$0xff]
        %v658 = vld [vmem:[#allocation7 + $0x228] sm:$0xff]
        %v659 = vld [vmem:[#allocation7 + $0x230] sm:$0xff]
        %v660 = vld [vmem:[#allocation7 + $0x238] sm:$0xff]
        %v661 = vld [vmem:[#allocation7 + $0x240] sm:$0xff]
        %v662 = vld [vmem:[#allocation7 + $0x248] sm:$0xff]
        %v663 = vld [vmem:[#allocation7 + $0x250] sm:$0xff]
        %v664 = vld [vmem:[#allocation7 + $0x258] sm:$0xff]
        %v665 = vld [vmem:[#allocation7 + $0x260] sm:$0xff]
        %v666 = vld [vmem:[#allocation7 + $0x268] sm:$0xff]
        %v667 = vld [vmem:[#allocation7 + $0x270] sm:$0xff]
        %v668 = vld [vmem:[#allocation7 + $0x278] sm:$0xff]
        %v669 = vld [vmem:[#allocation7 + $0x280] sm:$0xff]
        %v670 = vld [vmem:[#allocation7 + $0x288] sm:$0xff]
        %v671 = vld [vmem:[#allocation7 + $0x290] sm:$0xff]
        %v672 = vld [vmem:[#allocation7 + $0x298] sm:$0xff]
        %v673 = vld [vmem:[#allocation7 + $0x2a0] sm:$0xff]
        %v674 = vld [vmem:[#allocation7 + $0x2a8] sm:$0xff]
        %v675 = vld [vmem:[#allocation7 + $0x2b0] sm:$0xff]
        %v676 = vld [vmem:[#allocation7 + $0x2b8] sm:$0xff]
        %v677 = vld [vmem:[#allocation7 + $0x2c0] sm:$0xff]
        %v678 = vld [vmem:[#allocation7 + $0x2c8] sm:$0xff]
        %v679 = vld [vmem:[#allocation7 + $0x2d0] sm:$0xff]
        %v680 = vld [vmem:[#allocation7 + $0x2d8] sm:$0xff]
        %v681 = vld [vmem:[#allocation7 + $0x2e0] sm:$0xff]
        %v682 = vld [vmem:[#allocation7 + $0x2e8] sm:$0xff]
        %v683 = vld [vmem:[#allocation7 + $0x2f0] sm:$0xff]
        %v684 = vld [vmem:[#allocation7 + $0x2f8] sm:$0xff]
        %v685 = vld [vmem:[#allocation7 + $0x300] sm:$0xff]
        %v686 = vld [vmem:[#allocation7 + $0x308] sm:$0xff]
        %v687 = vld [vmem:[#allocation7 + $0x310] sm:$0xff]
        %v688 = vld [vmem:[#allocation7 + $0x318] sm:$0xff]
        %v689 = vld [vmem:[#allocation7 + $0x320] sm:$0xff]
        %v690 = vld [vmem:[#allocation7 + $0x328] sm:$0xff]
        %v691 = vld [vmem:[#allocation7 + $0x330] sm:$0xff]
        %v692 = vld [vmem:[#allocation7 + $0x338] sm:$0xff]
        %v693 = vld [vmem:[#allocation7 + $0x340] sm:$0xff]
        %v694 = vld [vmem:[#allocation7 + $0x348] sm:$0xff]
        %v695 = vld [vmem:[#allocation7 + $0x350] sm:$0xff]
        %v696 = vld [vmem:[#allocation7 + $0x358] sm:$0xff]
        %v697 = vld [vmem:[#allocation7 + $0x360] sm:$0xff]
        %v698 = vld [vmem:[#allocation7 + $0x368] sm:$0xff]
        %v699 = vld [vmem:[#allocation7 + $0x370] sm:$0xff]
        %v700 = vld [vmem:[#allocation7 + $0x378] sm:$0xff]
        %v701 = vld [vmem:[#allocation7 + $0x380] sm:$0xff]
        %v702 = vld [vmem:[#allocation7 + $0x388] sm:$0xff]
        %v703 = vld [vmem:[#allocation7 + $0x390] sm:$0xff]
        %v704 = vld [vmem:[#allocation7 + $0x398] sm:$0xff]
        %v705 = vld [vmem:[#allocation7 + $0x3a0] sm:$0xff]
        %v706 = vld [vmem:[#allocation7 + $0x3a8] sm:$0xff]
        %v707 = vld [vmem:[#allocation7 + $0x3b0] sm:$0xff]
        %v708 = vld [vmem:[#allocation7 + $0x3b8] sm:$0xff]
        %v709 = vld [vmem:[#allocation7 + $0x3c0] sm:$0xff]
        %v710 = vld [vmem:[#allocation7 + $0x3c8] sm:$0xff]
        %v711 = vld [vmem:[#allocation7 + $0x3d0] sm:$0xff]
        %v712 = vld [vmem:[#allocation7 + $0x3d8] sm:$0xff]
        %v713 = vld [vmem:[#allocation7 + $0x3e0] sm:$0xff]
        %v714 = vld [vmem:[#allocation7 + $0x3e8] sm:$0xff]
        %v715 = vld [vmem:[#allocation7 + $0x3f0] sm:$0xff]
        %v716 = vld [vmem:[#allocation7 + $0x3f8] sm:$0xff]
        %v717 = vld [vmem:[#allocation9] sm:$0xff]
        %v718 = vld [vmem:[#allocation9 + $0x8] sm:$0xff]
        %v719 = vld [vmem:[#allocation9 + $0x10] sm:$0xff]
        %v720 = vld [vmem:[#allocation9 + $0x18] sm:$0xff]
        %v721 = vld [vmem:[#allocation9 + $0x20] sm:$0xff]
        %v722 = vld [vmem:[#allocation9 + $0x28] sm:$0xff]
        %v723 = vld [vmem:[#allocation9 + $0x30] sm:$0xff]
        %v724 = vld [vmem:[#allocation9 + $0x38] sm:$0xff]
        %v725 = vld [vmem:[#allocation9 + $0x40] sm:$0xff]
        %v726 = vld [vmem:[#allocation9 + $0x48] sm:$0xff]
        %v727 = vld [vmem:[#allocation9 + $0x50] sm:$0xff]
        %v728 = vld [vmem:[#allocation9 + $0x58] sm:$0xff]
        %v729 = vld [vmem:[#allocation9 + $0x60] sm:$0xff]
        %v730 = vld [vmem:[#allocation9 + $0x68] sm:$0xff]
        %v731 = vld [vmem:[#allocation9 + $0x70] sm:$0xff]
        %v732 = vld [vmem:[#allocation9 + $0x78] sm:$0xff]
        %v733 = vld [vmem:[#allocation9 + $0x80] sm:$0xff]
        %v734 = vld [vmem:[#allocation9 + $0x88] sm:$0xff]
        %v735 = vld [vmem:[#allocation9 + $0x90] sm:$0xff]
        %v736 = vld [vmem:[#allocation9 + $0x98] sm:$0xff]
        %v737 = vld [vmem:[#allocation9 + $0xa0] sm:$0xff]
        %v738 = vld [vmem:[#allocation9 + $0xa8] sm:$0xff]
        %v739 = vld [vmem:[#allocation9 + $0xb0] sm:$0xff]
        %v740 = vld [vmem:[#allocation9 + $0xb8] sm:$0xff]
        %v741 = vld [vmem:[#allocation9 + $0xc0] sm:$0xff]
        %v742 = vld [vmem:[#allocation9 + $0xc8] sm:$0xff]
        %v743 = vld [vmem:[#allocation9 + $0xd0] sm:$0xff]
        %v744 = vld [vmem:[#allocation9 + $0xd8] sm:$0xff]
        %v745 = vld [vmem:[#allocation9 + $0xe0] sm:$0xff]
        %v746 = vld [vmem:[#allocation9 + $0xe8] sm:$0xff]
        %v747 = vld [vmem:[#allocation9 + $0xf0] sm:$0xff]
        %v748 = vld [vmem:[#allocation9 + $0xf8] sm:$0xff]
        %v749 = vld [vmem:[#allocation9 + $0x100] sm:$0xff]
        %v750 = vld [vmem:[#allocation9 + $0x108] sm:$0xff]
        %v751 = vld [vmem:[#allocation9 + $0x110] sm:$0xff]
        %v752 = vld [vmem:[#allocation9 + $0x118] sm:$0xff]
        %v753 = vld [vmem:[#allocation9 + $0x120] sm:$0xff]
        %v754 = vld [vmem:[#allocation9 + $0x128] sm:$0xff]
        %v755 = vld [vmem:[#allocation9 + $0x130] sm:$0xff]
        %v756 = vld [vmem:[#allocation9 + $0x138] sm:$0xff]
        %v757 = vld [vmem:[#allocation9 + $0x140] sm:$0xff]
        %v758 = vld [vmem:[#allocation9 + $0x148] sm:$0xff]
        %v759 = vld [vmem:[#allocation9 + $0x150] sm:$0xff]
        %v760 = vld [vmem:[#allocation9 + $0x158] sm:$0xff]
        %v761 = vld [vmem:[#allocation9 + $0x160] sm:$0xff]
        %v762 = vld [vmem:[#allocation9 + $0x168] sm:$0xff]
        %v763 = vld [vmem:[#allocation9 + $0x170] sm:$0xff]
        %v764 = vld [vmem:[#allocation9 + $0x178] sm:$0xff]
        %v765 = vld [vmem:[#allocation9 + $0x180] sm:$0xff]
        %v766 = vld [vmem:[#allocation9 + $0x188] sm:$0xff]
        %v767 = vld [vmem:[#allocation9 + $0x190] sm:$0xff]
        %v768 = vld [vmem:[#allocation9 + $0x198] sm:$0xff]
        %v769 = vld [vmem:[#allocation9 + $0x1a0] sm:$0xff]
        %v770 = vld [vmem:[#allocation9 + $0x1a8] sm:$0xff]
        %v771 = vld [vmem:[#allocation9 + $0x1b0] sm:$0xff]
        %v772 = vld [vmem:[#allocation9 + $0x1b8] sm:$0xff]
        %v773 = vld [vmem:[#allocation9 + $0x1c0] sm:$0xff]
        %v774 = vld [vmem:[#allocation9 + $0x1c8] sm:$0xff]
        %v775 = vld [vmem:[#allocation9 + $0x1d0] sm:$0xff]
        %v776 = vld [vmem:[#allocation9 + $0x1d8] sm:$0xff]
        %v777 = vld [vmem:[#allocation9 + $0x1e0] sm:$0xff]
        %v778 = vld [vmem:[#allocation9 + $0x1e8] sm:$0xff]
        %v779 = vld [vmem:[#allocation9 + $0x1f0] sm:$0xff]
        %v780 = vld [vmem:[#allocation9 + $0x1f8] sm:$0xff]
        %v781 = vld [vmem:[#allocation9 + $0x200] sm:$0xff]
        %v782 = vld [vmem:[#allocation9 + $0x208] sm:$0xff]
        %v783 = vld [vmem:[#allocation9 + $0x210] sm:$0xff]
        %v784 = vld [vmem:[#allocation9 + $0x218] sm:$0xff]
        %v785 = vld [vmem:[#allocation9 + $0x220] sm:$0xff]
        %v786 = vld [vmem:[#allocation9 + $0x228] sm:$0xff]
        %v787 = vld [vmem:[#allocation9 + $0x230] sm:$0xff]
        %v788 = vld [vmem:[#allocation9 + $0x238] sm:$0xff]
        %v789 = vld [vmem:[#allocation9 + $0x240] sm:$0xff]
        %v790 = vld [vmem:[#allocation9 + $0x248] sm:$0xff]
        %v791 = vld [vmem:[#allocation9 + $0x250] sm:$0xff]
        %v792 = vld [vmem:[#allocation9 + $0x258] sm:$0xff]
        %v793 = vld [vmem:[#allocation9 + $0x260] sm:$0xff]
        %v794 = vld [vmem:[#allocation9 + $0x268] sm:$0xff]
        %v795 = vld [vmem:[#allocation9 + $0x270] sm:$0xff]
        %v796 = vld [vmem:[#allocation9 + $0x278] sm:$0xff]
        %v797 = vld [vmem:[#allocation9 + $0x280] sm:$0xff]
        %v798 = vld [vmem:[#allocation9 + $0x288] sm:$0xff]
        %v799 = vld [vmem:[#allocation9 + $0x290] sm:$0xff]
        %v800 = vld [vmem:[#allocation9 + $0x298] sm:$0xff]
        %v801 = vld [vmem:[#allocation9 + $0x2a0] sm:$0xff]
        %v802 = vld [vmem:[#allocation9 + $0x2a8] sm:$0xff]
        %v803 = vld [vmem:[#allocation9 + $0x2b0] sm:$0xff]
        %v804 = vld [vmem:[#allocation9 + $0x2b8] sm:$0xff]
        %v805 = vld [vmem:[#allocation9 + $0x2c0] sm:$0xff]
        %v806 = vld [vmem:[#allocation9 + $0x2c8] sm:$0xff]
        %v807 = vld [vmem:[#allocation9 + $0x2d0] sm:$0xff]
        %v808 = vld [vmem:[#allocation9 + $0x2d8] sm:$0xff]
        %v809 = vld [vmem:[#allocation9 + $0x2e0] sm:$0xff]
        %v810 = vld [vmem:[#allocation9 + $0x2e8] sm:$0xff]
        %v811 = vld [vmem:[#allocation9 + $0x2f0] sm:$0xff]
        %v812 = vld [vmem:[#allocation9 + $0x2f8] sm:$0xff]
        %v813 = vld [vmem:[#allocation9 + $0x300] sm:$0xff]
        %v814 = vld [vmem:[#allocation9 + $0x308] sm:$0xff]
        %v815 = vld [vmem:[#allocation9 + $0x310] sm:$0xff]
        %v816 = vld [vmem:[#allocation9 + $0x318] sm:$0xff]
        %v817 = vld [vmem:[#allocation9 + $0x320] sm:$0xff]
        %v818 = vld [vmem:[#allocation9 + $0x328] sm:$0xff]
        %v819 = vld [vmem:[#allocation9 + $0x330] sm:$0xff]
        %v820 = vld [vmem:[#allocation9 + $0x338] sm:$0xff]
        %v821 = vld [vmem:[#allocation9 + $0x340] sm:$0xff]
        %v822 = vld [vmem:[#allocation9 + $0x348] sm:$0xff]
        %v823 = vld [vmem:[#allocation9 + $0x350] sm:$0xff]
        %v824 = vld [vmem:[#allocation9 + $0x358] sm:$0xff]
        %v825 = vld [vmem:[#allocation9 + $0x360] sm:$0xff]
        %v826 = vld [vmem:[#allocation9 + $0x368] sm:$0xff]
        %v827 = vld [vmem:[#allocation9 + $0x370] sm:$0xff]
        %v828 = vld [vmem:[#allocation9 + $0x378] sm:$0xff]
        %v829 = vld [vmem:[#allocation9 + $0x380] sm:$0xff]
        %v830 = vld [vmem:[#allocation9 + $0x388] sm:$0xff]
        %v831 = vld [vmem:[#allocation9 + $0x390] sm:$0xff]
        %v832 = vld [vmem:[#allocation9 + $0x398] sm:$0xff]
        %v833 = vld [vmem:[#allocation9 + $0x3a0] sm:$0xff]
        %v834 = vld [vmem:[#allocation9 + $0x3a8] sm:$0xff]
        %v835 = vld [vmem:[#allocation9 + $0x3b0] sm:$0xff]
        %v836 = vld [vmem:[#allocation9 + $0x3b8] sm:$0xff]
        %v837 = vld [vmem:[#allocation9 + $0x3c0] sm:$0xff]
        %v838 = vld [vmem:[#allocation9 + $0x3c8] sm:$0xff]
        %v839 = vld [vmem:[#allocation9 + $0x3d0] sm:$0xff]
        %v840 = vld [vmem:[#allocation9 + $0x3d8] sm:$0xff]
        %v841 = vld [vmem:[#allocation9 + $0x3e0] sm:$0xff]
        %v842 = vld [vmem:[#allocation9 + $0x3e8] sm:$0xff]
        %v843 = vld [vmem:[#allocation9 + $0x3f0] sm:$0xff]
        %v844 = vld [vmem:[#allocation9 + $0x3f8] sm:$0xff]
        %v845 = vld [vmem:[#allocation9 + $0x400] sm:$0xff]
        %v846 = vld [vmem:[#allocation9 + $0x408] sm:$0xff]
        %v847 = vld [vmem:[#allocation9 + $0x410] sm:$0xff]
        %v848 = vld [vmem:[#allocation9 + $0x418] sm:$0xff]
        %v849 = vld [vmem:[#allocation9 + $0x420] sm:$0xff]
        %v850 = vld [vmem:[#allocation9 + $0x428] sm:$0xff]
        %v851 = vld [vmem:[#allocation9 + $0x430] sm:$0xff]
        %v852 = vld [vmem:[#allocation9 + $0x438] sm:$0xff]
        %v853 = vld [vmem:[#allocation9 + $0x440] sm:$0xff]
        %v854 = vld [vmem:[#allocation9 + $0x448] sm:$0xff]
        %v855 = vld [vmem:[#allocation9 + $0x450] sm:$0xff]
        %v856 = vld [vmem:[#allocation9 + $0x458] sm:$0xff]
        %v857 = vld [vmem:[#allocation9 + $0x460] sm:$0xff]
        %v858 = vld [vmem:[#allocation9 + $0x468] sm:$0xff]
        %v859 = vld [vmem:[#allocation9 + $0x470] sm:$0xff]
        %v860 = vld [vmem:[#allocation9 + $0x478] sm:$0xff]
        %v861 = vld [vmem:[#allocation9 + $0x480] sm:$0xff]
        %v862 = vld [vmem:[#allocation9 + $0x488] sm:$0xff]
        %v863 = vld [vmem:[#allocation9 + $0x490] sm:$0xff]
        %v864 = vld [vmem:[#allocation9 + $0x498] sm:$0xff]
        %v865 = vld [vmem:[#allocation9 + $0x4a0] sm:$0xff]
        %v866 = vld [vmem:[#allocation9 + $0x4a8] sm:$0xff]
        %v867 = vld [vmem:[#allocation9 + $0x4b0] sm:$0xff]
        %v868 = vld [vmem:[#allocation9 + $0x4b8] sm:$0xff]
        %v869 = vld [vmem:[#allocation9 + $0x4c0] sm:$0xff]
        %v870 = vld [vmem:[#allocation9 + $0x4c8] sm:$0xff]
        %v871 = vld [vmem:[#allocation9 + $0x4d0] sm:$0xff]
        %v872 = vld [vmem:[#allocation9 + $0x4d8] sm:$0xff]
        %v873 = vld [vmem:[#allocation9 + $0x4e0] sm:$0xff]
        %v874 = vld [vmem:[#allocation9 + $0x4e8] sm:$0xff]
        %v875 = vld [vmem:[#allocation9 + $0x4f0] sm:$0xff]
        %v876 = vld [vmem:[#allocation9 + $0x4f8] sm:$0xff]
        %v877 = vld [vmem:[#allocation9 + $0x500] sm:$0xff]
        %v878 = vld [vmem:[#allocation9 + $0x508] sm:$0xff]
        %v879 = vld [vmem:[#allocation9 + $0x510] sm:$0xff]
        %v880 = vld [vmem:[#allocation9 + $0x518] sm:$0xff]
        %v881 = vld [vmem:[#allocation9 + $0x520] sm:$0xff]
        %v882 = vld [vmem:[#allocation9 + $0x528] sm:$0xff]
        %v883 = vld [vmem:[#allocation9 + $0x530] sm:$0xff]
        %v884 = vld [vmem:[#allocation9 + $0x538] sm:$0xff]
        %v885 = vld [vmem:[#allocation9 + $0x540] sm:$0xff]
        %v886 = vld [vmem:[#allocation9 + $0x548] sm:$0xff]
        %v887 = vld [vmem:[#allocation9 + $0x550] sm:$0xff]
        %v888 = vld [vmem:[#allocation9 + $0x558] sm:$0xff]
        %v889 = vld [vmem:[#allocation9 + $0x560] sm:$0xff]
        %v890 = vld [vmem:[#allocation9 + $0x568] sm:$0xff]
        %v891 = vld [vmem:[#allocation9 + $0x570] sm:$0xff]
        %v892 = vld [vmem:[#allocation9 + $0x578] sm:$0xff]
        %v893 = vld [vmem:[#allocation9 + $0x580] sm:$0xff]
        %v894 = vld [vmem:[#allocation9 + $0x588] sm:$0xff]
        %v895 = vld [vmem:[#allocation9 + $0x590] sm:$0xff]
        %v896 = vld [vmem:[#allocation9 + $0x598] sm:$0xff]
        %v897 = vld [vmem:[#allocation9 + $0x5a0] sm:$0xff]
        %v898 = vld [vmem:[#allocation9 + $0x5a8] sm:$0xff]
        %v899 = vld [vmem:[#allocation9 + $0x5b0] sm:$0xff]
        %v900 = vld [vmem:[#allocation9 + $0x5b8] sm:$0xff]
        %v901 = vld [vmem:[#allocation9 + $0x5c0] sm:$0xff]
        %v902 = vld [vmem:[#allocation9 + $0x5c8] sm:$0xff]
        %v903 = vld [vmem:[#allocation9 + $0x5d0] sm:$0xff]
        %v904 = vld [vmem:[#allocation9 + $0x5d8] sm:$0xff]
        %v905 = vld [vmem:[#allocation9 + $0x5e0] sm:$0xff]
        %v906 = vld [vmem:[#allocation9 + $0x5e8] sm:$0xff]
        %v907 = vld [vmem:[#allocation9 + $0x5f0] sm:$0xff]
        %v908 = vld [vmem:[#allocation9 + $0x5f8] sm:$0xff]
        %v909 = vld [vmem:[#allocation9 + $0x600] sm:$0xff]
        %v910 = vld [vmem:[#allocation9 + $0x608] sm:$0xff]
        %v911 = vld [vmem:[#allocation9 + $0x610] sm:$0xff]
        %v912 = vld [vmem:[#allocation9 + $0x618] sm:$0xff]
        %v913 = vld [vmem:[#allocation9 + $0x620] sm:$0xff]
        %v914 = vld [vmem:[#allocation9 + $0x628] sm:$0xff]
        %v915 = vld [vmem:[#allocation9 + $0x630] sm:$0xff]
        %v916 = vld [vmem:[#allocation9 + $0x638] sm:$0xff]
        %v917 = vld [vmem:[#allocation9 + $0x640] sm:$0xff]
        %v918 = vld [vmem:[#allocation9 + $0x648] sm:$0xff]
        %v919 = vld [vmem:[#allocation9 + $0x650] sm:$0xff]
        %v920 = vld [vmem:[#allocation9 + $0x658] sm:$0xff]
        %v921 = vld [vmem:[#allocation9 + $0x660] sm:$0xff]
        %v922 = vld [vmem:[#allocation9 + $0x668] sm:$0xff]
        %v923 = vld [vmem:[#allocation9 + $0x670] sm:$0xff]
        %v924 = vld [vmem:[#allocation9 + $0x678] sm:$0xff]
        %v925 = vld [vmem:[#allocation9 + $0x680] sm:$0xff]
        %v926 = vld [vmem:[#allocation9 + $0x688] sm:$0xff]
        %v927 = vld [vmem:[#allocation9 + $0x690] sm:$0xff]
        %v928 = vld [vmem:[#allocation9 + $0x698] sm:$0xff]
        %v929 = vld [vmem:[#allocation9 + $0x6a0] sm:$0xff]
        %v930 = vld [vmem:[#allocation9 + $0x6a8] sm:$0xff]
        %v931 = vld [vmem:[#allocation9 + $0x6b0] sm:$0xff]
        %v932 = vld [vmem:[#allocation9 + $0x6b8] sm:$0xff]
        %v933 = vld [vmem:[#allocation9 + $0x6c0] sm:$0xff]
        %v934 = vld [vmem:[#allocation9 + $0x6c8] sm:$0xff]
        %v935 = vld [vmem:[#allocation9 + $0x6d0] sm:$0xff]
        %v936 = vld [vmem:[#allocation9 + $0x6d8] sm:$0xff]
        %v937 = vld [vmem:[#allocation9 + $0x6e0] sm:$0xff]
        %v938 = vld [vmem:[#allocation9 + $0x6e8] sm:$0xff]
        %v939 = vld [vmem:[#allocation9 + $0x6f0] sm:$0xff]
        %v940 = vld [vmem:[#allocation9 + $0x6f8] sm:$0xff]
        %v941 = vld [vmem:[#allocation9 + $0x700] sm:$0xff]
        %v942 = vld [vmem:[#allocation9 + $0x708] sm:$0xff]
        %v943 = vld [vmem:[#allocation9 + $0x710] sm:$0xff]
        %v944 = vld [vmem:[#allocation9 + $0x718] sm:$0xff]
        %v945 = vld [vmem:[#allocation9 + $0x720] sm:$0xff]
        %v946 = vld [vmem:[#allocation9 + $0x728] sm:$0xff]
        %v947 = vld [vmem:[#allocation9 + $0x730] sm:$0xff]
        %v948 = vld [vmem:[#allocation9 + $0x738] sm:$0xff]
        %v949 = vld [vmem:[#allocation9 + $0x740] sm:$0xff]
        %v950 = vld [vmem:[#allocation9 + $0x748] sm:$0xff]
        %v951 = vld [vmem:[#allocation9 + $0x750] sm:$0xff]
        %v952 = vld [vmem:[#allocation9 + $0x758] sm:$0xff]
        %v953 = vld [vmem:[#allocation9 + $0x760] sm:$0xff]
        %v954 = vld [vmem:[#allocation9 + $0x768] sm:$0xff]
        %v955 = vld [vmem:[#allocation9 + $0x770] sm:$0xff]
        %v956 = vld [vmem:[#allocation9 + $0x778] sm:$0xff]
        %v957 = vld [vmem:[#allocation9 + $0x780] sm:$0xff]
        %v958 = vld [vmem:[#allocation9 + $0x788] sm:$0xff]
        %v959 = vld [vmem:[#allocation9 + $0x790] sm:$0xff]
        %v960 = vld [vmem:[#allocation9 + $0x798] sm:$0xff]
        %v961 = vld [vmem:[#allocation9 + $0x7a0] sm:$0xff]
        %v962 = vld [vmem:[#allocation9 + $0x7a8] sm:$0xff]
        %v963 = vld [vmem:[#allocation9 + $0x7b0] sm:$0xff]
        %v964 = vld [vmem:[#allocation9 + $0x7b8] sm:$0xff]
        %v965 = vld [vmem:[#allocation9 + $0x7c0] sm:$0xff]
        %v966 = vld [vmem:[#allocation9 + $0x7c8] sm:$0xff]
        %v967 = vld [vmem:[#allocation9 + $0x7d0] sm:$0xff]
        %v968 = vld [vmem:[#allocation9 + $0x7d8] sm:$0xff]
        %v969 = vld [vmem:[#allocation9 + $0x7e0] sm:$0xff]
        %v970 = vld [vmem:[#allocation9 + $0x7e8] sm:$0xff]
        %v971 = vld [vmem:[#allocation9 + $0x7f0] sm:$0xff]
        %v972 = vld [vmem:[#allocation9 + $0x7f8] sm:$0xff]
        %v973 = vld [vmem:[%s7] sm:$0xff]
        %v974 = vld [vmem:[#allocation10] sm:$0xff]
        %v975 = vld [vmem:[#allocation10 + $0x8] sm:$0xff]
        %v976 = vld [vmem:[#allocation10 + $0x10] sm:$0xff]
        %v977 = vld [vmem:[#allocation10 + $0x18] sm:$0xff]
        %v978 = vld [vmem:[#allocation10 + $0x20] sm:$0xff]
        %v979 = vld [vmem:[#allocation10 + $0x28] sm:$0xff]
        %v980 = vld [vmem:[#allocation10 + $0x30] sm:$0xff]
        %v981 = vld [vmem:[#allocation10 + $0x38] sm:$0xff]
        %v982 = vld [vmem:[#allocation10 + $0x40] sm:$0xff]
        %v983 = vld [vmem:[#allocation10 + $0x48] sm:$0xff]
        %v984 = vld [vmem:[#allocation10 + $0x50] sm:$0xff]
        %v985 = vld [vmem:[#allocation10 + $0x58] sm:$0xff]
        %v986 = vld [vmem:[#allocation10 + $0x60] sm:$0xff]
        %v987 = vld [vmem:[#allocation10 + $0x68] sm:$0xff]
        %v988 = vld [vmem:[#allocation10 + $0x70] sm:$0xff]
        %v989 = vld [vmem:[#allocation10 + $0x78] sm:$0xff]
        %v990 = vld [vmem:[#allocation10 + $0x80] sm:$0xff]
        %v991 = vld [vmem:[#allocation10 + $0x88] sm:$0xff]
        %v992 = vld [vmem:[#allocation10 + $0x90] sm:$0xff]
        %v993 = vld [vmem:[#allocation10 + $0x98] sm:$0xff]
        %v994 = vld [vmem:[#allocation10 + $0xa0] sm:$0xff]
        %v995 = vld [vmem:[#allocation10 + $0xa8] sm:$0xff]
        %v996 = vld [vmem:[#allocation10 + $0xb0] sm:$0xff]
        %v997 = vld [vmem:[#allocation10 + $0xb8] sm:$0xff]
        %v998 = vld [vmem:[#allocation10 + $0xc0] sm:$0xff]
        %v999 = vld [vmem:[#allocation10 + $0xc8] sm:$0xff]
        %v1000 = vld [vmem:[#allocation10 + $0xd0] sm:$0xff]
        %v1001 = vld [vmem:[#allocation10 + $0xd8] sm:$0xff]
        %v1002 = vld [vmem:[#allocation10 + $0xe0] sm:$0xff]
        %v1003 = vld [vmem:[#allocation10 + $0xe8] sm:$0xff]
        %v1004 = vld [vmem:[#allocation10 + $0xf0] sm:$0xff]
        %v1005 = vld [vmem:[#allocation10 + $0xf8] sm:$0xff]
        %v1006 = vld [vmem:[#allocation10 + $0x100] sm:$0xff]
        %v1007 = vld [vmem:[#allocation10 + $0x108] sm:$0xff]
        %v1008 = vld [vmem:[#allocation10 + $0x110] sm:$0xff]
        %v1009 = vld [vmem:[#allocation10 + $0x118] sm:$0xff]
        %v1010 = vld [vmem:[#allocation10 + $0x120] sm:$0xff]
        %v1011 = vld [vmem:[#allocation10 + $0x128] sm:$0xff]
        %v1012 = vld [vmem:[#allocation10 + $0x130] sm:$0xff]
        %v1013 = vld [vmem:[#allocation10 + $0x138] sm:$0xff]
        %v1014 = vld [vmem:[#allocation10 + $0x140] sm:$0xff]
        %v1015 = vld [vmem:[#allocation10 + $0x148] sm:$0xff]
        %v1016 = vld [vmem:[#allocation10 + $0x150] sm:$0xff]
        %v1017 = vld [vmem:[#allocation10 + $0x158] sm:$0xff]
        %v1018 = vld [vmem:[#allocation10 + $0x160] sm:$0xff]
        %v1019 = vld [vmem:[#allocation10 + $0x168] sm:$0xff]
        %v1020 = vld [vmem:[#allocation10 + $0x170] sm:$0xff]
        %v1021 = vld [vmem:[#allocation10 + $0x178] sm:$0xff]
        %v1022 = vld [vmem:[#allocation10 + $0x180] sm:$0xff]
        %v1023 = vld [vmem:[#allocation10 + $0x188] sm:$0xff]
        %v1024 = vld [vmem:[#allocation10 + $0x190] sm:$0xff]
        %v1025 = vld [vmem:[#allocation10 + $0x198] sm:$0xff]
        %v1026 = vld [vmem:[#allocation10 + $0x1a0] sm:$0xff]
        %v1027 = vld [vmem:[#allocation10 + $0x1a8] sm:$0xff]
        %v1028 = vld [vmem:[#allocation10 + $0x1b0] sm:$0xff]
        %v1029 = vld [vmem:[#allocation10 + $0x1b8] sm:$0xff]
        %v1030 = vld [vmem:[#allocation10 + $0x1c0] sm:$0xff]
        %v1031 = vld [vmem:[#allocation10 + $0x1c8] sm:$0xff]
        %v1032 = vld [vmem:[#allocation10 + $0x1d0] sm:$0xff]
        %v1033 = vld [vmem:[#allocation10 + $0x1d8] sm:$0xff]
        %v1034 = vld [vmem:[#allocation10 + $0x1e0] sm:$0xff]
        %v1035 = vld [vmem:[#allocation10 + $0x1e8] sm:$0xff]
        %v1036 = vld [vmem:[#allocation10 + $0x1f0] sm:$0xff]
        %v1037 = vld [vmem:[#allocation10 + $0x1f8] sm:$0xff]
        %v1038 = vld [vmem:[#allocation10 + $0x200] sm:$0xff]
        %v1039 = vld [vmem:[#allocation10 + $0x208] sm:$0xff]
        %v1040 = vld [vmem:[#allocation10 + $0x210] sm:$0xff]
        %v1041 = vld [vmem:[#allocation10 + $0x218] sm:$0xff]
        %v1042 = vld [vmem:[#allocation10 + $0x220] sm:$0xff]
        %v1043 = vld [vmem:[#allocation10 + $0x228] sm:$0xff]
        %v1044 = vld [vmem:[#allocation10 + $0x230] sm:$0xff]
        %v1045 = vld [vmem:[#allocation10 + $0x238] sm:$0xff]
        %v1046 = vld [vmem:[#allocation10 + $0x240] sm:$0xff]
        %v1047 = vld [vmem:[#allocation10 + $0x248] sm:$0xff]
        %v1048 = vld [vmem:[#allocation10 + $0x250] sm:$0xff]
        %v1049 = vld [vmem:[#allocation10 + $0x258] sm:$0xff]
        %v1050 = vld [vmem:[#allocation10 + $0x260] sm:$0xff]
        %v1051 = vld [vmem:[#allocation10 + $0x268] sm:$0xff]
        %v1052 = vld [vmem:[#allocation10 + $0x270] sm:$0xff]
        %v1053 = vld [vmem:[#allocation10 + $0x278] sm:$0xff]
        %v1054 = vld [vmem:[#allocation10 + $0x280] sm:$0xff]
        %v1055 = vld [vmem:[#allocation10 + $0x288] sm:$0xff]
        %v1056 = vld [vmem:[#allocation10 + $0x290] sm:$0xff]
        %v1057 = vld [vmem:[#allocation10 + $0x298] sm:$0xff]
        %v1058 = vld [vmem:[#allocation10 + $0x2a0] sm:$0xff]
        %v1059 = vld [vmem:[#allocation10 + $0x2a8] sm:$0xff]
        %v1060 = vld [vmem:[#allocation10 + $0x2b0] sm:$0xff]
        %v1061 = vld [vmem:[#allocation10 + $0x2b8] sm:$0xff]
        %v1062 = vld [vmem:[#allocation10 + $0x2c0] sm:$0xff]
        %v1063 = vld [vmem:[#allocation10 + $0x2c8] sm:$0xff]
        %v1064 = vld [vmem:[#allocation10 + $0x2d0] sm:$0xff]
        %v1065 = vld [vmem:[#allocation10 + $0x2d8] sm:$0xff]
        %v1066 = vld [vmem:[#allocation10 + $0x2e0] sm:$0xff]
        %v1067 = vld [vmem:[#allocation10 + $0x2e8] sm:$0xff]
        %v1068 = vld [vmem:[#allocation10 + $0x2f0] sm:$0xff]
        %v1069 = vld [vmem:[#allocation10 + $0x2f8] sm:$0xff]
        %v1070 = vld [vmem:[#allocation10 + $0x300] sm:$0xff]
        %v1071 = vld [vmem:[#allocation10 + $0x308] sm:$0xff]
        %v1072 = vld [vmem:[#allocation10 + $0x310] sm:$0xff]
        %v1073 = vld [vmem:[#allocation10 + $0x318] sm:$0xff]
        %v1074 = vld [vmem:[#allocation10 + $0x320] sm:$0xff]
        %v1075 = vld [vmem:[#allocation10 + $0x328] sm:$0xff]
        %v1076 = vld [vmem:[#allocation10 + $0x330] sm:$0xff]
        %v1077 = vld [vmem:[#allocation10 + $0x338] sm:$0xff]
        %v1078 = vld [vmem:[#allocation10 + $0x340] sm:$0xff]
        %v1079 = vld [vmem:[#allocation10 + $0x348] sm:$0xff]
        %v1080 = vld [vmem:[#allocation10 + $0x350] sm:$0xff]
        %v1081 = vld [vmem:[#allocation10 + $0x358] sm:$0xff]
        %v1082 = vld [vmem:[#allocation10 + $0x360] sm:$0xff]
        %v1083 = vld [vmem:[#allocation10 + $0x368] sm:$0xff]
        %v1084 = vld [vmem:[#allocation10 + $0x370] sm:$0xff]
        %v1085 = vld [vmem:[#allocation10 + $0x378] sm:$0xff]
        %v1086 = vld [vmem:[#allocation10 + $0x380] sm:$0xff]
        %v1087 = vld [vmem:[#allocation10 + $0x388] sm:$0xff]
        %v1088 = vld [vmem:[#allocation10 + $0x390] sm:$0xff]
        %v1089 = vld [vmem:[#allocation10 + $0x398] sm:$0xff]
        %v1090 = vld [vmem:[#allocation10 + $0x3a0] sm:$0xff]
        %v1091 = vld [vmem:[#allocation10 + $0x3a8] sm:$0xff]
        %v1092 = vld [vmem:[#allocation10 + $0x3b0] sm:$0xff]
        %v1093 = vld [vmem:[#allocation10 + $0x3b8] sm:$0xff]
        %v1094 = vld [vmem:[#allocation10 + $0x3c0] sm:$0xff]
        %v1095 = vld [vmem:[#allocation10 + $0x3c8] sm:$0xff]
        %v1096 = vld [vmem:[#allocation10 + $0x3d0] sm:$0xff]
        %v1097 = vld [vmem:[#allocation10 + $0x3d8] sm:$0xff]
        %v1098 = vld [vmem:[#allocation10 + $0x3e0] sm:$0xff]
        %v1099 = vld [vmem:[#allocation10 + $0x3e8] sm:$0xff]
        %v1100 = vld [vmem:[#allocation10 + $0x3f0] sm:$0xff]
        %v1101 = vld [vmem:[#allocation10 + $0x3f8] sm:$0xff]
        %v1102 = vld [vmem:[#allocation12] sm:$0xff]
        %v1103 = vld [vmem:[#allocation12 + $0x8] sm:$0xff]
        %v1104 = vld [vmem:[#allocation12 + $0x10] sm:$0xff]
        %v1105 = vld [vmem:[#allocation12 + $0x18] sm:$0xff]
        %v1106 = vld [vmem:[#allocation12 + $0x20] sm:$0xff]
        %v1107 = vld [vmem:[#allocation12 + $0x28] sm:$0xff]
        %v1108 = vld [vmem:[#allocation12 + $0x30] sm:$0xff]
        %v1109 = vld [vmem:[#allocation12 + $0x38] sm:$0xff]
        %v1110 = vld [vmem:[#allocation12 + $0x40] sm:$0xff]
        %v1111 = vld [vmem:[#allocation12 + $0x48] sm:$0xff]
        %v1112 = vld [vmem:[#allocation12 + $0x50] sm:$0xff]
        %v1113 = vld [vmem:[#allocation12 + $0x58] sm:$0xff]
        %v1114 = vld [vmem:[#allocation12 + $0x60] sm:$0xff]
        %v1115 = vld [vmem:[#allocation12 + $0x68] sm:$0xff]
        %v1116 = vld [vmem:[#allocation12 + $0x70] sm:$0xff]
        %v1117 = vld [vmem:[#allocation12 + $0x78] sm:$0xff]
        %v1118 = vld [vmem:[#allocation12 + $0x80] sm:$0xff]
        %v1119 = vld [vmem:[#allocation12 + $0x88] sm:$0xff]
        %v1120 = vld [vmem:[#allocation12 + $0x90] sm:$0xff]
        %v1121 = vld [vmem:[#allocation12 + $0x98] sm:$0xff]
        %v1122 = vld [vmem:[#allocation12 + $0xa0] sm:$0xff]
        %v1123 = vld [vmem:[#allocation12 + $0xa8] sm:$0xff]
        %v1124 = vld [vmem:[#allocation12 + $0xb0] sm:$0xff]
        %v1125 = vld [vmem:[#allocation12 + $0xb8] sm:$0xff]
        %v1126 = vld [vmem:[#allocation12 + $0xc0] sm:$0xff]
        %v1127 = vld [vmem:[#allocation12 + $0xc8] sm:$0xff]
        %v1128 = vld [vmem:[#allocation12 + $0xd0] sm:$0xff]
        %v1129 = vld [vmem:[#allocation12 + $0xd8] sm:$0xff]
        %v1130 = vld [vmem:[#allocation12 + $0xe0] sm:$0xff]
        %v1131 = vld [vmem:[#allocation12 + $0xe8] sm:$0xff]
        %v1132 = vld [vmem:[#allocation12 + $0xf0] sm:$0xff]
        %v1133 = vld [vmem:[#allocation12 + $0xf8] sm:$0xff]
        %v1134 = vld [vmem:[#allocation12 + $0x100] sm:$0xff]
        %v1135 = vld [vmem:[#allocation12 + $0x108] sm:$0xff]
        %v1136 = vld [vmem:[#allocation12 + $0x110] sm:$0xff]
        %v1137 = vld [vmem:[#allocation12 + $0x118] sm:$0xff]
        %v1138 = vld [vmem:[#allocation12 + $0x120] sm:$0xff]
        %v1139 = vld [vmem:[#allocation12 + $0x128] sm:$0xff]
        %v1140 = vld [vmem:[#allocation12 + $0x130] sm:$0xff]
        %v1141 = vld [vmem:[#allocation12 + $0x138] sm:$0xff]
        %v1142 = vld [vmem:[#allocation12 + $0x140] sm:$0xff]
        %v1143 = vld [vmem:[#allocation12 + $0x148] sm:$0xff]
        %v1144 = vld [vmem:[#allocation12 + $0x150] sm:$0xff]
        %v1145 = vld [vmem:[#allocation12 + $0x158] sm:$0xff]
        %v1146 = vld [vmem:[#allocation12 + $0x160] sm:$0xff]
        %v1147 = vld [vmem:[#allocation12 + $0x168] sm:$0xff]
        %v1148 = vld [vmem:[#allocation12 + $0x170] sm:$0xff]
        %v1149 = vld [vmem:[#allocation12 + $0x178] sm:$0xff]
        %v1150 = vld [vmem:[#allocation12 + $0x180] sm:$0xff]
        %v1151 = vld [vmem:[#allocation12 + $0x188] sm:$0xff]
        %v1152 = vld [vmem:[#allocation12 + $0x190] sm:$0xff]
        %v1153 = vld [vmem:[#allocation12 + $0x198] sm:$0xff]
        %v1154 = vld [vmem:[#allocation12 + $0x1a0] sm:$0xff]
        %v1155 = vld [vmem:[#allocation12 + $0x1a8] sm:$0xff]
        %v1156 = vld [vmem:[#allocation12 + $0x1b0] sm:$0xff]
        %v1157 = vld [vmem:[#allocation12 + $0x1b8] sm:$0xff]
        %v1158 = vld [vmem:[#allocation12 + $0x1c0] sm:$0xff]
        %v1159 = vld [vmem:[#allocation12 + $0x1c8] sm:$0xff]
        %v1160 = vld [vmem:[#allocation12 + $0x1d0] sm:$0xff]
        %v1161 = vld [vmem:[#allocation12 + $0x1d8] sm:$0xff]
        %v1162 = vld [vmem:[#allocation12 + $0x1e0] sm:$0xff]
        %v1163 = vld [vmem:[#allocation12 + $0x1e8] sm:$0xff]
        %v1164 = vld [vmem:[#allocation12 + $0x1f0] sm:$0xff]
        %v1165 = vld [vmem:[#allocation12 + $0x1f8] sm:$0xff]
        %v1166 = vld [vmem:[%s10] sm:$0xf]
        %v1167 = vld [vmem:[%s11] sm:$0xff]
        %v1168 = vld [vmem:[%s11 + $0x8] sm:$0xff]
        %v1169 = vld [vmem:[%s11 + $0x10] sm:$0xff]
        %v1170 = vld [vmem:[%s11 + $0x18] sm:$0xff]
        %v1171 = vld [vmem:[%s11 + $0x20] sm:$0xff]
        %v1172 = vld [vmem:[%s11 + $0x28] sm:$0xff]
        %v1173 = vld [vmem:[%s11 + $0x30] sm:$0xff]
        %v1174 = vld [vmem:[%s11 + $0x38] sm:$0xff]
        %v1175 = vld [vmem:[%s11 + $0x40] sm:$0xff]
        %v1176 = vld [vmem:[%s11 + $0x48] sm:$0xff]
        %v1177 = vld [vmem:[%s11 + $0x50] sm:$0xff]
        %v1178 = vld [vmem:[%s11 + $0x58] sm:$0xff]
        %v1179 = vld [vmem:[%s11 + $0x60] sm:$0xff]
        %v1180 = vld [vmem:[%s11 + $0x68] sm:$0xff]
        %v1181 = vld [vmem:[%s11 + $0x70] sm:$0xff]
        %v1182 = vld [vmem:[%s11 + $0x78] sm:$0xff]
        %v1183 = vld [vmem:[%s12] sm:$0x1]
        %vm1187 = vcmask 1046528
        %v1188 = vrot.slane %v521, 1
        %v1189 = vrot.slane %v522, 1
        %v1190 = vsel %vm1187, %v1188, %v1189
        %v1191 = vrot.slane %v523, 1
        %v1192 = vsel %vm1187, %v1189, %v1191
        %vm1193 = vcmask 15360
        %v1194 = vsel %vm1193, %v1190, 0
        %v1196 = vsel %vm1193, %v1192, 0
        %v1198 = vsel %vm1193, %v1191, 0
        %vm1200 = vcmask 1041408
        %v1202 = vsel %vm1200, %v525, 0
        %1204 = vmatpush.msra.mxu0 0.0
        %1205 = vmatpush.msra.mxu0 0.0
        %1206 = vmatpush.msra.mxu0 0.0
        %1207 = vmatpush.msra.mxu0 0.0
        %1208 = vmatpush.msra.mxu0 0.0
        %1209 = vmatpush.msra.mxu0 0.0
        %1210 = vmatpush.msra.mxu0 0.0
        %1211 = vmatpush.msra.mxu0 0.0
        %1212 = vmatpush.msra.mxu0 0.0
        %1213 = vmatpush.msra.mxu0 0.0
        %1214 = vmatpush.msra.mxu0 0.0
        %1215 = vmatpush.msra.mxu0 0.0
        %1216 = vmatpush.msra.mxu0 0.0
        %1217 = vmatpush.msra.mxu0 0.0
        %1218 = vmatpush.msra.mxu0 0.0
        %1219 = vmatpush.msra.mxu0 %v1202
        %1220 = vmatmul.f32.gmra.mxu0 %v1194
        %v1221 = vpop.f32.mrf.mxu0
        %v1222 = vadd.f32 0.0, %v1221
        %1223 = vmatmul.f32.gmra.mxu0 %v1196
        %v1224 = vpop.f32.mrf.mxu0
        %v1225 = vadd.f32 0.0, %v1224
        %1226 = vmatmul.f32.gmra.mxu0 %v1198
        %v1227 = vpop.f32.mrf.mxu0
        %v1228 = vadd.f32 0.0, %v1227
        %1229 = vdwg.mxu0
        %v1230 = vsel %vm1193, %v521, 0
        %v1232 = vsel %vm1193, %v522, 0
        %v1234 = vsel %vm1193, %v523, 0
        %v1237 = vsel %vm1200, %v524, 0
        %1239 = vmatpush.msra.mxu0 0.0
        %1240 = vmatpush.msra.mxu0 0.0
        %1241 = vmatpush.msra.mxu0 0.0
        %1242 = vmatpush.msra.mxu0 0.0
        %1243 = vmatpush.msra.mxu0 0.0
        %1244 = vmatpush.msra.mxu0 0.0
        %1245 = vmatpush.msra.mxu0 0.0
        %1246 = vmatpush.msra.mxu0 0.0
        %1247 = vmatpush.msra.mxu0 0.0
        %1248 = vmatpush.msra.mxu0 0.0
        %1249 = vmatpush.msra.mxu0 0.0
        %1250 = vmatpush.msra.mxu0 0.0
        %1251 = vmatpush.msra.mxu0 0.0
        %1252 = vmatpush.msra.mxu0 0.0
        %1253 = vmatpush.msra.mxu0 0.0
        %1254 = vmatpush.msra.mxu0 %v1237
        %1255 = vmatmul.f32.gmra.mxu0 %v1230
        %v1256 = vpop.f32.mrf.mxu0
        %v1257 = vadd.f32 %v1222, %v1256
        %1258 = vmatmul.f32.gmra.mxu0 %v1232
        %v1259 = vpop.f32.mrf.mxu0
        %v1260 = vadd.f32 %v1225, %v1259
        %1261 = vmatmul.f32.gmra.mxu0 %v1234
        %v1262 = vpop.f32.mrf.mxu0
        %v1263 = vadd.f32 %v1228, %v1262
        %1264 = vdwg.mxu0
        %vm1265 = vcmask 1045504
        %v1266 = vrot.slane %v521, 2
        %v1267 = vrot.slane %v522, 2
        %v1268 = vsel %vm1265, %v1266, %v1267
        %v1269 = vrot.slane %v523, 2
        %v1270 = vsel %vm1265, %v1267, %v1269
        %v1271 = vsel %vm1193, %v1268, 0
        %v1273 = vsel %vm1193, %v1270, 0
        %v1275 = vsel %vm1193, %v1269, 0
        %v1278 = vsel %vm1200, %v526, 0
        %1280 = vmatpush.msra.mxu0 0.0
        %1281 = vmatpush.msra.mxu0 0.0
        %1282 = vmatpush.msra.mxu0 0.0
        %1283 = vmatpush.msra.mxu0 0.0
        %1284 = vmatpush.msra.mxu0 0.0
        %1285 = vmatpush.msra.mxu0 0.0
        %1286 = vmatpush.msra.mxu0 0.0
        %1287 = vmatpush.msra.mxu0 0.0
        %1288 = vmatpush.msra.mxu0 0.0
        %1289 = vmatpush.msra.mxu0 0.0
        %1290 = vmatpush.msra.mxu0 0.0
        %1291 = vmatpush.msra.mxu0 0.0
        %1292 = vmatpush.msra.mxu0 0.0
        %1293 = vmatpush.msra.mxu0 0.0
        %1294 = vmatpush.msra.mxu0 0.0
        %1295 = vmatpush.msra.mxu0 %v1278
        %1296 = vmatmul.f32.gmra.mxu0 %v1271
        %v1297 = vpop.f32.mrf.mxu0
        %v1298 = vadd.f32 0.0, %v1297
        %1299 = vmatmul.f32.gmra.mxu0 %v1273
        %v1300 = vpop.f32.mrf.mxu0
        %v1301 = vadd.f32 0.0, %v1300
        %1302 = vmatmul.f32.gmra.mxu0 %v1275
        %v1303 = vpop.f32.mrf.mxu0
        %v1304 = vadd.f32 0.0, %v1303
        %1305 = vdwg.mxu0
        %v1306 = vadd.f32 %v1257, %v1298
        %v1307 = vadd.f32 %v1260, %v1301
        %v1308 = vadd.f32 %v1263, %v1304
        %vm1309 = vcmask 1044480
        %v1310 = vrot.slane %v521, 3
        %v1311 = vrot.slane %v522, 3
        %v1312 = vsel %vm1309, %v1310, %v1311
        %v1313 = vrot.slane %v523, 3
        %v1314 = vsel %vm1309, %v1311, %v1313
        %v1315 = vsel %vm1193, %v1312, 0
        %v1317 = vsel %vm1193, %v1314, 0
        %v1319 = vsel %vm1193, %v1313, 0
        %v1322 = vsel %vm1200, %v527, 0
        %1324 = vmatpush.msra.mxu0 0.0
        %1325 = vmatpush.msra.mxu0 0.0
        %1326 = vmatpush.msra.mxu0 0.0
        %1327 = vmatpush.msra.mxu0 0.0
        %1328 = vmatpush.msra.mxu0 0.0
        %1329 = vmatpush.msra.mxu0 0.0
        %1330 = vmatpush.msra.mxu0 0.0
        %1331 = vmatpush.msra.mxu0 0.0
        %1332 = vmatpush.msra.mxu0 0.0
        %1333 = vmatpush.msra.mxu0 0.0
        %1334 = vmatpush.msra.mxu0 0.0
        %1335 = vmatpush.msra.mxu0 0.0
        %1336 = vmatpush.msra.mxu0 0.0
        %1337 = vmatpush.msra.mxu0 0.0
        %1338 = vmatpush.msra.mxu0 0.0
        %1339 = vmatpush.msra.mxu0 %v1322
        %1340 = vmatmul.f32.gmra.mxu0 %v1315
        %v1341 = vpop.f32.mrf.mxu0
        %v1342 = vadd.f32 0.0, %v1341
        %1343 = vmatmul.f32.gmra.mxu0 %v1317
        %v1344 = vpop.f32.mrf.mxu0
        %v1345 = vadd.f32 0.0, %v1344
        %1346 = vmatmul.f32.gmra.mxu0 %v1319
        %v1347 = vpop.f32.mrf.mxu0
        %v1348 = vadd.f32 0.0, %v1347
        %1349 = vdwg.mxu0
        %v1350 = vadd.f32 %v1306, %v1342
        %v1351 = vadd.f32 %v1307, %v1345
        %v1352 = vadd.f32 %v1308, %v1348
        %vm1353 = vcmask 1043456
        %v1354 = vrot.slane %v521, 4
        %v1355 = vrot.slane %v522, 4
        %v1356 = vsel %vm1353, %v1354, %v1355
        %v1357 = vrot.slane %v523, 4
        %v1358 = vsel %vm1353, %v1355, %v1357
        %v1359 = vsel %vm1193, %v1356, 0
        %v1361 = vsel %vm1193, %v1358, 0
        %v1363 = vsel %vm1193, %v1357, 0
        %v1366 = vsel %vm1200, %v528, 0
        %1368 = vmatpush.msra.mxu0 0.0
        %1369 = vmatpush.msra.mxu0 0.0
        %1370 = vmatpush.msra.mxu0 0.0
        %1371 = vmatpush.msra.mxu0 0.0
        %1372 = vmatpush.msra.mxu0 0.0
        %1373 = vmatpush.msra.mxu0 0.0
        %1374 = vmatpush.msra.mxu0 0.0
        %1375 = vmatpush.msra.mxu0 0.0
        %1376 = vmatpush.msra.mxu0 0.0
        %1377 = vmatpush.msra.mxu0 0.0
        %1378 = vmatpush.msra.mxu0 0.0
        %1379 = vmatpush.msra.mxu0 0.0
        %1380 = vmatpush.msra.mxu0 0.0
        %1381 = vmatpush.msra.mxu0 0.0
        %1382 = vmatpush.msra.mxu0 0.0
        %1383 = vmatpush.msra.mxu0 %v1366
        %1384 = vmatmul.f32.gmra.mxu0 %v1359
        %v1385 = vpop.f32.mrf.mxu0
        %v1386 = vadd.f32 0.0, %v1385
        %1387 = vmatmul.f32.gmra.mxu0 %v1361
        %v1388 = vpop.f32.mrf.mxu0
        %v1389 = vadd.f32 0.0, %v1388
        %1390 = vmatmul.f32.gmra.mxu0 %v1363
        %v1391 = vpop.f32.mrf.mxu0
        %v1392 = vadd.f32 0.0, %v1391
        %1393 = vdwg.mxu0
        %v1394 = vadd.f32 %v1350, %v1386
        %v1395 = vadd.f32 %v1351, %v1389
        %v1396 = vadd.f32 %v1352, %v1392
        %vm1397 = vcmask 1042432
        %v1398 = vrot.slane %v521, 5
        %v1399 = vrot.slane %v522, 5
        %v1400 = vsel %vm1397, %v1398, %v1399
        %v1401 = vrot.slane %v523, 5
        %v1402 = vsel %vm1397, %v1399, %v1401
        %v1403 = vsel %vm1193, %v1400, 0
        %v1405 = vsel %vm1193, %v1402, 0
        %v1407 = vsel %vm1193, %v1401, 0
        %v1410 = vsel %vm1200, %v529, 0
        %1412 = vmatpush.msra.mxu0 0.0
        %1413 = vmatpush.msra.mxu0 0.0
        %1414 = vmatpush.msra.mxu0 0.0
        %1415 = vmatpush.msra.mxu0 0.0
        %1416 = vmatpush.msra.mxu0 0.0
        %1417 = vmatpush.msra.mxu0 0.0
        %1418 = vmatpush.msra.mxu0 0.0
        %1419 = vmatpush.msra.mxu0 0.0
        %1420 = vmatpush.msra.mxu0 0.0
        %1421 = vmatpush.msra.mxu0 0.0
        %1422 = vmatpush.msra.mxu0 0.0
        %1423 = vmatpush.msra.mxu0 0.0
        %1424 = vmatpush.msra.mxu0 0.0
        %1425 = vmatpush.msra.mxu0 0.0
        %1426 = vmatpush.msra.mxu0 0.0
        %1427 = vmatpush.msra.mxu0 %v1410
        %1428 = vmatmul.f32.gmra.mxu0 %v1403
        %v1429 = vpop.f32.mrf.mxu0
        %v1430 = vadd.f32 0.0, %v1429
        %1431 = vmatmul.f32.gmra.mxu0 %v1405
        %v1432 = vpop.f32.mrf.mxu0
        %v1433 = vadd.f32 0.0, %v1432
        %1434 = vmatmul.f32.gmra.mxu0 %v1407
        %v1435 = vpop.f32.mrf.mxu0
        %v1436 = vadd.f32 0.0, %v1435
        %1437 = vdwg.mxu0
        %v1438 = vadd.f32 %v1394, %v1430
        %v1439 = vadd.f32 %v1395, %v1433
        %v1440 = vadd.f32 %v1396, %v1436
        %v1441 = vrot.slane %v521, 6
        %v1442 = vrot.slane %v522, 6
        %v1443 = vsel %vm1200, %v1441, %v1442
        %v1444 = vrot.slane %v523, 6
        %v1445 = vsel %vm1200, %v1442, %v1444
        %v1446 = vsel %vm1193, %v1443, 0
        %v1448 = vsel %vm1193, %v1445, 0
        %v1450 = vsel %vm1193, %v1444, 0
        %v1453 = vsel %vm1200, %v530, 0
        %1455 = vmatpush.msra.mxu0 0.0
        %1456 = vmatpush.msra.mxu0 0.0
        %1457 = vmatpush.msra.mxu0 0.0
        %1458 = vmatpush.msra.mxu0 0.0
        %1459 = vmatpush.msra.mxu0 0.0
        %1460 = vmatpush.msra.mxu0 0.0
        %1461 = vmatpush.msra.mxu0 0.0
        %1462 = vmatpush.msra.mxu0 0.0
        %1463 = vmatpush.msra.mxu0 0.0
        %1464 = vmatpush.msra.mxu0 0.0
        %1465 = vmatpush.msra.mxu0 0.0
        %1466 = vmatpush.msra.mxu0 0.0
        %1467 = vmatpush.msra.mxu0 0.0
        %1468 = vmatpush.msra.mxu0 0.0
        %1469 = vmatpush.msra.mxu0 0.0
        %1470 = vmatpush.msra.mxu0 %v1453
        %1471 = vmatmul.f32.gmra.mxu0 %v1446
        %v1472 = vpop.f32.mrf.mxu0
        %v1473 = vadd.f32 0.0, %v1472
        %1474 = vmatmul.f32.gmra.mxu0 %v1448
        %v1475 = vpop.f32.mrf.mxu0
        %v1476 = vadd.f32 0.0, %v1475
        %1477 = vmatmul.f32.gmra.mxu0 %v1450
        %v1478 = vpop.f32.mrf.mxu0
        %v1479 = vadd.f32 0.0, %v1478
        %1480 = vdwg.mxu0
        %v1481 = vadd.f32 %v1438, %v1473
        %v1482 = vadd.f32 %v1439, %v1476
        %v1483 = vadd.f32 %v1440, %v1479
        %v1485 = vperm.slane %v531, 0
        %v1487 = vadd.f32 %v1481, %v1485
        %v1488 = vadd.f32 %v1482, %v1485
        %v1489 = vadd.f32 %v1483, %v1485
        %v1490 = vmul.f32 %v1487, 0.01
        %v1491 = vmul.f32 %v1488, 0.01
        %v1492 = vmul.f32 %v1489, 0.01
        %v1493 = vmax.f32 %v1487, %v1490
        %v1494 = vmax.f32 %v1488, %v1491
        %v1495 = vmax.f32 %v1489, %v1492
        %v1498 = vrot.slane %v1493, 1
        %v1499 = vrot.slane %v1494, 1
        %v1500 = vsel %vm1187, %v1498, %v1499
        %vm1501 = vcmask 523264
        %v1502 = vsel %vm1501, %v1500, 0
        %v1504 = vsel %vm1501, %v1499, 0
        %1506 = vmatpush.msra.mxu0 0.0
        %1507 = vmatpush.msra.mxu0 0.0
        %1508 = vmatpush.msra.mxu0 0.0
        %1509 = vmatpush.msra.mxu0 0.0
        %1510 = vmatpush.msra.mxu0 0.0
        %1511 = vmatpush.msra.mxu0 0.0
        %1512 = vmatpush.msra.mxu0 0.0
        %1513 = vmatpush.msra.mxu0 0.0
        %1514 = vmatpush.msra.mxu0 %v547
        %1515 = vmatpush.msra.mxu0 %v546
        %1516 = vmatpush.msra.mxu0 %v545
        %1517 = vmatpush.msra.mxu0 %v544
        %1518 = vmatpush.msra.mxu0 %v543
        %1519 = vmatpush.msra.mxu0 %v542
        %1520 = vmatpush.msra.mxu0 %v541
        %1521 = vmatpush.msra.mxu0 %v540
        %1522 = vmatmul.f32.gmra.mxu0 %v1502
        %v1523 = vpop.f32.mrf.mxu0
        %v1524 = vadd.f32 0.0, %v1523
        %1525 = vmatmul.f32.gmra.mxu0 %v1504
        %v1526 = vpop.f32.mrf.mxu0
        %v1527 = vadd.f32 0.0, %v1526
        %1528 = vdwg.mxu0
        %v1529 = vsel %vm1501, %v1493, 0
        %v1531 = vsel %vm1501, %v1494, 0
        %1533 = vmatpush.msra.mxu0 0.0
        %1534 = vmatpush.msra.mxu0 0.0
        %1535 = vmatpush.msra.mxu0 0.0
        %1536 = vmatpush.msra.mxu0 0.0
        %1537 = vmatpush.msra.mxu0 0.0
        %1538 = vmatpush.msra.mxu0 0.0
        %1539 = vmatpush.msra.mxu0 0.0
        %1540 = vmatpush.msra.mxu0 0.0
        %1541 = vmatpush.msra.mxu0 %v539
        %1542 = vmatpush.msra.mxu0 %v538
        %1543 = vmatpush.msra.mxu0 %v537
        %1544 = vmatpush.msra.mxu0 %v536
        %1545 = vmatpush.msra.mxu0 %v535
        %1546 = vmatpush.msra.mxu0 %v534
        %1547 = vmatpush.msra.mxu0 %v533
        %1548 = vmatpush.msra.mxu0 %v532
        %1549 = vmatmul.f32.gmra.mxu0 %v1529
        %v1550 = vpop.f32.mrf.mxu0
        %v1551 = vadd.f32 %v1524, %v1550
        %1552 = vmatmul.f32.gmra.mxu0 %v1531
        %v1553 = vpop.f32.mrf.mxu0
        %v1554 = vadd.f32 %v1527, %v1553
        %1555 = vdwg.mxu0
        %v1556 = vrot.slane %v1493, 2
        %v1557 = vrot.slane %v1494, 2
        %v1558 = vsel %vm1265, %v1556, %v1557
        %v1559 = vsel %vm1501, %v1558, 0
        %v1561 = vsel %vm1501, %v1557, 0
        %1563 = vmatpush.msra.mxu0 0.0
        %1564 = vmatpush.msra.mxu0 0.0
        %1565 = vmatpush.msra.mxu0 0.0
        %1566 = vmatpush.msra.mxu0 0.0
        %1567 = vmatpush.msra.mxu0 0.0
        %1568 = vmatpush.msra.mxu0 0.0
        %1569 = vmatpush.msra.mxu0 0.0
        %1570 = vmatpush.msra.mxu0 0.0
        %1571 = vmatpush.msra.mxu0 %v555
        %1572 = vmatpush.msra.mxu0 %v554
        %1573 = vmatpush.msra.mxu0 %v553
        %1574 = vmatpush.msra.mxu0 %v552
        %1575 = vmatpush.msra.mxu0 %v551
        %1576 = vmatpush.msra.mxu0 %v550
        %1577 = vmatpush.msra.mxu0 %v549
        %1578 = vmatpush.msra.mxu0 %v548
        %1579 = vmatmul.f32.gmra.mxu0 %v1559
        %v1580 = vpop.f32.mrf.mxu0
        %v1581 = vadd.f32 0.0, %v1580
        %1582 = vmatmul.f32.gmra.mxu0 %v1561
        %v1583 = vpop.f32.mrf.mxu0
        %v1584 = vadd.f32 0.0, %v1583
        %1585 = vdwg.mxu0
        %v1586 = vadd.f32 %v1551, %v1581
        %v1587 = vadd.f32 %v1554, %v1584
        %v1588 = vrot.slane %v1493, 3
        %v1589 = vrot.slane %v1494, 3
        %v1590 = vsel %vm1309, %v1588, %v1589
        %v1591 = vsel %vm1501, %v1590, 0
        %v1593 = vsel %vm1501, %v1589, 0
        %1595 = vmatpush.msra.mxu0 0.0
        %1596 = vmatpush.msra.mxu0 0.0
        %1597 = vmatpush.msra.mxu0 0.0
        %1598 = vmatpush.msra.mxu0 0.0
        %1599 = vmatpush.msra.mxu0 0.0
        %1600 = vmatpush.msra.mxu0 0.0
        %1601 = vmatpush.msra.mxu0 0.0
        %1602 = vmatpush.msra.mxu0 0.0
        %1603 = vmatpush.msra.mxu0 %v563
        %1604 = vmatpush.msra.mxu0 %v562
        %1605 = vmatpush.msra.mxu0 %v561
        %1606 = vmatpush.msra.mxu0 %v560
        %1607 = vmatpush.msra.mxu0 %v559
        %1608 = vmatpush.msra.mxu0 %v558
        %1609 = vmatpush.msra.mxu0 %v557
        %1610 = vmatpush.msra.mxu0 %v556
        %1611 = vmatmul.f32.gmra.mxu0 %v1591
        %v1612 = vpop.f32.mrf.mxu0
        %v1613 = vadd.f32 0.0, %v1612
        %1614 = vmatmul.f32.gmra.mxu0 %v1593
        %v1615 = vpop.f32.mrf.mxu0
        %v1616 = vadd.f32 0.0, %v1615
        %1617 = vdwg.mxu0
        %v1618 = vadd.f32 %v1586, %v1613
        %v1619 = vadd.f32 %v1587, %v1616
        %v1620 = vrot.slane %v1493, 4
        %v1621 = vrot.slane %v1494, 4
        %v1622 = vsel %vm1353, %v1620, %v1621
        %v1623 = vsel %vm1501, %v1622, 0
        %v1625 = vsel %vm1501, %v1621, 0
        %1627 = vmatpush.msra.mxu0 0.0
        %1628 = vmatpush.msra.mxu0 0.0
        %1629 = vmatpush.msra.mxu0 0.0
        %1630 = vmatpush.msra.mxu0 0.0
        %1631 = vmatpush.msra.mxu0 0.0
        %1632 = vmatpush.msra.mxu0 0.0
        %1633 = vmatpush.msra.mxu0 0.0
        %1634 = vmatpush.msra.mxu0 0.0
        %1635 = vmatpush.msra.mxu0 %v571
        %1636 = vmatpush.msra.mxu0 %v570
        %1637 = vmatpush.msra.mxu0 %v569
        %1638 = vmatpush.msra.mxu0 %v568
        %1639 = vmatpush.msra.mxu0 %v567
        %1640 = vmatpush.msra.mxu0 %v566
        %1641 = vmatpush.msra.mxu0 %v565
        %1642 = vmatpush.msra.mxu0 %v564
        %1643 = vmatmul.f32.gmra.mxu0 %v1623
        %v1644 = vpop.f32.mrf.mxu0
        %v1645 = vadd.f32 0.0, %v1644
        %1646 = vmatmul.f32.gmra.mxu0 %v1625
        %v1647 = vpop.f32.mrf.mxu0
        %v1648 = vadd.f32 0.0, %v1647
        %1649 = vdwg.mxu0
        %v1650 = vadd.f32 %v1618, %v1645
        %v1651 = vadd.f32 %v1619, %v1648
        %v1653 = vrot.slane %v1493, 5
        %v1654 = vrot.slane %v1494, 5
        %v1655 = vsel %vm1397, %v1653, %v1654
        %v1656 = vrot.slane %v1495, 5
        %v1657 = vsel %vm1397, %v1654, %v1656
        %v1658 = vsel %vm1501, %v1655, 0
        %v1660 = vsel %vm1501, %v1657, 0
        %1662 = vmatpush.msra.mxu0 0.0
        %1663 = vmatpush.msra.mxu0 0.0
        %1664 = vmatpush.msra.mxu0 0.0
        %1665 = vmatpush.msra.mxu0 0.0
        %1666 = vmatpush.msra.mxu0 0.0
        %1667 = vmatpush.msra.mxu0 0.0
        %1668 = vmatpush.msra.mxu0 0.0
        %1669 = vmatpush.msra.mxu0 0.0
        %1670 = vmatpush.msra.mxu0 %v579
        %1671 = vmatpush.msra.mxu0 %v578
        %1672 = vmatpush.msra.mxu0 %v577
        %1673 = vmatpush.msra.mxu0 %v576
        %1674 = vmatpush.msra.mxu0 %v575
        %1675 = vmatpush.msra.mxu0 %v574
        %1676 = vmatpush.msra.mxu0 %v573
        %1677 = vmatpush.msra.mxu0 %v572
        %1678 = vmatmul.f32.gmra.mxu0 %v1658
        %v1679 = vpop.f32.mrf.mxu0
        %v1680 = vadd.f32 0.0, %v1679
        %1681 = vmatmul.f32.gmra.mxu0 %v1660
        %v1682 = vpop.f32.mrf.mxu0
        %v1683 = vadd.f32 0.0, %v1682
        %1684 = vdwg.mxu0
        %v1685 = vadd.f32 %v1650, %v1680
        %v1686 = vadd.f32 %v1651, %v1683
        %v1687 = vrot.slane %v1493, 6
        %v1688 = vrot.slane %v1494, 6
        %v1689 = vsel %vm1200, %v1687, %v1688
        %v1690 = vrot.slane %v1495, 6
        %v1691 = vsel %vm1200, %v1688, %v1690
        %v1692 = vsel %vm1501, %v1689, 0
        %v1694 = vsel %vm1501, %v1691, 0
        %1696 = vmatpush.msra.mxu0 0.0
        %1697 = vmatpush.msra.mxu0 0.0
        %1698 = vmatpush.msra.mxu0 0.0
        %1699 = vmatpush.msra.mxu0 0.0
        %1700 = vmatpush.msra.mxu0 0.0
        %1701 = vmatpush.msra.mxu0 0.0
        %1702 = vmatpush.msra.mxu0 0.0
        %1703 = vmatpush.msra.mxu0 0.0
        %1704 = vmatpush.msra.mxu0 %v587
        %1705 = vmatpush.msra.mxu0 %v586
        %1706 = vmatpush.msra.mxu0 %v585
        %1707 = vmatpush.msra.mxu0 %v584
        %1708 = vmatpush.msra.mxu0 %v583
        %1709 = vmatpush.msra.mxu0 %v582
        %1710 = vmatpush.msra.mxu0 %v581
        %1711 = vmatpush.msra.mxu0 %v580
        %1712 = vmatmul.f32.gmra.mxu0 %v1692
        %v1713 = vpop.f32.mrf.mxu0
        %v1714 = vadd.f32 0.0, %v1713
        %1715 = vmatmul.f32.gmra.mxu0 %v1694
        %v1716 = vpop.f32.mrf.mxu0
        %v1717 = vadd.f32 0.0, %v1716
        %1718 = vdwg.mxu0
        %v1719 = vadd.f32 %v1685, %v1714
        %v1720 = vadd.f32 %v1686, %v1717
        %v1722 = vperm.slane %v588, 0
        %v1724 = vadd.f32 %v1719, %v1722
        %v1725 = vadd.f32 %v1720, %v1722
        %v1726 = vmul.f32 %v1724, 0.01
        %v1727 = vmul.f32 %v1725, 0.01
        %v1728 = vmax.f32 %v1724, %v1726
        %v1729 = vmax.f32 %v1725, %v1727
        %v1732 = vrot.slane %v1728, 1
        %v1733 = vrot.slane %v1729, 1
        %v1734 = vsel %vm1187, %v1732, %v1733
        %v1737 = vmax.f32 %v1728, %v1734
        %v1738 = vmax.f32 %v1729, %v1733
        %v1739 = vrot.slane %v1728, 2
        %v1740 = vrot.slane %v1729, 2
        %v1741 = vsel %vm1265, %v1739, %v1740
        %v1744 = vmax.f32 %v1737, %v1741
        %v1745 = vmax.f32 %v1738, %v1740
        %v1747 = vperm.slane %v973, 0
        %v1748 = vperm.slane %v973, 1
        %v1749 = vperm.slane %v973, 2
        %v1750 = vperm.slane %v973, 3
        %v1751 = vperm.slane %v973, 4
        %v1752 = vperm.slane %v973, 5
        %v1753 = vperm.slane %v973, 6
        %v1754 = vperm.slane %v973, 7
        %1763 = vmatpush.msra.mxu0 %v709
        %1764 = vmatpush.msra.mxu0 %v701
        %1765 = vmatpush.msra.mxu0 %v693
        %1766 = vmatpush.msra.mxu0 %v685
        %1767 = vmatpush.msra.mxu0 %v677
        %1768 = vmatpush.msra.mxu0 %v669
        %1769 = vmatpush.msra.mxu0 %v661
        %1770 = vmatpush.msra.mxu0 %v653
        %1771 = vmatpush.msra.mxu0 %v645
        %1772 = vmatpush.msra.mxu0 %v637
        %1773 = vmatpush.msra.mxu0 %v629
        %1774 = vmatpush.msra.mxu0 %v621
        %1775 = vmatpush.msra.mxu0 %v613
        %1776 = vmatpush.msra.mxu0 %v605
        %1777 = vmatpush.msra.mxu0 %v597
        %1778 = vmatpush.msra.mxu0 %v589
        %1779 = vmatmul.f32.gmra.mxu0 %v1744
        %v1780 = vpop.f32.mrf.mxu0
        %v1781 = vadd.f32 %v1747, %v1780
        %1782 = vmatmul.f32.gmra.mxu0 %v1745
        %v1783 = vpop.f32.mrf.mxu0
        %v1784 = vadd.f32 %v1747, %v1783
        %1785 = vdwg.mxu0
        %1786 = vmatpush.msra.mxu0 %v710
        %1787 = vmatpush.msra.mxu0 %v702
        %1788 = vmatpush.msra.mxu0 %v694
        %1789 = vmatpush.msra.mxu0 %v686
        %1790 = vmatpush.msra.mxu0 %v678
        %1791 = vmatpush.msra.mxu0 %v670
        %1792 = vmatpush.msra.mxu0 %v662
        %1793 = vmatpush.msra.mxu0 %v654
        %1794 = vmatpush.msra.mxu0 %v646
        %1795 = vmatpush.msra.mxu0 %v638
        %1796 = vmatpush.msra.mxu0 %v630
        %1797 = vmatpush.msra.mxu0 %v622
        %1798 = vmatpush.msra.mxu0 %v614
        %1799 = vmatpush.msra.mxu0 %v606
        %1800 = vmatpush.msra.mxu0 %v598
        %1801 = vmatpush.msra.mxu0 %v590
        %1802 = vmatmul.f32.gmra.mxu0 %v1744
        %v1803 = vpop.f32.mrf.mxu0
        %v1804 = vadd.f32 %v1748, %v1803
        %1805 = vmatmul.f32.gmra.mxu0 %v1745
        %v1806 = vpop.f32.mrf.mxu0
        %v1807 = vadd.f32 %v1748, %v1806
        %1808 = vdwg.mxu0
        %1809 = vmatpush.msra.mxu0 %v711
        %1810 = vmatpush.msra.mxu0 %v703
        %1811 = vmatpush.msra.mxu0 %v695
        %1812 = vmatpush.msra.mxu0 %v687
        %1813 = vmatpush.msra.mxu0 %v679
        %1814 = vmatpush.msra.mxu0 %v671
        %1815 = vmatpush.msra.mxu0 %v663
        %1816 = vmatpush.msra.mxu0 %v655
        %1817 = vmatpush.msra.mxu0 %v647
        %1818 = vmatpush.msra.mxu0 %v639
        %1819 = vmatpush.msra.mxu0 %v631
        %1820 = vmatpush.msra.mxu0 %v623
        %1821 = vmatpush.msra.mxu0 %v615
        %1822 = vmatpush.msra.mxu0 %v607
        %1823 = vmatpush.msra.mxu0 %v599
        %1824 = vmatpush.msra.mxu0 %v591
        %1825 = vmatmul.f32.gmra.mxu0 %v1744
        %v1826 = vpop.f32.mrf.mxu0
        %v1827 = vadd.f32 %v1749, %v1826
        %1828 = vmatmul.f32.gmra.mxu0 %v1745
        %v1829 = vpop.f32.mrf.mxu0
        %v1830 = vadd.f32 %v1749, %v1829
        %1831 = vdwg.mxu0
        %1832 = vmatpush.msra.mxu0 %v712
        %1833 = vmatpush.msra.mxu0 %v704
        %1834 = vmatpush.msra.mxu0 %v696
        %1835 = vmatpush.msra.mxu0 %v688
        %1836 = vmatpush.msra.mxu0 %v680
        %1837 = vmatpush.msra.mxu0 %v672
        %1838 = vmatpush.msra.mxu0 %v664
        %1839 = vmatpush.msra.mxu0 %v656
        %1840 = vmatpush.msra.mxu0 %v648
        %1841 = vmatpush.msra.mxu0 %v640
        %1842 = vmatpush.msra.mxu0 %v632
        %1843 = vmatpush.msra.mxu0 %v624
        %1844 = vmatpush.msra.mxu0 %v616
        %1845 = vmatpush.msra.mxu0 %v608
        %1846 = vmatpush.msra.mxu0 %v600
        %1847 = vmatpush.msra.mxu0 %v592
        %1848 = vmatmul.f32.gmra.mxu0 %v1744
        %v1849 = vpop.f32.mrf.mxu0
        %v1850 = vadd.f32 %v1750, %v1849
        %1851 = vmatmul.f32.gmra.mxu0 %v1745
        %v1852 = vpop.f32.mrf.mxu0
        %v1853 = vadd.f32 %v1750, %v1852
        %1854 = vdwg.mxu0
        %1855 = vmatpush.msra.mxu0 %v713
        %1856 = vmatpush.msra.mxu0 %v705
        %1857 = vmatpush.msra.mxu0 %v697
        %1858 = vmatpush.msra.mxu0 %v689
        %1859 = vmatpush.msra.mxu0 %v681
        %1860 = vmatpush.msra.mxu0 %v673
        %1861 = vmatpush.msra.mxu0 %v665
        %1862 = vmatpush.msra.mxu0 %v657
        %1863 = vmatpush.msra.mxu0 %v649
        %1864 = vmatpush.msra.mxu0 %v641
        %1865 = vmatpush.msra.mxu0 %v633
        %1866 = vmatpush.msra.mxu0 %v625
        %1867 = vmatpush.msra.mxu0 %v617
        %1868 = vmatpush.msra.mxu0 %v609
        %1869 = vmatpush.msra.mxu0 %v601
        %1870 = vmatpush.msra.mxu0 %v593
        %1871 = vmatmul.f32.gmra.mxu0 %v1744
        %v1872 = vpop.f32.mrf.mxu0
        %v1873 = vadd.f32 %v1751, %v1872
        %1874 = vmatmul.f32.gmra.mxu0 %v1745
        %v1875 = vpop.f32.mrf.mxu0
        %v1876 = vadd.f32 %v1751, %v1875
        %1877 = vdwg.mxu0
        %1878 = vmatpush.msra.mxu0 %v714
        %1879 = vmatpush.msra.mxu0 %v706
        %1880 = vmatpush.msra.mxu0 %v698
        %1881 = vmatpush.msra.mxu0 %v690
        %1882 = vmatpush.msra.mxu0 %v682
        %1883 = vmatpush.msra.mxu0 %v674
        %1884 = vmatpush.msra.mxu0 %v666
        %1885 = vmatpush.msra.mxu0 %v658
        %1886 = vmatpush.msra.mxu0 %v650
        %1887 = vmatpush.msra.mxu0 %v642
        %1888 = vmatpush.msra.mxu0 %v634
        %1889 = vmatpush.msra.mxu0 %v626
        %1890 = vmatpush.msra.mxu0 %v618
        %1891 = vmatpush.msra.mxu0 %v610
        %1892 = vmatpush.msra.mxu0 %v602
        %1893 = vmatpush.msra.mxu0 %v594
        %1894 = vmatmul.f32.gmra.mxu0 %v1744
        %v1895 = vpop.f32.mrf.mxu0
        %v1896 = vadd.f32 %v1752, %v1895
        %1897 = vmatmul.f32.gmra.mxu0 %v1745
        %v1898 = vpop.f32.mrf.mxu0
        %v1899 = vadd.f32 %v1752, %v1898
        %1900 = vdwg.mxu0
        %1901 = vmatpush.msra.mxu0 %v715
        %1902 = vmatpush.msra.mxu0 %v707
        %1903 = vmatpush.msra.mxu0 %v699
        %1904 = vmatpush.msra.mxu0 %v691
        %1905 = vmatpush.msra.mxu0 %v683
        %1906 = vmatpush.msra.mxu0 %v675
        %1907 = vmatpush.msra.mxu0 %v667
        %1908 = vmatpush.msra.mxu0 %v659
        %1909 = vmatpush.msra.mxu0 %v651
        %1910 = vmatpush.msra.mxu0 %v643
        %1911 = vmatpush.msra.mxu0 %v635
        %1912 = vmatpush.msra.mxu0 %v627
        %1913 = vmatpush.msra.mxu0 %v619
        %1914 = vmatpush.msra.mxu0 %v611
        %1915 = vmatpush.msra.mxu0 %v603
        %1916 = vmatpush.msra.mxu0 %v595
        %1917 = vmatmul.f32.gmra.mxu0 %v1744
        %v1918 = vpop.f32.mrf.mxu0
        %v1919 = vadd.f32 %v1753, %v1918
        %1920 = vmatmul.f32.gmra.mxu0 %v1745
        %v1921 = vpop.f32.mrf.mxu0
        %v1922 = vadd.f32 %v1753, %v1921
        %1923 = vdwg.mxu0
        %1924 = vmatpush.msra.mxu0 %v716
        %1925 = vmatpush.msra.mxu0 %v708
        %1926 = vmatpush.msra.mxu0 %v700
        %1927 = vmatpush.msra.mxu0 %v692
        %1928 = vmatpush.msra.mxu0 %v684
        %1929 = vmatpush.msra.mxu0 %v676
        %1930 = vmatpush.msra.mxu0 %v668
        %1931 = vmatpush.msra.mxu0 %v660
        %1932 = vmatpush.msra.mxu0 %v652
        %1933 = vmatpush.msra.mxu0 %v644
        %1934 = vmatpush.msra.mxu0 %v636
        %1935 = vmatpush.msra.mxu0 %v628
        %1936 = vmatpush.msra.mxu0 %v620
        %1937 = vmatpush.msra.mxu0 %v612
        %1938 = vmatpush.msra.mxu0 %v604
        %1939 = vmatpush.msra.mxu0 %v596
        %1940 = vmatmul.f32.gmra.mxu0 %v1744
        %v1941 = vpop.f32.mrf.mxu0
        %v1942 = vadd.f32 %v1754, %v1941
        %1943 = vmatmul.f32.gmra.mxu0 %v1745
        %v1944 = vpop.f32.mrf.mxu0
        %v1945 = vadd.f32 %v1754, %v1944
        %1946 = vdwg.mxu0
        %1947 = vmatpush.msra.mxu0 %v837
        %1948 = vmatpush.msra.mxu0 %v829
        %1949 = vmatpush.msra.mxu0 %v821
        %1950 = vmatpush.msra.mxu0 %v813
        %1951 = vmatpush.msra.mxu0 %v805
        %1952 = vmatpush.msra.mxu0 %v797
        %1953 = vmatpush.msra.mxu0 %v789
        %1954 = vmatpush.msra.mxu0 %v781
        %1955 = vmatpush.msra.mxu0 %v773
        %1956 = vmatpush.msra.mxu0 %v765
        %1957 = vmatpush.msra.mxu0 %v757
        %1958 = vmatpush.msra.mxu0 %v749
        %1959 = vmatpush.msra.mxu0 %v741
        %1960 = vmatpush.msra.mxu0 %v733
        %1961 = vmatpush.msra.mxu0 %v725
        %1962 = vmatpush.msra.mxu0 %v717
        %1963 = vmatmul.f32.gmra.mxu0 0.0
        %v1964 = vpop.f32.mrf.mxu0
        %v1965 = vadd.f32 0.0, %v1964
        %1966 = vdwg.mxu0
        %1967 = vmatpush.msra.mxu0 %v965
        %1968 = vmatpush.msra.mxu0 %v957
        %1969 = vmatpush.msra.mxu0 %v949
        %1970 = vmatpush.msra.mxu0 %v941
        %1971 = vmatpush.msra.mxu0 %v933
        %1972 = vmatpush.msra.mxu0 %v925
        %1973 = vmatpush.msra.mxu0 %v917
        %1974 = vmatpush.msra.mxu0 %v909
        %1975 = vmatpush.msra.mxu0 %v901
        %1976 = vmatpush.msra.mxu0 %v893
        %1977 = vmatpush.msra.mxu0 %v885
        %1978 = vmatpush.msra.mxu0 %v877
        %1979 = vmatpush.msra.mxu0 %v869
        %1980 = vmatpush.msra.mxu0 %v861
        %1981 = vmatpush.msra.mxu0 %v853
        %1982 = vmatpush.msra.mxu0 %v845
        %1983 = vmatmul.f32.gmra.mxu0 0.0
        %v1984 = vpop.f32.mrf.mxu0
        %v1985 = vadd.f32 %v1965, %v1984
        %1986 = vdwg.mxu0
        %1987 = vmatpush.msra.mxu0 %v838
        %1988 = vmatpush.msra.mxu0 %v830
        %1989 = vmatpush.msra.mxu0 %v822
        %1990 = vmatpush.msra.mxu0 %v814
        %1991 = vmatpush.msra.mxu0 %v806
        %1992 = vmatpush.msra.mxu0 %v798
        %1993 = vmatpush.msra.mxu0 %v790
        %1994 = vmatpush.msra.mxu0 %v782
        %1995 = vmatpush.msra.mxu0 %v774
        %1996 = vmatpush.msra.mxu0 %v766
        %1997 = vmatpush.msra.mxu0 %v758
        %1998 = vmatpush.msra.mxu0 %v750
        %1999 = vmatpush.msra.mxu0 %v742
        %2000 = vmatpush.msra.mxu0 %v734
        %2001 = vmatpush.msra.mxu0 %v726
        %2002 = vmatpush.msra.mxu0 %v718
        %2003 = vmatmul.f32.gmra.mxu0 0.0
        %v2004 = vpop.f32.mrf.mxu0
        %v2005 = vadd.f32 0.0, %v2004
        %2006 = vdwg.mxu0
        %2007 = vmatpush.msra.mxu0 %v966
        %2008 = vmatpush.msra.mxu0 %v958
        %2009 = vmatpush.msra.mxu0 %v950
        %2010 = vmatpush.msra.mxu0 %v942
        %2011 = vmatpush.msra.mxu0 %v934
        %2012 = vmatpush.msra.mxu0 %v926
        %2013 = vmatpush.msra.mxu0 %v918
        %2014 = vmatpush.msra.mxu0 %v910
        %2015 = vmatpush.msra.mxu0 %v902
        %2016 = vmatpush.msra.mxu0 %v894
        %2017 = vmatpush.msra.mxu0 %v886
        %2018 = vmatpush.msra.mxu0 %v878
        %2019 = vmatpush.msra.mxu0 %v870
        %2020 = vmatpush.msra.mxu0 %v862
        %2021 = vmatpush.msra.mxu0 %v854
        %2022 = vmatpush.msra.mxu0 %v846
        %2023 = vmatmul.f32.gmra.mxu0 0.0
        %v2024 = vpop.f32.mrf.mxu0
        %v2025 = vadd.f32 %v2005, %v2024
        %2026 = vdwg.mxu0
        %2027 = vmatpush.msra.mxu0 %v839
        %2028 = vmatpush.msra.mxu0 %v831
        %2029 = vmatpush.msra.mxu0 %v823
        %2030 = vmatpush.msra.mxu0 %v815
        %2031 = vmatpush.msra.mxu0 %v807
        %2032 = vmatpush.msra.mxu0 %v799
        %2033 = vmatpush.msra.mxu0 %v791
        %2034 = vmatpush.msra.mxu0 %v783
        %2035 = vmatpush.msra.mxu0 %v775
        %2036 = vmatpush.msra.mxu0 %v767
        %2037 = vmatpush.msra.mxu0 %v759
        %2038 = vmatpush.msra.mxu0 %v751
        %2039 = vmatpush.msra.mxu0 %v743
        %2040 = vmatpush.msra.mxu0 %v735
        %2041 = vmatpush.msra.mxu0 %v727
        %2042 = vmatpush.msra.mxu0 %v719
        %2043 = vmatmul.f32.gmra.mxu0 0.0
        %v2044 = vpop.f32.mrf.mxu0
        %v2045 = vadd.f32 0.0, %v2044
        %2046 = vdwg.mxu0
        %2047 = vmatpush.msra.mxu0 %v967
        %2048 = vmatpush.msra.mxu0 %v959
        %2049 = vmatpush.msra.mxu0 %v951
        %2050 = vmatpush.msra.mxu0 %v943
        %2051 = vmatpush.msra.mxu0 %v935
        %2052 = vmatpush.msra.mxu0 %v927
        %2053 = vmatpush.msra.mxu0 %v919
        %2054 = vmatpush.msra.mxu0 %v911
        %2055 = vmatpush.msra.mxu0 %v903
        %2056 = vmatpush.msra.mxu0 %v895
        %2057 = vmatpush.msra.mxu0 %v887
        %2058 = vmatpush.msra.mxu0 %v879
        %2059 = vmatpush.msra.mxu0 %v871
        %2060 = vmatpush.msra.mxu0 %v863
        %2061 = vmatpush.msra.mxu0 %v855
        %2062 = vmatpush.msra.mxu0 %v847
        %2063 = vmatmul.f32.gmra.mxu0 0.0
        %v2064 = vpop.f32.mrf.mxu0
        %v2065 = vadd.f32 %v2045, %v2064
        %2066 = vdwg.mxu0
        %2067 = vmatpush.msra.mxu0 %v840
        %2068 = vmatpush.msra.mxu0 %v832
        %2069 = vmatpush.msra.mxu0 %v824
        %2070 = vmatpush.msra.mxu0 %v816
        %2071 = vmatpush.msra.mxu0 %v808
        %2072 = vmatpush.msra.mxu0 %v800
        %2073 = vmatpush.msra.mxu0 %v792
        %2074 = vmatpush.msra.mxu0 %v784
        %2075 = vmatpush.msra.mxu0 %v776
        %2076 = vmatpush.msra.mxu0 %v768
        %2077 = vmatpush.msra.mxu0 %v760
        %2078 = vmatpush.msra.mxu0 %v752
        %2079 = vmatpush.msra.mxu0 %v744
        %2080 = vmatpush.msra.mxu0 %v736
        %2081 = vmatpush.msra.mxu0 %v728
        %2082 = vmatpush.msra.mxu0 %v720
        %2083 = vmatmul.f32.gmra.mxu0 0.0
        %v2084 = vpop.f32.mrf.mxu0
        %v2085 = vadd.f32 0.0, %v2084
        %2086 = vdwg.mxu0
        %2087 = vmatpush.msra.mxu0 %v968
        %2088 = vmatpush.msra.mxu0 %v960
        %2089 = vmatpush.msra.mxu0 %v952
        %2090 = vmatpush.msra.mxu0 %v944
        %2091 = vmatpush.msra.mxu0 %v936
        %2092 = vmatpush.msra.mxu0 %v928
        %2093 = vmatpush.msra.mxu0 %v920
        %2094 = vmatpush.msra.mxu0 %v912
        %2095 = vmatpush.msra.mxu0 %v904
        %2096 = vmatpush.msra.mxu0 %v896
        %2097 = vmatpush.msra.mxu0 %v888
        %2098 = vmatpush.msra.mxu0 %v880
        %2099 = vmatpush.msra.mxu0 %v872
        %2100 = vmatpush.msra.mxu0 %v864
        %2101 = vmatpush.msra.mxu0 %v856
        %2102 = vmatpush.msra.mxu0 %v848
        %2103 = vmatmul.f32.gmra.mxu0 0.0
        %v2104 = vpop.f32.mrf.mxu0
        %v2105 = vadd.f32 %v2085, %v2104
        %2106 = vdwg.mxu0
        %2107 = vmatpush.msra.mxu0 %v841
        %2108 = vmatpush.msra.mxu0 %v833
        %2109 = vmatpush.msra.mxu0 %v825
        %2110 = vmatpush.msra.mxu0 %v817
        %2111 = vmatpush.msra.mxu0 %v809
        %2112 = vmatpush.msra.mxu0 %v801
        %2113 = vmatpush.msra.mxu0 %v793
        %2114 = vmatpush.msra.mxu0 %v785
        %2115 = vmatpush.msra.mxu0 %v777
        %2116 = vmatpush.msra.mxu0 %v769
        %2117 = vmatpush.msra.mxu0 %v761
        %2118 = vmatpush.msra.mxu0 %v753
        %2119 = vmatpush.msra.mxu0 %v745
        %2120 = vmatpush.msra.mxu0 %v737
        %2121 = vmatpush.msra.mxu0 %v729
        %2122 = vmatpush.msra.mxu0 %v721
        %2123 = vmatmul.f32.gmra.mxu0 0.0
        %v2124 = vpop.f32.mrf.mxu0
        %v2125 = vadd.f32 0.0, %v2124
        %2126 = vdwg.mxu0
        %2127 = vmatpush.msra.mxu0 %v969
        %2128 = vmatpush.msra.mxu0 %v961
        %2129 = vmatpush.msra.mxu0 %v953
        %2130 = vmatpush.msra.mxu0 %v945
        %2131 = vmatpush.msra.mxu0 %v937
        %2132 = vmatpush.msra.mxu0 %v929
        %2133 = vmatpush.msra.mxu0 %v921
        %2134 = vmatpush.msra.mxu0 %v913
        %2135 = vmatpush.msra.mxu0 %v905
        %2136 = vmatpush.msra.mxu0 %v897
        %2137 = vmatpush.msra.mxu0 %v889
        %2138 = vmatpush.msra.mxu0 %v881
        %2139 = vmatpush.msra.mxu0 %v873
        %2140 = vmatpush.msra.mxu0 %v865
        %2141 = vmatpush.msra.mxu0 %v857
        %2142 = vmatpush.msra.mxu0 %v849
        %2143 = vmatmul.f32.gmra.mxu0 0.0
        %v2144 = vpop.f32.mrf.mxu0
        %v2145 = vadd.f32 %v2125, %v2144
        %2146 = vdwg.mxu0
        %2147 = vmatpush.msra.mxu0 %v842
        %2148 = vmatpush.msra.mxu0 %v834
        %2149 = vmatpush.msra.mxu0 %v826
        %2150 = vmatpush.msra.mxu0 %v818
        %2151 = vmatpush.msra.mxu0 %v810
        %2152 = vmatpush.msra.mxu0 %v802
        %2153 = vmatpush.msra.mxu0 %v794
        %2154 = vmatpush.msra.mxu0 %v786
        %2155 = vmatpush.msra.mxu0 %v778
        %2156 = vmatpush.msra.mxu0 %v770
        %2157 = vmatpush.msra.mxu0 %v762
        %2158 = vmatpush.msra.mxu0 %v754
        %2159 = vmatpush.msra.mxu0 %v746
        %2160 = vmatpush.msra.mxu0 %v738
        %2161 = vmatpush.msra.mxu0 %v730
        %2162 = vmatpush.msra.mxu0 %v722
        %2163 = vmatmul.f32.gmra.mxu0 0.0
        %v2164 = vpop.f32.mrf.mxu0
        %v2165 = vadd.f32 0.0, %v2164
        %2166 = vdwg.mxu0
        %2167 = vmatpush.msra.mxu0 %v970
        %2168 = vmatpush.msra.mxu0 %v962
        %2169 = vmatpush.msra.mxu0 %v954
        %2170 = vmatpush.msra.mxu0 %v946
        %2171 = vmatpush.msra.mxu0 %v938
        %2172 = vmatpush.msra.mxu0 %v930
        %2173 = vmatpush.msra.mxu0 %v922
        %2174 = vmatpush.msra.mxu0 %v914
        %2175 = vmatpush.msra.mxu0 %v906
        %2176 = vmatpush.msra.mxu0 %v898
        %2177 = vmatpush.msra.mxu0 %v890
        %2178 = vmatpush.msra.mxu0 %v882
        %2179 = vmatpush.msra.mxu0 %v874
        %2180 = vmatpush.msra.mxu0 %v866
        %2181 = vmatpush.msra.mxu0 %v858
        %2182 = vmatpush.msra.mxu0 %v850
        %2183 = vmatmul.f32.gmra.mxu0 0.0
        %v2184 = vpop.f32.mrf.mxu0
        %v2185 = vadd.f32 %v2165, %v2184
        %2186 = vdwg.mxu0
        %2187 = vmatpush.msra.mxu0 %v843
        %2188 = vmatpush.msra.mxu0 %v835
        %2189 = vmatpush.msra.mxu0 %v827
        %2190 = vmatpush.msra.mxu0 %v819
        %2191 = vmatpush.msra.mxu0 %v811
        %2192 = vmatpush.msra.mxu0 %v803
        %2193 = vmatpush.msra.mxu0 %v795
        %2194 = vmatpush.msra.mxu0 %v787
        %2195 = vmatpush.msra.mxu0 %v779
        %2196 = vmatpush.msra.mxu0 %v771
        %2197 = vmatpush.msra.mxu0 %v763
        %2198 = vmatpush.msra.mxu0 %v755
        %2199 = vmatpush.msra.mxu0 %v747
        %2200 = vmatpush.msra.mxu0 %v739
        %2201 = vmatpush.msra.mxu0 %v731
        %2202 = vmatpush.msra.mxu0 %v723
        %2203 = vmatmul.f32.gmra.mxu0 0.0
        %v2204 = vpop.f32.mrf.mxu0
        %v2205 = vadd.f32 0.0, %v2204
        %2206 = vdwg.mxu0
        %2207 = vmatpush.msra.mxu0 %v971
        %2208 = vmatpush.msra.mxu0 %v963
        %2209 = vmatpush.msra.mxu0 %v955
        %2210 = vmatpush.msra.mxu0 %v947
        %2211 = vmatpush.msra.mxu0 %v939
        %2212 = vmatpush.msra.mxu0 %v931
        %2213 = vmatpush.msra.mxu0 %v923
        %2214 = vmatpush.msra.mxu0 %v915
        %2215 = vmatpush.msra.mxu0 %v907
        %2216 = vmatpush.msra.mxu0 %v899
        %2217 = vmatpush.msra.mxu0 %v891
        %2218 = vmatpush.msra.mxu0 %v883
        %2219 = vmatpush.msra.mxu0 %v875
        %2220 = vmatpush.msra.mxu0 %v867
        %2221 = vmatpush.msra.mxu0 %v859
        %2222 = vmatpush.msra.mxu0 %v851
        %2223 = vmatmul.f32.gmra.mxu0 0.0
        %v2224 = vpop.f32.mrf.mxu0
        %v2225 = vadd.f32 %v2205, %v2224
        %2226 = vdwg.mxu0
        %2227 = vmatpush.msra.mxu0 %v844
        %2228 = vmatpush.msra.mxu0 %v836
        %2229 = vmatpush.msra.mxu0 %v828
        %2230 = vmatpush.msra.mxu0 %v820
        %2231 = vmatpush.msra.mxu0 %v812
        %2232 = vmatpush.msra.mxu0 %v804
        %2233 = vmatpush.msra.mxu0 %v796
        %2234 = vmatpush.msra.mxu0 %v788
        %2235 = vmatpush.msra.mxu0 %v780
        %2236 = vmatpush.msra.mxu0 %v772
        %2237 = vmatpush.msra.mxu0 %v764
        %2238 = vmatpush.msra.mxu0 %v756
        %2239 = vmatpush.msra.mxu0 %v748
        %2240 = vmatpush.msra.mxu0 %v740
        %2241 = vmatpush.msra.mxu0 %v732
        %2242 = vmatpush.msra.mxu0 %v724
        %2243 = vmatmul.f32.gmra.mxu0 0.0
        %v2244 = vpop.f32.mrf.mxu0
        %v2245 = vadd.f32 0.0, %v2244
        %2246 = vdwg.mxu0
        %2247 = vmatpush.msra.mxu0 %v972
        %2248 = vmatpush.msra.mxu0 %v964
        %2249 = vmatpush.msra.mxu0 %v956
        %2250 = vmatpush.msra.mxu0 %v948
        %2251 = vmatpush.msra.mxu0 %v940
        %2252 = vmatpush.msra.mxu0 %v932
        %2253 = vmatpush.msra.mxu0 %v924
        %2254 = vmatpush.msra.mxu0 %v916
        %2255 = vmatpush.msra.mxu0 %v908
        %2256 = vmatpush.msra.mxu0 %v900
        %2257 = vmatpush.msra.mxu0 %v892
        %2258 = vmatpush.msra.mxu0 %v884
        %2259 = vmatpush.msra.mxu0 %v876
        %2260 = vmatpush.msra.mxu0 %v868
        %2261 = vmatpush.msra.mxu0 %v860
        %2262 = vmatpush.msra.mxu0 %v852
        %2263 = vmatmul.f32.gmra.mxu0 0.0
        %v2264 = vpop.f32.mrf.mxu0
        %v2265 = vadd.f32 %v2245, %v2264
        %2266 = vdwg.mxu0
        %v2267 = vadd.f32 %v1781, %v1985
        %v2268 = vadd.f32 %v1804, %v2025
        %v2269 = vadd.f32 %v1827, %v2065
        %v2270 = vadd.f32 %v1850, %v2105
        %v2271 = vadd.f32 %v1873, %v2145
        %v2272 = vadd.f32 %v1896, %v2185
        %v2273 = vadd.f32 %v1919, %v2225
        %v2274 = vadd.f32 %v1942, %v2265
        %v2275 = vxor.u32 %v2267, 2147483648
        %v2276 = vxor.u32 %v2268, 2147483648
        %v2277 = vmul.f32 %v2275, 1.442695
        %v2278 = vpow.pop %v2277
        %v2279 = vmul.f32 %v2276, 1.442695
        %v2280 = vpow.pop %v2279
        %v2281 = vadd.f32 %v2278, 1.0
        %v2282 = vadd.f32 %v2280, 1.0
        %v2283 = vrcp.pop %v2281
        %v2284 = vmul.f32 %v2281, %v2283
        %v2285 = vsub.f32 1.0, %v2284
        %v2286 = vmul.f32 %v2283, %v2285
        %v2287 = vadd.f32 %v2283, %v2286
        %vm2288 = vweird.f32 %v2281
        %vm2289 = vweird.f32 %v2283
        %vm2290 = vmor %vm2288, %vm2289
        %v2291 = vsel %vm2290, %v2283, %v2287
        %v2292 = vand.u32 2147483647, %v2281
        %vm2293 = vcmp.eq.f32.partialorder %v2292, 8.507059e+37
        %v2294 = vand.u32 %v2281, 2147483648
        %v2295 = vor.u32 1.1754944e-38, %v2294
        %v2296 = vsel %vm2293, %v2295, %v2291
        %v2297 = vmul.f32 1.0, %v2296
        %v2298 = vrcp.pop %v2282
        %v2299 = vmul.f32 %v2282, %v2298
        %v2300 = vsub.f32 1.0, %v2299
        %v2301 = vmul.f32 %v2298, %v2300
        %v2302 = vadd.f32 %v2298, %v2301
        %vm2303 = vweird.f32 %v2282
        %vm2304 = vweird.f32 %v2298
        %vm2305 = vmor %vm2303, %vm2304
        %v2306 = vsel %vm2305, %v2298, %v2302
        %v2307 = vand.u32 2147483647, %v2282
        %vm2308 = vcmp.eq.f32.partialorder %v2307, 8.507059e+37
        %v2309 = vand.u32 %v2282, 2147483648
        %v2310 = vor.u32 1.1754944e-38, %v2309
        %v2311 = vsel %vm2308, %v2310, %v2306
        %v2312 = vmul.f32 1.0, %v2311
        %v2313 = vxor.u32 %v2269, 2147483648
        %v2314 = vxor.u32 %v2270, 2147483648
        %v2315 = vmul.f32 %v2313, 1.442695
        %v2316 = vpow.pop %v2315
        %v2317 = vmul.f32 %v2314, 1.442695
        %v2318 = vpow.pop %v2317
        %v2319 = vadd.f32 %v2316, 1.0
        %v2320 = vadd.f32 %v2318, 1.0
        %v2321 = vrcp.pop %v2319
        %v2322 = vmul.f32 %v2319, %v2321
        %v2323 = vsub.f32 1.0, %v2322
        %v2324 = vmul.f32 %v2321, %v2323
        %v2325 = vadd.f32 %v2321, %v2324
        %vm2326 = vweird.f32 %v2319
        %vm2327 = vweird.f32 %v2321
        %vm2328 = vmor %vm2326, %vm2327
        %v2329 = vsel %vm2328, %v2321, %v2325
        %v2330 = vand.u32 2147483647, %v2319
        %vm2331 = vcmp.eq.f32.partialorder %v2330, 8.507059e+37
        %v2332 = vand.u32 %v2319, 2147483648
        %v2333 = vor.u32 1.1754944e-38, %v2332
        %v2334 = vsel %vm2331, %v2333, %v2329
        %v2335 = vmul.f32 1.0, %v2334
        %v2336 = vrcp.pop %v2320
        %v2337 = vmul.f32 %v2320, %v2336
        %v2338 = vsub.f32 1.0, %v2337
        %v2339 = vmul.f32 %v2336, %v2338
        %v2340 = vadd.f32 %v2336, %v2339
        %vm2341 = vweird.f32 %v2320
        %vm2342 = vweird.f32 %v2336
        %vm2343 = vmor %vm2341, %vm2342
        %v2344 = vsel %vm2343, %v2336, %v2340
        %v2345 = vand.u32 2147483647, %v2320
        %vm2346 = vcmp.eq.f32.partialorder %v2345, 8.507059e+37
        %v2347 = vand.u32 %v2320, 2147483648
        %v2348 = vor.u32 1.1754944e-38, %v2347
        %v2349 = vsel %vm2346, %v2348, %v2344
        %v2350 = vmul.f32 1.0, %v2349
        %v2351 = vtanh.pop %v2271
        %v2352 = vtanh.pop %v2272
        %v2353 = vxor.u32 %v2273, 2147483648
        %v2354 = vxor.u32 %v2274, 2147483648
        %v2355 = vmul.f32 %v2353, 1.442695
        %v2356 = vpow.pop %v2355
        %v2357 = vmul.f32 %v2354, 1.442695
        %v2358 = vpow.pop %v2357
        %v2359 = vadd.f32 %v2356, 1.0
        %v2360 = vadd.f32 %v2358, 1.0
        %v2361 = vrcp.pop %v2359
        %v2362 = vmul.f32 %v2359, %v2361
        %v2363 = vsub.f32 1.0, %v2362
        %v2364 = vmul.f32 %v2361, %v2363
        %v2365 = vadd.f32 %v2361, %v2364
        %vm2366 = vweird.f32 %v2359
        %vm2367 = vweird.f32 %v2361
        %vm2368 = vmor %vm2366, %vm2367
        %v2369 = vsel %vm2368, %v2361, %v2365
        %v2370 = vand.u32 2147483647, %v2359
        %vm2371 = vcmp.eq.f32.partialorder %v2370, 8.507059e+37
        %v2372 = vand.u32 %v2359, 2147483648
        %v2373 = vor.u32 1.1754944e-38, %v2372
        %v2374 = vsel %vm2371, %v2373, %v2369
        %v2375 = vmul.f32 1.0, %v2374
        %v2376 = vrcp.pop %v2360
        %v2377 = vmul.f32 %v2360, %v2376
        %v2378 = vsub.f32 1.0, %v2377
        %v2379 = vmul.f32 %v2376, %v2378
        %v2380 = vadd.f32 %v2376, %v2379
        %vm2381 = vweird.f32 %v2360
        %vm2382 = vweird.f32 %v2376
        %vm2383 = vmor %vm2381, %vm2382
        %v2384 = vsel %vm2383, %v2376, %v2380
        %v2385 = vand.u32 2147483647, %v2360
        %vm2386 = vcmp.eq.f32.partialorder %v2385, 8.507059e+37
        %v2387 = vand.u32 %v2360, 2147483648
        %v2388 = vor.u32 1.1754944e-38, %v2387
        %v2389 = vsel %vm2386, %v2388, %v2384
        %v2390 = vmul.f32 1.0, %v2389
        %v2391 = vmul.f32 %v2335, 0.0
        %v2392 = vmul.f32 %v2350, 0.0
        %v2393 = vmul.f32 %v2297, %v2351
        %v2394 = vmul.f32 %v2312, %v2352
        %v2395 = vadd.f32 %v2391, %v2393
        %v2396 = vadd.f32 %v2392, %v2394
        %v2397 = vtanh.pop %v2395
        %v2398 = vtanh.pop %v2396
        %v2399 = vmul.f32 %v2375, %v2397
        %v2400 = vmul.f32 %v2390, %v2398
        %v2403 = vrot.slane %v2400, 7
        %vm2404 = vcmask 1040384
        %v2405 = vsel %vm2404, %v2399, %v2403
        %v2407 = vlaneseq
        %vm2408 = vcmp.ge.s32.totalorder %v2407, 0
        %vm2409 = vcmp.lt.s32.totalorder %v2407, 256
        %vm2410 = vmand %vm2408, %vm2409
        %2411 = vst.msk [vmem:[#allocation2] ss:$8 sm:$0x3] %vm2410, %v2405
        %2412 = vst.msk [vmem:[#allocation2] ss:$8 sm:$0x0] %vm2410, %v2405
        %2413 = vmatpush.msra.mxu0 %v837
        %2414 = vmatpush.msra.mxu0 %v829
        %2415 = vmatpush.msra.mxu0 %v821
        %2416 = vmatpush.msra.mxu0 %v813
        %2417 = vmatpush.msra.mxu0 %v805
        %2418 = vmatpush.msra.mxu0 %v797
        %2419 = vmatpush.msra.mxu0 %v789
        %2420 = vmatpush.msra.mxu0 %v781
        %2421 = vmatpush.msra.mxu0 %v773
        %2422 = vmatpush.msra.mxu0 %v765
        %2423 = vmatpush.msra.mxu0 %v757
        %2424 = vmatpush.msra.mxu0 %v749
        %2425 = vmatpush.msra.mxu0 %v741
        %2426 = vmatpush.msra.mxu0 %v733
        %2427 = vmatpush.msra.mxu0 %v725
        %2428 = vmatpush.msra.mxu0 %v717
        %2429 = vmatmul.f32.gmra.mxu0 %v2399
        %v2430 = vpop.f32.mrf.mxu0
        %v2431 = vadd.f32 0.0, %v2430
        %2432 = vdwg.mxu0
        %2433 = vmatpush.msra.mxu0 %v965
        %2434 = vmatpush.msra.mxu0 %v957
        %2435 = vmatpush.msra.mxu0 %v949
        %2436 = vmatpush.msra.mxu0 %v941
        %2437 = vmatpush.msra.mxu0 %v933
        %2438 = vmatpush.msra.mxu0 %v925
        %2439 = vmatpush.msra.mxu0 %v917
        %2440 = vmatpush.msra.mxu0 %v909
        %2441 = vmatpush.msra.mxu0 %v901
        %2442 = vmatpush.msra.mxu0 %v893
        %2443 = vmatpush.msra.mxu0 %v885
        %2444 = vmatpush.msra.mxu0 %v877
        %2445 = vmatpush.msra.mxu0 %v869
        %2446 = vmatpush.msra.mxu0 %v861
        %2447 = vmatpush.msra.mxu0 %v853
        %2448 = vmatpush.msra.mxu0 %v845
        %2449 = vmatmul.f32.gmra.mxu0 %v2400
        %v2450 = vpop.f32.mrf.mxu0
        %v2451 = vadd.f32 %v2431, %v2450
        %2452 = vdwg.mxu0
        %2453 = vmatpush.msra.mxu0 %v838
        %2454 = vmatpush.msra.mxu0 %v830
        %2455 = vmatpush.msra.mxu0 %v822
        %2456 = vmatpush.msra.mxu0 %v814
        %2457 = vmatpush.msra.mxu0 %v806
        %2458 = vmatpush.msra.mxu0 %v798
        %2459 = vmatpush.msra.mxu0 %v790
        %2460 = vmatpush.msra.mxu0 %v782
        %2461 = vmatpush.msra.mxu0 %v774
        %2462 = vmatpush.msra.mxu0 %v766
        %2463 = vmatpush.msra.mxu0 %v758
        %2464 = vmatpush.msra.mxu0 %v750
        %2465 = vmatpush.msra.mxu0 %v742
        %2466 = vmatpush.msra.mxu0 %v734
        %2467 = vmatpush.msra.mxu0 %v726
        %2468 = vmatpush.msra.mxu0 %v718
        %2469 = vmatmul.f32.gmra.mxu0 %v2399
        %v2470 = vpop.f32.mrf.mxu0
        %v2471 = vadd.f32 0.0, %v2470
        %2472 = vdwg.mxu0
        %2473 = vmatpush.msra.mxu0 %v966
        %2474 = vmatpush.msra.mxu0 %v958
        %2475 = vmatpush.msra.mxu0 %v950
        %2476 = vmatpush.msra.mxu0 %v942
        %2477 = vmatpush.msra.mxu0 %v934
        %2478 = vmatpush.msra.mxu0 %v926
        %2479 = vmatpush.msra.mxu0 %v918
        %2480 = vmatpush.msra.mxu0 %v910
        %2481 = vmatpush.msra.mxu0 %v902
        %2482 = vmatpush.msra.mxu0 %v894
        %2483 = vmatpush.msra.mxu0 %v886
        %2484 = vmatpush.msra.mxu0 %v878
        %2485 = vmatpush.msra.mxu0 %v870
        %2486 = vmatpush.msra.mxu0 %v862
        %2487 = vmatpush.msra.mxu0 %v854
        %2488 = vmatpush.msra.mxu0 %v846
        %2489 = vmatmul.f32.gmra.mxu0 %v2400
        %v2490 = vpop.f32.mrf.mxu0
        %v2491 = vadd.f32 %v2471, %v2490
        %2492 = vdwg.mxu0
        %2493 = vmatpush.msra.mxu0 %v839
        %2494 = vmatpush.msra.mxu0 %v831
        %2495 = vmatpush.msra.mxu0 %v823
        %2496 = vmatpush.msra.mxu0 %v815
        %2497 = vmatpush.msra.mxu0 %v807
        %2498 = vmatpush.msra.mxu0 %v799
        %2499 = vmatpush.msra.mxu0 %v791
        %2500 = vmatpush.msra.mxu0 %v783
        %2501 = vmatpush.msra.mxu0 %v775
        %2502 = vmatpush.msra.mxu0 %v767
        %2503 = vmatpush.msra.mxu0 %v759
        %2504 = vmatpush.msra.mxu0 %v751
        %2505 = vmatpush.msra.mxu0 %v743
        %2506 = vmatpush.msra.mxu0 %v735
        %2507 = vmatpush.msra.mxu0 %v727
        %2508 = vmatpush.msra.mxu0 %v719
        %2509 = vmatmul.f32.gmra.mxu0 %v2399
        %v2510 = vpop.f32.mrf.mxu0
        %v2511 = vadd.f32 0.0, %v2510
        %2512 = vdwg.mxu0
        %2513 = vmatpush.msra.mxu0 %v967
        %2514 = vmatpush.msra.mxu0 %v959
        %2515 = vmatpush.msra.mxu0 %v951
        %2516 = vmatpush.msra.mxu0 %v943
        %2517 = vmatpush.msra.mxu0 %v935
        %2518 = vmatpush.msra.mxu0 %v927
        %2519 = vmatpush.msra.mxu0 %v919
        %2520 = vmatpush.msra.mxu0 %v911
        %2521 = vmatpush.msra.mxu0 %v903
        %2522 = vmatpush.msra.mxu0 %v895
        %2523 = vmatpush.msra.mxu0 %v887
        %2524 = vmatpush.msra.mxu0 %v879
        %2525 = vmatpush.msra.mxu0 %v871
        %2526 = vmatpush.msra.mxu0 %v863
        %2527 = vmatpush.msra.mxu0 %v855
        %2528 = vmatpush.msra.mxu0 %v847
        %2529 = vmatmul.f32.gmra.mxu0 %v2400
        %v2530 = vpop.f32.mrf.mxu0
        %v2531 = vadd.f32 %v2511, %v2530
        %2532 = vdwg.mxu0
        %2533 = vmatpush.msra.mxu0 %v840
        %2534 = vmatpush.msra.mxu0 %v832
        %2535 = vmatpush.msra.mxu0 %v824
        %2536 = vmatpush.msra.mxu0 %v816
        %2537 = vmatpush.msra.mxu0 %v808
        %2538 = vmatpush.msra.mxu0 %v800
        %2539 = vmatpush.msra.mxu0 %v792
        %2540 = vmatpush.msra.mxu0 %v784
        %2541 = vmatpush.msra.mxu0 %v776
        %2542 = vmatpush.msra.mxu0 %v768
        %2543 = vmatpush.msra.mxu0 %v760
        %2544 = vmatpush.msra.mxu0 %v752
        %2545 = vmatpush.msra.mxu0 %v744
        %2546 = vmatpush.msra.mxu0 %v736
        %2547 = vmatpush.msra.mxu0 %v728
        %2548 = vmatpush.msra.mxu0 %v720
        %2549 = vmatmul.f32.gmra.mxu0 %v2399
        %v2550 = vpop.f32.mrf.mxu0
        %v2551 = vadd.f32 0.0, %v2550
        %2552 = vdwg.mxu0
        %2553 = vmatpush.msra.mxu0 %v968
        %2554 = vmatpush.msra.mxu0 %v960
        %2555 = vmatpush.msra.mxu0 %v952
        %2556 = vmatpush.msra.mxu0 %v944
        %2557 = vmatpush.msra.mxu0 %v936
        %2558 = vmatpush.msra.mxu0 %v928
        %2559 = vmatpush.msra.mxu0 %v920
        %2560 = vmatpush.msra.mxu0 %v912
        %2561 = vmatpush.msra.mxu0 %v904
        %2562 = vmatpush.msra.mxu0 %v896
        %2563 = vmatpush.msra.mxu0 %v888
        %2564 = vmatpush.msra.mxu0 %v880
        %2565 = vmatpush.msra.mxu0 %v872
        %2566 = vmatpush.msra.mxu0 %v864
        %2567 = vmatpush.msra.mxu0 %v856
        %2568 = vmatpush.msra.mxu0 %v848
        %2569 = vmatmul.f32.gmra.mxu0 %v2400
        %v2570 = vpop.f32.mrf.mxu0
        %v2571 = vadd.f32 %v2551, %v2570
        %2572 = vdwg.mxu0
        %2573 = vmatpush.msra.mxu0 %v841
        %2574 = vmatpush.msra.mxu0 %v833
        %2575 = vmatpush.msra.mxu0 %v825
        %2576 = vmatpush.msra.mxu0 %v817
        %2577 = vmatpush.msra.mxu0 %v809
        %2578 = vmatpush.msra.mxu0 %v801
        %2579 = vmatpush.msra.mxu0 %v793
        %2580 = vmatpush.msra.mxu0 %v785
        %2581 = vmatpush.msra.mxu0 %v777
        %2582 = vmatpush.msra.mxu0 %v769
        %2583 = vmatpush.msra.mxu0 %v761
        %2584 = vmatpush.msra.mxu0 %v753
        %2585 = vmatpush.msra.mxu0 %v745
        %2586 = vmatpush.msra.mxu0 %v737
        %2587 = vmatpush.msra.mxu0 %v729
        %2588 = vmatpush.msra.mxu0 %v721
        %2589 = vmatmul.f32.gmra.mxu0 %v2399
        %v2590 = vpop.f32.mrf.mxu0
        %v2591 = vadd.f32 0.0, %v2590
        %2592 = vdwg.mxu0
        %2593 = vmatpush.msra.mxu0 %v969
        %2594 = vmatpush.msra.mxu0 %v961
        %2595 = vmatpush.msra.mxu0 %v953
        %2596 = vmatpush.msra.mxu0 %v945
        %2597 = vmatpush.msra.mxu0 %v937
        %2598 = vmatpush.msra.mxu0 %v929
        %2599 = vmatpush.msra.mxu0 %v921
        %2600 = vmatpush.msra.mxu0 %v913
        %2601 = vmatpush.msra.mxu0 %v905
        %2602 = vmatpush.msra.mxu0 %v897
        %2603 = vmatpush.msra.mxu0 %v889
        %2604 = vmatpush.msra.mxu0 %v881
        %2605 = vmatpush.msra.mxu0 %v873
        %2606 = vmatpush.msra.mxu0 %v865
        %2607 = vmatpush.msra.mxu0 %v857
        %2608 = vmatpush.msra.mxu0 %v849
        %2609 = vmatmul.f32.gmra.mxu0 %v2400
        %v2610 = vpop.f32.mrf.mxu0
        %v2611 = vadd.f32 %v2591, %v2610
        %2612 = vdwg.mxu0
        %2613 = vmatpush.msra.mxu0 %v842
        %2614 = vmatpush.msra.mxu0 %v834
        %2615 = vmatpush.msra.mxu0 %v826
        %2616 = vmatpush.msra.mxu0 %v818
        %2617 = vmatpush.msra.mxu0 %v810
        %2618 = vmatpush.msra.mxu0 %v802
        %2619 = vmatpush.msra.mxu0 %v794
        %2620 = vmatpush.msra.mxu0 %v786
        %2621 = vmatpush.msra.mxu0 %v778
        %2622 = vmatpush.msra.mxu0 %v770
        %2623 = vmatpush.msra.mxu0 %v762
        %2624 = vmatpush.msra.mxu0 %v754
        %2625 = vmatpush.msra.mxu0 %v746
        %2626 = vmatpush.msra.mxu0 %v738
        %2627 = vmatpush.msra.mxu0 %v730
        %2628 = vmatpush.msra.mxu0 %v722
        %2629 = vmatmul.f32.gmra.mxu0 %v2399
        %v2630 = vpop.f32.mrf.mxu0
        %v2631 = vadd.f32 0.0, %v2630
        %2632 = vdwg.mxu0
        %2633 = vmatpush.msra.mxu0 %v970
        %2634 = vmatpush.msra.mxu0 %v962
        %2635 = vmatpush.msra.mxu0 %v954
        %2636 = vmatpush.msra.mxu0 %v946
        %2637 = vmatpush.msra.mxu0 %v938
        %2638 = vmatpush.msra.mxu0 %v930
        %2639 = vmatpush.msra.mxu0 %v922
        %2640 = vmatpush.msra.mxu0 %v914
        %2641 = vmatpush.msra.mxu0 %v906
        %2642 = vmatpush.msra.mxu0 %v898
        %2643 = vmatpush.msra.mxu0 %v890
        %2644 = vmatpush.msra.mxu0 %v882
        %2645 = vmatpush.msra.mxu0 %v874
        %2646 = vmatpush.msra.mxu0 %v866
        %2647 = vmatpush.msra.mxu0 %v858
        %2648 = vmatpush.msra.mxu0 %v850
        %2649 = vmatmul.f32.gmra.mxu0 %v2400
        %v2650 = vpop.f32.mrf.mxu0
        %v2651 = vadd.f32 %v2631, %v2650
        %2652 = vdwg.mxu0
        %2653 = vmatpush.msra.mxu0 %v843
        %2654 = vmatpush.msra.mxu0 %v835
        %2655 = vmatpush.msra.mxu0 %v827
        %2656 = vmatpush.msra.mxu0 %v819
        %2657 = vmatpush.msra.mxu0 %v811
        %2658 = vmatpush.msra.mxu0 %v803
        %2659 = vmatpush.msra.mxu0 %v795
        %2660 = vmatpush.msra.mxu0 %v787
        %2661 = vmatpush.msra.mxu0 %v779
        %2662 = vmatpush.msra.mxu0 %v771
        %2663 = vmatpush.msra.mxu0 %v763
        %2664 = vmatpush.msra.mxu0 %v755
        %2665 = vmatpush.msra.mxu0 %v747
        %2666 = vmatpush.msra.mxu0 %v739
        %2667 = vmatpush.msra.mxu0 %v731
        %2668 = vmatpush.msra.mxu0 %v723
        %2669 = vmatmul.f32.gmra.mxu0 %v2399
        %v2670 = vpop.f32.mrf.mxu0
        %v2671 = vadd.f32 0.0, %v2670
        %2672 = vdwg.mxu0
        %2673 = vmatpush.msra.mxu0 %v971
        %2674 = vmatpush.msra.mxu0 %v963
        %2675 = vmatpush.msra.mxu0 %v955
        %2676 = vmatpush.msra.mxu0 %v947
        %2677 = vmatpush.msra.mxu0 %v939
        %2678 = vmatpush.msra.mxu0 %v931
        %2679 = vmatpush.msra.mxu0 %v923
        %2680 = vmatpush.msra.mxu0 %v915
        %2681 = vmatpush.msra.mxu0 %v907
        %2682 = vmatpush.msra.mxu0 %v899
        %2683 = vmatpush.msra.mxu0 %v891
        %2684 = vmatpush.msra.mxu0 %v883
        %2685 = vmatpush.msra.mxu0 %v875
        %2686 = vmatpush.msra.mxu0 %v867
        %2687 = vmatpush.msra.mxu0 %v859
        %2688 = vmatpush.msra.mxu0 %v851
        %2689 = vmatmul.f32.gmra.mxu0 %v2400
        %v2690 = vpop.f32.mrf.mxu0
        %v2691 = vadd.f32 %v2671, %v2690
        %2692 = vdwg.mxu0
        %2693 = vmatpush.msra.mxu0 %v844
        %2694 = vmatpush.msra.mxu0 %v836
        %2695 = vmatpush.msra.mxu0 %v828
        %2696 = vmatpush.msra.mxu0 %v820
        %2697 = vmatpush.msra.mxu0 %v812
        %2698 = vmatpush.msra.mxu0 %v804
        %2699 = vmatpush.msra.mxu0 %v796
        %2700 = vmatpush.msra.mxu0 %v788
        %2701 = vmatpush.msra.mxu0 %v780
        %2702 = vmatpush.msra.mxu0 %v772
        %2703 = vmatpush.msra.mxu0 %v764
        %2704 = vmatpush.msra.mxu0 %v756
        %2705 = vmatpush.msra.mxu0 %v748
        %2706 = vmatpush.msra.mxu0 %v740
        %2707 = vmatpush.msra.mxu0 %v732
        %2708 = vmatpush.msra.mxu0 %v724
        %2709 = vmatmul.f32.gmra.mxu0 %v2399
        %v2710 = vpop.f32.mrf.mxu0
        %v2711 = vadd.f32 0.0, %v2710
        %2712 = vdwg.mxu0
        %2713 = vmatpush.msra.mxu0 %v972
        %2714 = vmatpush.msra.mxu0 %v964
        %2715 = vmatpush.msra.mxu0 %v956
        %2716 = vmatpush.msra.mxu0 %v948
        %2717 = vmatpush.msra.mxu0 %v940
        %2718 = vmatpush.msra.mxu0 %v932
        %2719 = vmatpush.msra.mxu0 %v924
        %2720 = vmatpush.msra.mxu0 %v916
        %2721 = vmatpush.msra.mxu0 %v908
        %2722 = vmatpush.msra.mxu0 %v900
        %2723 = vmatpush.msra.mxu0 %v892
        %2724 = vmatpush.msra.mxu0 %v884
        %2725 = vmatpush.msra.mxu0 %v876
        %2726 = vmatpush.msra.mxu0 %v868
        %2727 = vmatpush.msra.mxu0 %v860
        %2728 = vmatpush.msra.mxu0 %v852
        %2729 = vmatmul.f32.gmra.mxu0 %v2400
        %v2730 = vpop.f32.mrf.mxu0
        %v2731 = vadd.f32 %v2711, %v2730
        %2732 = vdwg.mxu0
        %v2741 = vrot.slane %v2451, 7
        %v2742 = vrot.slane %v2491, 7
        %v2743 = vrot.slane %v2531, 7
        %v2744 = vrot.slane %v2571, 7
        %v2745 = vrot.slane %v2611, 7
        %v2746 = vrot.slane %v2651, 7
        %v2747 = vrot.slane %v2691, 7
        %v2748 = vrot.slane %v2731, 7
        %v2757 = vadd.f32 %v1781, %v2741
        %v2758 = vadd.f32 %v1804, %v2742
        %v2759 = vadd.f32 %v1827, %v2743
        %v2760 = vadd.f32 %v1850, %v2744
        %v2761 = vadd.f32 %v1873, %v2745
        %v2762 = vadd.f32 %v1896, %v2746
        %v2763 = vadd.f32 %v1919, %v2747
        %v2764 = vadd.f32 %v1942, %v2748
        %v2765 = vxor.u32 %v2757, 2147483648
        %v2766 = vxor.u32 %v2758, 2147483648
        %v2767 = vmul.f32 %v2765, 1.442695
        %v2768 = vpow.pop %v2767
        %v2769 = vmul.f32 %v2766, 1.442695
        %v2770 = vpow.pop %v2769
        %v2771 = vadd.f32 %v2768, 1.0
        %v2772 = vadd.f32 %v2770, 1.0
        %v2773 = vrcp.pop %v2771
        %v2774 = vmul.f32 %v2771, %v2773
        %v2775 = vsub.f32 1.0, %v2774
        %v2776 = vmul.f32 %v2773, %v2775
        %v2777 = vadd.f32 %v2773, %v2776
        %vm2778 = vweird.f32 %v2771
        %vm2779 = vweird.f32 %v2773
        %vm2780 = vmor %vm2778, %vm2779
        %v2781 = vsel %vm2780, %v2773, %v2777
        %v2782 = vand.u32 2147483647, %v2771
        %vm2783 = vcmp.eq.f32.partialorder %v2782, 8.507059e+37
        %v2784 = vand.u32 %v2771, 2147483648
        %v2785 = vor.u32 1.1754944e-38, %v2784
        %v2786 = vsel %vm2783, %v2785, %v2781
        %v2787 = vmul.f32 1.0, %v2786
        %v2788 = vrcp.pop %v2772
        %v2789 = vmul.f32 %v2772, %v2788
        %v2790 = vsub.f32 1.0, %v2789
        %v2791 = vmul.f32 %v2788, %v2790
        %v2792 = vadd.f32 %v2788, %v2791
        %vm2793 = vweird.f32 %v2772
        %vm2794 = vweird.f32 %v2788
        %vm2795 = vmor %vm2793, %vm2794
        %v2796 = vsel %vm2795, %v2788, %v2792
        %v2797 = vand.u32 2147483647, %v2772
        %vm2798 = vcmp.eq.f32.partialorder %v2797, 8.507059e+37
        %v2799 = vand.u32 %v2772, 2147483648
        %v2800 = vor.u32 1.1754944e-38, %v2799
        %v2801 = vsel %vm2798, %v2800, %v2796
        %v2802 = vmul.f32 1.0, %v2801
        %v2803 = vxor.u32 %v2759, 2147483648
        %v2804 = vxor.u32 %v2760, 2147483648
        %v2805 = vmul.f32 %v2803, 1.442695
        %v2806 = vpow.pop %v2805
        %v2807 = vmul.f32 %v2804, 1.442695
        %v2808 = vpow.pop %v2807
        %v2809 = vadd.f32 %v2806, 1.0
        %v2810 = vadd.f32 %v2808, 1.0
        %v2811 = vrcp.pop %v2809
        %v2812 = vmul.f32 %v2809, %v2811
        %v2813 = vsub.f32 1.0, %v2812
        %v2814 = vmul.f32 %v2811, %v2813
        %v2815 = vadd.f32 %v2811, %v2814
        %vm2816 = vweird.f32 %v2809
        %vm2817 = vweird.f32 %v2811
        %vm2818 = vmor %vm2816, %vm2817
        %v2819 = vsel %vm2818, %v2811, %v2815
        %v2820 = vand.u32 2147483647, %v2809
        %vm2821 = vcmp.eq.f32.partialorder %v2820, 8.507059e+37
        %v2822 = vand.u32 %v2809, 2147483648
        %v2823 = vor.u32 1.1754944e-38, %v2822
        %v2824 = vsel %vm2821, %v2823, %v2819
        %v2825 = vmul.f32 1.0, %v2824
        %v2826 = vrcp.pop %v2810
        %v2827 = vmul.f32 %v2810, %v2826
        %v2828 = vsub.f32 1.0, %v2827
        %v2829 = vmul.f32 %v2826, %v2828
        %v2830 = vadd.f32 %v2826, %v2829
        %vm2831 = vweird.f32 %v2810
        %vm2832 = vweird.f32 %v2826
        %vm2833 = vmor %vm2831, %vm2832
        %v2834 = vsel %vm2833, %v2826, %v2830
        %v2835 = vand.u32 2147483647, %v2810
        %vm2836 = vcmp.eq.f32.partialorder %v2835, 8.507059e+37
        %v2837 = vand.u32 %v2810, 2147483648
        %v2838 = vor.u32 1.1754944e-38, %v2837
        %v2839 = vsel %vm2836, %v2838, %v2834
        %v2840 = vmul.f32 1.0, %v2839
        %v2841 = vtanh.pop %v2761
        %v2842 = vtanh.pop %v2762
        %v2843 = vxor.u32 %v2763, 2147483648
        %v2844 = vxor.u32 %v2764, 2147483648
        %v2845 = vmul.f32 %v2843, 1.442695
        %v2846 = vpow.pop %v2845
        %v2847 = vmul.f32 %v2844, 1.442695
        %v2848 = vpow.pop %v2847
        %v2849 = vadd.f32 %v2846, 1.0
        %v2850 = vadd.f32 %v2848, 1.0
        %v2851 = vrcp.pop %v2849
        %v2852 = vmul.f32 %v2849, %v2851
        %v2853 = vsub.f32 1.0, %v2852
        %v2854 = vmul.f32 %v2851, %v2853
        %v2855 = vadd.f32 %v2851, %v2854
        %vm2856 = vweird.f32 %v2849
        %vm2857 = vweird.f32 %v2851
        %vm2858 = vmor %vm2856, %vm2857
        %v2859 = vsel %vm2858, %v2851, %v2855
        %v2860 = vand.u32 2147483647, %v2849
        %vm2861 = vcmp.eq.f32.partialorder %v2860, 8.507059e+37
        %v2862 = vand.u32 %v2849, 2147483648
        %v2863 = vor.u32 1.1754944e-38, %v2862
        %v2864 = vsel %vm2861, %v2863, %v2859
        %v2865 = vmul.f32 1.0, %v2864
        %v2866 = vrcp.pop %v2850
        %v2867 = vmul.f32 %v2850, %v2866
        %v2868 = vsub.f32 1.0, %v2867
        %v2869 = vmul.f32 %v2866, %v2868
        %v2870 = vadd.f32 %v2866, %v2869
        %vm2871 = vweird.f32 %v2850
        %vm2872 = vweird.f32 %v2866
        %vm2873 = vmor %vm2871, %vm2872
        %v2874 = vsel %vm2873, %v2866, %v2870
        %v2875 = vand.u32 2147483647, %v2850
        %vm2876 = vcmp.eq.f32.partialorder %v2875, 8.507059e+37
        %v2877 = vand.u32 %v2850, 2147483648
        %v2878 = vor.u32 1.1754944e-38, %v2877
        %v2879 = vsel %vm2876, %v2878, %v2874
        %v2880 = vmul.f32 1.0, %v2879
        %v2883 = vrot.slane %v2395, 7
        %v2884 = vrot.slane %v2396, 7
        %v2887 = vmul.f32 %v2825, %v2883
        %v2888 = vmul.f32 %v2840, %v2884
        %v2889 = vmul.f32 %v2787, %v2841
        %v2890 = vmul.f32 %v2802, %v2842
        %v2891 = vadd.f32 %v2887, %v2889
        %v2892 = vadd.f32 %v2888, %v2890
        %v2893 = vtanh.pop %v2891
        %v2894 = vtanh.pop %v2892
        %v2895 = vmul.f32 %v2865, %v2893
        %v2896 = vmul.f32 %v2880, %v2894
        %2899 = vst [vmem:[#allocation1] sm:$0xff] %v2895
        %2900 = vst [vmem:[#allocation1 + $0x9] sm:$0xff] %v2896
        %s2901 = scalar_lea.vmem [#allocation1], 1
        %v2902 = vld [vmem:[%s2901] ss:$9 sm:$0xff]
        %s2904 = scalar_lea.vmem [#allocation2], 1
        %2905 = vst.msk [vmem:[%s2904] ss:$8 sm:$0x3] %vm2410, %v2902
        %2906 = vst.msk [vmem:[%s2904] ss:$8 sm:$0x0] %vm2410, %v2902
        %v2907 = vrot.slane %v2895, 1
        %v2908 = vrot.slane %v2896, 1
        %2911 = vmatpush.msra.mxu0 %v837
        %2912 = vmatpush.msra.mxu0 %v829
        %2913 = vmatpush.msra.mxu0 %v821
        %2914 = vmatpush.msra.mxu0 %v813
        %2915 = vmatpush.msra.mxu0 %v805
        %2916 = vmatpush.msra.mxu0 %v797
        %2917 = vmatpush.msra.mxu0 %v789
        %2918 = vmatpush.msra.mxu0 %v781
        %2919 = vmatpush.msra.mxu0 %v773
        %2920 = vmatpush.msra.mxu0 %v765
        %2921 = vmatpush.msra.mxu0 %v757
        %2922 = vmatpush.msra.mxu0 %v749
        %2923 = vmatpush.msra.mxu0 %v741
        %2924 = vmatpush.msra.mxu0 %v733
        %2925 = vmatpush.msra.mxu0 %v725
        %2926 = vmatpush.msra.mxu0 %v717
        %2927 = vmatmul.f32.gmra.mxu0 %v2907
        %v2928 = vpop.f32.mrf.mxu0
        %v2929 = vadd.f32 0.0, %v2928
        %2930 = vdwg.mxu0
        %2931 = vmatpush.msra.mxu0 %v965
        %2932 = vmatpush.msra.mxu0 %v957
        %2933 = vmatpush.msra.mxu0 %v949
        %2934 = vmatpush.msra.mxu0 %v941
        %2935 = vmatpush.msra.mxu0 %v933
        %2936 = vmatpush.msra.mxu0 %v925
        %2937 = vmatpush.msra.mxu0 %v917
        %2938 = vmatpush.msra.mxu0 %v909
        %2939 = vmatpush.msra.mxu0 %v901
        %2940 = vmatpush.msra.mxu0 %v893
        %2941 = vmatpush.msra.mxu0 %v885
        %2942 = vmatpush.msra.mxu0 %v877
        %2943 = vmatpush.msra.mxu0 %v869
        %2944 = vmatpush.msra.mxu0 %v861
        %2945 = vmatpush.msra.mxu0 %v853
        %2946 = vmatpush.msra.mxu0 %v845
        %2947 = vmatmul.f32.gmra.mxu0 %v2908
        %v2948 = vpop.f32.mrf.mxu0
        %v2949 = vadd.f32 %v2929, %v2948
        %2950 = vdwg.mxu0
        %2951 = vmatpush.msra.mxu0 %v838
        %2952 = vmatpush.msra.mxu0 %v830
        %2953 = vmatpush.msra.mxu0 %v822
        %2954 = vmatpush.msra.mxu0 %v814
        %2955 = vmatpush.msra.mxu0 %v806
        %2956 = vmatpush.msra.mxu0 %v798
        %2957 = vmatpush.msra.mxu0 %v790
        %2958 = vmatpush.msra.mxu0 %v782
        %2959 = vmatpush.msra.mxu0 %v774
        %2960 = vmatpush.msra.mxu0 %v766
        %2961 = vmatpush.msra.mxu0 %v758
        %2962 = vmatpush.msra.mxu0 %v750
        %2963 = vmatpush.msra.mxu0 %v742
        %2964 = vmatpush.msra.mxu0 %v734
        %2965 = vmatpush.msra.mxu0 %v726
        %2966 = vmatpush.msra.mxu0 %v718
        %2967 = vmatmul.f32.gmra.mxu0 %v2907
        %v2968 = vpop.f32.mrf.mxu0
        %v2969 = vadd.f32 0.0, %v2968
        %2970 = vdwg.mxu0
        %2971 = vmatpush.msra.mxu0 %v966
        %2972 = vmatpush.msra.mxu0 %v958
        %2973 = vmatpush.msra.mxu0 %v950
        %2974 = vmatpush.msra.mxu0 %v942
        %2975 = vmatpush.msra.mxu0 %v934
        %2976 = vmatpush.msra.mxu0 %v926
        %2977 = vmatpush.msra.mxu0 %v918
        %2978 = vmatpush.msra.mxu0 %v910
        %2979 = vmatpush.msra.mxu0 %v902
        %2980 = vmatpush.msra.mxu0 %v894
        %2981 = vmatpush.msra.mxu0 %v886
        %2982 = vmatpush.msra.mxu0 %v878
        %2983 = vmatpush.msra.mxu0 %v870
        %2984 = vmatpush.msra.mxu0 %v862
        %2985 = vmatpush.msra.mxu0 %v854
        %2986 = vmatpush.msra.mxu0 %v846
        %2987 = vmatmul.f32.gmra.mxu0 %v2908
        %v2988 = vpop.f32.mrf.mxu0
        %v2989 = vadd.f32 %v2969, %v2988
        %2990 = vdwg.mxu0
        %2991 = vmatpush.msra.mxu0 %v839
        %2992 = vmatpush.msra.mxu0 %v831
        %2993 = vmatpush.msra.mxu0 %v823
        %2994 = vmatpush.msra.mxu0 %v815
        %2995 = vmatpush.msra.mxu0 %v807
        %2996 = vmatpush.msra.mxu0 %v799
        %2997 = vmatpush.msra.mxu0 %v791
        %2998 = vmatpush.msra.mxu0 %v783
        %2999 = vmatpush.msra.mxu0 %v775
        %3000 = vmatpush.msra.mxu0 %v767
        %3001 = vmatpush.msra.mxu0 %v759
        %3002 = vmatpush.msra.mxu0 %v751
        %3003 = vmatpush.msra.mxu0 %v743
        %3004 = vmatpush.msra.mxu0 %v735
        %3005 = vmatpush.msra.mxu0 %v727
        %3006 = vmatpush.msra.mxu0 %v719
        %3007 = vmatmul.f32.gmra.mxu0 %v2907
        %v3008 = vpop.f32.mrf.mxu0
        %v3009 = vadd.f32 0.0, %v3008
        %3010 = vdwg.mxu0
        %3011 = vmatpush.msra.mxu0 %v967
        %3012 = vmatpush.msra.mxu0 %v959
        %3013 = vmatpush.msra.mxu0 %v951
        %3014 = vmatpush.msra.mxu0 %v943
        %3015 = vmatpush.msra.mxu0 %v935
        %3016 = vmatpush.msra.mxu0 %v927
        %3017 = vmatpush.msra.mxu0 %v919
        %3018 = vmatpush.msra.mxu0 %v911
        %3019 = vmatpush.msra.mxu0 %v903
        %3020 = vmatpush.msra.mxu0 %v895
        %3021 = vmatpush.msra.mxu0 %v887
        %3022 = vmatpush.msra.mxu0 %v879
        %3023 = vmatpush.msra.mxu0 %v871
        %3024 = vmatpush.msra.mxu0 %v863
        %3025 = vmatpush.msra.mxu0 %v855
        %3026 = vmatpush.msra.mxu0 %v847
        %3027 = vmatmul.f32.gmra.mxu0 %v2908
        %v3028 = vpop.f32.mrf.mxu0
        %v3029 = vadd.f32 %v3009, %v3028
        %3030 = vdwg.mxu0
        %3031 = vmatpush.msra.mxu0 %v840
        %3032 = vmatpush.msra.mxu0 %v832
        %3033 = vmatpush.msra.mxu0 %v824
        %3034 = vmatpush.msra.mxu0 %v816
        %3035 = vmatpush.msra.mxu0 %v808
        %3036 = vmatpush.msra.mxu0 %v800
        %3037 = vmatpush.msra.mxu0 %v792
        %3038 = vmatpush.msra.mxu0 %v784
        %3039 = vmatpush.msra.mxu0 %v776
        %3040 = vmatpush.msra.mxu0 %v768
        %3041 = vmatpush.msra.mxu0 %v760
        %3042 = vmatpush.msra.mxu0 %v752
        %3043 = vmatpush.msra.mxu0 %v744
        %3044 = vmatpush.msra.mxu0 %v736
        %3045 = vmatpush.msra.mxu0 %v728
        %3046 = vmatpush.msra.mxu0 %v720
        %3047 = vmatmul.f32.gmra.mxu0 %v2907
        %v3048 = vpop.f32.mrf.mxu0
        %v3049 = vadd.f32 0.0, %v3048
        %3050 = vdwg.mxu0
        %3051 = vmatpush.msra.mxu0 %v968
        %3052 = vmatpush.msra.mxu0 %v960
        %3053 = vmatpush.msra.mxu0 %v952
        %3054 = vmatpush.msra.mxu0 %v944
        %3055 = vmatpush.msra.mxu0 %v936
        %3056 = vmatpush.msra.mxu0 %v928
        %3057 = vmatpush.msra.mxu0 %v920
        %3058 = vmatpush.msra.mxu0 %v912
        %3059 = vmatpush.msra.mxu0 %v904
        %3060 = vmatpush.msra.mxu0 %v896
        %3061 = vmatpush.msra.mxu0 %v888
        %3062 = vmatpush.msra.mxu0 %v880
        %3063 = vmatpush.msra.mxu0 %v872
        %3064 = vmatpush.msra.mxu0 %v864
        %3065 = vmatpush.msra.mxu0 %v856
        %3066 = vmatpush.msra.mxu0 %v848
        %3067 = vmatmul.f32.gmra.mxu0 %v2908
        %v3068 = vpop.f32.mrf.mxu0
        %v3069 = vadd.f32 %v3049, %v3068
        %3070 = vdwg.mxu0
        %3071 = vmatpush.msra.mxu0 %v841
        %3072 = vmatpush.msra.mxu0 %v833
        %3073 = vmatpush.msra.mxu0 %v825
        %3074 = vmatpush.msra.mxu0 %v817
        %3075 = vmatpush.msra.mxu0 %v809
        %3076 = vmatpush.msra.mxu0 %v801
        %3077 = vmatpush.msra.mxu0 %v793
        %3078 = vmatpush.msra.mxu0 %v785
        %3079 = vmatpush.msra.mxu0 %v777
        %3080 = vmatpush.msra.mxu0 %v769
        %3081 = vmatpush.msra.mxu0 %v761
        %3082 = vmatpush.msra.mxu0 %v753
        %3083 = vmatpush.msra.mxu0 %v745
        %3084 = vmatpush.msra.mxu0 %v737
        %3085 = vmatpush.msra.mxu0 %v729
        %3086 = vmatpush.msra.mxu0 %v721
        %3087 = vmatmul.f32.gmra.mxu0 %v2907
        %v3088 = vpop.f32.mrf.mxu0
        %v3089 = vadd.f32 0.0, %v3088
        %3090 = vdwg.mxu0
        %3091 = vmatpush.msra.mxu0 %v969
        %3092 = vmatpush.msra.mxu0 %v961
        %3093 = vmatpush.msra.mxu0 %v953
        %3094 = vmatpush.msra.mxu0 %v945
        %3095 = vmatpush.msra.mxu0 %v937
        %3096 = vmatpush.msra.mxu0 %v929
        %3097 = vmatpush.msra.mxu0 %v921
        %3098 = vmatpush.msra.mxu0 %v913
        %3099 = vmatpush.msra.mxu0 %v905
        %3100 = vmatpush.msra.mxu0 %v897
        %3101 = vmatpush.msra.mxu0 %v889
        %3102 = vmatpush.msra.mxu0 %v881
        %3103 = vmatpush.msra.mxu0 %v873
        %3104 = vmatpush.msra.mxu0 %v865
        %3105 = vmatpush.msra.mxu0 %v857
        %3106 = vmatpush.msra.mxu0 %v849
        %3107 = vmatmul.f32.gmra.mxu0 %v2908
        %v3108 = vpop.f32.mrf.mxu0
        %v3109 = vadd.f32 %v3089, %v3108
        %3110 = vdwg.mxu0
        %3111 = vmatpush.msra.mxu0 %v842
        %3112 = vmatpush.msra.mxu0 %v834
        %3113 = vmatpush.msra.mxu0 %v826
        %3114 = vmatpush.msra.mxu0 %v818
        %3115 = vmatpush.msra.mxu0 %v810
        %3116 = vmatpush.msra.mxu0 %v802
        %3117 = vmatpush.msra.mxu0 %v794
        %3118 = vmatpush.msra.mxu0 %v786
        %3119 = vmatpush.msra.mxu0 %v778
        %3120 = vmatpush.msra.mxu0 %v770
        %3121 = vmatpush.msra.mxu0 %v762
        %3122 = vmatpush.msra.mxu0 %v754
        %3123 = vmatpush.msra.mxu0 %v746
        %3124 = vmatpush.msra.mxu0 %v738
        %3125 = vmatpush.msra.mxu0 %v730
        %3126 = vmatpush.msra.mxu0 %v722
        %3127 = vmatmul.f32.gmra.mxu0 %v2907
        %v3128 = vpop.f32.mrf.mxu0
        %v3129 = vadd.f32 0.0, %v3128
        %3130 = vdwg.mxu0
        %3131 = vmatpush.msra.mxu0 %v970
        %3132 = vmatpush.msra.mxu0 %v962
        %3133 = vmatpush.msra.mxu0 %v954
        %3134 = vmatpush.msra.mxu0 %v946
        %3135 = vmatpush.msra.mxu0 %v938
        %3136 = vmatpush.msra.mxu0 %v930
        %3137 = vmatpush.msra.mxu0 %v922
        %3138 = vmatpush.msra.mxu0 %v914
        %3139 = vmatpush.msra.mxu0 %v906
        %3140 = vmatpush.msra.mxu0 %v898
        %3141 = vmatpush.msra.mxu0 %v890
        %3142 = vmatpush.msra.mxu0 %v882
        %3143 = vmatpush.msra.mxu0 %v874
        %3144 = vmatpush.msra.mxu0 %v866
        %3145 = vmatpush.msra.mxu0 %v858
        %3146 = vmatpush.msra.mxu0 %v850
        %3147 = vmatmul.f32.gmra.mxu0 %v2908
        %v3148 = vpop.f32.mrf.mxu0
        %v3149 = vadd.f32 %v3129, %v3148
        %3150 = vdwg.mxu0
        %3151 = vmatpush.msra.mxu0 %v843
        %3152 = vmatpush.msra.mxu0 %v835
        %3153 = vmatpush.msra.mxu0 %v827
        %3154 = vmatpush.msra.mxu0 %v819
        %3155 = vmatpush.msra.mxu0 %v811
        %3156 = vmatpush.msra.mxu0 %v803
        %3157 = vmatpush.msra.mxu0 %v795
        %3158 = vmatpush.msra.mxu0 %v787
        %3159 = vmatpush.msra.mxu0 %v779
        %3160 = vmatpush.msra.mxu0 %v771
        %3161 = vmatpush.msra.mxu0 %v763
        %3162 = vmatpush.msra.mxu0 %v755
        %3163 = vmatpush.msra.mxu0 %v747
        %3164 = vmatpush.msra.mxu0 %v739
        %3165 = vmatpush.msra.mxu0 %v731
        %3166 = vmatpush.msra.mxu0 %v723
        %3167 = vmatmul.f32.gmra.mxu0 %v2907
        %v3168 = vpop.f32.mrf.mxu0
        %v3169 = vadd.f32 0.0, %v3168
        %3170 = vdwg.mxu0
        %3171 = vmatpush.msra.mxu0 %v971
        %3172 = vmatpush.msra.mxu0 %v963
        %3173 = vmatpush.msra.mxu0 %v955
        %3174 = vmatpush.msra.mxu0 %v947
        %3175 = vmatpush.msra.mxu0 %v939
        %3176 = vmatpush.msra.mxu0 %v931
        %3177 = vmatpush.msra.mxu0 %v923
        %3178 = vmatpush.msra.mxu0 %v915
        %3179 = vmatpush.msra.mxu0 %v907
        %3180 = vmatpush.msra.mxu0 %v899
        %3181 = vmatpush.msra.mxu0 %v891
        %3182 = vmatpush.msra.mxu0 %v883
        %3183 = vmatpush.msra.mxu0 %v875
        %3184 = vmatpush.msra.mxu0 %v867
        %3185 = vmatpush.msra.mxu0 %v859
        %3186 = vmatpush.msra.mxu0 %v851
        %3187 = vmatmul.f32.gmra.mxu0 %v2908
        %v3188 = vpop.f32.mrf.mxu0
        %v3189 = vadd.f32 %v3169, %v3188
        %3190 = vdwg.mxu0
        %3191 = vmatpush.msra.mxu0 %v844
        %3192 = vmatpush.msra.mxu0 %v836
        %3193 = vmatpush.msra.mxu0 %v828
        %3194 = vmatpush.msra.mxu0 %v820
        %3195 = vmatpush.msra.mxu0 %v812
        %3196 = vmatpush.msra.mxu0 %v804
        %3197 = vmatpush.msra.mxu0 %v796
        %3198 = vmatpush.msra.mxu0 %v788
        %3199 = vmatpush.msra.mxu0 %v780
        %3200 = vmatpush.msra.mxu0 %v772
        %3201 = vmatpush.msra.mxu0 %v764
        %3202 = vmatpush.msra.mxu0 %v756
        %3203 = vmatpush.msra.mxu0 %v748
        %3204 = vmatpush.msra.mxu0 %v740
        %3205 = vmatpush.msra.mxu0 %v732
        %3206 = vmatpush.msra.mxu0 %v724
        %3207 = vmatmul.f32.gmra.mxu0 %v2907
        %v3208 = vpop.f32.mrf.mxu0
        %v3209 = vadd.f32 0.0, %v3208
        %3210 = vdwg.mxu0
        %3211 = vmatpush.msra.mxu0 %v972
        %3212 = vmatpush.msra.mxu0 %v964
        %3213 = vmatpush.msra.mxu0 %v956
        %3214 = vmatpush.msra.mxu0 %v948
        %3215 = vmatpush.msra.mxu0 %v940
        %3216 = vmatpush.msra.mxu0 %v932
        %3217 = vmatpush.msra.mxu0 %v924
        %3218 = vmatpush.msra.mxu0 %v916
        %3219 = vmatpush.msra.mxu0 %v908
        %3220 = vmatpush.msra.mxu0 %v900
        %3221 = vmatpush.msra.mxu0 %v892
        %3222 = vmatpush.msra.mxu0 %v884
        %3223 = vmatpush.msra.mxu0 %v876
        %3224 = vmatpush.msra.mxu0 %v868
        %3225 = vmatpush.msra.mxu0 %v860
        %3226 = vmatpush.msra.mxu0 %v852
        %3227 = vmatmul.f32.gmra.mxu0 %v2908
        %v3228 = vpop.f32.mrf.mxu0
        %v3229 = vadd.f32 %v3209, %v3228
        %3230 = vdwg.mxu0
        %v3239 = vrot.slane %v2949, 6
        %v3240 = vrot.slane %v2989, 6
        %v3241 = vrot.slane %v3029, 6
        %v3242 = vrot.slane %v3069, 6
        %v3243 = vrot.slane %v3109, 6
        %v3244 = vrot.slane %v3149, 6
        %v3245 = vrot.slane %v3189, 6
        %v3246 = vrot.slane %v3229, 6
        %v3255 = vadd.f32 %v1781, %v3239
        %v3256 = vadd.f32 %v1804, %v3240
        %v3257 = vadd.f32 %v1827, %v3241
        %v3258 = vadd.f32 %v1850, %v3242
        %v3259 = vadd.f32 %v1873, %v3243
        %v3260 = vadd.f32 %v1896, %v3244
        %v3261 = vadd.f32 %v1919, %v3245
        %v3262 = vadd.f32 %v1942, %v3246
        %v3263 = vxor.u32 %v3255, 2147483648
        %v3264 = vxor.u32 %v3256, 2147483648
        %v3265 = vmul.f32 %v3263, 1.442695
        %v3266 = vpow.pop %v3265
        %v3267 = vmul.f32 %v3264, 1.442695
        %v3268 = vpow.pop %v3267
        %v3269 = vadd.f32 %v3266, 1.0
        %v3270 = vadd.f32 %v3268, 1.0
        %v3271 = vrcp.pop %v3269
        %v3272 = vmul.f32 %v3269, %v3271
        %v3273 = vsub.f32 1.0, %v3272
        %v3274 = vmul.f32 %v3271, %v3273
        %v3275 = vadd.f32 %v3271, %v3274
        %vm3276 = vweird.f32 %v3269
        %vm3277 = vweird.f32 %v3271
        %vm3278 = vmor %vm3276, %vm3277
        %v3279 = vsel %vm3278, %v3271, %v3275
        %v3280 = vand.u32 2147483647, %v3269
        %vm3281 = vcmp.eq.f32.partialorder %v3280, 8.507059e+37
        %v3282 = vand.u32 %v3269, 2147483648
        %v3283 = vor.u32 1.1754944e-38, %v3282
        %v3284 = vsel %vm3281, %v3283, %v3279
        %v3285 = vmul.f32 1.0, %v3284
        %v3286 = vrcp.pop %v3270
        %v3287 = vmul.f32 %v3270, %v3286
        %v3288 = vsub.f32 1.0, %v3287
        %v3289 = vmul.f32 %v3286, %v3288
        %v3290 = vadd.f32 %v3286, %v3289
        %vm3291 = vweird.f32 %v3270
        %vm3292 = vweird.f32 %v3286
        %vm3293 = vmor %vm3291, %vm3292
        %v3294 = vsel %vm3293, %v3286, %v3290
        %v3295 = vand.u32 2147483647, %v3270
        %vm3296 = vcmp.eq.f32.partialorder %v3295, 8.507059e+37
        %v3297 = vand.u32 %v3270, 2147483648
        %v3298 = vor.u32 1.1754944e-38, %v3297
        %v3299 = vsel %vm3296, %v3298, %v3294
        %v3300 = vmul.f32 1.0, %v3299
        %v3301 = vxor.u32 %v3257, 2147483648
        %v3302 = vxor.u32 %v3258, 2147483648
        %v3303 = vmul.f32 %v3301, 1.442695
        %v3304 = vpow.pop %v3303
        %v3305 = vmul.f32 %v3302, 1.442695
        %v3306 = vpow.pop %v3305
        %v3307 = vadd.f32 %v3304, 1.0
        %v3308 = vadd.f32 %v3306, 1.0
        %v3309 = vrcp.pop %v3307
        %v3310 = vmul.f32 %v3307, %v3309
        %v3311 = vsub.f32 1.0, %v3310
        %v3312 = vmul.f32 %v3309, %v3311
        %v3313 = vadd.f32 %v3309, %v3312
        %vm3314 = vweird.f32 %v3307
        %vm3315 = vweird.f32 %v3309
        %vm3316 = vmor %vm3314, %vm3315
        %v3317 = vsel %vm3316, %v3309, %v3313
        %v3318 = vand.u32 2147483647, %v3307
        %vm3319 = vcmp.eq.f32.partialorder %v3318, 8.507059e+37
        %v3320 = vand.u32 %v3307, 2147483648
        %v3321 = vor.u32 1.1754944e-38, %v3320
        %v3322 = vsel %vm3319, %v3321, %v3317
        %v3323 = vmul.f32 1.0, %v3322
        %v3324 = vrcp.pop %v3308
        %v3325 = vmul.f32 %v3308, %v3324
        %v3326 = vsub.f32 1.0, %v3325
        %v3327 = vmul.f32 %v3324, %v3326
        %v3328 = vadd.f32 %v3324, %v3327
        %vm3329 = vweird.f32 %v3308
        %vm3330 = vweird.f32 %v3324
        %vm3331 = vmor %vm3329, %vm3330
        %v3332 = vsel %vm3331, %v3324, %v3328
        %v3333 = vand.u32 2147483647, %v3308
        %vm3334 = vcmp.eq.f32.partialorder %v3333, 8.507059e+37
        %v3335 = vand.u32 %v3308, 2147483648
        %v3336 = vor.u32 1.1754944e-38, %v3335
        %v3337 = vsel %vm3334, %v3336, %v3332
        %v3338 = vmul.f32 1.0, %v3337
        %v3339 = vtanh.pop %v3259
        %v3340 = vtanh.pop %v3260
        %v3341 = vxor.u32 %v3261, 2147483648
        %v3342 = vxor.u32 %v3262, 2147483648
        %v3343 = vmul.f32 %v3341, 1.442695
        %v3344 = vpow.pop %v3343
        %v3345 = vmul.f32 %v3342, 1.442695
        %v3346 = vpow.pop %v3345
        %v3347 = vadd.f32 %v3344, 1.0
        %v3348 = vadd.f32 %v3346, 1.0
        %v3349 = vrcp.pop %v3347
        %v3350 = vmul.f32 %v3347, %v3349
        %v3351 = vsub.f32 1.0, %v3350
        %v3352 = vmul.f32 %v3349, %v3351
        %v3353 = vadd.f32 %v3349, %v3352
        %vm3354 = vweird.f32 %v3347
        %vm3355 = vweird.f32 %v3349
        %vm3356 = vmor %vm3354, %vm3355
        %v3357 = vsel %vm3356, %v3349, %v3353
        %v3358 = vand.u32 2147483647, %v3347
        %vm3359 = vcmp.eq.f32.partialorder %v3358, 8.507059e+37
        %v3360 = vand.u32 %v3347, 2147483648
        %v3361 = vor.u32 1.1754944e-38, %v3360
        %v3362 = vsel %vm3359, %v3361, %v3357
        %v3363 = vmul.f32 1.0, %v3362
        %v3364 = vrcp.pop %v3348
        %v3365 = vmul.f32 %v3348, %v3364
        %v3366 = vsub.f32 1.0, %v3365
        %v3367 = vmul.f32 %v3364, %v3366
        %v3368 = vadd.f32 %v3364, %v3367
        %vm3369 = vweird.f32 %v3348
        %vm3370 = vweird.f32 %v3364
        %vm3371 = vmor %vm3369, %vm3370
        %v3372 = vsel %vm3371, %v3364, %v3368
        %v3373 = vand.u32 2147483647, %v3348
        %vm3374 = vcmp.eq.f32.partialorder %v3373, 8.507059e+37
        %v3375 = vand.u32 %v3348, 2147483648
        %v3376 = vor.u32 1.1754944e-38, %v3375
        %v3377 = vsel %vm3374, %v3376, %v3372
        %v3378 = vmul.f32 1.0, %v3377
        %v3381 = vrot.slane %v2891, 7
        %v3382 = vrot.slane %v2892, 7
        %v3385 = vmul.f32 %v3323, %v3381
        %v3386 = vmul.f32 %v3338, %v3382
        %v3387 = vmul.f32 %v3285, %v3339
        %v3388 = vmul.f32 %v3300, %v3340
        %v3389 = vadd.f32 %v3385, %v3387
        %v3390 = vadd.f32 %v3386, %v3388
        %v3391 = vtanh.pop %v3389
        %v3392 = vtanh.pop %v3390
        %v3393 = vmul.f32 %v3363, %v3391
        %v3394 = vmul.f32 %v3378, %v3392
        %3397 = vst [vmem:[#allocation1] sm:$0xff] %v3393
        %3398 = vst [vmem:[#allocation1 + $0x9] sm:$0xff] %v3394
        %s3399 = scalar_lea.vmem [#allocation1], 2
        %v3400 = vld [vmem:[%s3399] ss:$9 sm:$0xff]
        %s3402 = scalar_lea.vmem [#allocation2], 2
        %3403 = vst.msk [vmem:[%s3402] ss:$8 sm:$0x3] %vm2410, %v3400
        %3404 = vst.msk [vmem:[%s3402] ss:$8 sm:$0x0] %vm2410, %v3400
        %v3405 = vrot.slane %v3393, 2
        %v3406 = vrot.slane %v3394, 2
        %3409 = vmatpush.msra.mxu0 %v837
        %3410 = vmatpush.msra.mxu0 %v829
        %3411 = vmatpush.msra.mxu0 %v821
        %3412 = vmatpush.msra.mxu0 %v813
        %3413 = vmatpush.msra.mxu0 %v805
        %3414 = vmatpush.msra.mxu0 %v797
        %3415 = vmatpush.msra.mxu0 %v789
        %3416 = vmatpush.msra.mxu0 %v781
        %3417 = vmatpush.msra.mxu0 %v773
        %3418 = vmatpush.msra.mxu0 %v765
        %3419 = vmatpush.msra.mxu0 %v757
        %3420 = vmatpush.msra.mxu0 %v749
        %3421 = vmatpush.msra.mxu0 %v741
        %3422 = vmatpush.msra.mxu0 %v733
        %3423 = vmatpush.msra.mxu0 %v725
        %3424 = vmatpush.msra.mxu0 %v717
        %3425 = vmatmul.f32.gmra.mxu0 %v3405
        %v3426 = vpop.f32.mrf.mxu0
        %v3427 = vadd.f32 0.0, %v3426
        %3428 = vdwg.mxu0
        %3429 = vmatpush.msra.mxu0 %v965
        %3430 = vmatpush.msra.mxu0 %v957
        %3431 = vmatpush.msra.mxu0 %v949
        %3432 = vmatpush.msra.mxu0 %v941
        %3433 = vmatpush.msra.mxu0 %v933
        %3434 = vmatpush.msra.mxu0 %v925
        %3435 = vmatpush.msra.mxu0 %v917
        %3436 = vmatpush.msra.mxu0 %v909
        %3437 = vmatpush.msra.mxu0 %v901
        %3438 = vmatpush.msra.mxu0 %v893
        %3439 = vmatpush.msra.mxu0 %v885
        %3440 = vmatpush.msra.mxu0 %v877
        %3441 = vmatpush.msra.mxu0 %v869
        %3442 = vmatpush.msra.mxu0 %v861
        %3443 = vmatpush.msra.mxu0 %v853
        %3444 = vmatpush.msra.mxu0 %v845
        %3445 = vmatmul.f32.gmra.mxu0 %v3406
        %v3446 = vpop.f32.mrf.mxu0
        %v3447 = vadd.f32 %v3427, %v3446
        %3448 = vdwg.mxu0
        %3449 = vmatpush.msra.mxu0 %v838
        %3450 = vmatpush.msra.mxu0 %v830
        %3451 = vmatpush.msra.mxu0 %v822
        %3452 = vmatpush.msra.mxu0 %v814
        %3453 = vmatpush.msra.mxu0 %v806
        %3454 = vmatpush.msra.mxu0 %v798
        %3455 = vmatpush.msra.mxu0 %v790
        %3456 = vmatpush.msra.mxu0 %v782
        %3457 = vmatpush.msra.mxu0 %v774
        %3458 = vmatpush.msra.mxu0 %v766
        %3459 = vmatpush.msra.mxu0 %v758
        %3460 = vmatpush.msra.mxu0 %v750
        %3461 = vmatpush.msra.mxu0 %v742
        %3462 = vmatpush.msra.mxu0 %v734
        %3463 = vmatpush.msra.mxu0 %v726
        %3464 = vmatpush.msra.mxu0 %v718
        %3465 = vmatmul.f32.gmra.mxu0 %v3405
        %v3466 = vpop.f32.mrf.mxu0
        %v3467 = vadd.f32 0.0, %v3466
        %3468 = vdwg.mxu0
        %3469 = vmatpush.msra.mxu0 %v966
        %3470 = vmatpush.msra.mxu0 %v958
        %3471 = vmatpush.msra.mxu0 %v950
        %3472 = vmatpush.msra.mxu0 %v942
        %3473 = vmatpush.msra.mxu0 %v934
        %3474 = vmatpush.msra.mxu0 %v926
        %3475 = vmatpush.msra.mxu0 %v918
        %3476 = vmatpush.msra.mxu0 %v910
        %3477 = vmatpush.msra.mxu0 %v902
        %3478 = vmatpush.msra.mxu0 %v894
        %3479 = vmatpush.msra.mxu0 %v886
        %3480 = vmatpush.msra.mxu0 %v878
        %3481 = vmatpush.msra.mxu0 %v870
        %3482 = vmatpush.msra.mxu0 %v862
        %3483 = vmatpush.msra.mxu0 %v854
        %3484 = vmatpush.msra.mxu0 %v846
        %3485 = vmatmul.f32.gmra.mxu0 %v3406
        %v3486 = vpop.f32.mrf.mxu0
        %v3487 = vadd.f32 %v3467, %v3486
        %3488 = vdwg.mxu0
        %3489 = vmatpush.msra.mxu0 %v839
        %3490 = vmatpush.msra.mxu0 %v831
        %3491 = vmatpush.msra.mxu0 %v823
        %3492 = vmatpush.msra.mxu0 %v815
        %3493 = vmatpush.msra.mxu0 %v807
        %3494 = vmatpush.msra.mxu0 %v799
        %3495 = vmatpush.msra.mxu0 %v791
        %3496 = vmatpush.msra.mxu0 %v783
        %3497 = vmatpush.msra.mxu0 %v775
        %3498 = vmatpush.msra.mxu0 %v767
        %3499 = vmatpush.msra.mxu0 %v759
        %3500 = vmatpush.msra.mxu0 %v751
        %3501 = vmatpush.msra.mxu0 %v743
        %3502 = vmatpush.msra.mxu0 %v735
        %3503 = vmatpush.msra.mxu0 %v727
        %3504 = vmatpush.msra.mxu0 %v719
        %3505 = vmatmul.f32.gmra.mxu0 %v3405
        %v3506 = vpop.f32.mrf.mxu0
        %v3507 = vadd.f32 0.0, %v3506
        %3508 = vdwg.mxu0
        %3509 = vmatpush.msra.mxu0 %v967
        %3510 = vmatpush.msra.mxu0 %v959
        %3511 = vmatpush.msra.mxu0 %v951
        %3512 = vmatpush.msra.mxu0 %v943
        %3513 = vmatpush.msra.mxu0 %v935
        %3514 = vmatpush.msra.mxu0 %v927
        %3515 = vmatpush.msra.mxu0 %v919
        %3516 = vmatpush.msra.mxu0 %v911
        %3517 = vmatpush.msra.mxu0 %v903
        %3518 = vmatpush.msra.mxu0 %v895
        %3519 = vmatpush.msra.mxu0 %v887
        %3520 = vmatpush.msra.mxu0 %v879
        %3521 = vmatpush.msra.mxu0 %v871
        %3522 = vmatpush.msra.mxu0 %v863
        %3523 = vmatpush.msra.mxu0 %v855
        %3524 = vmatpush.msra.mxu0 %v847
        %3525 = vmatmul.f32.gmra.mxu0 %v3406
        %v3526 = vpop.f32.mrf.mxu0
        %v3527 = vadd.f32 %v3507, %v3526
        %3528 = vdwg.mxu0
        %3529 = vmatpush.msra.mxu0 %v840
        %3530 = vmatpush.msra.mxu0 %v832
        %3531 = vmatpush.msra.mxu0 %v824
        %3532 = vmatpush.msra.mxu0 %v816
        %3533 = vmatpush.msra.mxu0 %v808
        %3534 = vmatpush.msra.mxu0 %v800
        %3535 = vmatpush.msra.mxu0 %v792
        %3536 = vmatpush.msra.mxu0 %v784
        %3537 = vmatpush.msra.mxu0 %v776
        %3538 = vmatpush.msra.mxu0 %v768
        %3539 = vmatpush.msra.mxu0 %v760
        %3540 = vmatpush.msra.mxu0 %v752
        %3541 = vmatpush.msra.mxu0 %v744
        %3542 = vmatpush.msra.mxu0 %v736
        %3543 = vmatpush.msra.mxu0 %v728
        %3544 = vmatpush.msra.mxu0 %v720
        %3545 = vmatmul.f32.gmra.mxu0 %v3405
        %v3546 = vpop.f32.mrf.mxu0
        %v3547 = vadd.f32 0.0, %v3546
        %3548 = vdwg.mxu0
        %3549 = vmatpush.msra.mxu0 %v968
        %3550 = vmatpush.msra.mxu0 %v960
        %3551 = vmatpush.msra.mxu0 %v952
        %3552 = vmatpush.msra.mxu0 %v944
        %3553 = vmatpush.msra.mxu0 %v936
        %3554 = vmatpush.msra.mxu0 %v928
        %3555 = vmatpush.msra.mxu0 %v920
        %3556 = vmatpush.msra.mxu0 %v912
        %3557 = vmatpush.msra.mxu0 %v904
        %3558 = vmatpush.msra.mxu0 %v896
        %3559 = vmatpush.msra.mxu0 %v888
        %3560 = vmatpush.msra.mxu0 %v880
        %3561 = vmatpush.msra.mxu0 %v872
        %3562 = vmatpush.msra.mxu0 %v864
        %3563 = vmatpush.msra.mxu0 %v856
        %3564 = vmatpush.msra.mxu0 %v848
        %3565 = vmatmul.f32.gmra.mxu0 %v3406
        %v3566 = vpop.f32.mrf.mxu0
        %v3567 = vadd.f32 %v3547, %v3566
        %3568 = vdwg.mxu0
        %3569 = vmatpush.msra.mxu0 %v841
        %3570 = vmatpush.msra.mxu0 %v833
        %3571 = vmatpush.msra.mxu0 %v825
        %3572 = vmatpush.msra.mxu0 %v817
        %3573 = vmatpush.msra.mxu0 %v809
        %3574 = vmatpush.msra.mxu0 %v801
        %3575 = vmatpush.msra.mxu0 %v793
        %3576 = vmatpush.msra.mxu0 %v785
        %3577 = vmatpush.msra.mxu0 %v777
        %3578 = vmatpush.msra.mxu0 %v769
        %3579 = vmatpush.msra.mxu0 %v761
        %3580 = vmatpush.msra.mxu0 %v753
        %3581 = vmatpush.msra.mxu0 %v745
        %3582 = vmatpush.msra.mxu0 %v737
        %3583 = vmatpush.msra.mxu0 %v729
        %3584 = vmatpush.msra.mxu0 %v721
        %3585 = vmatmul.f32.gmra.mxu0 %v3405
        %v3586 = vpop.f32.mrf.mxu0
        %v3587 = vadd.f32 0.0, %v3586
        %3588 = vdwg.mxu0
        %3589 = vmatpush.msra.mxu0 %v969
        %3590 = vmatpush.msra.mxu0 %v961
        %3591 = vmatpush.msra.mxu0 %v953
        %3592 = vmatpush.msra.mxu0 %v945
        %3593 = vmatpush.msra.mxu0 %v937
        %3594 = vmatpush.msra.mxu0 %v929
        %3595 = vmatpush.msra.mxu0 %v921
        %3596 = vmatpush.msra.mxu0 %v913
        %3597 = vmatpush.msra.mxu0 %v905
        %3598 = vmatpush.msra.mxu0 %v897
        %3599 = vmatpush.msra.mxu0 %v889
        %3600 = vmatpush.msra.mxu0 %v881
        %3601 = vmatpush.msra.mxu0 %v873
        %3602 = vmatpush.msra.mxu0 %v865
        %3603 = vmatpush.msra.mxu0 %v857
        %3604 = vmatpush.msra.mxu0 %v849
        %3605 = vmatmul.f32.gmra.mxu0 %v3406
        %v3606 = vpop.f32.mrf.mxu0
        %v3607 = vadd.f32 %v3587, %v3606
        %3608 = vdwg.mxu0
        %3609 = vmatpush.msra.mxu0 %v842
        %3610 = vmatpush.msra.mxu0 %v834
        %3611 = vmatpush.msra.mxu0 %v826
        %3612 = vmatpush.msra.mxu0 %v818
        %3613 = vmatpush.msra.mxu0 %v810
        %3614 = vmatpush.msra.mxu0 %v802
        %3615 = vmatpush.msra.mxu0 %v794
        %3616 = vmatpush.msra.mxu0 %v786
        %3617 = vmatpush.msra.mxu0 %v778
        %3618 = vmatpush.msra.mxu0 %v770
        %3619 = vmatpush.msra.mxu0 %v762
        %3620 = vmatpush.msra.mxu0 %v754
        %3621 = vmatpush.msra.mxu0 %v746
        %3622 = vmatpush.msra.mxu0 %v738
        %3623 = vmatpush.msra.mxu0 %v730
        %3624 = vmatpush.msra.mxu0 %v722
        %3625 = vmatmul.f32.gmra.mxu0 %v3405
        %v3626 = vpop.f32.mrf.mxu0
        %v3627 = vadd.f32 0.0, %v3626
        %3628 = vdwg.mxu0
        %3629 = vmatpush.msra.mxu0 %v970
        %3630 = vmatpush.msra.mxu0 %v962
        %3631 = vmatpush.msra.mxu0 %v954
        %3632 = vmatpush.msra.mxu0 %v946
        %3633 = vmatpush.msra.mxu0 %v938
        %3634 = vmatpush.msra.mxu0 %v930
        %3635 = vmatpush.msra.mxu0 %v922
        %3636 = vmatpush.msra.mxu0 %v914
        %3637 = vmatpush.msra.mxu0 %v906
        %3638 = vmatpush.msra.mxu0 %v898
        %3639 = vmatpush.msra.mxu0 %v890
        %3640 = vmatpush.msra.mxu0 %v882
        %3641 = vmatpush.msra.mxu0 %v874
        %3642 = vmatpush.msra.mxu0 %v866
        %3643 = vmatpush.msra.mxu0 %v858
        %3644 = vmatpush.msra.mxu0 %v850
        %3645 = vmatmul.f32.gmra.mxu0 %v3406
        %v3646 = vpop.f32.mrf.mxu0
        %v3647 = vadd.f32 %v3627, %v3646
        %3648 = vdwg.mxu0
        %3649 = vmatpush.msra.mxu0 %v843
        %3650 = vmatpush.msra.mxu0 %v835
        %3651 = vmatpush.msra.mxu0 %v827
        %3652 = vmatpush.msra.mxu0 %v819
        %3653 = vmatpush.msra.mxu0 %v811
        %3654 = vmatpush.msra.mxu0 %v803
        %3655 = vmatpush.msra.mxu0 %v795
        %3656 = vmatpush.msra.mxu0 %v787
        %3657 = vmatpush.msra.mxu0 %v779
        %3658 = vmatpush.msra.mxu0 %v771
        %3659 = vmatpush.msra.mxu0 %v763
        %3660 = vmatpush.msra.mxu0 %v755
        %3661 = vmatpush.msra.mxu0 %v747
        %3662 = vmatpush.msra.mxu0 %v739
        %3663 = vmatpush.msra.mxu0 %v731
        %3664 = vmatpush.msra.mxu0 %v723
        %3665 = vmatmul.f32.gmra.mxu0 %v3405
        %v3666 = vpop.f32.mrf.mxu0
        %v3667 = vadd.f32 0.0, %v3666
        %3668 = vdwg.mxu0
        %3669 = vmatpush.msra.mxu0 %v971
        %3670 = vmatpush.msra.mxu0 %v963
        %3671 = vmatpush.msra.mxu0 %v955
        %3672 = vmatpush.msra.mxu0 %v947
        %3673 = vmatpush.msra.mxu0 %v939
        %3674 = vmatpush.msra.mxu0 %v931
        %3675 = vmatpush.msra.mxu0 %v923
        %3676 = vmatpush.msra.mxu0 %v915
        %3677 = vmatpush.msra.mxu0 %v907
        %3678 = vmatpush.msra.mxu0 %v899
        %3679 = vmatpush.msra.mxu0 %v891
        %3680 = vmatpush.msra.mxu0 %v883
        %3681 = vmatpush.msra.mxu0 %v875
        %3682 = vmatpush.msra.mxu0 %v867
        %3683 = vmatpush.msra.mxu0 %v859
        %3684 = vmatpush.msra.mxu0 %v851
        %3685 = vmatmul.f32.gmra.mxu0 %v3406
        %v3686 = vpop.f32.mrf.mxu0
        %v3687 = vadd.f32 %v3667, %v3686
        %3688 = vdwg.mxu0
        %3689 = vmatpush.msra.mxu0 %v844
        %3690 = vmatpush.msra.mxu0 %v836
        %3691 = vmatpush.msra.mxu0 %v828
        %3692 = vmatpush.msra.mxu0 %v820
        %3693 = vmatpush.msra.mxu0 %v812
        %3694 = vmatpush.msra.mxu0 %v804
        %3695 = vmatpush.msra.mxu0 %v796
        %3696 = vmatpush.msra.mxu0 %v788
        %3697 = vmatpush.msra.mxu0 %v780
        %3698 = vmatpush.msra.mxu0 %v772
        %3699 = vmatpush.msra.mxu0 %v764
        %3700 = vmatpush.msra.mxu0 %v756
        %3701 = vmatpush.msra.mxu0 %v748
        %3702 = vmatpush.msra.mxu0 %v740
        %3703 = vmatpush.msra.mxu0 %v732
        %3704 = vmatpush.msra.mxu0 %v724
        %3705 = vmatmul.f32.gmra.mxu0 %v3405
        %v3706 = vpop.f32.mrf.mxu0
        %v3707 = vadd.f32 0.0, %v3706
        %3708 = vdwg.mxu0
        %3709 = vmatpush.msra.mxu0 %v972
        %3710 = vmatpush.msra.mxu0 %v964
        %3711 = vmatpush.msra.mxu0 %v956
        %3712 = vmatpush.msra.mxu0 %v948
        %3713 = vmatpush.msra.mxu0 %v940
        %3714 = vmatpush.msra.mxu0 %v932
        %3715 = vmatpush.msra.mxu0 %v924
        %3716 = vmatpush.msra.mxu0 %v916
        %3717 = vmatpush.msra.mxu0 %v908
        %3718 = vmatpush.msra.mxu0 %v900
        %3719 = vmatpush.msra.mxu0 %v892
        %3720 = vmatpush.msra.mxu0 %v884
        %3721 = vmatpush.msra.mxu0 %v876
        %3722 = vmatpush.msra.mxu0 %v868
        %3723 = vmatpush.msra.mxu0 %v860
        %3724 = vmatpush.msra.mxu0 %v852
        %3725 = vmatmul.f32.gmra.mxu0 %v3406
        %v3726 = vpop.f32.mrf.mxu0
        %v3727 = vadd.f32 %v3707, %v3726
        %3728 = vdwg.mxu0
        %v3737 = vrot.slane %v3447, 5
        %v3738 = vrot.slane %v3487, 5
        %v3739 = vrot.slane %v3527, 5
        %v3740 = vrot.slane %v3567, 5
        %v3741 = vrot.slane %v3607, 5
        %v3742 = vrot.slane %v3647, 5
        %v3743 = vrot.slane %v3687, 5
        %v3744 = vrot.slane %v3727, 5
        %v3753 = vadd.f32 %v1781, %v3737
        %v3754 = vadd.f32 %v1804, %v3738
        %v3755 = vadd.f32 %v1827, %v3739
        %v3756 = vadd.f32 %v1850, %v3740
        %v3757 = vadd.f32 %v1873, %v3741
        %v3758 = vadd.f32 %v1896, %v3742
        %v3759 = vadd.f32 %v1919, %v3743
        %v3760 = vadd.f32 %v1942, %v3744
        %v3761 = vxor.u32 %v3753, 2147483648
        %v3762 = vxor.u32 %v3754, 2147483648
        %v3763 = vmul.f32 %v3761, 1.442695
        %v3764 = vpow.pop %v3763
        %v3765 = vmul.f32 %v3762, 1.442695
        %v3766 = vpow.pop %v3765
        %v3767 = vadd.f32 %v3764, 1.0
        %v3768 = vadd.f32 %v3766, 1.0
        %v3769 = vrcp.pop %v3767
        %v3770 = vmul.f32 %v3767, %v3769
        %v3771 = vsub.f32 1.0, %v3770
        %v3772 = vmul.f32 %v3769, %v3771
        %v3773 = vadd.f32 %v3769, %v3772
        %vm3774 = vweird.f32 %v3767
        %vm3775 = vweird.f32 %v3769
        %vm3776 = vmor %vm3774, %vm3775
        %v3777 = vsel %vm3776, %v3769, %v3773
        %v3778 = vand.u32 2147483647, %v3767
        %vm3779 = vcmp.eq.f32.partialorder %v3778, 8.507059e+37
        %v3780 = vand.u32 %v3767, 2147483648
        %v3781 = vor.u32 1.1754944e-38, %v3780
        %v3782 = vsel %vm3779, %v3781, %v3777
        %v3783 = vmul.f32 1.0, %v3782
        %v3784 = vrcp.pop %v3768
        %v3785 = vmul.f32 %v3768, %v3784
        %v3786 = vsub.f32 1.0, %v3785
        %v3787 = vmul.f32 %v3784, %v3786
        %v3788 = vadd.f32 %v3784, %v3787
        %vm3789 = vweird.f32 %v3768
        %vm3790 = vweird.f32 %v3784
        %vm3791 = vmor %vm3789, %vm3790
        %v3792 = vsel %vm3791, %v3784, %v3788
        %v3793 = vand.u32 2147483647, %v3768
        %vm3794 = vcmp.eq.f32.partialorder %v3793, 8.507059e+37
        %v3795 = vand.u32 %v3768, 2147483648
        %v3796 = vor.u32 1.1754944e-38, %v3795
        %v3797 = vsel %vm3794, %v3796, %v3792
        %v3798 = vmul.f32 1.0, %v3797
        %v3799 = vxor.u32 %v3755, 2147483648
        %v3800 = vxor.u32 %v3756, 2147483648
        %v3801 = vmul.f32 %v3799, 1.442695
        %v3802 = vpow.pop %v3801
        %v3803 = vmul.f32 %v3800, 1.442695
        %v3804 = vpow.pop %v3803
        %v3805 = vadd.f32 %v3802, 1.0
        %v3806 = vadd.f32 %v3804, 1.0
        %v3807 = vrcp.pop %v3805
        %v3808 = vmul.f32 %v3805, %v3807
        %v3809 = vsub.f32 1.0, %v3808
        %v3810 = vmul.f32 %v3807, %v3809
        %v3811 = vadd.f32 %v3807, %v3810
        %vm3812 = vweird.f32 %v3805
        %vm3813 = vweird.f32 %v3807
        %vm3814 = vmor %vm3812, %vm3813
        %v3815 = vsel %vm3814, %v3807, %v3811
        %v3816 = vand.u32 2147483647, %v3805
        %vm3817 = vcmp.eq.f32.partialorder %v3816, 8.507059e+37
        %v3818 = vand.u32 %v3805, 2147483648
        %v3819 = vor.u32 1.1754944e-38, %v3818
        %v3820 = vsel %vm3817, %v3819, %v3815
        %v3821 = vmul.f32 1.0, %v3820
        %v3822 = vrcp.pop %v3806
        %v3823 = vmul.f32 %v3806, %v3822
        %v3824 = vsub.f32 1.0, %v3823
        %v3825 = vmul.f32 %v3822, %v3824
        %v3826 = vadd.f32 %v3822, %v3825
        %vm3827 = vweird.f32 %v3806
        %vm3828 = vweird.f32 %v3822
        %vm3829 = vmor %vm3827, %vm3828
        %v3830 = vsel %vm3829, %v3822, %v3826
        %v3831 = vand.u32 2147483647, %v3806
        %vm3832 = vcmp.eq.f32.partialorder %v3831, 8.507059e+37
        %v3833 = vand.u32 %v3806, 2147483648
        %v3834 = vor.u32 1.1754944e-38, %v3833
        %v3835 = vsel %vm3832, %v3834, %v3830
        %v3836 = vmul.f32 1.0, %v3835
        %v3837 = vtanh.pop %v3757
        %v3838 = vtanh.pop %v3758
        %v3839 = vxor.u32 %v3759, 2147483648
        %v3840 = vxor.u32 %v3760, 2147483648
        %v3841 = vmul.f32 %v3839, 1.442695
        %v3842 = vpow.pop %v3841
        %v3843 = vmul.f32 %v3840, 1.442695
        %v3844 = vpow.pop %v3843
        %v3845 = vadd.f32 %v3842, 1.0
        %v3846 = vadd.f32 %v3844, 1.0
        %v3847 = vrcp.pop %v3845
        %v3848 = vmul.f32 %v3845, %v3847
        %v3849 = vsub.f32 1.0, %v3848
        %v3850 = vmul.f32 %v3847, %v3849
        %v3851 = vadd.f32 %v3847, %v3850
        %vm3852 = vweird.f32 %v3845
        %vm3853 = vweird.f32 %v3847
        %vm3854 = vmor %vm3852, %vm3853
        %v3855 = vsel %vm3854, %v3847, %v3851
        %v3856 = vand.u32 2147483647, %v3845
        %vm3857 = vcmp.eq.f32.partialorder %v3856, 8.507059e+37
        %v3858 = vand.u32 %v3845, 2147483648
        %v3859 = vor.u32 1.1754944e-38, %v3858
        %v3860 = vsel %vm3857, %v3859, %v3855
        %v3861 = vmul.f32 1.0, %v3860
        %v3862 = vrcp.pop %v3846
        %v3863 = vmul.f32 %v3846, %v3862
        %v3864 = vsub.f32 1.0, %v3863
        %v3865 = vmul.f32 %v3862, %v3864
        %v3866 = vadd.f32 %v3862, %v3865
        %vm3867 = vweird.f32 %v3846
        %vm3868 = vweird.f32 %v3862
        %vm3869 = vmor %vm3867, %vm3868
        %v3870 = vsel %vm3869, %v3862, %v3866
        %v3871 = vand.u32 2147483647, %v3846
        %vm3872 = vcmp.eq.f32.partialorder %v3871, 8.507059e+37
        %v3873 = vand.u32 %v3846, 2147483648
        %v3874 = vor.u32 1.1754944e-38, %v3873
        %v3875 = vsel %vm3872, %v3874, %v3870
        %v3876 = vmul.f32 1.0, %v3875
        %v3879 = vrot.slane %v3389, 7
        %v3880 = vrot.slane %v3390, 7
        %v3883 = vmul.f32 %v3821, %v3879
        %v3884 = vmul.f32 %v3836, %v3880
        %v3885 = vmul.f32 %v3783, %v3837
        %v3886 = vmul.f32 %v3798, %v3838
        %v3887 = vadd.f32 %v3883, %v3885
        %v3888 = vadd.f32 %v3884, %v3886
        %v3889 = vtanh.pop %v3887
        %v3890 = vtanh.pop %v3888
        %v3891 = vmul.f32 %v3861, %v3889
        %v3892 = vmul.f32 %v3876, %v3890
        %3895 = vst [vmem:[#allocation1] sm:$0xff] %v3891
        %3896 = vst [vmem:[#allocation1 + $0x9] sm:$0xff] %v3892
        %s3897 = scalar_lea.vmem [#allocation1], 3
        %v3898 = vld [vmem:[%s3897] ss:$9 sm:$0xff]
        %s3900 = scalar_lea.vmem [#allocation2], 3
        %3901 = vst.msk [vmem:[%s3900] ss:$8 sm:$0x3] %vm2410, %v3898
        %3902 = vst.msk [vmem:[%s3900] ss:$8 sm:$0x0] %vm2410, %v3898
        %v3903 = vrot.slane %v3891, 3
        %v3904 = vrot.slane %v3892, 3
        %3907 = vmatpush.msra.mxu0 %v837
        %3908 = vmatpush.msra.mxu0 %v829
        %3909 = vmatpush.msra.mxu0 %v821
        %3910 = vmatpush.msra.mxu0 %v813
        %3911 = vmatpush.msra.mxu0 %v805
        %3912 = vmatpush.msra.mxu0 %v797
        %3913 = vmatpush.msra.mxu0 %v789
        %3914 = vmatpush.msra.mxu0 %v781
        %3915 = vmatpush.msra.mxu0 %v773
        %3916 = vmatpush.msra.mxu0 %v765
        %3917 = vmatpush.msra.mxu0 %v757
        %3918 = vmatpush.msra.mxu0 %v749
        %3919 = vmatpush.msra.mxu0 %v741
        %3920 = vmatpush.msra.mxu0 %v733
        %3921 = vmatpush.msra.mxu0 %v725
        %3922 = vmatpush.msra.mxu0 %v717
        %3923 = vmatmul.f32.gmra.mxu0 %v3903
        %v3924 = vpop.f32.mrf.mxu0
        %v3925 = vadd.f32 0.0, %v3924
        %3926 = vdwg.mxu0
        %3927 = vmatpush.msra.mxu0 %v965
        %3928 = vmatpush.msra.mxu0 %v957
        %3929 = vmatpush.msra.mxu0 %v949
        %3930 = vmatpush.msra.mxu0 %v941
        %3931 = vmatpush.msra.mxu0 %v933
        %3932 = vmatpush.msra.mxu0 %v925
        %3933 = vmatpush.msra.mxu0 %v917
        %3934 = vmatpush.msra.mxu0 %v909
        %3935 = vmatpush.msra.mxu0 %v901
        %3936 = vmatpush.msra.mxu0 %v893
        %3937 = vmatpush.msra.mxu0 %v885
        %3938 = vmatpush.msra.mxu0 %v877
        %3939 = vmatpush.msra.mxu0 %v869
        %3940 = vmatpush.msra.mxu0 %v861
        %3941 = vmatpush.msra.mxu0 %v853
        %3942 = vmatpush.msra.mxu0 %v845
        %3943 = vmatmul.f32.gmra.mxu0 %v3904
        %v3944 = vpop.f32.mrf.mxu0
        %v3945 = vadd.f32 %v3925, %v3944
        %3946 = vdwg.mxu0
        %3947 = vmatpush.msra.mxu0 %v838
        %3948 = vmatpush.msra.mxu0 %v830
        %3949 = vmatpush.msra.mxu0 %v822
        %3950 = vmatpush.msra.mxu0 %v814
        %3951 = vmatpush.msra.mxu0 %v806
        %3952 = vmatpush.msra.mxu0 %v798
        %3953 = vmatpush.msra.mxu0 %v790
        %3954 = vmatpush.msra.mxu0 %v782
        %3955 = vmatpush.msra.mxu0 %v774
        %3956 = vmatpush.msra.mxu0 %v766
        %3957 = vmatpush.msra.mxu0 %v758
        %3958 = vmatpush.msra.mxu0 %v750
        %3959 = vmatpush.msra.mxu0 %v742
        %3960 = vmatpush.msra.mxu0 %v734
        %3961 = vmatpush.msra.mxu0 %v726
        %3962 = vmatpush.msra.mxu0 %v718
        %3963 = vmatmul.f32.gmra.mxu0 %v3903
        %v3964 = vpop.f32.mrf.mxu0
        %v3965 = vadd.f32 0.0, %v3964
        %3966 = vdwg.mxu0
        %3967 = vmatpush.msra.mxu0 %v966
        %3968 = vmatpush.msra.mxu0 %v958
        %3969 = vmatpush.msra.mxu0 %v950
        %3970 = vmatpush.msra.mxu0 %v942
        %3971 = vmatpush.msra.mxu0 %v934
        %3972 = vmatpush.msra.mxu0 %v926
        %3973 = vmatpush.msra.mxu0 %v918
        %3974 = vmatpush.msra.mxu0 %v910
        %3975 = vmatpush.msra.mxu0 %v902
        %3976 = vmatpush.msra.mxu0 %v894
        %3977 = vmatpush.msra.mxu0 %v886
        %3978 = vmatpush.msra.mxu0 %v878
        %3979 = vmatpush.msra.mxu0 %v870
        %3980 = vmatpush.msra.mxu0 %v862
        %3981 = vmatpush.msra.mxu0 %v854
        %3982 = vmatpush.msra.mxu0 %v846
        %3983 = vmatmul.f32.gmra.mxu0 %v3904
        %v3984 = vpop.f32.mrf.mxu0
        %v3985 = vadd.f32 %v3965, %v3984
        %3986 = vdwg.mxu0
        %3987 = vmatpush.msra.mxu0 %v839
        %3988 = vmatpush.msra.mxu0 %v831
        %3989 = vmatpush.msra.mxu0 %v823
        %3990 = vmatpush.msra.mxu0 %v815
        %3991 = vmatpush.msra.mxu0 %v807
        %3992 = vmatpush.msra.mxu0 %v799
        %3993 = vmatpush.msra.mxu0 %v791
        %3994 = vmatpush.msra.mxu0 %v783
        %3995 = vmatpush.msra.mxu0 %v775
        %3996 = vmatpush.msra.mxu0 %v767
        %3997 = vmatpush.msra.mxu0 %v759
        %3998 = vmatpush.msra.mxu0 %v751
        %3999 = vmatpush.msra.mxu0 %v743
        %4000 = vmatpush.msra.mxu0 %v735
        %4001 = vmatpush.msra.mxu0 %v727
        %4002 = vmatpush.msra.mxu0 %v719
        %4003 = vmatmul.f32.gmra.mxu0 %v3903
        %v4004 = vpop.f32.mrf.mxu0
        %v4005 = vadd.f32 0.0, %v4004
        %4006 = vdwg.mxu0
        %4007 = vmatpush.msra.mxu0 %v967
        %4008 = vmatpush.msra.mxu0 %v959
        %4009 = vmatpush.msra.mxu0 %v951
        %4010 = vmatpush.msra.mxu0 %v943
        %4011 = vmatpush.msra.mxu0 %v935
        %4012 = vmatpush.msra.mxu0 %v927
        %4013 = vmatpush.msra.mxu0 %v919
        %4014 = vmatpush.msra.mxu0 %v911
        %4015 = vmatpush.msra.mxu0 %v903
        %4016 = vmatpush.msra.mxu0 %v895
        %4017 = vmatpush.msra.mxu0 %v887
        %4018 = vmatpush.msra.mxu0 %v879
        %4019 = vmatpush.msra.mxu0 %v871
        %4020 = vmatpush.msra.mxu0 %v863
        %4021 = vmatpush.msra.mxu0 %v855
        %4022 = vmatpush.msra.mxu0 %v847
        %4023 = vmatmul.f32.gmra.mxu0 %v3904
        %v4024 = vpop.f32.mrf.mxu0
        %v4025 = vadd.f32 %v4005, %v4024
        %4026 = vdwg.mxu0
        %4027 = vmatpush.msra.mxu0 %v840
        %4028 = vmatpush.msra.mxu0 %v832
        %4029 = vmatpush.msra.mxu0 %v824
        %4030 = vmatpush.msra.mxu0 %v816
        %4031 = vmatpush.msra.mxu0 %v808
        %4032 = vmatpush.msra.mxu0 %v800
        %4033 = vmatpush.msra.mxu0 %v792
        %4034 = vmatpush.msra.mxu0 %v784
        %4035 = vmatpush.msra.mxu0 %v776
        %4036 = vmatpush.msra.mxu0 %v768
        %4037 = vmatpush.msra.mxu0 %v760
        %4038 = vmatpush.msra.mxu0 %v752
        %4039 = vmatpush.msra.mxu0 %v744
        %4040 = vmatpush.msra.mxu0 %v736
        %4041 = vmatpush.msra.mxu0 %v728
        %4042 = vmatpush.msra.mxu0 %v720
        %4043 = vmatmul.f32.gmra.mxu0 %v3903
        %v4044 = vpop.f32.mrf.mxu0
        %v4045 = vadd.f32 0.0, %v4044
        %4046 = vdwg.mxu0
        %4047 = vmatpush.msra.mxu0 %v968
        %4048 = vmatpush.msra.mxu0 %v960
        %4049 = vmatpush.msra.mxu0 %v952
        %4050 = vmatpush.msra.mxu0 %v944
        %4051 = vmatpush.msra.mxu0 %v936
        %4052 = vmatpush.msra.mxu0 %v928
        %4053 = vmatpush.msra.mxu0 %v920
        %4054 = vmatpush.msra.mxu0 %v912
        %4055 = vmatpush.msra.mxu0 %v904
        %4056 = vmatpush.msra.mxu0 %v896
        %4057 = vmatpush.msra.mxu0 %v888
        %4058 = vmatpush.msra.mxu0 %v880
        %4059 = vmatpush.msra.mxu0 %v872
        %4060 = vmatpush.msra.mxu0 %v864
        %4061 = vmatpush.msra.mxu0 %v856
        %4062 = vmatpush.msra.mxu0 %v848
        %4063 = vmatmul.f32.gmra.mxu0 %v3904
        %v4064 = vpop.f32.mrf.mxu0
        %v4065 = vadd.f32 %v4045, %v4064
        %4066 = vdwg.mxu0
        %4067 = vmatpush.msra.mxu0 %v841
        %4068 = vmatpush.msra.mxu0 %v833
        %4069 = vmatpush.msra.mxu0 %v825
        %4070 = vmatpush.msra.mxu0 %v817
        %4071 = vmatpush.msra.mxu0 %v809
        %4072 = vmatpush.msra.mxu0 %v801
        %4073 = vmatpush.msra.mxu0 %v793
        %4074 = vmatpush.msra.mxu0 %v785
        %4075 = vmatpush.msra.mxu0 %v777
        %4076 = vmatpush.msra.mxu0 %v769
        %4077 = vmatpush.msra.mxu0 %v761
        %4078 = vmatpush.msra.mxu0 %v753
        %4079 = vmatpush.msra.mxu0 %v745
        %4080 = vmatpush.msra.mxu0 %v737
        %4081 = vmatpush.msra.mxu0 %v729
        %4082 = vmatpush.msra.mxu0 %v721
        %4083 = vmatmul.f32.gmra.mxu0 %v3903
        %v4084 = vpop.f32.mrf.mxu0
        %v4085 = vadd.f32 0.0, %v4084
        %4086 = vdwg.mxu0
        %4087 = vmatpush.msra.mxu0 %v969
        %4088 = vmatpush.msra.mxu0 %v961
        %4089 = vmatpush.msra.mxu0 %v953
        %4090 = vmatpush.msra.mxu0 %v945
        %4091 = vmatpush.msra.mxu0 %v937
        %4092 = vmatpush.msra.mxu0 %v929
        %4093 = vmatpush.msra.mxu0 %v921
        %4094 = vmatpush.msra.mxu0 %v913
        %4095 = vmatpush.msra.mxu0 %v905
        %4096 = vmatpush.msra.mxu0 %v897
        %4097 = vmatpush.msra.mxu0 %v889
        %4098 = vmatpush.msra.mxu0 %v881
        %4099 = vmatpush.msra.mxu0 %v873
        %4100 = vmatpush.msra.mxu0 %v865
        %4101 = vmatpush.msra.mxu0 %v857
        %4102 = vmatpush.msra.mxu0 %v849
        %4103 = vmatmul.f32.gmra.mxu0 %v3904
        %v4104 = vpop.f32.mrf.mxu0
        %v4105 = vadd.f32 %v4085, %v4104
        %4106 = vdwg.mxu0
        %4107 = vmatpush.msra.mxu0 %v842
        %4108 = vmatpush.msra.mxu0 %v834
        %4109 = vmatpush.msra.mxu0 %v826
        %4110 = vmatpush.msra.mxu0 %v818
        %4111 = vmatpush.msra.mxu0 %v810
        %4112 = vmatpush.msra.mxu0 %v802
        %4113 = vmatpush.msra.mxu0 %v794
        %4114 = vmatpush.msra.mxu0 %v786
        %4115 = vmatpush.msra.mxu0 %v778
        %4116 = vmatpush.msra.mxu0 %v770
        %4117 = vmatpush.msra.mxu0 %v762
        %4118 = vmatpush.msra.mxu0 %v754
        %4119 = vmatpush.msra.mxu0 %v746
        %4120 = vmatpush.msra.mxu0 %v738
        %4121 = vmatpush.msra.mxu0 %v730
        %4122 = vmatpush.msra.mxu0 %v722
        %4123 = vmatmul.f32.gmra.mxu0 %v3903
        %v4124 = vpop.f32.mrf.mxu0
        %v4125 = vadd.f32 0.0, %v4124
        %4126 = vdwg.mxu0
        %4127 = vmatpush.msra.mxu0 %v970
        %4128 = vmatpush.msra.mxu0 %v962
        %4129 = vmatpush.msra.mxu0 %v954
        %4130 = vmatpush.msra.mxu0 %v946
        %4131 = vmatpush.msra.mxu0 %v938
        %4132 = vmatpush.msra.mxu0 %v930
        %4133 = vmatpush.msra.mxu0 %v922
        %4134 = vmatpush.msra.mxu0 %v914
        %4135 = vmatpush.msra.mxu0 %v906
        %4136 = vmatpush.msra.mxu0 %v898
        %4137 = vmatpush.msra.mxu0 %v890
        %4138 = vmatpush.msra.mxu0 %v882
        %4139 = vmatpush.msra.mxu0 %v874
        %4140 = vmatpush.msra.mxu0 %v866
        %4141 = vmatpush.msra.mxu0 %v858
        %4142 = vmatpush.msra.mxu0 %v850
        %4143 = vmatmul.f32.gmra.mxu0 %v3904
        %v4144 = vpop.f32.mrf.mxu0
        %v4145 = vadd.f32 %v4125, %v4144
        %4146 = vdwg.mxu0
        %4147 = vmatpush.msra.mxu0 %v843
        %4148 = vmatpush.msra.mxu0 %v835
        %4149 = vmatpush.msra.mxu0 %v827
        %4150 = vmatpush.msra.mxu0 %v819
        %4151 = vmatpush.msra.mxu0 %v811
        %4152 = vmatpush.msra.mxu0 %v803
        %4153 = vmatpush.msra.mxu0 %v795
        %4154 = vmatpush.msra.mxu0 %v787
        %4155 = vmatpush.msra.mxu0 %v779
        %4156 = vmatpush.msra.mxu0 %v771
        %4157 = vmatpush.msra.mxu0 %v763
        %4158 = vmatpush.msra.mxu0 %v755
        %4159 = vmatpush.msra.mxu0 %v747
        %4160 = vmatpush.msra.mxu0 %v739
        %4161 = vmatpush.msra.mxu0 %v731
        %4162 = vmatpush.msra.mxu0 %v723
        %4163 = vmatmul.f32.gmra.mxu0 %v3903
        %v4164 = vpop.f32.mrf.mxu0
        %v4165 = vadd.f32 0.0, %v4164
        %4166 = vdwg.mxu0
        %4167 = vmatpush.msra.mxu0 %v971
        %4168 = vmatpush.msra.mxu0 %v963
        %4169 = vmatpush.msra.mxu0 %v955
        %4170 = vmatpush.msra.mxu0 %v947
        %4171 = vmatpush.msra.mxu0 %v939
        %4172 = vmatpush.msra.mxu0 %v931
        %4173 = vmatpush.msra.mxu0 %v923
        %4174 = vmatpush.msra.mxu0 %v915
        %4175 = vmatpush.msra.mxu0 %v907
        %4176 = vmatpush.msra.mxu0 %v899
        %4177 = vmatpush.msra.mxu0 %v891
        %4178 = vmatpush.msra.mxu0 %v883
        %4179 = vmatpush.msra.mxu0 %v875
        %4180 = vmatpush.msra.mxu0 %v867
        %4181 = vmatpush.msra.mxu0 %v859
        %4182 = vmatpush.msra.mxu0 %v851
        %4183 = vmatmul.f32.gmra.mxu0 %v3904
        %v4184 = vpop.f32.mrf.mxu0
        %v4185 = vadd.f32 %v4165, %v4184
        %4186 = vdwg.mxu0
        %4187 = vmatpush.msra.mxu0 %v844
        %4188 = vmatpush.msra.mxu0 %v836
        %4189 = vmatpush.msra.mxu0 %v828
        %4190 = vmatpush.msra.mxu0 %v820
        %4191 = vmatpush.msra.mxu0 %v812
        %4192 = vmatpush.msra.mxu0 %v804
        %4193 = vmatpush.msra.mxu0 %v796
        %4194 = vmatpush.msra.mxu0 %v788
        %4195 = vmatpush.msra.mxu0 %v780
        %4196 = vmatpush.msra.mxu0 %v772
        %4197 = vmatpush.msra.mxu0 %v764
        %4198 = vmatpush.msra.mxu0 %v756
        %4199 = vmatpush.msra.mxu0 %v748
        %4200 = vmatpush.msra.mxu0 %v740
        %4201 = vmatpush.msra.mxu0 %v732
        %4202 = vmatpush.msra.mxu0 %v724
        %4203 = vmatmul.f32.gmra.mxu0 %v3903
        %v4204 = vpop.f32.mrf.mxu0
        %v4205 = vadd.f32 0.0, %v4204
        %4206 = vdwg.mxu0
        %4207 = vmatpush.msra.mxu0 %v972
        %4208 = vmatpush.msra.mxu0 %v964
        %4209 = vmatpush.msra.mxu0 %v956
        %4210 = vmatpush.msra.mxu0 %v948
        %4211 = vmatpush.msra.mxu0 %v940
        %4212 = vmatpush.msra.mxu0 %v932
        %4213 = vmatpush.msra.mxu0 %v924
        %4214 = vmatpush.msra.mxu0 %v916
        %4215 = vmatpush.msra.mxu0 %v908
        %4216 = vmatpush.msra.mxu0 %v900
        %4217 = vmatpush.msra.mxu0 %v892
        %4218 = vmatpush.msra.mxu0 %v884
        %4219 = vmatpush.msra.mxu0 %v876
        %4220 = vmatpush.msra.mxu0 %v868
        %4221 = vmatpush.msra.mxu0 %v860
        %4222 = vmatpush.msra.mxu0 %v852
        %4223 = vmatmul.f32.gmra.mxu0 %v3904
        %v4224 = vpop.f32.mrf.mxu0
        %v4225 = vadd.f32 %v4205, %v4224
        %4226 = vdwg.mxu0
        %v4235 = vrot.slane %v3945, 4
        %v4236 = vrot.slane %v3985, 4
        %v4237 = vrot.slane %v4025, 4
        %v4238 = vrot.slane %v4065, 4
        %v4239 = vrot.slane %v4105, 4
        %v4240 = vrot.slane %v4145, 4
        %v4241 = vrot.slane %v4185, 4
        %v4242 = vrot.slane %v4225, 4
        %v4251 = vadd.f32 %v1781, %v4235
        %v4252 = vadd.f32 %v1804, %v4236
        %v4253 = vadd.f32 %v1827, %v4237
        %v4254 = vadd.f32 %v1850, %v4238
        %v4255 = vadd.f32 %v1873, %v4239
        %v4256 = vadd.f32 %v1896, %v4240
        %v4257 = vadd.f32 %v1919, %v4241
        %v4258 = vadd.f32 %v1942, %v4242
        %v4259 = vxor.u32 %v4251, 2147483648
        %v4260 = vxor.u32 %v4252, 2147483648
        %v4261 = vmul.f32 %v4259, 1.442695
        %v4262 = vpow.pop %v4261
        %v4263 = vmul.f32 %v4260, 1.442695
        %v4264 = vpow.pop %v4263
        %v4265 = vadd.f32 %v4262, 1.0
        %v4266 = vadd.f32 %v4264, 1.0
        %v4267 = vrcp.pop %v4265
        %v4268 = vmul.f32 %v4265, %v4267
        %v4269 = vsub.f32 1.0, %v4268
        %v4270 = vmul.f32 %v4267, %v4269
        %v4271 = vadd.f32 %v4267, %v4270
        %vm4272 = vweird.f32 %v4265
        %vm4273 = vweird.f32 %v4267
        %vm4274 = vmor %vm4272, %vm4273
        %v4275 = vsel %vm4274, %v4267, %v4271
        %v4276 = vand.u32 2147483647, %v4265
        %vm4277 = vcmp.eq.f32.partialorder %v4276, 8.507059e+37
        %v4278 = vand.u32 %v4265, 2147483648
        %v4279 = vor.u32 1.1754944e-38, %v4278
        %v4280 = vsel %vm4277, %v4279, %v4275
        %v4281 = vmul.f32 1.0, %v4280
        %v4282 = vrcp.pop %v4266
        %v4283 = vmul.f32 %v4266, %v4282
        %v4284 = vsub.f32 1.0, %v4283
        %v4285 = vmul.f32 %v4282, %v4284
        %v4286 = vadd.f32 %v4282, %v4285
        %vm4287 = vweird.f32 %v4266
        %vm4288 = vweird.f32 %v4282
        %vm4289 = vmor %vm4287, %vm4288
        %v4290 = vsel %vm4289, %v4282, %v4286
        %v4291 = vand.u32 2147483647, %v4266
        %vm4292 = vcmp.eq.f32.partialorder %v4291, 8.507059e+37
        %v4293 = vand.u32 %v4266, 2147483648
        %v4294 = vor.u32 1.1754944e-38, %v4293
        %v4295 = vsel %vm4292, %v4294, %v4290
        %v4296 = vmul.f32 1.0, %v4295
        %v4297 = vxor.u32 %v4253, 2147483648
        %v4298 = vxor.u32 %v4254, 2147483648
        %v4299 = vmul.f32 %v4297, 1.442695
        %v4300 = vpow.pop %v4299
        %v4301 = vmul.f32 %v4298, 1.442695
        %v4302 = vpow.pop %v4301
        %v4303 = vadd.f32 %v4300, 1.0
        %v4304 = vadd.f32 %v4302, 1.0
        %v4305 = vrcp.pop %v4303
        %v4306 = vmul.f32 %v4303, %v4305
        %v4307 = vsub.f32 1.0, %v4306
        %v4308 = vmul.f32 %v4305, %v4307
        %v4309 = vadd.f32 %v4305, %v4308
        %vm4310 = vweird.f32 %v4303
        %vm4311 = vweird.f32 %v4305
        %vm4312 = vmor %vm4310, %vm4311
        %v4313 = vsel %vm4312, %v4305, %v4309
        %v4314 = vand.u32 2147483647, %v4303
        %vm4315 = vcmp.eq.f32.partialorder %v4314, 8.507059e+37
        %v4316 = vand.u32 %v4303, 2147483648
        %v4317 = vor.u32 1.1754944e-38, %v4316
        %v4318 = vsel %vm4315, %v4317, %v4313
        %v4319 = vmul.f32 1.0, %v4318
        %v4320 = vrcp.pop %v4304
        %v4321 = vmul.f32 %v4304, %v4320
        %v4322 = vsub.f32 1.0, %v4321
        %v4323 = vmul.f32 %v4320, %v4322
        %v4324 = vadd.f32 %v4320, %v4323
        %vm4325 = vweird.f32 %v4304
        %vm4326 = vweird.f32 %v4320
        %vm4327 = vmor %vm4325, %vm4326
        %v4328 = vsel %vm4327, %v4320, %v4324
        %v4329 = vand.u32 2147483647, %v4304
        %vm4330 = vcmp.eq.f32.partialorder %v4329, 8.507059e+37
        %v4331 = vand.u32 %v4304, 2147483648
        %v4332 = vor.u32 1.1754944e-38, %v4331
        %v4333 = vsel %vm4330, %v4332, %v4328
        %v4334 = vmul.f32 1.0, %v4333
        %v4335 = vtanh.pop %v4255
        %v4336 = vtanh.pop %v4256
        %v4337 = vxor.u32 %v4257, 2147483648
        %v4338 = vxor.u32 %v4258, 2147483648
        %v4339 = vmul.f32 %v4337, 1.442695
        %v4340 = vpow.pop %v4339
        %v4341 = vmul.f32 %v4338, 1.442695
        %v4342 = vpow.pop %v4341
        %v4343 = vadd.f32 %v4340, 1.0
        %v4344 = vadd.f32 %v4342, 1.0
        %v4345 = vrcp.pop %v4343
        %v4346 = vmul.f32 %v4343, %v4345
        %v4347 = vsub.f32 1.0, %v4346
        %v4348 = vmul.f32 %v4345, %v4347
        %v4349 = vadd.f32 %v4345, %v4348
        %vm4350 = vweird.f32 %v4343
        %vm4351 = vweird.f32 %v4345
        %vm4352 = vmor %vm4350, %vm4351
        %v4353 = vsel %vm4352, %v4345, %v4349
        %v4354 = vand.u32 2147483647, %v4343
        %vm4355 = vcmp.eq.f32.partialorder %v4354, 8.507059e+37
        %v4356 = vand.u32 %v4343, 2147483648
        %v4357 = vor.u32 1.1754944e-38, %v4356
        %v4358 = vsel %vm4355, %v4357, %v4353
        %v4359 = vmul.f32 1.0, %v4358
        %v4360 = vrcp.pop %v4344
        %v4361 = vmul.f32 %v4344, %v4360
        %v4362 = vsub.f32 1.0, %v4361
        %v4363 = vmul.f32 %v4360, %v4362
        %v4364 = vadd.f32 %v4360, %v4363
        %vm4365 = vweird.f32 %v4344
        %vm4366 = vweird.f32 %v4360
        %vm4367 = vmor %vm4365, %vm4366
        %v4368 = vsel %vm4367, %v4360, %v4364
        %v4369 = vand.u32 2147483647, %v4344
        %vm4370 = vcmp.eq.f32.partialorder %v4369, 8.507059e+37
        %v4371 = vand.u32 %v4344, 2147483648
        %v4372 = vor.u32 1.1754944e-38, %v4371
        %v4373 = vsel %vm4370, %v4372, %v4368
        %v4374 = vmul.f32 1.0, %v4373
        %v4377 = vrot.slane %v3887, 7
        %v4378 = vrot.slane %v3888, 7
        %v4381 = vmul.f32 %v4319, %v4377
        %v4382 = vmul.f32 %v4334, %v4378
        %v4383 = vmul.f32 %v4281, %v4335
        %v4384 = vmul.f32 %v4296, %v4336
        %v4385 = vadd.f32 %v4381, %v4383
        %v4386 = vadd.f32 %v4382, %v4384
        %v4387 = vtanh.pop %v4385
        %v4388 = vtanh.pop %v4386
        %v4389 = vmul.f32 %v4359, %v4387
        %v4390 = vmul.f32 %v4374, %v4388
        %4393 = vst [vmem:[#allocation1] sm:$0xff] %v4389
        %4394 = vst [vmem:[#allocation1 + $0x9] sm:$0xff] %v4390
        %s4395 = scalar_lea.vmem [#allocation1], 4
        %v4396 = vld [vmem:[%s4395] ss:$9 sm:$0xff]
        %s4398 = scalar_lea.vmem [#allocation2], 4
        %4399 = vst.msk [vmem:[%s4398] ss:$8 sm:$0x3] %vm2410, %v4396
        %4400 = vst.msk [vmem:[%s4398] ss:$8 sm:$0x0] %vm2410, %v4396
        %v4401 = vrot.slane %v4389, 4
        %v4402 = vrot.slane %v4390, 4
        %4405 = vmatpush.msra.mxu0 %v837
        %4406 = vmatpush.msra.mxu0 %v829
        %4407 = vmatpush.msra.mxu0 %v821
        %4408 = vmatpush.msra.mxu0 %v813
        %4409 = vmatpush.msra.mxu0 %v805
        %4410 = vmatpush.msra.mxu0 %v797
        %4411 = vmatpush.msra.mxu0 %v789
        %4412 = vmatpush.msra.mxu0 %v781
        %4413 = vmatpush.msra.mxu0 %v773
        %4414 = vmatpush.msra.mxu0 %v765
        %4415 = vmatpush.msra.mxu0 %v757
        %4416 = vmatpush.msra.mxu0 %v749
        %4417 = vmatpush.msra.mxu0 %v741
        %4418 = vmatpush.msra.mxu0 %v733
        %4419 = vmatpush.msra.mxu0 %v725
        %4420 = vmatpush.msra.mxu0 %v717
        %4421 = vmatmul.f32.gmra.mxu0 %v4401
        %v4422 = vpop.f32.mrf.mxu0
        %v4423 = vadd.f32 0.0, %v4422
        %4424 = vdwg.mxu0
        %4425 = vmatpush.msra.mxu0 %v965
        %4426 = vmatpush.msra.mxu0 %v957
        %4427 = vmatpush.msra.mxu0 %v949
        %4428 = vmatpush.msra.mxu0 %v941
        %4429 = vmatpush.msra.mxu0 %v933
        %4430 = vmatpush.msra.mxu0 %v925
        %4431 = vmatpush.msra.mxu0 %v917
        %4432 = vmatpush.msra.mxu0 %v909
        %4433 = vmatpush.msra.mxu0 %v901
        %4434 = vmatpush.msra.mxu0 %v893
        %4435 = vmatpush.msra.mxu0 %v885
        %4436 = vmatpush.msra.mxu0 %v877
        %4437 = vmatpush.msra.mxu0 %v869
        %4438 = vmatpush.msra.mxu0 %v861
        %4439 = vmatpush.msra.mxu0 %v853
        %4440 = vmatpush.msra.mxu0 %v845
        %4441 = vmatmul.f32.gmra.mxu0 %v4402
        %v4442 = vpop.f32.mrf.mxu0
        %v4443 = vadd.f32 %v4423, %v4442
        %4444 = vdwg.mxu0
        %4445 = vmatpush.msra.mxu0 %v838
        %4446 = vmatpush.msra.mxu0 %v830
        %4447 = vmatpush.msra.mxu0 %v822
        %4448 = vmatpush.msra.mxu0 %v814
        %4449 = vmatpush.msra.mxu0 %v806
        %4450 = vmatpush.msra.mxu0 %v798
        %4451 = vmatpush.msra.mxu0 %v790
        %4452 = vmatpush.msra.mxu0 %v782
        %4453 = vmatpush.msra.mxu0 %v774
        %4454 = vmatpush.msra.mxu0 %v766
        %4455 = vmatpush.msra.mxu0 %v758
        %4456 = vmatpush.msra.mxu0 %v750
        %4457 = vmatpush.msra.mxu0 %v742
        %4458 = vmatpush.msra.mxu0 %v734
        %4459 = vmatpush.msra.mxu0 %v726
        %4460 = vmatpush.msra.mxu0 %v718
        %4461 = vmatmul.f32.gmra.mxu0 %v4401
        %v4462 = vpop.f32.mrf.mxu0
        %v4463 = vadd.f32 0.0, %v4462
        %4464 = vdwg.mxu0
        %4465 = vmatpush.msra.mxu0 %v966
        %4466 = vmatpush.msra.mxu0 %v958
        %4467 = vmatpush.msra.mxu0 %v950
        %4468 = vmatpush.msra.mxu0 %v942
        %4469 = vmatpush.msra.mxu0 %v934
        %4470 = vmatpush.msra.mxu0 %v926
        %4471 = vmatpush.msra.mxu0 %v918
        %4472 = vmatpush.msra.mxu0 %v910
        %4473 = vmatpush.msra.mxu0 %v902
        %4474 = vmatpush.msra.mxu0 %v894
        %4475 = vmatpush.msra.mxu0 %v886
        %4476 = vmatpush.msra.mxu0 %v878
        %4477 = vmatpush.msra.mxu0 %v870
        %4478 = vmatpush.msra.mxu0 %v862
        %4479 = vmatpush.msra.mxu0 %v854
        %4480 = vmatpush.msra.mxu0 %v846
        %4481 = vmatmul.f32.gmra.mxu0 %v4402
        %v4482 = vpop.f32.mrf.mxu0
        %v4483 = vadd.f32 %v4463, %v4482
        %4484 = vdwg.mxu0
        %4485 = vmatpush.msra.mxu0 %v839
        %4486 = vmatpush.msra.mxu0 %v831
        %4487 = vmatpush.msra.mxu0 %v823
        %4488 = vmatpush.msra.mxu0 %v815
        %4489 = vmatpush.msra.mxu0 %v807
        %4490 = vmatpush.msra.mxu0 %v799
        %4491 = vmatpush.msra.mxu0 %v791
        %4492 = vmatpush.msra.mxu0 %v783
        %4493 = vmatpush.msra.mxu0 %v775
        %4494 = vmatpush.msra.mxu0 %v767
        %4495 = vmatpush.msra.mxu0 %v759
        %4496 = vmatpush.msra.mxu0 %v751
        %4497 = vmatpush.msra.mxu0 %v743
        %4498 = vmatpush.msra.mxu0 %v735
        %4499 = vmatpush.msra.mxu0 %v727
        %4500 = vmatpush.msra.mxu0 %v719
        %4501 = vmatmul.f32.gmra.mxu0 %v4401
        %v4502 = vpop.f32.mrf.mxu0
        %v4503 = vadd.f32 0.0, %v4502
        %4504 = vdwg.mxu0
        %4505 = vmatpush.msra.mxu0 %v967
        %4506 = vmatpush.msra.mxu0 %v959
        %4507 = vmatpush.msra.mxu0 %v951
        %4508 = vmatpush.msra.mxu0 %v943
        %4509 = vmatpush.msra.mxu0 %v935
        %4510 = vmatpush.msra.mxu0 %v927
        %4511 = vmatpush.msra.mxu0 %v919
        %4512 = vmatpush.msra.mxu0 %v911
        %4513 = vmatpush.msra.mxu0 %v903
        %4514 = vmatpush.msra.mxu0 %v895
        %4515 = vmatpush.msra.mxu0 %v887
        %4516 = vmatpush.msra.mxu0 %v879
        %4517 = vmatpush.msra.mxu0 %v871
        %4518 = vmatpush.msra.mxu0 %v863
        %4519 = vmatpush.msra.mxu0 %v855
        %4520 = vmatpush.msra.mxu0 %v847
        %4521 = vmatmul.f32.gmra.mxu0 %v4402
        %v4522 = vpop.f32.mrf.mxu0
        %v4523 = vadd.f32 %v4503, %v4522
        %4524 = vdwg.mxu0
        %4525 = vmatpush.msra.mxu0 %v840
        %4526 = vmatpush.msra.mxu0 %v832
        %4527 = vmatpush.msra.mxu0 %v824
        %4528 = vmatpush.msra.mxu0 %v816
        %4529 = vmatpush.msra.mxu0 %v808
        %4530 = vmatpush.msra.mxu0 %v800
        %4531 = vmatpush.msra.mxu0 %v792
        %4532 = vmatpush.msra.mxu0 %v784
        %4533 = vmatpush.msra.mxu0 %v776
        %4534 = vmatpush.msra.mxu0 %v768
        %4535 = vmatpush.msra.mxu0 %v760
        %4536 = vmatpush.msra.mxu0 %v752
        %4537 = vmatpush.msra.mxu0 %v744
        %4538 = vmatpush.msra.mxu0 %v736
        %4539 = vmatpush.msra.mxu0 %v728
        %4540 = vmatpush.msra.mxu0 %v720
        %4541 = vmatmul.f32.gmra.mxu0 %v4401
        %v4542 = vpop.f32.mrf.mxu0
        %v4543 = vadd.f32 0.0, %v4542
        %4544 = vdwg.mxu0
        %4545 = vmatpush.msra.mxu0 %v968
        %4546 = vmatpush.msra.mxu0 %v960
        %4547 = vmatpush.msra.mxu0 %v952
        %4548 = vmatpush.msra.mxu0 %v944
        %4549 = vmatpush.msra.mxu0 %v936
        %4550 = vmatpush.msra.mxu0 %v928
        %4551 = vmatpush.msra.mxu0 %v920
        %4552 = vmatpush.msra.mxu0 %v912
        %4553 = vmatpush.msra.mxu0 %v904
        %4554 = vmatpush.msra.mxu0 %v896
        %4555 = vmatpush.msra.mxu0 %v888
        %4556 = vmatpush.msra.mxu0 %v880
        %4557 = vmatpush.msra.mxu0 %v872
        %4558 = vmatpush.msra.mxu0 %v864
        %4559 = vmatpush.msra.mxu0 %v856
        %4560 = vmatpush.msra.mxu0 %v848
        %4561 = vmatmul.f32.gmra.mxu0 %v4402
        %v4562 = vpop.f32.mrf.mxu0
        %v4563 = vadd.f32 %v4543, %v4562
        %4564 = vdwg.mxu0
        %4565 = vmatpush.msra.mxu0 %v841
        %4566 = vmatpush.msra.mxu0 %v833
        %4567 = vmatpush.msra.mxu0 %v825
        %4568 = vmatpush.msra.mxu0 %v817
        %4569 = vmatpush.msra.mxu0 %v809
        %4570 = vmatpush.msra.mxu0 %v801
        %4571 = vmatpush.msra.mxu0 %v793
        %4572 = vmatpush.msra.mxu0 %v785
        %4573 = vmatpush.msra.mxu0 %v777
        %4574 = vmatpush.msra.mxu0 %v769
        %4575 = vmatpush.msra.mxu0 %v761
        %4576 = vmatpush.msra.mxu0 %v753
        %4577 = vmatpush.msra.mxu0 %v745
        %4578 = vmatpush.msra.mxu0 %v737
        %4579 = vmatpush.msra.mxu0 %v729
        %4580 = vmatpush.msra.mxu0 %v721
        %4581 = vmatmul.f32.gmra.mxu0 %v4401
        %v4582 = vpop.f32.mrf.mxu0
        %v4583 = vadd.f32 0.0, %v4582
        %4584 = vdwg.mxu0
        %4585 = vmatpush.msra.mxu0 %v969
        %4586 = vmatpush.msra.mxu0 %v961
        %4587 = vmatpush.msra.mxu0 %v953
        %4588 = vmatpush.msra.mxu0 %v945
        %4589 = vmatpush.msra.mxu0 %v937
        %4590 = vmatpush.msra.mxu0 %v929
        %4591 = vmatpush.msra.mxu0 %v921
        %4592 = vmatpush.msra.mxu0 %v913
        %4593 = vmatpush.msra.mxu0 %v905
        %4594 = vmatpush.msra.mxu0 %v897
        %4595 = vmatpush.msra.mxu0 %v889
        %4596 = vmatpush.msra.mxu0 %v881
        %4597 = vmatpush.msra.mxu0 %v873
        %4598 = vmatpush.msra.mxu0 %v865
        %4599 = vmatpush.msra.mxu0 %v857
        %4600 = vmatpush.msra.mxu0 %v849
        %4601 = vmatmul.f32.gmra.mxu0 %v4402
        %v4602 = vpop.f32.mrf.mxu0
        %v4603 = vadd.f32 %v4583, %v4602
        %4604 = vdwg.mxu0
        %4605 = vmatpush.msra.mxu0 %v842
        %4606 = vmatpush.msra.mxu0 %v834
        %4607 = vmatpush.msra.mxu0 %v826
        %4608 = vmatpush.msra.mxu0 %v818
        %4609 = vmatpush.msra.mxu0 %v810
        %4610 = vmatpush.msra.mxu0 %v802
        %4611 = vmatpush.msra.mxu0 %v794
        %4612 = vmatpush.msra.mxu0 %v786
        %4613 = vmatpush.msra.mxu0 %v778
        %4614 = vmatpush.msra.mxu0 %v770
        %4615 = vmatpush.msra.mxu0 %v762
        %4616 = vmatpush.msra.mxu0 %v754
        %4617 = vmatpush.msra.mxu0 %v746
        %4618 = vmatpush.msra.mxu0 %v738
        %4619 = vmatpush.msra.mxu0 %v730
        %4620 = vmatpush.msra.mxu0 %v722
        %4621 = vmatmul.f32.gmra.mxu0 %v4401
        %v4622 = vpop.f32.mrf.mxu0
        %v4623 = vadd.f32 0.0, %v4622
        %4624 = vdwg.mxu0
        %4625 = vmatpush.msra.mxu0 %v970
        %4626 = vmatpush.msra.mxu0 %v962
        %4627 = vmatpush.msra.mxu0 %v954
        %4628 = vmatpush.msra.mxu0 %v946
        %4629 = vmatpush.msra.mxu0 %v938
        %4630 = vmatpush.msra.mxu0 %v930
        %4631 = vmatpush.msra.mxu0 %v922
        %4632 = vmatpush.msra.mxu0 %v914
        %4633 = vmatpush.msra.mxu0 %v906
        %4634 = vmatpush.msra.mxu0 %v898
        %4635 = vmatpush.msra.mxu0 %v890
        %4636 = vmatpush.msra.mxu0 %v882
        %4637 = vmatpush.msra.mxu0 %v874
        %4638 = vmatpush.msra.mxu0 %v866
        %4639 = vmatpush.msra.mxu0 %v858
        %4640 = vmatpush.msra.mxu0 %v850
        %4641 = vmatmul.f32.gmra.mxu0 %v4402
        %v4642 = vpop.f32.mrf.mxu0
        %v4643 = vadd.f32 %v4623, %v4642
        %4644 = vdwg.mxu0
        %4645 = vmatpush.msra.mxu0 %v843
        %4646 = vmatpush.msra.mxu0 %v835
        %4647 = vmatpush.msra.mxu0 %v827
        %4648 = vmatpush.msra.mxu0 %v819
        %4649 = vmatpush.msra.mxu0 %v811
        %4650 = vmatpush.msra.mxu0 %v803
        %4651 = vmatpush.msra.mxu0 %v795
        %4652 = vmatpush.msra.mxu0 %v787
        %4653 = vmatpush.msra.mxu0 %v779
        %4654 = vmatpush.msra.mxu0 %v771
        %4655 = vmatpush.msra.mxu0 %v763
        %4656 = vmatpush.msra.mxu0 %v755
        %4657 = vmatpush.msra.mxu0 %v747
        %4658 = vmatpush.msra.mxu0 %v739
        %4659 = vmatpush.msra.mxu0 %v731
        %4660 = vmatpush.msra.mxu0 %v723
        %4661 = vmatmul.f32.gmra.mxu0 %v4401
        %v4662 = vpop.f32.mrf.mxu0
        %v4663 = vadd.f32 0.0, %v4662
        %4664 = vdwg.mxu0
        %4665 = vmatpush.msra.mxu0 %v971
        %4666 = vmatpush.msra.mxu0 %v963
        %4667 = vmatpush.msra.mxu0 %v955
        %4668 = vmatpush.msra.mxu0 %v947
        %4669 = vmatpush.msra.mxu0 %v939
        %4670 = vmatpush.msra.mxu0 %v931
        %4671 = vmatpush.msra.mxu0 %v923
        %4672 = vmatpush.msra.mxu0 %v915
        %4673 = vmatpush.msra.mxu0 %v907
        %4674 = vmatpush.msra.mxu0 %v899
        %4675 = vmatpush.msra.mxu0 %v891
        %4676 = vmatpush.msra.mxu0 %v883
        %4677 = vmatpush.msra.mxu0 %v875
        %4678 = vmatpush.msra.mxu0 %v867
        %4679 = vmatpush.msra.mxu0 %v859
        %4680 = vmatpush.msra.mxu0 %v851
        %4681 = vmatmul.f32.gmra.mxu0 %v4402
        %v4682 = vpop.f32.mrf.mxu0
        %v4683 = vadd.f32 %v4663, %v4682
        %4684 = vdwg.mxu0
        %4685 = vmatpush.msra.mxu0 %v844
        %4686 = vmatpush.msra.mxu0 %v836
        %4687 = vmatpush.msra.mxu0 %v828
        %4688 = vmatpush.msra.mxu0 %v820
        %4689 = vmatpush.msra.mxu0 %v812
        %4690 = vmatpush.msra.mxu0 %v804
        %4691 = vmatpush.msra.mxu0 %v796
        %4692 = vmatpush.msra.mxu0 %v788
        %4693 = vmatpush.msra.mxu0 %v780
        %4694 = vmatpush.msra.mxu0 %v772
        %4695 = vmatpush.msra.mxu0 %v764
        %4696 = vmatpush.msra.mxu0 %v756
        %4697 = vmatpush.msra.mxu0 %v748
        %4698 = vmatpush.msra.mxu0 %v740
        %4699 = vmatpush.msra.mxu0 %v732
        %4700 = vmatpush.msra.mxu0 %v724
        %4701 = vmatmul.f32.gmra.mxu0 %v4401
        %v4702 = vpop.f32.mrf.mxu0
        %v4703 = vadd.f32 0.0, %v4702
        %4704 = vdwg.mxu0
        %4705 = vmatpush.msra.mxu0 %v972
        %4706 = vmatpush.msra.mxu0 %v964
        %4707 = vmatpush.msra.mxu0 %v956
        %4708 = vmatpush.msra.mxu0 %v948
        %4709 = vmatpush.msra.mxu0 %v940
        %4710 = vmatpush.msra.mxu0 %v932
        %4711 = vmatpush.msra.mxu0 %v924
        %4712 = vmatpush.msra.mxu0 %v916
        %4713 = vmatpush.msra.mxu0 %v908
        %4714 = vmatpush.msra.mxu0 %v900
        %4715 = vmatpush.msra.mxu0 %v892
        %4716 = vmatpush.msra.mxu0 %v884
        %4717 = vmatpush.msra.mxu0 %v876
        %4718 = vmatpush.msra.mxu0 %v868
        %4719 = vmatpush.msra.mxu0 %v860
        %4720 = vmatpush.msra.mxu0 %v852
        %4721 = vmatmul.f32.gmra.mxu0 %v4402
        %v4722 = vpop.f32.mrf.mxu0
        %v4723 = vadd.f32 %v4703, %v4722
        %4724 = vdwg.mxu0
        %v4733 = vrot.slane %v4443, 3
        %v4734 = vrot.slane %v4483, 3
        %v4735 = vrot.slane %v4523, 3
        %v4736 = vrot.slane %v4563, 3
        %v4737 = vrot.slane %v4603, 3
        %v4738 = vrot.slane %v4643, 3
        %v4739 = vrot.slane %v4683, 3
        %v4740 = vrot.slane %v4723, 3
        %v4749 = vadd.f32 %v1781, %v4733
        %v4750 = vadd.f32 %v1804, %v4734
        %v4751 = vadd.f32 %v1827, %v4735
        %v4752 = vadd.f32 %v1850, %v4736
        %v4753 = vadd.f32 %v1873, %v4737
        %v4754 = vadd.f32 %v1896, %v4738
        %v4755 = vadd.f32 %v1919, %v4739
        %v4756 = vadd.f32 %v1942, %v4740
        %v4757 = vxor.u32 %v4749, 2147483648
        %v4758 = vxor.u32 %v4750, 2147483648
        %v4759 = vmul.f32 %v4757, 1.442695
        %v4760 = vpow.pop %v4759
        %v4761 = vmul.f32 %v4758, 1.442695
        %v4762 = vpow.pop %v4761
        %v4763 = vadd.f32 %v4760, 1.0
        %v4764 = vadd.f32 %v4762, 1.0
        %v4765 = vrcp.pop %v4763
        %v4766 = vmul.f32 %v4763, %v4765
        %v4767 = vsub.f32 1.0, %v4766
        %v4768 = vmul.f32 %v4765, %v4767
        %v4769 = vadd.f32 %v4765, %v4768
        %vm4770 = vweird.f32 %v4763
        %vm4771 = vweird.f32 %v4765
        %vm4772 = vmor %vm4770, %vm4771
        %v4773 = vsel %vm4772, %v4765, %v4769
        %v4774 = vand.u32 2147483647, %v4763
        %vm4775 = vcmp.eq.f32.partialorder %v4774, 8.507059e+37
        %v4776 = vand.u32 %v4763, 2147483648
        %v4777 = vor.u32 1.1754944e-38, %v4776
        %v4778 = vsel %vm4775, %v4777, %v4773
        %v4779 = vmul.f32 1.0, %v4778
        %v4780 = vrcp.pop %v4764
        %v4781 = vmul.f32 %v4764, %v4780
        %v4782 = vsub.f32 1.0, %v4781
        %v4783 = vmul.f32 %v4780, %v4782
        %v4784 = vadd.f32 %v4780, %v4783
        %vm4785 = vweird.f32 %v4764
        %vm4786 = vweird.f32 %v4780
        %vm4787 = vmor %vm4785, %vm4786
        %v4788 = vsel %vm4787, %v4780, %v4784
        %v4789 = vand.u32 2147483647, %v4764
        %vm4790 = vcmp.eq.f32.partialorder %v4789, 8.507059e+37
        %v4791 = vand.u32 %v4764, 2147483648
        %v4792 = vor.u32 1.1754944e-38, %v4791
        %v4793 = vsel %vm4790, %v4792, %v4788
        %v4794 = vmul.f32 1.0, %v4793
        %v4795 = vxor.u32 %v4751, 2147483648
        %v4796 = vxor.u32 %v4752, 2147483648
        %v4797 = vmul.f32 %v4795, 1.442695
        %v4798 = vpow.pop %v4797
        %v4799 = vmul.f32 %v4796, 1.442695
        %v4800 = vpow.pop %v4799
        %v4801 = vadd.f32 %v4798, 1.0
        %v4802 = vadd.f32 %v4800, 1.0
        %v4803 = vrcp.pop %v4801
        %v4804 = vmul.f32 %v4801, %v4803
        %v4805 = vsub.f32 1.0, %v4804
        %v4806 = vmul.f32 %v4803, %v4805
        %v4807 = vadd.f32 %v4803, %v4806
        %vm4808 = vweird.f32 %v4801
        %vm4809 = vweird.f32 %v4803
        %vm4810 = vmor %vm4808, %vm4809
        %v4811 = vsel %vm4810, %v4803, %v4807
        %v4812 = vand.u32 2147483647, %v4801
        %vm4813 = vcmp.eq.f32.partialorder %v4812, 8.507059e+37
        %v4814 = vand.u32 %v4801, 2147483648
        %v4815 = vor.u32 1.1754944e-38, %v4814
        %v4816 = vsel %vm4813, %v4815, %v4811
        %v4817 = vmul.f32 1.0, %v4816
        %v4818 = vrcp.pop %v4802
        %v4819 = vmul.f32 %v4802, %v4818
        %v4820 = vsub.f32 1.0, %v4819
        %v4821 = vmul.f32 %v4818, %v4820
        %v4822 = vadd.f32 %v4818, %v4821
        %vm4823 = vweird.f32 %v4802
        %vm4824 = vweird.f32 %v4818
        %vm4825 = vmor %vm4823, %vm4824
        %v4826 = vsel %vm4825, %v4818, %v4822
        %v4827 = vand.u32 2147483647, %v4802
        %vm4828 = vcmp.eq.f32.partialorder %v4827, 8.507059e+37
        %v4829 = vand.u32 %v4802, 2147483648
        %v4830 = vor.u32 1.1754944e-38, %v4829
        %v4831 = vsel %vm4828, %v4830, %v4826
        %v4832 = vmul.f32 1.0, %v4831
        %v4833 = vtanh.pop %v4753
        %v4834 = vtanh.pop %v4754
        %v4835 = vxor.u32 %v4755, 2147483648
        %v4836 = vxor.u32 %v4756, 2147483648
        %v4837 = vmul.f32 %v4835, 1.442695
        %v4838 = vpow.pop %v4837
        %v4839 = vmul.f32 %v4836, 1.442695
        %v4840 = vpow.pop %v4839
        %v4841 = vadd.f32 %v4838, 1.0
        %v4842 = vadd.f32 %v4840, 1.0
        %v4843 = vrcp.pop %v4841
        %v4844 = vmul.f32 %v4841, %v4843
        %v4845 = vsub.f32 1.0, %v4844
        %v4846 = vmul.f32 %v4843, %v4845
        %v4847 = vadd.f32 %v4843, %v4846
        %vm4848 = vweird.f32 %v4841
        %vm4849 = vweird.f32 %v4843
        %vm4850 = vmor %vm4848, %vm4849
        %v4851 = vsel %vm4850, %v4843, %v4847
        %v4852 = vand.u32 2147483647, %v4841
        %vm4853 = vcmp.eq.f32.partialorder %v4852, 8.507059e+37
        %v4854 = vand.u32 %v4841, 2147483648
        %v4855 = vor.u32 1.1754944e-38, %v4854
        %v4856 = vsel %vm4853, %v4855, %v4851
        %v4857 = vmul.f32 1.0, %v4856
        %v4858 = vrcp.pop %v4842
        %v4859 = vmul.f32 %v4842, %v4858
        %v4860 = vsub.f32 1.0, %v4859
        %v4861 = vmul.f32 %v4858, %v4860
        %v4862 = vadd.f32 %v4858, %v4861
        %vm4863 = vweird.f32 %v4842
        %vm4864 = vweird.f32 %v4858
        %vm4865 = vmor %vm4863, %vm4864
        %v4866 = vsel %vm4865, %v4858, %v4862
        %v4867 = vand.u32 2147483647, %v4842
        %vm4868 = vcmp.eq.f32.partialorder %v4867, 8.507059e+37
        %v4869 = vand.u32 %v4842, 2147483648
        %v4870 = vor.u32 1.1754944e-38, %v4869
        %v4871 = vsel %vm4868, %v4870, %v4866
        %v4872 = vmul.f32 1.0, %v4871
        %v4875 = vrot.slane %v4385, 7
        %v4876 = vrot.slane %v4386, 7
        %v4879 = vmul.f32 %v4817, %v4875
        %v4880 = vmul.f32 %v4832, %v4876
        %v4881 = vmul.f32 %v4779, %v4833
        %v4882 = vmul.f32 %v4794, %v4834
        %v4883 = vadd.f32 %v4879, %v4881
        %v4884 = vadd.f32 %v4880, %v4882
        %v4885 = vtanh.pop %v4883
        %v4886 = vtanh.pop %v4884
        %v4887 = vmul.f32 %v4857, %v4885
        %v4888 = vmul.f32 %v4872, %v4886
        %4891 = vst [vmem:[#allocation1] sm:$0xff] %v4887
        %4892 = vst [vmem:[#allocation1 + $0x9] sm:$0xff] %v4888
        %s4893 = scalar_lea.vmem [#allocation1], 5
        %v4894 = vld [vmem:[%s4893] ss:$9 sm:$0xff]
        %s4896 = scalar_lea.vmem [#allocation2], 5
        %4897 = vst.msk [vmem:[%s4896] ss:$8 sm:$0x3] %vm2410, %v4894
        %4898 = vst.msk [vmem:[%s4896] ss:$8 sm:$0x0] %vm2410, %v4894
        %v4899 = vrot.slane %v4887, 5
        %v4900 = vrot.slane %v4888, 5
        %4903 = vmatpush.msra.mxu0 %v837
        %4904 = vmatpush.msra.mxu0 %v829
        %4905 = vmatpush.msra.mxu0 %v821
        %4906 = vmatpush.msra.mxu0 %v813
        %4907 = vmatpush.msra.mxu0 %v805
        %4908 = vmatpush.msra.mxu0 %v797
        %4909 = vmatpush.msra.mxu0 %v789
        %4910 = vmatpush.msra.mxu0 %v781
        %4911 = vmatpush.msra.mxu0 %v773
        %4912 = vmatpush.msra.mxu0 %v765
        %4913 = vmatpush.msra.mxu0 %v757
        %4914 = vmatpush.msra.mxu0 %v749
        %4915 = vmatpush.msra.mxu0 %v741
        %4916 = vmatpush.msra.mxu0 %v733
        %4917 = vmatpush.msra.mxu0 %v725
        %4918 = vmatpush.msra.mxu0 %v717
        %4919 = vmatmul.f32.gmra.mxu0 %v4899
        %v4920 = vpop.f32.mrf.mxu0
        %v4921 = vadd.f32 0.0, %v4920
        %4922 = vdwg.mxu0
        %4923 = vmatpush.msra.mxu0 %v965
        %4924 = vmatpush.msra.mxu0 %v957
        %4925 = vmatpush.msra.mxu0 %v949
        %4926 = vmatpush.msra.mxu0 %v941
        %4927 = vmatpush.msra.mxu0 %v933
        %4928 = vmatpush.msra.mxu0 %v925
        %4929 = vmatpush.msra.mxu0 %v917
        %4930 = vmatpush.msra.mxu0 %v909
        %4931 = vmatpush.msra.mxu0 %v901
        %4932 = vmatpush.msra.mxu0 %v893
        %4933 = vmatpush.msra.mxu0 %v885
        %4934 = vmatpush.msra.mxu0 %v877
        %4935 = vmatpush.msra.mxu0 %v869
        %4936 = vmatpush.msra.mxu0 %v861
        %4937 = vmatpush.msra.mxu0 %v853
        %4938 = vmatpush.msra.mxu0 %v845
        %4939 = vmatmul.f32.gmra.mxu0 %v4900
        %v4940 = vpop.f32.mrf.mxu0
        %v4941 = vadd.f32 %v4921, %v4940
        %4942 = vdwg.mxu0
        %4943 = vmatpush.msra.mxu0 %v838
        %4944 = vmatpush.msra.mxu0 %v830
        %4945 = vmatpush.msra.mxu0 %v822
        %4946 = vmatpush.msra.mxu0 %v814
        %4947 = vmatpush.msra.mxu0 %v806
        %4948 = vmatpush.msra.mxu0 %v798
        %4949 = vmatpush.msra.mxu0 %v790
        %4950 = vmatpush.msra.mxu0 %v782
        %4951 = vmatpush.msra.mxu0 %v774
        %4952 = vmatpush.msra.mxu0 %v766
        %4953 = vmatpush.msra.mxu0 %v758
        %4954 = vmatpush.msra.mxu0 %v750
        %4955 = vmatpush.msra.mxu0 %v742
        %4956 = vmatpush.msra.mxu0 %v734
        %4957 = vmatpush.msra.mxu0 %v726
        %4958 = vmatpush.msra.mxu0 %v718
        %4959 = vmatmul.f32.gmra.mxu0 %v4899
        %v4960 = vpop.f32.mrf.mxu0
        %v4961 = vadd.f32 0.0, %v4960
        %4962 = vdwg.mxu0
        %4963 = vmatpush.msra.mxu0 %v966
        %4964 = vmatpush.msra.mxu0 %v958
        %4965 = vmatpush.msra.mxu0 %v950
        %4966 = vmatpush.msra.mxu0 %v942
        %4967 = vmatpush.msra.mxu0 %v934
        %4968 = vmatpush.msra.mxu0 %v926
        %4969 = vmatpush.msra.mxu0 %v918
        %4970 = vmatpush.msra.mxu0 %v910
        %4971 = vmatpush.msra.mxu0 %v902
        %4972 = vmatpush.msra.mxu0 %v894
        %4973 = vmatpush.msra.mxu0 %v886
        %4974 = vmatpush.msra.mxu0 %v878
        %4975 = vmatpush.msra.mxu0 %v870
        %4976 = vmatpush.msra.mxu0 %v862
        %4977 = vmatpush.msra.mxu0 %v854
        %4978 = vmatpush.msra.mxu0 %v846
        %4979 = vmatmul.f32.gmra.mxu0 %v4900
        %v4980 = vpop.f32.mrf.mxu0
        %v4981 = vadd.f32 %v4961, %v4980
        %4982 = vdwg.mxu0
        %4983 = vmatpush.msra.mxu0 %v839
        %4984 = vmatpush.msra.mxu0 %v831
        %4985 = vmatpush.msra.mxu0 %v823
        %4986 = vmatpush.msra.mxu0 %v815
        %4987 = vmatpush.msra.mxu0 %v807
        %4988 = vmatpush.msra.mxu0 %v799
        %4989 = vmatpush.msra.mxu0 %v791
        %4990 = vmatpush.msra.mxu0 %v783
        %4991 = vmatpush.msra.mxu0 %v775
        %4992 = vmatpush.msra.mxu0 %v767
        %4993 = vmatpush.msra.mxu0 %v759
        %4994 = vmatpush.msra.mxu0 %v751
        %4995 = vmatpush.msra.mxu0 %v743
        %4996 = vmatpush.msra.mxu0 %v735
        %4997 = vmatpush.msra.mxu0 %v727
        %4998 = vmatpush.msra.mxu0 %v719
        %4999 = vmatmul.f32.gmra.mxu0 %v4899
        %v5000 = vpop.f32.mrf.mxu0
        %v5001 = vadd.f32 0.0, %v5000
        %5002 = vdwg.mxu0
        %5003 = vmatpush.msra.mxu0 %v967
        %5004 = vmatpush.msra.mxu0 %v959
        %5005 = vmatpush.msra.mxu0 %v951
        %5006 = vmatpush.msra.mxu0 %v943
        %5007 = vmatpush.msra.mxu0 %v935
        %5008 = vmatpush.msra.mxu0 %v927
        %5009 = vmatpush.msra.mxu0 %v919
        %5010 = vmatpush.msra.mxu0 %v911
        %5011 = vmatpush.msra.mxu0 %v903
        %5012 = vmatpush.msra.mxu0 %v895
        %5013 = vmatpush.msra.mxu0 %v887
        %5014 = vmatpush.msra.mxu0 %v879
        %5015 = vmatpush.msra.mxu0 %v871
        %5016 = vmatpush.msra.mxu0 %v863
        %5017 = vmatpush.msra.mxu0 %v855
        %5018 = vmatpush.msra.mxu0 %v847
        %5019 = vmatmul.f32.gmra.mxu0 %v4900
        %v5020 = vpop.f32.mrf.mxu0
        %v5021 = vadd.f32 %v5001, %v5020
        %5022 = vdwg.mxu0
        %5023 = vmatpush.msra.mxu0 %v840
        %5024 = vmatpush.msra.mxu0 %v832
        %5025 = vmatpush.msra.mxu0 %v824
        %5026 = vmatpush.msra.mxu0 %v816
        %5027 = vmatpush.msra.mxu0 %v808
        %5028 = vmatpush.msra.mxu0 %v800
        %5029 = vmatpush.msra.mxu0 %v792
        %5030 = vmatpush.msra.mxu0 %v784
        %5031 = vmatpush.msra.mxu0 %v776
        %5032 = vmatpush.msra.mxu0 %v768
        %5033 = vmatpush.msra.mxu0 %v760
        %5034 = vmatpush.msra.mxu0 %v752
        %5035 = vmatpush.msra.mxu0 %v744
        %5036 = vmatpush.msra.mxu0 %v736
        %5037 = vmatpush.msra.mxu0 %v728
        %5038 = vmatpush.msra.mxu0 %v720
        %5039 = vmatmul.f32.gmra.mxu0 %v4899
        %v5040 = vpop.f32.mrf.mxu0
        %v5041 = vadd.f32 0.0, %v5040
        %5042 = vdwg.mxu0
        %5043 = vmatpush.msra.mxu0 %v968
        %5044 = vmatpush.msra.mxu0 %v960
        %5045 = vmatpush.msra.mxu0 %v952
        %5046 = vmatpush.msra.mxu0 %v944
        %5047 = vmatpush.msra.mxu0 %v936
        %5048 = vmatpush.msra.mxu0 %v928
        %5049 = vmatpush.msra.mxu0 %v920
        %5050 = vmatpush.msra.mxu0 %v912
        %5051 = vmatpush.msra.mxu0 %v904
        %5052 = vmatpush.msra.mxu0 %v896
        %5053 = vmatpush.msra.mxu0 %v888
        %5054 = vmatpush.msra.mxu0 %v880
        %5055 = vmatpush.msra.mxu0 %v872
        %5056 = vmatpush.msra.mxu0 %v864
        %5057 = vmatpush.msra.mxu0 %v856
        %5058 = vmatpush.msra.mxu0 %v848
        %5059 = vmatmul.f32.gmra.mxu0 %v4900
        %v5060 = vpop.f32.mrf.mxu0
        %v5061 = vadd.f32 %v5041, %v5060
        %5062 = vdwg.mxu0
        %5063 = vmatpush.msra.mxu0 %v841
        %5064 = vmatpush.msra.mxu0 %v833
        %5065 = vmatpush.msra.mxu0 %v825
        %5066 = vmatpush.msra.mxu0 %v817
        %5067 = vmatpush.msra.mxu0 %v809
        %5068 = vmatpush.msra.mxu0 %v801
        %5069 = vmatpush.msra.mxu0 %v793
        %5070 = vmatpush.msra.mxu0 %v785
        %5071 = vmatpush.msra.mxu0 %v777
        %5072 = vmatpush.msra.mxu0 %v769
        %5073 = vmatpush.msra.mxu0 %v761
        %5074 = vmatpush.msra.mxu0 %v753
        %5075 = vmatpush.msra.mxu0 %v745
        %5076 = vmatpush.msra.mxu0 %v737
        %5077 = vmatpush.msra.mxu0 %v729
        %5078 = vmatpush.msra.mxu0 %v721
        %5079 = vmatmul.f32.gmra.mxu0 %v4899
        %v5080 = vpop.f32.mrf.mxu0
        %v5081 = vadd.f32 0.0, %v5080
        %5082 = vdwg.mxu0
        %5083 = vmatpush.msra.mxu0 %v969
        %5084 = vmatpush.msra.mxu0 %v961
        %5085 = vmatpush.msra.mxu0 %v953
        %5086 = vmatpush.msra.mxu0 %v945
        %5087 = vmatpush.msra.mxu0 %v937
        %5088 = vmatpush.msra.mxu0 %v929
        %5089 = vmatpush.msra.mxu0 %v921
        %5090 = vmatpush.msra.mxu0 %v913
        %5091 = vmatpush.msra.mxu0 %v905
        %5092 = vmatpush.msra.mxu0 %v897
        %5093 = vmatpush.msra.mxu0 %v889
        %5094 = vmatpush.msra.mxu0 %v881
        %5095 = vmatpush.msra.mxu0 %v873
        %5096 = vmatpush.msra.mxu0 %v865
        %5097 = vmatpush.msra.mxu0 %v857
        %5098 = vmatpush.msra.mxu0 %v849
        %5099 = vmatmul.f32.gmra.mxu0 %v4900
        %v5100 = vpop.f32.mrf.mxu0
        %v5101 = vadd.f32 %v5081, %v5100
        %5102 = vdwg.mxu0
        %5103 = vmatpush.msra.mxu0 %v842
        %5104 = vmatpush.msra.mxu0 %v834
        %5105 = vmatpush.msra.mxu0 %v826
        %5106 = vmatpush.msra.mxu0 %v818
        %5107 = vmatpush.msra.mxu0 %v810
        %5108 = vmatpush.msra.mxu0 %v802
        %5109 = vmatpush.msra.mxu0 %v794
        %5110 = vmatpush.msra.mxu0 %v786
        %5111 = vmatpush.msra.mxu0 %v778
        %5112 = vmatpush.msra.mxu0 %v770
        %5113 = vmatpush.msra.mxu0 %v762
        %5114 = vmatpush.msra.mxu0 %v754
        %5115 = vmatpush.msra.mxu0 %v746
        %5116 = vmatpush.msra.mxu0 %v738
        %5117 = vmatpush.msra.mxu0 %v730
        %5118 = vmatpush.msra.mxu0 %v722
        %5119 = vmatmul.f32.gmra.mxu0 %v4899
        %v5120 = vpop.f32.mrf.mxu0
        %v5121 = vadd.f32 0.0, %v5120
        %5122 = vdwg.mxu0
        %5123 = vmatpush.msra.mxu0 %v970
        %5124 = vmatpush.msra.mxu0 %v962
        %5125 = vmatpush.msra.mxu0 %v954
        %5126 = vmatpush.msra.mxu0 %v946
        %5127 = vmatpush.msra.mxu0 %v938
        %5128 = vmatpush.msra.mxu0 %v930
        %5129 = vmatpush.msra.mxu0 %v922
        %5130 = vmatpush.msra.mxu0 %v914
        %5131 = vmatpush.msra.mxu0 %v906
        %5132 = vmatpush.msra.mxu0 %v898
        %5133 = vmatpush.msra.mxu0 %v890
        %5134 = vmatpush.msra.mxu0 %v882
        %5135 = vmatpush.msra.mxu0 %v874
        %5136 = vmatpush.msra.mxu0 %v866
        %5137 = vmatpush.msra.mxu0 %v858
        %5138 = vmatpush.msra.mxu0 %v850
        %5139 = vmatmul.f32.gmra.mxu0 %v4900
        %v5140 = vpop.f32.mrf.mxu0
        %v5141 = vadd.f32 %v5121, %v5140
        %5142 = vdwg.mxu0
        %5143 = vmatpush.msra.mxu0 %v843
        %5144 = vmatpush.msra.mxu0 %v835
        %5145 = vmatpush.msra.mxu0 %v827
        %5146 = vmatpush.msra.mxu0 %v819
        %5147 = vmatpush.msra.mxu0 %v811
        %5148 = vmatpush.msra.mxu0 %v803
        %5149 = vmatpush.msra.mxu0 %v795
        %5150 = vmatpush.msra.mxu0 %v787
        %5151 = vmatpush.msra.mxu0 %v779
        %5152 = vmatpush.msra.mxu0 %v771
        %5153 = vmatpush.msra.mxu0 %v763
        %5154 = vmatpush.msra.mxu0 %v755
        %5155 = vmatpush.msra.mxu0 %v747
        %5156 = vmatpush.msra.mxu0 %v739
        %5157 = vmatpush.msra.mxu0 %v731
        %5158 = vmatpush.msra.mxu0 %v723
        %5159 = vmatmul.f32.gmra.mxu0 %v4899
        %v5160 = vpop.f32.mrf.mxu0
        %v5161 = vadd.f32 0.0, %v5160
        %5162 = vdwg.mxu0
        %5163 = vmatpush.msra.mxu0 %v971
        %5164 = vmatpush.msra.mxu0 %v963
        %5165 = vmatpush.msra.mxu0 %v955
        %5166 = vmatpush.msra.mxu0 %v947
        %5167 = vmatpush.msra.mxu0 %v939
        %5168 = vmatpush.msra.mxu0 %v931
        %5169 = vmatpush.msra.mxu0 %v923
        %5170 = vmatpush.msra.mxu0 %v915
        %5171 = vmatpush.msra.mxu0 %v907
        %5172 = vmatpush.msra.mxu0 %v899
        %5173 = vmatpush.msra.mxu0 %v891
        %5174 = vmatpush.msra.mxu0 %v883
        %5175 = vmatpush.msra.mxu0 %v875
        %5176 = vmatpush.msra.mxu0 %v867
        %5177 = vmatpush.msra.mxu0 %v859
        %5178 = vmatpush.msra.mxu0 %v851
        %5179 = vmatmul.f32.gmra.mxu0 %v4900
        %v5180 = vpop.f32.mrf.mxu0
        %v5181 = vadd.f32 %v5161, %v5180
        %5182 = vdwg.mxu0
        %5183 = vmatpush.msra.mxu0 %v844
        %5184 = vmatpush.msra.mxu0 %v836
        %5185 = vmatpush.msra.mxu0 %v828
        %5186 = vmatpush.msra.mxu0 %v820
        %5187 = vmatpush.msra.mxu0 %v812
        %5188 = vmatpush.msra.mxu0 %v804
        %5189 = vmatpush.msra.mxu0 %v796
        %5190 = vmatpush.msra.mxu0 %v788
        %5191 = vmatpush.msra.mxu0 %v780
        %5192 = vmatpush.msra.mxu0 %v772
        %5193 = vmatpush.msra.mxu0 %v764
        %5194 = vmatpush.msra.mxu0 %v756
        %5195 = vmatpush.msra.mxu0 %v748
        %5196 = vmatpush.msra.mxu0 %v740
        %5197 = vmatpush.msra.mxu0 %v732
        %5198 = vmatpush.msra.mxu0 %v724
        %5199 = vmatmul.f32.gmra.mxu0 %v4899
        %v5200 = vpop.f32.mrf.mxu0
        %v5201 = vadd.f32 0.0, %v5200
        %5202 = vdwg.mxu0
        %5203 = vmatpush.msra.mxu0 %v972
        %5204 = vmatpush.msra.mxu0 %v964
        %5205 = vmatpush.msra.mxu0 %v956
        %5206 = vmatpush.msra.mxu0 %v948
        %5207 = vmatpush.msra.mxu0 %v940
        %5208 = vmatpush.msra.mxu0 %v932
        %5209 = vmatpush.msra.mxu0 %v924
        %5210 = vmatpush.msra.mxu0 %v916
        %5211 = vmatpush.msra.mxu0 %v908
        %5212 = vmatpush.msra.mxu0 %v900
        %5213 = vmatpush.msra.mxu0 %v892
        %5214 = vmatpush.msra.mxu0 %v884
        %5215 = vmatpush.msra.mxu0 %v876
        %5216 = vmatpush.msra.mxu0 %v868
        %5217 = vmatpush.msra.mxu0 %v860
        %5218 = vmatpush.msra.mxu0 %v852
        %5219 = vmatmul.f32.gmra.mxu0 %v4900
        %v5220 = vpop.f32.mrf.mxu0
        %v5221 = vadd.f32 %v5201, %v5220
        %5222 = vdwg.mxu0
        %v5231 = vrot.slane %v4941, 2
        %v5232 = vrot.slane %v4981, 2
        %v5233 = vrot.slane %v5021, 2
        %v5234 = vrot.slane %v5061, 2
        %v5235 = vrot.slane %v5101, 2
        %v5236 = vrot.slane %v5141, 2
        %v5237 = vrot.slane %v5181, 2
        %v5238 = vrot.slane %v5221, 2
        %v5247 = vadd.f32 %v1781, %v5231
        %v5248 = vadd.f32 %v1804, %v5232
        %v5249 = vadd.f32 %v1827, %v5233
        %v5250 = vadd.f32 %v1850, %v5234
        %v5251 = vadd.f32 %v1873, %v5235
        %v5252 = vadd.f32 %v1896, %v5236
        %v5253 = vadd.f32 %v1919, %v5237
        %v5254 = vadd.f32 %v1942, %v5238
        %v5255 = vxor.u32 %v5247, 2147483648
        %v5256 = vxor.u32 %v5248, 2147483648
        %v5257 = vmul.f32 %v5255, 1.442695
        %v5258 = vpow.pop %v5257
        %v5259 = vmul.f32 %v5256, 1.442695
        %v5260 = vpow.pop %v5259
        %v5261 = vadd.f32 %v5258, 1.0
        %v5262 = vadd.f32 %v5260, 1.0
        %v5263 = vrcp.pop %v5261
        %v5264 = vmul.f32 %v5261, %v5263
        %v5265 = vsub.f32 1.0, %v5264
        %v5266 = vmul.f32 %v5263, %v5265
        %v5267 = vadd.f32 %v5263, %v5266
        %vm5268 = vweird.f32 %v5261
        %vm5269 = vweird.f32 %v5263
        %vm5270 = vmor %vm5268, %vm5269
        %v5271 = vsel %vm5270, %v5263, %v5267
        %v5272 = vand.u32 2147483647, %v5261
        %vm5273 = vcmp.eq.f32.partialorder %v5272, 8.507059e+37
        %v5274 = vand.u32 %v5261, 2147483648
        %v5275 = vor.u32 1.1754944e-38, %v5274
        %v5276 = vsel %vm5273, %v5275, %v5271
        %v5277 = vmul.f32 1.0, %v5276
        %v5278 = vrcp.pop %v5262
        %v5279 = vmul.f32 %v5262, %v5278
        %v5280 = vsub.f32 1.0, %v5279
        %v5281 = vmul.f32 %v5278, %v5280
        %v5282 = vadd.f32 %v5278, %v5281
        %vm5283 = vweird.f32 %v5262
        %vm5284 = vweird.f32 %v5278
        %vm5285 = vmor %vm5283, %vm5284
        %v5286 = vsel %vm5285, %v5278, %v5282
        %v5287 = vand.u32 2147483647, %v5262
        %vm5288 = vcmp.eq.f32.partialorder %v5287, 8.507059e+37
        %v5289 = vand.u32 %v5262, 2147483648
        %v5290 = vor.u32 1.1754944e-38, %v5289
        %v5291 = vsel %vm5288, %v5290, %v5286
        %v5292 = vmul.f32 1.0, %v5291
        %v5293 = vxor.u32 %v5249, 2147483648
        %v5294 = vxor.u32 %v5250, 2147483648
        %v5295 = vmul.f32 %v5293, 1.442695
        %v5296 = vpow.pop %v5295
        %v5297 = vmul.f32 %v5294, 1.442695
        %v5298 = vpow.pop %v5297
        %v5299 = vadd.f32 %v5296, 1.0
        %v5300 = vadd.f32 %v5298, 1.0
        %v5301 = vrcp.pop %v5299
        %v5302 = vmul.f32 %v5299, %v5301
        %v5303 = vsub.f32 1.0, %v5302
        %v5304 = vmul.f32 %v5301, %v5303
        %v5305 = vadd.f32 %v5301, %v5304
        %vm5306 = vweird.f32 %v5299
        %vm5307 = vweird.f32 %v5301
        %vm5308 = vmor %vm5306, %vm5307
        %v5309 = vsel %vm5308, %v5301, %v5305
        %v5310 = vand.u32 2147483647, %v5299
        %vm5311 = vcmp.eq.f32.partialorder %v5310, 8.507059e+37
        %v5312 = vand.u32 %v5299, 2147483648
        %v5313 = vor.u32 1.1754944e-38, %v5312
        %v5314 = vsel %vm5311, %v5313, %v5309
        %v5315 = vmul.f32 1.0, %v5314
        %v5316 = vrcp.pop %v5300
        %v5317 = vmul.f32 %v5300, %v5316
        %v5318 = vsub.f32 1.0, %v5317
        %v5319 = vmul.f32 %v5316, %v5318
        %v5320 = vadd.f32 %v5316, %v5319
        %vm5321 = vweird.f32 %v5300
        %vm5322 = vweird.f32 %v5316
        %vm5323 = vmor %vm5321, %vm5322
        %v5324 = vsel %vm5323, %v5316, %v5320
        %v5325 = vand.u32 2147483647, %v5300
        %vm5326 = vcmp.eq.f32.partialorder %v5325, 8.507059e+37
        %v5327 = vand.u32 %v5300, 2147483648
        %v5328 = vor.u32 1.1754944e-38, %v5327
        %v5329 = vsel %vm5326, %v5328, %v5324
        %v5330 = vmul.f32 1.0, %v5329
        %v5331 = vtanh.pop %v5251
        %v5332 = vtanh.pop %v5252
        %v5333 = vxor.u32 %v5253, 2147483648
        %v5334 = vxor.u32 %v5254, 2147483648
        %v5335 = vmul.f32 %v5333, 1.442695
        %v5336 = vpow.pop %v5335
        %v5337 = vmul.f32 %v5334, 1.442695
        %v5338 = vpow.pop %v5337
        %v5339 = vadd.f32 %v5336, 1.0
        %v5340 = vadd.f32 %v5338, 1.0
        %v5341 = vrcp.pop %v5339
        %v5342 = vmul.f32 %v5339, %v5341
        %v5343 = vsub.f32 1.0, %v5342
        %v5344 = vmul.f32 %v5341, %v5343
        %v5345 = vadd.f32 %v5341, %v5344
        %vm5346 = vweird.f32 %v5339
        %vm5347 = vweird.f32 %v5341
        %vm5348 = vmor %vm5346, %vm5347
        %v5349 = vsel %vm5348, %v5341, %v5345
        %v5350 = vand.u32 2147483647, %v5339
        %vm5351 = vcmp.eq.f32.partialorder %v5350, 8.507059e+37
        %v5352 = vand.u32 %v5339, 2147483648
        %v5353 = vor.u32 1.1754944e-38, %v5352
        %v5354 = vsel %vm5351, %v5353, %v5349
        %v5355 = vmul.f32 1.0, %v5354
        %v5356 = vrcp.pop %v5340
        %v5357 = vmul.f32 %v5340, %v5356
        %v5358 = vsub.f32 1.0, %v5357
        %v5359 = vmul.f32 %v5356, %v5358
        %v5360 = vadd.f32 %v5356, %v5359
        %vm5361 = vweird.f32 %v5340
        %vm5362 = vweird.f32 %v5356
        %vm5363 = vmor %vm5361, %vm5362
        %v5364 = vsel %vm5363, %v5356, %v5360
        %v5365 = vand.u32 2147483647, %v5340
        %vm5366 = vcmp.eq.f32.partialorder %v5365, 8.507059e+37
        %v5367 = vand.u32 %v5340, 2147483648
        %v5368 = vor.u32 1.1754944e-38, %v5367
        %v5369 = vsel %vm5366, %v5368, %v5364
        %v5370 = vmul.f32 1.0, %v5369
        %v5373 = vrot.slane %v4883, 7
        %v5374 = vrot.slane %v4884, 7
        %v5377 = vmul.f32 %v5315, %v5373
        %v5378 = vmul.f32 %v5330, %v5374
        %v5379 = vmul.f32 %v5277, %v5331
        %v5380 = vmul.f32 %v5292, %v5332
        %v5381 = vadd.f32 %v5377, %v5379
        %v5382 = vadd.f32 %v5378, %v5380
        %v5383 = vtanh.pop %v5381
        %v5384 = vtanh.pop %v5382
        %v5385 = vmul.f32 %v5355, %v5383
        %v5386 = vmul.f32 %v5370, %v5384
        %5389 = vst [vmem:[#allocation1] sm:$0xff] %v5385
        %5390 = vst [vmem:[#allocation1 + $0x9] sm:$0xff] %v5386
        %s5391 = scalar_lea.vmem [#allocation1], 6
        %v5392 = vld [vmem:[%s5391] ss:$9 sm:$0xff]
        %s5394 = scalar_lea.vmem [#allocation2], 6
        %5395 = vst.msk [vmem:[%s5394] ss:$8 sm:$0x3] %vm2410, %v5392
        %5396 = vst.msk [vmem:[%s5394] ss:$8 sm:$0x0] %vm2410, %v5392
        %v5397 = vrot.slane %v5385, 6
        %v5398 = vrot.slane %v5386, 6
        %5401 = vmatpush.msra.mxu0 %v837
        %5402 = vmatpush.msra.mxu0 %v829
        %5403 = vmatpush.msra.mxu0 %v821
        %5404 = vmatpush.msra.mxu0 %v813
        %5405 = vmatpush.msra.mxu0 %v805
        %5406 = vmatpush.msra.mxu0 %v797
        %5407 = vmatpush.msra.mxu0 %v789
        %5408 = vmatpush.msra.mxu0 %v781
        %5409 = vmatpush.msra.mxu0 %v773
        %5410 = vmatpush.msra.mxu0 %v765
        %5411 = vmatpush.msra.mxu0 %v757
        %5412 = vmatpush.msra.mxu0 %v749
        %5413 = vmatpush.msra.mxu0 %v741
        %5414 = vmatpush.msra.mxu0 %v733
        %5415 = vmatpush.msra.mxu0 %v725
        %5416 = vmatpush.msra.mxu0 %v717
        %5417 = vmatmul.f32.gmra.mxu0 %v5397
        %v5418 = vpop.f32.mrf.mxu0
        %v5419 = vadd.f32 0.0, %v5418
        %5420 = vdwg.mxu0
        %5421 = vmatpush.msra.mxu0 %v965
        %5422 = vmatpush.msra.mxu0 %v957
        %5423 = vmatpush.msra.mxu0 %v949
        %5424 = vmatpush.msra.mxu0 %v941
        %5425 = vmatpush.msra.mxu0 %v933
        %5426 = vmatpush.msra.mxu0 %v925
        %5427 = vmatpush.msra.mxu0 %v917
        %5428 = vmatpush.msra.mxu0 %v909
        %5429 = vmatpush.msra.mxu0 %v901
        %5430 = vmatpush.msra.mxu0 %v893
        %5431 = vmatpush.msra.mxu0 %v885
        %5432 = vmatpush.msra.mxu0 %v877
        %5433 = vmatpush.msra.mxu0 %v869
        %5434 = vmatpush.msra.mxu0 %v861
        %5435 = vmatpush.msra.mxu0 %v853
        %5436 = vmatpush.msra.mxu0 %v845
        %5437 = vmatmul.f32.gmra.mxu0 %v5398
        %v5438 = vpop.f32.mrf.mxu0
        %v5439 = vadd.f32 %v5419, %v5438
        %5440 = vdwg.mxu0
        %5441 = vmatpush.msra.mxu0 %v838
        %5442 = vmatpush.msra.mxu0 %v830
        %5443 = vmatpush.msra.mxu0 %v822
        %5444 = vmatpush.msra.mxu0 %v814
        %5445 = vmatpush.msra.mxu0 %v806
        %5446 = vmatpush.msra.mxu0 %v798
        %5447 = vmatpush.msra.mxu0 %v790
        %5448 = vmatpush.msra.mxu0 %v782
        %5449 = vmatpush.msra.mxu0 %v774
        %5450 = vmatpush.msra.mxu0 %v766
        %5451 = vmatpush.msra.mxu0 %v758
        %5452 = vmatpush.msra.mxu0 %v750
        %5453 = vmatpush.msra.mxu0 %v742
        %5454 = vmatpush.msra.mxu0 %v734
        %5455 = vmatpush.msra.mxu0 %v726
        %5456 = vmatpush.msra.mxu0 %v718
        %5457 = vmatmul.f32.gmra.mxu0 %v5397
        %v5458 = vpop.f32.mrf.mxu0
        %v5459 = vadd.f32 0.0, %v5458
        %5460 = vdwg.mxu0
        %5461 = vmatpush.msra.mxu0 %v966
        %5462 = vmatpush.msra.mxu0 %v958
        %5463 = vmatpush.msra.mxu0 %v950
        %5464 = vmatpush.msra.mxu0 %v942
        %5465 = vmatpush.msra.mxu0 %v934
        %5466 = vmatpush.msra.mxu0 %v926
        %5467 = vmatpush.msra.mxu0 %v918
        %5468 = vmatpush.msra.mxu0 %v910
        %5469 = vmatpush.msra.mxu0 %v902
        %5470 = vmatpush.msra.mxu0 %v894
        %5471 = vmatpush.msra.mxu0 %v886
        %5472 = vmatpush.msra.mxu0 %v878
        %5473 = vmatpush.msra.mxu0 %v870
        %5474 = vmatpush.msra.mxu0 %v862
        %5475 = vmatpush.msra.mxu0 %v854
        %5476 = vmatpush.msra.mxu0 %v846
        %5477 = vmatmul.f32.gmra.mxu0 %v5398
        %v5478 = vpop.f32.mrf.mxu0
        %v5479 = vadd.f32 %v5459, %v5478
        %5480 = vdwg.mxu0
        %5481 = vmatpush.msra.mxu0 %v839
        %5482 = vmatpush.msra.mxu0 %v831
        %5483 = vmatpush.msra.mxu0 %v823
        %5484 = vmatpush.msra.mxu0 %v815
        %5485 = vmatpush.msra.mxu0 %v807
        %5486 = vmatpush.msra.mxu0 %v799
        %5487 = vmatpush.msra.mxu0 %v791
        %5488 = vmatpush.msra.mxu0 %v783
        %5489 = vmatpush.msra.mxu0 %v775
        %5490 = vmatpush.msra.mxu0 %v767
        %5491 = vmatpush.msra.mxu0 %v759
        %5492 = vmatpush.msra.mxu0 %v751
        %5493 = vmatpush.msra.mxu0 %v743
        %5494 = vmatpush.msra.mxu0 %v735
        %5495 = vmatpush.msra.mxu0 %v727
        %5496 = vmatpush.msra.mxu0 %v719
        %5497 = vmatmul.f32.gmra.mxu0 %v5397
        %v5498 = vpop.f32.mrf.mxu0
        %v5499 = vadd.f32 0.0, %v5498
        %5500 = vdwg.mxu0
        %5501 = vmatpush.msra.mxu0 %v967
        %5502 = vmatpush.msra.mxu0 %v959
        %5503 = vmatpush.msra.mxu0 %v951
        %5504 = vmatpush.msra.mxu0 %v943
        %5505 = vmatpush.msra.mxu0 %v935
        %5506 = vmatpush.msra.mxu0 %v927
        %5507 = vmatpush.msra.mxu0 %v919
        %5508 = vmatpush.msra.mxu0 %v911
        %5509 = vmatpush.msra.mxu0 %v903
        %5510 = vmatpush.msra.mxu0 %v895
        %5511 = vmatpush.msra.mxu0 %v887
        %5512 = vmatpush.msra.mxu0 %v879
        %5513 = vmatpush.msra.mxu0 %v871
        %5514 = vmatpush.msra.mxu0 %v863
        %5515 = vmatpush.msra.mxu0 %v855
        %5516 = vmatpush.msra.mxu0 %v847
        %5517 = vmatmul.f32.gmra.mxu0 %v5398
        %v5518 = vpop.f32.mrf.mxu0
        %v5519 = vadd.f32 %v5499, %v5518
        %5520 = vdwg.mxu0
        %5521 = vmatpush.msra.mxu0 %v840
        %5522 = vmatpush.msra.mxu0 %v832
        %5523 = vmatpush.msra.mxu0 %v824
        %5524 = vmatpush.msra.mxu0 %v816
        %5525 = vmatpush.msra.mxu0 %v808
        %5526 = vmatpush.msra.mxu0 %v800
        %5527 = vmatpush.msra.mxu0 %v792
        %5528 = vmatpush.msra.mxu0 %v784
        %5529 = vmatpush.msra.mxu0 %v776
        %5530 = vmatpush.msra.mxu0 %v768
        %5531 = vmatpush.msra.mxu0 %v760
        %5532 = vmatpush.msra.mxu0 %v752
        %5533 = vmatpush.msra.mxu0 %v744
        %5534 = vmatpush.msra.mxu0 %v736
        %5535 = vmatpush.msra.mxu0 %v728
        %5536 = vmatpush.msra.mxu0 %v720
        %5537 = vmatmul.f32.gmra.mxu0 %v5397
        %v5538 = vpop.f32.mrf.mxu0
        %v5539 = vadd.f32 0.0, %v5538
        %5540 = vdwg.mxu0
        %5541 = vmatpush.msra.mxu0 %v968
        %5542 = vmatpush.msra.mxu0 %v960
        %5543 = vmatpush.msra.mxu0 %v952
        %5544 = vmatpush.msra.mxu0 %v944
        %5545 = vmatpush.msra.mxu0 %v936
        %5546 = vmatpush.msra.mxu0 %v928
        %5547 = vmatpush.msra.mxu0 %v920
        %5548 = vmatpush.msra.mxu0 %v912
        %5549 = vmatpush.msra.mxu0 %v904
        %5550 = vmatpush.msra.mxu0 %v896
        %5551 = vmatpush.msra.mxu0 %v888
        %5552 = vmatpush.msra.mxu0 %v880
        %5553 = vmatpush.msra.mxu0 %v872
        %5554 = vmatpush.msra.mxu0 %v864
        %5555 = vmatpush.msra.mxu0 %v856
        %5556 = vmatpush.msra.mxu0 %v848
        %5557 = vmatmul.f32.gmra.mxu0 %v5398
        %v5558 = vpop.f32.mrf.mxu0
        %v5559 = vadd.f32 %v5539, %v5558
        %5560 = vdwg.mxu0
        %5561 = vmatpush.msra.mxu0 %v841
        %5562 = vmatpush.msra.mxu0 %v833
        %5563 = vmatpush.msra.mxu0 %v825
        %5564 = vmatpush.msra.mxu0 %v817
        %5565 = vmatpush.msra.mxu0 %v809
        %5566 = vmatpush.msra.mxu0 %v801
        %5567 = vmatpush.msra.mxu0 %v793
        %5568 = vmatpush.msra.mxu0 %v785
        %5569 = vmatpush.msra.mxu0 %v777
        %5570 = vmatpush.msra.mxu0 %v769
        %5571 = vmatpush.msra.mxu0 %v761
        %5572 = vmatpush.msra.mxu0 %v753
        %5573 = vmatpush.msra.mxu0 %v745
        %5574 = vmatpush.msra.mxu0 %v737
        %5575 = vmatpush.msra.mxu0 %v729
        %5576 = vmatpush.msra.mxu0 %v721
        %5577 = vmatmul.f32.gmra.mxu0 %v5397
        %v5578 = vpop.f32.mrf.mxu0
        %v5579 = vadd.f32 0.0, %v5578
        %5580 = vdwg.mxu0
        %5581 = vmatpush.msra.mxu0 %v969
        %5582 = vmatpush.msra.mxu0 %v961
        %5583 = vmatpush.msra.mxu0 %v953
        %5584 = vmatpush.msra.mxu0 %v945
        %5585 = vmatpush.msra.mxu0 %v937
        %5586 = vmatpush.msra.mxu0 %v929
        %5587 = vmatpush.msra.mxu0 %v921
        %5588 = vmatpush.msra.mxu0 %v913
        %5589 = vmatpush.msra.mxu0 %v905
        %5590 = vmatpush.msra.mxu0 %v897
        %5591 = vmatpush.msra.mxu0 %v889
        %5592 = vmatpush.msra.mxu0 %v881
        %5593 = vmatpush.msra.mxu0 %v873
        %5594 = vmatpush.msra.mxu0 %v865
        %5595 = vmatpush.msra.mxu0 %v857
        %5596 = vmatpush.msra.mxu0 %v849
        %5597 = vmatmul.f32.gmra.mxu0 %v5398
        %v5598 = vpop.f32.mrf.mxu0
        %v5599 = vadd.f32 %v5579, %v5598
        %5600 = vdwg.mxu0
        %5601 = vmatpush.msra.mxu0 %v842
        %5602 = vmatpush.msra.mxu0 %v834
        %5603 = vmatpush.msra.mxu0 %v826
        %5604 = vmatpush.msra.mxu0 %v818
        %5605 = vmatpush.msra.mxu0 %v810
        %5606 = vmatpush.msra.mxu0 %v802
        %5607 = vmatpush.msra.mxu0 %v794
        %5608 = vmatpush.msra.mxu0 %v786
        %5609 = vmatpush.msra.mxu0 %v778
        %5610 = vmatpush.msra.mxu0 %v770
        %5611 = vmatpush.msra.mxu0 %v762
        %5612 = vmatpush.msra.mxu0 %v754
        %5613 = vmatpush.msra.mxu0 %v746
        %5614 = vmatpush.msra.mxu0 %v738
        %5615 = vmatpush.msra.mxu0 %v730
        %5616 = vmatpush.msra.mxu0 %v722
        %5617 = vmatmul.f32.gmra.mxu0 %v5397
        %v5618 = vpop.f32.mrf.mxu0
        %v5619 = vadd.f32 0.0, %v5618
        %5620 = vdwg.mxu0
        %5621 = vmatpush.msra.mxu0 %v970
        %5622 = vmatpush.msra.mxu0 %v962
        %5623 = vmatpush.msra.mxu0 %v954
        %5624 = vmatpush.msra.mxu0 %v946
        %5625 = vmatpush.msra.mxu0 %v938
        %5626 = vmatpush.msra.mxu0 %v930
        %5627 = vmatpush.msra.mxu0 %v922
        %5628 = vmatpush.msra.mxu0 %v914
        %5629 = vmatpush.msra.mxu0 %v906
        %5630 = vmatpush.msra.mxu0 %v898
        %5631 = vmatpush.msra.mxu0 %v890
        %5632 = vmatpush.msra.mxu0 %v882
        %5633 = vmatpush.msra.mxu0 %v874
        %5634 = vmatpush.msra.mxu0 %v866
        %5635 = vmatpush.msra.mxu0 %v858
        %5636 = vmatpush.msra.mxu0 %v850
        %5637 = vmatmul.f32.gmra.mxu0 %v5398
        %v5638 = vpop.f32.mrf.mxu0
        %v5639 = vadd.f32 %v5619, %v5638
        %5640 = vdwg.mxu0
        %5641 = vmatpush.msra.mxu0 %v843
        %5642 = vmatpush.msra.mxu0 %v835
        %5643 = vmatpush.msra.mxu0 %v827
        %5644 = vmatpush.msra.mxu0 %v819
        %5645 = vmatpush.msra.mxu0 %v811
        %5646 = vmatpush.msra.mxu0 %v803
        %5647 = vmatpush.msra.mxu0 %v795
        %5648 = vmatpush.msra.mxu0 %v787
        %5649 = vmatpush.msra.mxu0 %v779
        %5650 = vmatpush.msra.mxu0 %v771
        %5651 = vmatpush.msra.mxu0 %v763
        %5652 = vmatpush.msra.mxu0 %v755
        %5653 = vmatpush.msra.mxu0 %v747
        %5654 = vmatpush.msra.mxu0 %v739
        %5655 = vmatpush.msra.mxu0 %v731
        %5656 = vmatpush.msra.mxu0 %v723
        %5657 = vmatmul.f32.gmra.mxu0 %v5397
        %v5658 = vpop.f32.mrf.mxu0
        %v5659 = vadd.f32 0.0, %v5658
        %5660 = vdwg.mxu0
        %5661 = vmatpush.msra.mxu0 %v971
        %5662 = vmatpush.msra.mxu0 %v963
        %5663 = vmatpush.msra.mxu0 %v955
        %5664 = vmatpush.msra.mxu0 %v947
        %5665 = vmatpush.msra.mxu0 %v939
        %5666 = vmatpush.msra.mxu0 %v931
        %5667 = vmatpush.msra.mxu0 %v923
        %5668 = vmatpush.msra.mxu0 %v915
        %5669 = vmatpush.msra.mxu0 %v907
        %5670 = vmatpush.msra.mxu0 %v899
        %5671 = vmatpush.msra.mxu0 %v891
        %5672 = vmatpush.msra.mxu0 %v883
        %5673 = vmatpush.msra.mxu0 %v875
        %5674 = vmatpush.msra.mxu0 %v867
        %5675 = vmatpush.msra.mxu0 %v859
        %5676 = vmatpush.msra.mxu0 %v851
        %5677 = vmatmul.f32.gmra.mxu0 %v5398
        %v5678 = vpop.f32.mrf.mxu0
        %v5679 = vadd.f32 %v5659, %v5678
        %5680 = vdwg.mxu0
        %5681 = vmatpush.msra.mxu0 %v844
        %5682 = vmatpush.msra.mxu0 %v836
        %5683 = vmatpush.msra.mxu0 %v828
        %5684 = vmatpush.msra.mxu0 %v820
        %5685 = vmatpush.msra.mxu0 %v812
        %5686 = vmatpush.msra.mxu0 %v804
        %5687 = vmatpush.msra.mxu0 %v796
        %5688 = vmatpush.msra.mxu0 %v788
        %5689 = vmatpush.msra.mxu0 %v780
        %5690 = vmatpush.msra.mxu0 %v772
        %5691 = vmatpush.msra.mxu0 %v764
        %5692 = vmatpush.msra.mxu0 %v756
        %5693 = vmatpush.msra.mxu0 %v748
        %5694 = vmatpush.msra.mxu0 %v740
        %5695 = vmatpush.msra.mxu0 %v732
        %5696 = vmatpush.msra.mxu0 %v724
        %5697 = vmatmul.f32.gmra.mxu0 %v5397
        %v5698 = vpop.f32.mrf.mxu0
        %v5699 = vadd.f32 0.0, %v5698
        %5700 = vdwg.mxu0
        %5701 = vmatpush.msra.mxu0 %v972
        %5702 = vmatpush.msra.mxu0 %v964
        %5703 = vmatpush.msra.mxu0 %v956
        %5704 = vmatpush.msra.mxu0 %v948
        %5705 = vmatpush.msra.mxu0 %v940
        %5706 = vmatpush.msra.mxu0 %v932
        %5707 = vmatpush.msra.mxu0 %v924
        %5708 = vmatpush.msra.mxu0 %v916
        %5709 = vmatpush.msra.mxu0 %v908
        %5710 = vmatpush.msra.mxu0 %v900
        %5711 = vmatpush.msra.mxu0 %v892
        %5712 = vmatpush.msra.mxu0 %v884
        %5713 = vmatpush.msra.mxu0 %v876
        %5714 = vmatpush.msra.mxu0 %v868
        %5715 = vmatpush.msra.mxu0 %v860
        %5716 = vmatpush.msra.mxu0 %v852
        %5717 = vmatmul.f32.gmra.mxu0 %v5398
        %v5718 = vpop.f32.mrf.mxu0
        %v5719 = vadd.f32 %v5699, %v5718
        %5720 = vdwg.mxu0
        %v5729 = vrot.slane %v5439, 1
        %v5730 = vrot.slane %v5479, 1
        %v5731 = vrot.slane %v5519, 1
        %v5732 = vrot.slane %v5559, 1
        %v5733 = vrot.slane %v5599, 1
        %v5734 = vrot.slane %v5639, 1
        %v5735 = vrot.slane %v5679, 1
        %v5736 = vrot.slane %v5719, 1
        %v5745 = vadd.f32 %v1781, %v5729
        %v5746 = vadd.f32 %v1804, %v5730
        %v5747 = vadd.f32 %v1827, %v5731
        %v5748 = vadd.f32 %v1850, %v5732
        %v5749 = vadd.f32 %v1873, %v5733
        %v5750 = vadd.f32 %v1896, %v5734
        %v5751 = vadd.f32 %v1919, %v5735
        %v5752 = vadd.f32 %v1942, %v5736
        %v5753 = vxor.u32 %v5745, 2147483648
        %v5754 = vxor.u32 %v5746, 2147483648
        %v5755 = vmul.f32 %v5753, 1.442695
        %v5756 = vpow.pop %v5755
        %v5757 = vmul.f32 %v5754, 1.442695
        %v5758 = vpow.pop %v5757
        %v5759 = vadd.f32 %v5756, 1.0
        %v5760 = vadd.f32 %v5758, 1.0
        %v5761 = vrcp.pop %v5759
        %v5762 = vmul.f32 %v5759, %v5761
        %v5763 = vsub.f32 1.0, %v5762
        %v5764 = vmul.f32 %v5761, %v5763
        %v5765 = vadd.f32 %v5761, %v5764
        %vm5766 = vweird.f32 %v5759
        %vm5767 = vweird.f32 %v5761
        %vm5768 = vmor %vm5766, %vm5767
        %v5769 = vsel %vm5768, %v5761, %v5765
        %v5770 = vand.u32 2147483647, %v5759
        %vm5771 = vcmp.eq.f32.partialorder %v5770, 8.507059e+37
        %v5772 = vand.u32 %v5759, 2147483648
        %v5773 = vor.u32 1.1754944e-38, %v5772
        %v5774 = vsel %vm5771, %v5773, %v5769
        %v5775 = vmul.f32 1.0, %v5774
        %v5776 = vrcp.pop %v5760
        %v5777 = vmul.f32 %v5760, %v5776
        %v5778 = vsub.f32 1.0, %v5777
        %v5779 = vmul.f32 %v5776, %v5778
        %v5780 = vadd.f32 %v5776, %v5779
        %vm5781 = vweird.f32 %v5760
        %vm5782 = vweird.f32 %v5776
        %vm5783 = vmor %vm5781, %vm5782
        %v5784 = vsel %vm5783, %v5776, %v5780
        %v5785 = vand.u32 2147483647, %v5760
        %vm5786 = vcmp.eq.f32.partialorder %v5785, 8.507059e+37
        %v5787 = vand.u32 %v5760, 2147483648
        %v5788 = vor.u32 1.1754944e-38, %v5787
        %v5789 = vsel %vm5786, %v5788, %v5784
        %v5790 = vmul.f32 1.0, %v5789
        %v5791 = vxor.u32 %v5747, 2147483648
        %v5792 = vxor.u32 %v5748, 2147483648
        %v5793 = vmul.f32 %v5791, 1.442695
        %v5794 = vpow.pop %v5793
        %v5795 = vmul.f32 %v5792, 1.442695
        %v5796 = vpow.pop %v5795
        %v5797 = vadd.f32 %v5794, 1.0
        %v5798 = vadd.f32 %v5796, 1.0
        %v5799 = vrcp.pop %v5797
        %v5800 = vmul.f32 %v5797, %v5799
        %v5801 = vsub.f32 1.0, %v5800
        %v5802 = vmul.f32 %v5799, %v5801
        %v5803 = vadd.f32 %v5799, %v5802
        %vm5804 = vweird.f32 %v5797
        %vm5805 = vweird.f32 %v5799
        %vm5806 = vmor %vm5804, %vm5805
        %v5807 = vsel %vm5806, %v5799, %v5803
        %v5808 = vand.u32 2147483647, %v5797
        %vm5809 = vcmp.eq.f32.partialorder %v5808, 8.507059e+37
        %v5810 = vand.u32 %v5797, 2147483648
        %v5811 = vor.u32 1.1754944e-38, %v5810
        %v5812 = vsel %vm5809, %v5811, %v5807
        %v5813 = vmul.f32 1.0, %v5812
        %v5814 = vrcp.pop %v5798
        %v5815 = vmul.f32 %v5798, %v5814
        %v5816 = vsub.f32 1.0, %v5815
        %v5817 = vmul.f32 %v5814, %v5816
        %v5818 = vadd.f32 %v5814, %v5817
        %vm5819 = vweird.f32 %v5798
        %vm5820 = vweird.f32 %v5814
        %vm5821 = vmor %vm5819, %vm5820
        %v5822 = vsel %vm5821, %v5814, %v5818
        %v5823 = vand.u32 2147483647, %v5798
        %vm5824 = vcmp.eq.f32.partialorder %v5823, 8.507059e+37
        %v5825 = vand.u32 %v5798, 2147483648
        %v5826 = vor.u32 1.1754944e-38, %v5825
        %v5827 = vsel %vm5824, %v5826, %v5822
        %v5828 = vmul.f32 1.0, %v5827
        %v5829 = vtanh.pop %v5749
        %v5830 = vtanh.pop %v5750
        %v5831 = vxor.u32 %v5751, 2147483648
        %v5832 = vxor.u32 %v5752, 2147483648
        %v5833 = vmul.f32 %v5831, 1.442695
        %v5834 = vpow.pop %v5833
        %v5835 = vmul.f32 %v5832, 1.442695
        %v5836 = vpow.pop %v5835
        %v5837 = vadd.f32 %v5834, 1.0
        %v5838 = vadd.f32 %v5836, 1.0
        %v5839 = vrcp.pop %v5837
        %v5840 = vmul.f32 %v5837, %v5839
        %v5841 = vsub.f32 1.0, %v5840
        %v5842 = vmul.f32 %v5839, %v5841
        %v5843 = vadd.f32 %v5839, %v5842
        %vm5844 = vweird.f32 %v5837
        %vm5845 = vweird.f32 %v5839
        %vm5846 = vmor %vm5844, %vm5845
        %v5847 = vsel %vm5846, %v5839, %v5843
        %v5848 = vand.u32 2147483647, %v5837
        %vm5849 = vcmp.eq.f32.partialorder %v5848, 8.507059e+37
        %v5850 = vand.u32 %v5837, 2147483648
        %v5851 = vor.u32 1.1754944e-38, %v5850
        %v5852 = vsel %vm5849, %v5851, %v5847
        %v5853 = vmul.f32 1.0, %v5852
        %v5854 = vrcp.pop %v5838
        %v5855 = vmul.f32 %v5838, %v5854
        %v5856 = vsub.f32 1.0, %v5855
        %v5857 = vmul.f32 %v5854, %v5856
        %v5858 = vadd.f32 %v5854, %v5857
        %vm5859 = vweird.f32 %v5838
        %vm5860 = vweird.f32 %v5854
        %vm5861 = vmor %vm5859, %vm5860
        %v5862 = vsel %vm5861, %v5854, %v5858
        %v5863 = vand.u32 2147483647, %v5838
        %vm5864 = vcmp.eq.f32.partialorder %v5863, 8.507059e+37
        %v5865 = vand.u32 %v5838, 2147483648
        %v5866 = vor.u32 1.1754944e-38, %v5865
        %v5867 = vsel %vm5864, %v5866, %v5862
        %v5868 = vmul.f32 1.0, %v5867
        %v5871 = vrot.slane %v5381, 7
        %v5872 = vrot.slane %v5382, 7
        %v5875 = vmul.f32 %v5813, %v5871
        %v5876 = vmul.f32 %v5828, %v5872
        %v5877 = vmul.f32 %v5775, %v5829
        %v5878 = vmul.f32 %v5790, %v5830
        %v5879 = vadd.f32 %v5875, %v5877
        %v5880 = vadd.f32 %v5876, %v5878
        %v5881 = vtanh.pop %v5879
        %v5882 = vtanh.pop %v5880
        %v5883 = vmul.f32 %v5853, %v5881
        %v5884 = vmul.f32 %v5868, %v5882
        %5887 = vst [vmem:[#allocation1] sm:$0xff] %v5883
        %5888 = vst [vmem:[#allocation1 + $0x9] sm:$0xff] %v5884
        %s5889 = scalar_lea.vmem [#allocation1], 7
        %v5890 = vld [vmem:[%s5889] ss:$9 sm:$0xff]
        %s5892 = scalar_lea.vmem [#allocation2], 7
        %5893 = vst.msk [vmem:[%s5892] ss:$8 sm:$0x3] %vm2410, %v5890
        %5894 = vst.msk [vmem:[%s5892] ss:$8 sm:$0x0] %vm2410, %v5890
        %v5895 = vrot.slane %v5883, 7
        %v5896 = vrot.slane %v5884, 7
        %5899 = vmatpush.msra.mxu0 %v837
        %5900 = vmatpush.msra.mxu0 %v829
        %5901 = vmatpush.msra.mxu0 %v821
        %5902 = vmatpush.msra.mxu0 %v813
        %5903 = vmatpush.msra.mxu0 %v805
        %5904 = vmatpush.msra.mxu0 %v797
        %5905 = vmatpush.msra.mxu0 %v789
        %5906 = vmatpush.msra.mxu0 %v781
        %5907 = vmatpush.msra.mxu0 %v773
        %5908 = vmatpush.msra.mxu0 %v765
        %5909 = vmatpush.msra.mxu0 %v757
        %5910 = vmatpush.msra.mxu0 %v749
        %5911 = vmatpush.msra.mxu0 %v741
        %5912 = vmatpush.msra.mxu0 %v733
        %5913 = vmatpush.msra.mxu0 %v725
        %5914 = vmatpush.msra.mxu0 %v717
        %5915 = vmatmul.f32.gmra.mxu0 %v5895
        %v5916 = vpop.f32.mrf.mxu0
        %v5917 = vadd.f32 0.0, %v5916
        %5918 = vdwg.mxu0
        %5919 = vmatpush.msra.mxu0 %v965
        %5920 = vmatpush.msra.mxu0 %v957
        %5921 = vmatpush.msra.mxu0 %v949
        %5922 = vmatpush.msra.mxu0 %v941
        %5923 = vmatpush.msra.mxu0 %v933
        %5924 = vmatpush.msra.mxu0 %v925
        %5925 = vmatpush.msra.mxu0 %v917
        %5926 = vmatpush.msra.mxu0 %v909
        %5927 = vmatpush.msra.mxu0 %v901
        %5928 = vmatpush.msra.mxu0 %v893
        %5929 = vmatpush.msra.mxu0 %v885
        %5930 = vmatpush.msra.mxu0 %v877
        %5931 = vmatpush.msra.mxu0 %v869
        %5932 = vmatpush.msra.mxu0 %v861
        %5933 = vmatpush.msra.mxu0 %v853
        %5934 = vmatpush.msra.mxu0 %v845
        %5935 = vmatmul.f32.gmra.mxu0 %v5896
        %v5936 = vpop.f32.mrf.mxu0
        %v5937 = vadd.f32 %v5917, %v5936
        %5938 = vdwg.mxu0
        %5939 = vmatpush.msra.mxu0 %v838
        %5940 = vmatpush.msra.mxu0 %v830
        %5941 = vmatpush.msra.mxu0 %v822
        %5942 = vmatpush.msra.mxu0 %v814
        %5943 = vmatpush.msra.mxu0 %v806
        %5944 = vmatpush.msra.mxu0 %v798
        %5945 = vmatpush.msra.mxu0 %v790
        %5946 = vmatpush.msra.mxu0 %v782
        %5947 = vmatpush.msra.mxu0 %v774
        %5948 = vmatpush.msra.mxu0 %v766
        %5949 = vmatpush.msra.mxu0 %v758
        %5950 = vmatpush.msra.mxu0 %v750
        %5951 = vmatpush.msra.mxu0 %v742
        %5952 = vmatpush.msra.mxu0 %v734
        %5953 = vmatpush.msra.mxu0 %v726
        %5954 = vmatpush.msra.mxu0 %v718
        %5955 = vmatmul.f32.gmra.mxu0 %v5895
        %v5956 = vpop.f32.mrf.mxu0
        %v5957 = vadd.f32 0.0, %v5956
        %5958 = vdwg.mxu0
        %5959 = vmatpush.msra.mxu0 %v966
        %5960 = vmatpush.msra.mxu0 %v958
        %5961 = vmatpush.msra.mxu0 %v950
        %5962 = vmatpush.msra.mxu0 %v942
        %5963 = vmatpush.msra.mxu0 %v934
        %5964 = vmatpush.msra.mxu0 %v926
        %5965 = vmatpush.msra.mxu0 %v918
        %5966 = vmatpush.msra.mxu0 %v910
        %5967 = vmatpush.msra.mxu0 %v902
        %5968 = vmatpush.msra.mxu0 %v894
        %5969 = vmatpush.msra.mxu0 %v886
        %5970 = vmatpush.msra.mxu0 %v878
        %5971 = vmatpush.msra.mxu0 %v870
        %5972 = vmatpush.msra.mxu0 %v862
        %5973 = vmatpush.msra.mxu0 %v854
        %5974 = vmatpush.msra.mxu0 %v846
        %5975 = vmatmul.f32.gmra.mxu0 %v5896
        %v5976 = vpop.f32.mrf.mxu0
        %v5977 = vadd.f32 %v5957, %v5976
        %5978 = vdwg.mxu0
        %5979 = vmatpush.msra.mxu0 %v839
        %5980 = vmatpush.msra.mxu0 %v831
        %5981 = vmatpush.msra.mxu0 %v823
        %5982 = vmatpush.msra.mxu0 %v815
        %5983 = vmatpush.msra.mxu0 %v807
        %5984 = vmatpush.msra.mxu0 %v799
        %5985 = vmatpush.msra.mxu0 %v791
        %5986 = vmatpush.msra.mxu0 %v783
        %5987 = vmatpush.msra.mxu0 %v775
        %5988 = vmatpush.msra.mxu0 %v767
        %5989 = vmatpush.msra.mxu0 %v759
        %5990 = vmatpush.msra.mxu0 %v751
        %5991 = vmatpush.msra.mxu0 %v743
        %5992 = vmatpush.msra.mxu0 %v735
        %5993 = vmatpush.msra.mxu0 %v727
        %5994 = vmatpush.msra.mxu0 %v719
        %5995 = vmatmul.f32.gmra.mxu0 %v5895
        %v5996 = vpop.f32.mrf.mxu0
        %v5997 = vadd.f32 0.0, %v5996
        %5998 = vdwg.mxu0
        %5999 = vmatpush.msra.mxu0 %v967
        %6000 = vmatpush.msra.mxu0 %v959
        %6001 = vmatpush.msra.mxu0 %v951
        %6002 = vmatpush.msra.mxu0 %v943
        %6003 = vmatpush.msra.mxu0 %v935
        %6004 = vmatpush.msra.mxu0 %v927
        %6005 = vmatpush.msra.mxu0 %v919
        %6006 = vmatpush.msra.mxu0 %v911
        %6007 = vmatpush.msra.mxu0 %v903
        %6008 = vmatpush.msra.mxu0 %v895
        %6009 = vmatpush.msra.mxu0 %v887
        %6010 = vmatpush.msra.mxu0 %v879
        %6011 = vmatpush.msra.mxu0 %v871
        %6012 = vmatpush.msra.mxu0 %v863
        %6013 = vmatpush.msra.mxu0 %v855
        %6014 = vmatpush.msra.mxu0 %v847
        %6015 = vmatmul.f32.gmra.mxu0 %v5896
        %v6016 = vpop.f32.mrf.mxu0
        %v6017 = vadd.f32 %v5997, %v6016
        %6018 = vdwg.mxu0
        %6019 = vmatpush.msra.mxu0 %v840
        %6020 = vmatpush.msra.mxu0 %v832
        %6021 = vmatpush.msra.mxu0 %v824
        %6022 = vmatpush.msra.mxu0 %v816
        %6023 = vmatpush.msra.mxu0 %v808
        %6024 = vmatpush.msra.mxu0 %v800
        %6025 = vmatpush.msra.mxu0 %v792
        %6026 = vmatpush.msra.mxu0 %v784
        %6027 = vmatpush.msra.mxu0 %v776
        %6028 = vmatpush.msra.mxu0 %v768
        %6029 = vmatpush.msra.mxu0 %v760
        %6030 = vmatpush.msra.mxu0 %v752
        %6031 = vmatpush.msra.mxu0 %v744
        %6032 = vmatpush.msra.mxu0 %v736
        %6033 = vmatpush.msra.mxu0 %v728
        %6034 = vmatpush.msra.mxu0 %v720
        %6035 = vmatmul.f32.gmra.mxu0 %v5895
        %v6036 = vpop.f32.mrf.mxu0
        %v6037 = vadd.f32 0.0, %v6036
        %6038 = vdwg.mxu0
        %6039 = vmatpush.msra.mxu0 %v968
        %6040 = vmatpush.msra.mxu0 %v960
        %6041 = vmatpush.msra.mxu0 %v952
        %6042 = vmatpush.msra.mxu0 %v944
        %6043 = vmatpush.msra.mxu0 %v936
        %6044 = vmatpush.msra.mxu0 %v928
        %6045 = vmatpush.msra.mxu0 %v920
        %6046 = vmatpush.msra.mxu0 %v912
        %6047 = vmatpush.msra.mxu0 %v904
        %6048 = vmatpush.msra.mxu0 %v896
        %6049 = vmatpush.msra.mxu0 %v888
        %6050 = vmatpush.msra.mxu0 %v880
        %6051 = vmatpush.msra.mxu0 %v872
        %6052 = vmatpush.msra.mxu0 %v864
        %6053 = vmatpush.msra.mxu0 %v856
        %6054 = vmatpush.msra.mxu0 %v848
        %6055 = vmatmul.f32.gmra.mxu0 %v5896
        %v6056 = vpop.f32.mrf.mxu0
        %v6057 = vadd.f32 %v6037, %v6056
        %6058 = vdwg.mxu0
        %6059 = vmatpush.msra.mxu0 %v841
        %6060 = vmatpush.msra.mxu0 %v833
        %6061 = vmatpush.msra.mxu0 %v825
        %6062 = vmatpush.msra.mxu0 %v817
        %6063 = vmatpush.msra.mxu0 %v809
        %6064 = vmatpush.msra.mxu0 %v801
        %6065 = vmatpush.msra.mxu0 %v793
        %6066 = vmatpush.msra.mxu0 %v785
        %6067 = vmatpush.msra.mxu0 %v777
        %6068 = vmatpush.msra.mxu0 %v769
        %6069 = vmatpush.msra.mxu0 %v761
        %6070 = vmatpush.msra.mxu0 %v753
        %6071 = vmatpush.msra.mxu0 %v745
        %6072 = vmatpush.msra.mxu0 %v737
        %6073 = vmatpush.msra.mxu0 %v729
        %6074 = vmatpush.msra.mxu0 %v721
        %6075 = vmatmul.f32.gmra.mxu0 %v5895
        %v6076 = vpop.f32.mrf.mxu0
        %v6077 = vadd.f32 0.0, %v6076
        %6078 = vdwg.mxu0
        %6079 = vmatpush.msra.mxu0 %v969
        %6080 = vmatpush.msra.mxu0 %v961
        %6081 = vmatpush.msra.mxu0 %v953
        %6082 = vmatpush.msra.mxu0 %v945
        %6083 = vmatpush.msra.mxu0 %v937
        %6084 = vmatpush.msra.mxu0 %v929
        %6085 = vmatpush.msra.mxu0 %v921
        %6086 = vmatpush.msra.mxu0 %v913
        %6087 = vmatpush.msra.mxu0 %v905
        %6088 = vmatpush.msra.mxu0 %v897
        %6089 = vmatpush.msra.mxu0 %v889
        %6090 = vmatpush.msra.mxu0 %v881
        %6091 = vmatpush.msra.mxu0 %v873
        %6092 = vmatpush.msra.mxu0 %v865
        %6093 = vmatpush.msra.mxu0 %v857
        %6094 = vmatpush.msra.mxu0 %v849
        %6095 = vmatmul.f32.gmra.mxu0 %v5896
        %v6096 = vpop.f32.mrf.mxu0
        %v6097 = vadd.f32 %v6077, %v6096
        %6098 = vdwg.mxu0
        %6099 = vmatpush.msra.mxu0 %v842
        %6100 = vmatpush.msra.mxu0 %v834
        %6101 = vmatpush.msra.mxu0 %v826
        %6102 = vmatpush.msra.mxu0 %v818
        %6103 = vmatpush.msra.mxu0 %v810
        %6104 = vmatpush.msra.mxu0 %v802
        %6105 = vmatpush.msra.mxu0 %v794
        %6106 = vmatpush.msra.mxu0 %v786
        %6107 = vmatpush.msra.mxu0 %v778
        %6108 = vmatpush.msra.mxu0 %v770
        %6109 = vmatpush.msra.mxu0 %v762
        %6110 = vmatpush.msra.mxu0 %v754
        %6111 = vmatpush.msra.mxu0 %v746
        %6112 = vmatpush.msra.mxu0 %v738
        %6113 = vmatpush.msra.mxu0 %v730
        %6114 = vmatpush.msra.mxu0 %v722
        %6115 = vmatmul.f32.gmra.mxu0 %v5895
        %v6116 = vpop.f32.mrf.mxu0
        %v6117 = vadd.f32 0.0, %v6116
        %6118 = vdwg.mxu0
        %6119 = vmatpush.msra.mxu0 %v970
        %6120 = vmatpush.msra.mxu0 %v962
        %6121 = vmatpush.msra.mxu0 %v954
        %6122 = vmatpush.msra.mxu0 %v946
        %6123 = vmatpush.msra.mxu0 %v938
        %6124 = vmatpush.msra.mxu0 %v930
        %6125 = vmatpush.msra.mxu0 %v922
        %6126 = vmatpush.msra.mxu0 %v914
        %6127 = vmatpush.msra.mxu0 %v906
        %6128 = vmatpush.msra.mxu0 %v898
        %6129 = vmatpush.msra.mxu0 %v890
        %6130 = vmatpush.msra.mxu0 %v882
        %6131 = vmatpush.msra.mxu0 %v874
        %6132 = vmatpush.msra.mxu0 %v866
        %6133 = vmatpush.msra.mxu0 %v858
        %6134 = vmatpush.msra.mxu0 %v850
        %6135 = vmatmul.f32.gmra.mxu0 %v5896
        %v6136 = vpop.f32.mrf.mxu0
        %v6137 = vadd.f32 %v6117, %v6136
        %6138 = vdwg.mxu0
        %6139 = vmatpush.msra.mxu0 %v843
        %6140 = vmatpush.msra.mxu0 %v835
        %6141 = vmatpush.msra.mxu0 %v827
        %6142 = vmatpush.msra.mxu0 %v819
        %6143 = vmatpush.msra.mxu0 %v811
        %6144 = vmatpush.msra.mxu0 %v803
        %6145 = vmatpush.msra.mxu0 %v795
        %6146 = vmatpush.msra.mxu0 %v787
        %6147 = vmatpush.msra.mxu0 %v779
        %6148 = vmatpush.msra.mxu0 %v771
        %6149 = vmatpush.msra.mxu0 %v763
        %6150 = vmatpush.msra.mxu0 %v755
        %6151 = vmatpush.msra.mxu0 %v747
        %6152 = vmatpush.msra.mxu0 %v739
        %6153 = vmatpush.msra.mxu0 %v731
        %6154 = vmatpush.msra.mxu0 %v723
        %6155 = vmatmul.f32.gmra.mxu0 %v5895
        %v6156 = vpop.f32.mrf.mxu0
        %v6157 = vadd.f32 0.0, %v6156
        %6158 = vdwg.mxu0
        %6159 = vmatpush.msra.mxu0 %v971
        %6160 = vmatpush.msra.mxu0 %v963
        %6161 = vmatpush.msra.mxu0 %v955
        %6162 = vmatpush.msra.mxu0 %v947
        %6163 = vmatpush.msra.mxu0 %v939
        %6164 = vmatpush.msra.mxu0 %v931
        %6165 = vmatpush.msra.mxu0 %v923
        %6166 = vmatpush.msra.mxu0 %v915
        %6167 = vmatpush.msra.mxu0 %v907
        %6168 = vmatpush.msra.mxu0 %v899
        %6169 = vmatpush.msra.mxu0 %v891
        %6170 = vmatpush.msra.mxu0 %v883
        %6171 = vmatpush.msra.mxu0 %v875
        %6172 = vmatpush.msra.mxu0 %v867
        %6173 = vmatpush.msra.mxu0 %v859
        %6174 = vmatpush.msra.mxu0 %v851
        %6175 = vmatmul.f32.gmra.mxu0 %v5896
        %v6176 = vpop.f32.mrf.mxu0
        %v6177 = vadd.f32 %v6157, %v6176
        %6178 = vdwg.mxu0
        %6179 = vmatpush.msra.mxu0 %v844
        %6180 = vmatpush.msra.mxu0 %v836
        %6181 = vmatpush.msra.mxu0 %v828
        %6182 = vmatpush.msra.mxu0 %v820
        %6183 = vmatpush.msra.mxu0 %v812
        %6184 = vmatpush.msra.mxu0 %v804
        %6185 = vmatpush.msra.mxu0 %v796
        %6186 = vmatpush.msra.mxu0 %v788
        %6187 = vmatpush.msra.mxu0 %v780
        %6188 = vmatpush.msra.mxu0 %v772
        %6189 = vmatpush.msra.mxu0 %v764
        %6190 = vmatpush.msra.mxu0 %v756
        %6191 = vmatpush.msra.mxu0 %v748
        %6192 = vmatpush.msra.mxu0 %v740
        %6193 = vmatpush.msra.mxu0 %v732
        %6194 = vmatpush.msra.mxu0 %v724
        %6195 = vmatmul.f32.gmra.mxu0 %v5895
        %v6196 = vpop.f32.mrf.mxu0
        %v6197 = vadd.f32 0.0, %v6196
        %6198 = vdwg.mxu0
        %6199 = vmatpush.msra.mxu0 %v972
        %6200 = vmatpush.msra.mxu0 %v964
        %6201 = vmatpush.msra.mxu0 %v956
        %6202 = vmatpush.msra.mxu0 %v948
        %6203 = vmatpush.msra.mxu0 %v940
        %6204 = vmatpush.msra.mxu0 %v932
        %6205 = vmatpush.msra.mxu0 %v924
        %6206 = vmatpush.msra.mxu0 %v916
        %6207 = vmatpush.msra.mxu0 %v908
        %6208 = vmatpush.msra.mxu0 %v900
        %6209 = vmatpush.msra.mxu0 %v892
        %6210 = vmatpush.msra.mxu0 %v884
        %6211 = vmatpush.msra.mxu0 %v876
        %6212 = vmatpush.msra.mxu0 %v868
        %6213 = vmatpush.msra.mxu0 %v860
        %6214 = vmatpush.msra.mxu0 %v852
        %6215 = vmatmul.f32.gmra.mxu0 %v5896
        %v6216 = vpop.f32.mrf.mxu0
        %v6217 = vadd.f32 %v6197, %v6216
        %6218 = vdwg.mxu0
        %v6219 = vadd.f32 %v1784, %v5937
        %v6220 = vadd.f32 %v1807, %v5977
        %v6221 = vadd.f32 %v1830, %v6017
        %v6222 = vadd.f32 %v1853, %v6057
        %v6223 = vadd.f32 %v1876, %v6097
        %v6224 = vadd.f32 %v1899, %v6137
        %v6225 = vadd.f32 %v1922, %v6177
        %v6226 = vadd.f32 %v1945, %v6217
        %v6227 = vxor.u32 %v6219, 2147483648
        %v6228 = vxor.u32 %v6220, 2147483648
        %v6229 = vmul.f32 %v6227, 1.442695
        %v6230 = vpow.pop %v6229
        %v6231 = vmul.f32 %v6228, 1.442695
        %v6232 = vpow.pop %v6231
        %v6233 = vadd.f32 %v6230, 1.0
        %v6234 = vadd.f32 %v6232, 1.0
        %v6235 = vrcp.pop %v6233
        %v6236 = vmul.f32 %v6233, %v6235
        %v6237 = vsub.f32 1.0, %v6236
        %v6238 = vmul.f32 %v6235, %v6237
        %v6239 = vadd.f32 %v6235, %v6238
        %vm6240 = vweird.f32 %v6233
        %vm6241 = vweird.f32 %v6235
        %vm6242 = vmor %vm6240, %vm6241
        %v6243 = vsel %vm6242, %v6235, %v6239
        %v6244 = vand.u32 2147483647, %v6233
        %vm6245 = vcmp.eq.f32.partialorder %v6244, 8.507059e+37
        %v6246 = vand.u32 %v6233, 2147483648
        %v6247 = vor.u32 1.1754944e-38, %v6246
        %v6248 = vsel %vm6245, %v6247, %v6243
        %v6249 = vmul.f32 1.0, %v6248
        %v6250 = vrcp.pop %v6234
        %v6251 = vmul.f32 %v6234, %v6250
        %v6252 = vsub.f32 1.0, %v6251
        %v6253 = vmul.f32 %v6250, %v6252
        %v6254 = vadd.f32 %v6250, %v6253
        %vm6255 = vweird.f32 %v6234
        %vm6256 = vweird.f32 %v6250
        %vm6257 = vmor %vm6255, %vm6256
        %v6258 = vsel %vm6257, %v6250, %v6254
        %v6259 = vand.u32 2147483647, %v6234
        %vm6260 = vcmp.eq.f32.partialorder %v6259, 8.507059e+37
        %v6261 = vand.u32 %v6234, 2147483648
        %v6262 = vor.u32 1.1754944e-38, %v6261
        %v6263 = vsel %vm6260, %v6262, %v6258
        %v6264 = vmul.f32 1.0, %v6263
        %v6265 = vxor.u32 %v6221, 2147483648
        %v6266 = vxor.u32 %v6222, 2147483648
        %v6267 = vmul.f32 %v6265, 1.442695
        %v6268 = vpow.pop %v6267
        %v6269 = vmul.f32 %v6266, 1.442695
        %v6270 = vpow.pop %v6269
        %v6271 = vadd.f32 %v6268, 1.0
        %v6272 = vadd.f32 %v6270, 1.0
        %v6273 = vrcp.pop %v6271
        %v6274 = vmul.f32 %v6271, %v6273
        %v6275 = vsub.f32 1.0, %v6274
        %v6276 = vmul.f32 %v6273, %v6275
        %v6277 = vadd.f32 %v6273, %v6276
        %vm6278 = vweird.f32 %v6271
        %vm6279 = vweird.f32 %v6273
        %vm6280 = vmor %vm6278, %vm6279
        %v6281 = vsel %vm6280, %v6273, %v6277
        %v6282 = vand.u32 2147483647, %v6271
        %vm6283 = vcmp.eq.f32.partialorder %v6282, 8.507059e+37
        %v6284 = vand.u32 %v6271, 2147483648
        %v6285 = vor.u32 1.1754944e-38, %v6284
        %v6286 = vsel %vm6283, %v6285, %v6281
        %v6287 = vmul.f32 1.0, %v6286
        %v6288 = vrcp.pop %v6272
        %v6289 = vmul.f32 %v6272, %v6288
        %v6290 = vsub.f32 1.0, %v6289
        %v6291 = vmul.f32 %v6288, %v6290
        %v6292 = vadd.f32 %v6288, %v6291
        %vm6293 = vweird.f32 %v6272
        %vm6294 = vweird.f32 %v6288
        %vm6295 = vmor %vm6293, %vm6294
        %v6296 = vsel %vm6295, %v6288, %v6292
        %v6297 = vand.u32 2147483647, %v6272
        %vm6298 = vcmp.eq.f32.partialorder %v6297, 8.507059e+37
        %v6299 = vand.u32 %v6272, 2147483648
        %v6300 = vor.u32 1.1754944e-38, %v6299
        %v6301 = vsel %vm6298, %v6300, %v6296
        %v6302 = vmul.f32 1.0, %v6301
        %v6303 = vtanh.pop %v6223
        %v6304 = vtanh.pop %v6224
        %v6305 = vxor.u32 %v6225, 2147483648
        %v6306 = vxor.u32 %v6226, 2147483648
        %v6307 = vmul.f32 %v6305, 1.442695
        %v6308 = vpow.pop %v6307
        %v6309 = vmul.f32 %v6306, 1.442695
        %v6310 = vpow.pop %v6309
        %v6311 = vadd.f32 %v6308, 1.0
        %v6312 = vadd.f32 %v6310, 1.0
        %v6313 = vrcp.pop %v6311
        %v6314 = vmul.f32 %v6311, %v6313
        %v6315 = vsub.f32 1.0, %v6314
        %v6316 = vmul.f32 %v6313, %v6315
        %v6317 = vadd.f32 %v6313, %v6316
        %vm6318 = vweird.f32 %v6311
        %vm6319 = vweird.f32 %v6313
        %vm6320 = vmor %vm6318, %vm6319
        %v6321 = vsel %vm6320, %v6313, %v6317
        %v6322 = vand.u32 2147483647, %v6311
        %vm6323 = vcmp.eq.f32.partialorder %v6322, 8.507059e+37
        %v6324 = vand.u32 %v6311, 2147483648
        %v6325 = vor.u32 1.1754944e-38, %v6324
        %v6326 = vsel %vm6323, %v6325, %v6321
        %v6327 = vmul.f32 1.0, %v6326
        %v6328 = vrcp.pop %v6312
        %v6329 = vmul.f32 %v6312, %v6328
        %v6330 = vsub.f32 1.0, %v6329
        %v6331 = vmul.f32 %v6328, %v6330
        %v6332 = vadd.f32 %v6328, %v6331
        %vm6333 = vweird.f32 %v6312
        %vm6334 = vweird.f32 %v6328
        %vm6335 = vmor %vm6333, %vm6334
        %v6336 = vsel %vm6335, %v6328, %v6332
        %v6337 = vand.u32 2147483647, %v6312
        %vm6338 = vcmp.eq.f32.partialorder %v6337, 8.507059e+37
        %v6339 = vand.u32 %v6312, 2147483648
        %v6340 = vor.u32 1.1754944e-38, %v6339
        %v6341 = vsel %vm6338, %v6340, %v6336
        %v6342 = vmul.f32 1.0, %v6341
        %v6345 = vrot.slane %v5879, 7
        %v6346 = vrot.slane %v5880, 7
        %v6349 = vmul.f32 %v6287, %v6345
        %v6350 = vmul.f32 %v6302, %v6346
        %v6351 = vmul.f32 %v6249, %v6303
        %v6352 = vmul.f32 %v6264, %v6304
        %v6353 = vadd.f32 %v6349, %v6351
        %v6354 = vadd.f32 %v6350, %v6352
        %v6355 = vtanh.pop %v6353
        %v6356 = vtanh.pop %v6354
        %v6357 = vmul.f32 %v6327, %v6355
        %v6358 = vmul.f32 %v6342, %v6356
        %v6361 = vrot.slane %v6358, 7
        %v6362 = vsel %vm2404, %v6357, %v6361
        %s6364 = scalar_lea.vmem [#allocation2], 16
        %6365 = vst.msk [vmem:[%s6364] ss:$8 sm:$0x3] %vm2410, %v6362
        %6366 = vst.msk [vmem:[%s6364] ss:$8 sm:$0x0] %vm2410, %v6362
        %6367 = vmatpush.msra.mxu0 %v837
        %6368 = vmatpush.msra.mxu0 %v829
        %6369 = vmatpush.msra.mxu0 %v821
        %6370 = vmatpush.msra.mxu0 %v813
        %6371 = vmatpush.msra.mxu0 %v805
        %6372 = vmatpush.msra.mxu0 %v797
        %6373 = vmatpush.msra.mxu0 %v789
        %6374 = vmatpush.msra.mxu0 %v781
        %6375 = vmatpush.msra.mxu0 %v773
        %6376 = vmatpush.msra.mxu0 %v765
        %6377 = vmatpush.msra.mxu0 %v757
        %6378 = vmatpush.msra.mxu0 %v749
        %6379 = vmatpush.msra.mxu0 %v741
        %6380 = vmatpush.msra.mxu0 %v733
        %6381 = vmatpush.msra.mxu0 %v725
        %6382 = vmatpush.msra.mxu0 %v717
        %6383 = vmatmul.f32.gmra.mxu0 %v6357
        %v6384 = vpop.f32.mrf.mxu0
        %v6385 = vadd.f32 0.0, %v6384
        %6386 = vdwg.mxu0
        %6387 = vmatpush.msra.mxu0 %v965
        %6388 = vmatpush.msra.mxu0 %v957
        %6389 = vmatpush.msra.mxu0 %v949
        %6390 = vmatpush.msra.mxu0 %v941
        %6391 = vmatpush.msra.mxu0 %v933
        %6392 = vmatpush.msra.mxu0 %v925
        %6393 = vmatpush.msra.mxu0 %v917
        %6394 = vmatpush.msra.mxu0 %v909
        %6395 = vmatpush.msra.mxu0 %v901
        %6396 = vmatpush.msra.mxu0 %v893
        %6397 = vmatpush.msra.mxu0 %v885
        %6398 = vmatpush.msra.mxu0 %v877
        %6399 = vmatpush.msra.mxu0 %v869
        %6400 = vmatpush.msra.mxu0 %v861
        %6401 = vmatpush.msra.mxu0 %v853
        %6402 = vmatpush.msra.mxu0 %v845
        %6403 = vmatmul.f32.gmra.mxu0 %v6358
        %v6404 = vpop.f32.mrf.mxu0
        %v6405 = vadd.f32 %v6385, %v6404
        %6406 = vdwg.mxu0
        %6407 = vmatpush.msra.mxu0 %v838
        %6408 = vmatpush.msra.mxu0 %v830
        %6409 = vmatpush.msra.mxu0 %v822
        %6410 = vmatpush.msra.mxu0 %v814
        %6411 = vmatpush.msra.mxu0 %v806
        %6412 = vmatpush.msra.mxu0 %v798
        %6413 = vmatpush.msra.mxu0 %v790
        %6414 = vmatpush.msra.mxu0 %v782
        %6415 = vmatpush.msra.mxu0 %v774
        %6416 = vmatpush.msra.mxu0 %v766
        %6417 = vmatpush.msra.mxu0 %v758
        %6418 = vmatpush.msra.mxu0 %v750
        %6419 = vmatpush.msra.mxu0 %v742
        %6420 = vmatpush.msra.mxu0 %v734
        %6421 = vmatpush.msra.mxu0 %v726
        %6422 = vmatpush.msra.mxu0 %v718
        %6423 = vmatmul.f32.gmra.mxu0 %v6357
        %v6424 = vpop.f32.mrf.mxu0
        %v6425 = vadd.f32 0.0, %v6424
        %6426 = vdwg.mxu0
        %6427 = vmatpush.msra.mxu0 %v966
        %6428 = vmatpush.msra.mxu0 %v958
        %6429 = vmatpush.msra.mxu0 %v950
        %6430 = vmatpush.msra.mxu0 %v942
        %6431 = vmatpush.msra.mxu0 %v934
        %6432 = vmatpush.msra.mxu0 %v926
        %6433 = vmatpush.msra.mxu0 %v918
        %6434 = vmatpush.msra.mxu0 %v910
        %6435 = vmatpush.msra.mxu0 %v902
        %6436 = vmatpush.msra.mxu0 %v894
        %6437 = vmatpush.msra.mxu0 %v886
        %6438 = vmatpush.msra.mxu0 %v878
        %6439 = vmatpush.msra.mxu0 %v870
        %6440 = vmatpush.msra.mxu0 %v862
        %6441 = vmatpush.msra.mxu0 %v854
        %6442 = vmatpush.msra.mxu0 %v846
        %6443 = vmatmul.f32.gmra.mxu0 %v6358
        %v6444 = vpop.f32.mrf.mxu0
        %v6445 = vadd.f32 %v6425, %v6444
        %6446 = vdwg.mxu0
        %6447 = vmatpush.msra.mxu0 %v839
        %6448 = vmatpush.msra.mxu0 %v831
        %6449 = vmatpush.msra.mxu0 %v823
        %6450 = vmatpush.msra.mxu0 %v815
        %6451 = vmatpush.msra.mxu0 %v807
        %6452 = vmatpush.msra.mxu0 %v799
        %6453 = vmatpush.msra.mxu0 %v791
        %6454 = vmatpush.msra.mxu0 %v783
        %6455 = vmatpush.msra.mxu0 %v775
        %6456 = vmatpush.msra.mxu0 %v767
        %6457 = vmatpush.msra.mxu0 %v759
        %6458 = vmatpush.msra.mxu0 %v751
        %6459 = vmatpush.msra.mxu0 %v743
        %6460 = vmatpush.msra.mxu0 %v735
        %6461 = vmatpush.msra.mxu0 %v727
        %6462 = vmatpush.msra.mxu0 %v719
        %6463 = vmatmul.f32.gmra.mxu0 %v6357
        %v6464 = vpop.f32.mrf.mxu0
        %v6465 = vadd.f32 0.0, %v6464
        %6466 = vdwg.mxu0
        %6467 = vmatpush.msra.mxu0 %v967
        %6468 = vmatpush.msra.mxu0 %v959
        %6469 = vmatpush.msra.mxu0 %v951
        %6470 = vmatpush.msra.mxu0 %v943
        %6471 = vmatpush.msra.mxu0 %v935
        %6472 = vmatpush.msra.mxu0 %v927
        %6473 = vmatpush.msra.mxu0 %v919
        %6474 = vmatpush.msra.mxu0 %v911
        %6475 = vmatpush.msra.mxu0 %v903
        %6476 = vmatpush.msra.mxu0 %v895
        %6477 = vmatpush.msra.mxu0 %v887
        %6478 = vmatpush.msra.mxu0 %v879
        %6479 = vmatpush.msra.mxu0 %v871
        %6480 = vmatpush.msra.mxu0 %v863
        %6481 = vmatpush.msra.mxu0 %v855
        %6482 = vmatpush.msra.mxu0 %v847
        %6483 = vmatmul.f32.gmra.mxu0 %v6358
        %v6484 = vpop.f32.mrf.mxu0
        %v6485 = vadd.f32 %v6465, %v6484
        %6486 = vdwg.mxu0
        %6487 = vmatpush.msra.mxu0 %v840
        %6488 = vmatpush.msra.mxu0 %v832
        %6489 = vmatpush.msra.mxu0 %v824
        %6490 = vmatpush.msra.mxu0 %v816
        %6491 = vmatpush.msra.mxu0 %v808
        %6492 = vmatpush.msra.mxu0 %v800
        %6493 = vmatpush.msra.mxu0 %v792
        %6494 = vmatpush.msra.mxu0 %v784
        %6495 = vmatpush.msra.mxu0 %v776
        %6496 = vmatpush.msra.mxu0 %v768
        %6497 = vmatpush.msra.mxu0 %v760
        %6498 = vmatpush.msra.mxu0 %v752
        %6499 = vmatpush.msra.mxu0 %v744
        %6500 = vmatpush.msra.mxu0 %v736
        %6501 = vmatpush.msra.mxu0 %v728
        %6502 = vmatpush.msra.mxu0 %v720
        %6503 = vmatmul.f32.gmra.mxu0 %v6357
        %v6504 = vpop.f32.mrf.mxu0
        %v6505 = vadd.f32 0.0, %v6504
        %6506 = vdwg.mxu0
        %6507 = vmatpush.msra.mxu0 %v968
        %6508 = vmatpush.msra.mxu0 %v960
        %6509 = vmatpush.msra.mxu0 %v952
        %6510 = vmatpush.msra.mxu0 %v944
        %6511 = vmatpush.msra.mxu0 %v936
        %6512 = vmatpush.msra.mxu0 %v928
        %6513 = vmatpush.msra.mxu0 %v920
        %6514 = vmatpush.msra.mxu0 %v912
        %6515 = vmatpush.msra.mxu0 %v904
        %6516 = vmatpush.msra.mxu0 %v896
        %6517 = vmatpush.msra.mxu0 %v888
        %6518 = vmatpush.msra.mxu0 %v880
        %6519 = vmatpush.msra.mxu0 %v872
        %6520 = vmatpush.msra.mxu0 %v864
        %6521 = vmatpush.msra.mxu0 %v856
        %6522 = vmatpush.msra.mxu0 %v848
        %6523 = vmatmul.f32.gmra.mxu0 %v6358
        %v6524 = vpop.f32.mrf.mxu0
        %v6525 = vadd.f32 %v6505, %v6524
        %6526 = vdwg.mxu0
        %6527 = vmatpush.msra.mxu0 %v841
        %6528 = vmatpush.msra.mxu0 %v833
        %6529 = vmatpush.msra.mxu0 %v825
        %6530 = vmatpush.msra.mxu0 %v817
        %6531 = vmatpush.msra.mxu0 %v809
        %6532 = vmatpush.msra.mxu0 %v801
        %6533 = vmatpush.msra.mxu0 %v793
        %6534 = vmatpush.msra.mxu0 %v785
        %6535 = vmatpush.msra.mxu0 %v777
        %6536 = vmatpush.msra.mxu0 %v769
        %6537 = vmatpush.msra.mxu0 %v761
        %6538 = vmatpush.msra.mxu0 %v753
        %6539 = vmatpush.msra.mxu0 %v745
        %6540 = vmatpush.msra.mxu0 %v737
        %6541 = vmatpush.msra.mxu0 %v729
        %6542 = vmatpush.msra.mxu0 %v721
        %6543 = vmatmul.f32.gmra.mxu0 %v6357
        %v6544 = vpop.f32.mrf.mxu0
        %v6545 = vadd.f32 0.0, %v6544
        %6546 = vdwg.mxu0
        %6547 = vmatpush.msra.mxu0 %v969
        %6548 = vmatpush.msra.mxu0 %v961
        %6549 = vmatpush.msra.mxu0 %v953
        %6550 = vmatpush.msra.mxu0 %v945
        %6551 = vmatpush.msra.mxu0 %v937
        %6552 = vmatpush.msra.mxu0 %v929
        %6553 = vmatpush.msra.mxu0 %v921
        %6554 = vmatpush.msra.mxu0 %v913
        %6555 = vmatpush.msra.mxu0 %v905
        %6556 = vmatpush.msra.mxu0 %v897
        %6557 = vmatpush.msra.mxu0 %v889
        %6558 = vmatpush.msra.mxu0 %v881
        %6559 = vmatpush.msra.mxu0 %v873
        %6560 = vmatpush.msra.mxu0 %v865
        %6561 = vmatpush.msra.mxu0 %v857
        %6562 = vmatpush.msra.mxu0 %v849
        %6563 = vmatmul.f32.gmra.mxu0 %v6358
        %v6564 = vpop.f32.mrf.mxu0
        %v6565 = vadd.f32 %v6545, %v6564
        %6566 = vdwg.mxu0
        %6567 = vmatpush.msra.mxu0 %v842
        %6568 = vmatpush.msra.mxu0 %v834
        %6569 = vmatpush.msra.mxu0 %v826
        %6570 = vmatpush.msra.mxu0 %v818
        %6571 = vmatpush.msra.mxu0 %v810
        %6572 = vmatpush.msra.mxu0 %v802
        %6573 = vmatpush.msra.mxu0 %v794
        %6574 = vmatpush.msra.mxu0 %v786
        %6575 = vmatpush.msra.mxu0 %v778
        %6576 = vmatpush.msra.mxu0 %v770
        %6577 = vmatpush.msra.mxu0 %v762
        %6578 = vmatpush.msra.mxu0 %v754
        %6579 = vmatpush.msra.mxu0 %v746
        %6580 = vmatpush.msra.mxu0 %v738
        %6581 = vmatpush.msra.mxu0 %v730
        %6582 = vmatpush.msra.mxu0 %v722
        %6583 = vmatmul.f32.gmra.mxu0 %v6357
        %v6584 = vpop.f32.mrf.mxu0
        %v6585 = vadd.f32 0.0, %v6584
        %6586 = vdwg.mxu0
        %6587 = vmatpush.msra.mxu0 %v970
        %6588 = vmatpush.msra.mxu0 %v962
        %6589 = vmatpush.msra.mxu0 %v954
        %6590 = vmatpush.msra.mxu0 %v946
        %6591 = vmatpush.msra.mxu0 %v938
        %6592 = vmatpush.msra.mxu0 %v930
        %6593 = vmatpush.msra.mxu0 %v922
        %6594 = vmatpush.msra.mxu0 %v914
        %6595 = vmatpush.msra.mxu0 %v906
        %6596 = vmatpush.msra.mxu0 %v898
        %6597 = vmatpush.msra.mxu0 %v890
        %6598 = vmatpush.msra.mxu0 %v882
        %6599 = vmatpush.msra.mxu0 %v874
        %6600 = vmatpush.msra.mxu0 %v866
        %6601 = vmatpush.msra.mxu0 %v858
        %6602 = vmatpush.msra.mxu0 %v850
        %6603 = vmatmul.f32.gmra.mxu0 %v6358
        %v6604 = vpop.f32.mrf.mxu0
        %v6605 = vadd.f32 %v6585, %v6604
        %6606 = vdwg.mxu0
        %6607 = vmatpush.msra.mxu0 %v843
        %6608 = vmatpush.msra.mxu0 %v835
        %6609 = vmatpush.msra.mxu0 %v827
        %6610 = vmatpush.msra.mxu0 %v819
        %6611 = vmatpush.msra.mxu0 %v811
        %6612 = vmatpush.msra.mxu0 %v803
        %6613 = vmatpush.msra.mxu0 %v795
        %6614 = vmatpush.msra.mxu0 %v787
        %6615 = vmatpush.msra.mxu0 %v779
        %6616 = vmatpush.msra.mxu0 %v771
        %6617 = vmatpush.msra.mxu0 %v763
        %6618 = vmatpush.msra.mxu0 %v755
        %6619 = vmatpush.msra.mxu0 %v747
        %6620 = vmatpush.msra.mxu0 %v739
        %6621 = vmatpush.msra.mxu0 %v731
        %6622 = vmatpush.msra.mxu0 %v723
        %6623 = vmatmul.f32.gmra.mxu0 %v6357
        %v6624 = vpop.f32.mrf.mxu0
        %v6625 = vadd.f32 0.0, %v6624
        %6626 = vdwg.mxu0
        %6627 = vmatpush.msra.mxu0 %v971
        %6628 = vmatpush.msra.mxu0 %v963
        %6629 = vmatpush.msra.mxu0 %v955
        %6630 = vmatpush.msra.mxu0 %v947
        %6631 = vmatpush.msra.mxu0 %v939
        %6632 = vmatpush.msra.mxu0 %v931
        %6633 = vmatpush.msra.mxu0 %v923
        %6634 = vmatpush.msra.mxu0 %v915
        %6635 = vmatpush.msra.mxu0 %v907
        %6636 = vmatpush.msra.mxu0 %v899
        %6637 = vmatpush.msra.mxu0 %v891
        %6638 = vmatpush.msra.mxu0 %v883
        %6639 = vmatpush.msra.mxu0 %v875
        %6640 = vmatpush.msra.mxu0 %v867
        %6641 = vmatpush.msra.mxu0 %v859
        %6642 = vmatpush.msra.mxu0 %v851
        %6643 = vmatmul.f32.gmra.mxu0 %v6358
        %v6644 = vpop.f32.mrf.mxu0
        %v6645 = vadd.f32 %v6625, %v6644
        %6646 = vdwg.mxu0
        %6647 = vmatpush.msra.mxu0 %v844
        %6648 = vmatpush.msra.mxu0 %v836
        %6649 = vmatpush.msra.mxu0 %v828
        %6650 = vmatpush.msra.mxu0 %v820
        %6651 = vmatpush.msra.mxu0 %v812
        %6652 = vmatpush.msra.mxu0 %v804
        %6653 = vmatpush.msra.mxu0 %v796
        %6654 = vmatpush.msra.mxu0 %v788
        %6655 = vmatpush.msra.mxu0 %v780
        %6656 = vmatpush.msra.mxu0 %v772
        %6657 = vmatpush.msra.mxu0 %v764
        %6658 = vmatpush.msra.mxu0 %v756
        %6659 = vmatpush.msra.mxu0 %v748
        %6660 = vmatpush.msra.mxu0 %v740
        %6661 = vmatpush.msra.mxu0 %v732
        %6662 = vmatpush.msra.mxu0 %v724
        %6663 = vmatmul.f32.gmra.mxu0 %v6357
        %v6664 = vpop.f32.mrf.mxu0
        %v6665 = vadd.f32 0.0, %v6664
        %6666 = vdwg.mxu0
        %6667 = vmatpush.msra.mxu0 %v972
        %6668 = vmatpush.msra.mxu0 %v964
        %6669 = vmatpush.msra.mxu0 %v956
        %6670 = vmatpush.msra.mxu0 %v948
        %6671 = vmatpush.msra.mxu0 %v940
        %6672 = vmatpush.msra.mxu0 %v932
        %6673 = vmatpush.msra.mxu0 %v924
        %6674 = vmatpush.msra.mxu0 %v916
        %6675 = vmatpush.msra.mxu0 %v908
        %6676 = vmatpush.msra.mxu0 %v900
        %6677 = vmatpush.msra.mxu0 %v892
        %6678 = vmatpush.msra.mxu0 %v884
        %6679 = vmatpush.msra.mxu0 %v876
        %6680 = vmatpush.msra.mxu0 %v868
        %6681 = vmatpush.msra.mxu0 %v860
        %6682 = vmatpush.msra.mxu0 %v852
        %6683 = vmatmul.f32.gmra.mxu0 %v6358
        %v6684 = vpop.f32.mrf.mxu0
        %v6685 = vadd.f32 %v6665, %v6684
        %6686 = vdwg.mxu0
        %v6695 = vrot.slane %v6405, 7
        %v6696 = vrot.slane %v6445, 7
        %v6697 = vrot.slane %v6485, 7
        %v6698 = vrot.slane %v6525, 7
        %v6699 = vrot.slane %v6565, 7
        %v6700 = vrot.slane %v6605, 7
        %v6701 = vrot.slane %v6645, 7
        %v6702 = vrot.slane %v6685, 7
        %v6711 = vadd.f32 %v1784, %v6695
        %v6712 = vadd.f32 %v1807, %v6696
        %v6713 = vadd.f32 %v1830, %v6697
        %v6714 = vadd.f32 %v1853, %v6698
        %v6715 = vadd.f32 %v1876, %v6699
        %v6716 = vadd.f32 %v1899, %v6700
        %v6717 = vadd.f32 %v1922, %v6701
        %v6718 = vadd.f32 %v1945, %v6702
        %v6719 = vxor.u32 %v6711, 2147483648
        %v6720 = vxor.u32 %v6712, 2147483648
        %v6721 = vmul.f32 %v6719, 1.442695
        %v6722 = vpow.pop %v6721
        %v6723 = vmul.f32 %v6720, 1.442695
        %v6724 = vpow.pop %v6723
        %v6725 = vadd.f32 %v6722, 1.0
        %v6726 = vadd.f32 %v6724, 1.0
        %v6727 = vrcp.pop %v6725
        %v6728 = vmul.f32 %v6725, %v6727
        %v6729 = vsub.f32 1.0, %v6728
        %v6730 = vmul.f32 %v6727, %v6729
        %v6731 = vadd.f32 %v6727, %v6730
        %vm6732 = vweird.f32 %v6725
        %vm6733 = vweird.f32 %v6727
        %vm6734 = vmor %vm6732, %vm6733
        %v6735 = vsel %vm6734, %v6727, %v6731
        %v6736 = vand.u32 2147483647, %v6725
        %vm6737 = vcmp.eq.f32.partialorder %v6736, 8.507059e+37
        %v6738 = vand.u32 %v6725, 2147483648
        %v6739 = vor.u32 1.1754944e-38, %v6738
        %v6740 = vsel %vm6737, %v6739, %v6735
        %v6741 = vmul.f32 1.0, %v6740
        %v6742 = vrcp.pop %v6726
        %v6743 = vmul.f32 %v6726, %v6742
        %v6744 = vsub.f32 1.0, %v6743
        %v6745 = vmul.f32 %v6742, %v6744
        %v6746 = vadd.f32 %v6742, %v6745
        %vm6747 = vweird.f32 %v6726
        %vm6748 = vweird.f32 %v6742
        %vm6749 = vmor %vm6747, %vm6748
        %v6750 = vsel %vm6749, %v6742, %v6746
        %v6751 = vand.u32 2147483647, %v6726
        %vm6752 = vcmp.eq.f32.partialorder %v6751, 8.507059e+37
        %v6753 = vand.u32 %v6726, 2147483648
        %v6754 = vor.u32 1.1754944e-38, %v6753
        %v6755 = vsel %vm6752, %v6754, %v6750
        %v6756 = vmul.f32 1.0, %v6755
        %v6757 = vxor.u32 %v6713, 2147483648
        %v6758 = vxor.u32 %v6714, 2147483648
        %v6759 = vmul.f32 %v6757, 1.442695
        %v6760 = vpow.pop %v6759
        %v6761 = vmul.f32 %v6758, 1.442695
        %v6762 = vpow.pop %v6761
        %v6763 = vadd.f32 %v6760, 1.0
        %v6764 = vadd.f32 %v6762, 1.0
        %v6765 = vrcp.pop %v6763
        %v6766 = vmul.f32 %v6763, %v6765
        %v6767 = vsub.f32 1.0, %v6766
        %v6768 = vmul.f32 %v6765, %v6767
        %v6769 = vadd.f32 %v6765, %v6768
        %vm6770 = vweird.f32 %v6763
        %vm6771 = vweird.f32 %v6765
        %vm6772 = vmor %vm6770, %vm6771
        %v6773 = vsel %vm6772, %v6765, %v6769
        %v6774 = vand.u32 2147483647, %v6763
        %vm6775 = vcmp.eq.f32.partialorder %v6774, 8.507059e+37
        %v6776 = vand.u32 %v6763, 2147483648
        %v6777 = vor.u32 1.1754944e-38, %v6776
        %v6778 = vsel %vm6775, %v6777, %v6773
        %v6779 = vmul.f32 1.0, %v6778
        %v6780 = vrcp.pop %v6764
        %v6781 = vmul.f32 %v6764, %v6780
        %v6782 = vsub.f32 1.0, %v6781
        %v6783 = vmul.f32 %v6780, %v6782
        %v6784 = vadd.f32 %v6780, %v6783
        %vm6785 = vweird.f32 %v6764
        %vm6786 = vweird.f32 %v6780
        %vm6787 = vmor %vm6785, %vm6786
        %v6788 = vsel %vm6787, %v6780, %v6784
        %v6789 = vand.u32 2147483647, %v6764
        %vm6790 = vcmp.eq.f32.partialorder %v6789, 8.507059e+37
        %v6791 = vand.u32 %v6764, 2147483648
        %v6792 = vor.u32 1.1754944e-38, %v6791
        %v6793 = vsel %vm6790, %v6792, %v6788
        %v6794 = vmul.f32 1.0, %v6793
        %v6795 = vtanh.pop %v6715
        %v6796 = vtanh.pop %v6716
        %v6797 = vxor.u32 %v6717, 2147483648
        %v6798 = vxor.u32 %v6718, 2147483648
        %v6799 = vmul.f32 %v6797, 1.442695
        %v6800 = vpow.pop %v6799
        %v6801 = vmul.f32 %v6798, 1.442695
        %v6802 = vpow.pop %v6801
        %v6803 = vadd.f32 %v6800, 1.0
        %v6804 = vadd.f32 %v6802, 1.0
        %v6805 = vrcp.pop %v6803
        %v6806 = vmul.f32 %v6803, %v6805
        %v6807 = vsub.f32 1.0, %v6806
        %v6808 = vmul.f32 %v6805, %v6807
        %v6809 = vadd.f32 %v6805, %v6808
        %vm6810 = vweird.f32 %v6803
        %vm6811 = vweird.f32 %v6805
        %vm6812 = vmor %vm6810, %vm6811
        %v6813 = vsel %vm6812, %v6805, %v6809
        %v6814 = vand.u32 2147483647, %v6803
        %vm6815 = vcmp.eq.f32.partialorder %v6814, 8.507059e+37
        %v6816 = vand.u32 %v6803, 2147483648
        %v6817 = vor.u32 1.1754944e-38, %v6816
        %v6818 = vsel %vm6815, %v6817, %v6813
        %v6819 = vmul.f32 1.0, %v6818
        %v6820 = vrcp.pop %v6804
        %v6821 = vmul.f32 %v6804, %v6820
        %v6822 = vsub.f32 1.0, %v6821
        %v6823 = vmul.f32 %v6820, %v6822
        %v6824 = vadd.f32 %v6820, %v6823
        %vm6825 = vweird.f32 %v6804
        %vm6826 = vweird.f32 %v6820
        %vm6827 = vmor %vm6825, %vm6826
        %v6828 = vsel %vm6827, %v6820, %v6824
        %v6829 = vand.u32 2147483647, %v6804
        %vm6830 = vcmp.eq.f32.partialorder %v6829, 8.507059e+37
        %v6831 = vand.u32 %v6804, 2147483648
        %v6832 = vor.u32 1.1754944e-38, %v6831
        %v6833 = vsel %vm6830, %v6832, %v6828
        %v6834 = vmul.f32 1.0, %v6833
        %v6837 = vrot.slane %v6353, 7
        %v6838 = vrot.slane %v6354, 7
        %v6841 = vmul.f32 %v6779, %v6837
        %v6842 = vmul.f32 %v6794, %v6838
        %v6843 = vmul.f32 %v6741, %v6795
        %v6844 = vmul.f32 %v6756, %v6796
        %v6845 = vadd.f32 %v6841, %v6843
        %v6846 = vadd.f32 %v6842, %v6844
        %v6847 = vtanh.pop %v6845
        %v6848 = vtanh.pop %v6846
        %v6849 = vmul.f32 %v6819, %v6847
        %v6850 = vmul.f32 %v6834, %v6848
        %6853 = vst [vmem:[#allocation1] sm:$0xff] %v6849
        %6854 = vst [vmem:[#allocation1 + $0x9] sm:$0xff] %v6850
        %s6855 = scalar_lea.vmem [#allocation1], 1
        %v6856 = vld [vmem:[%s6855] ss:$9 sm:$0xff]
        %s6858 = scalar_lea.vmem [#allocation2], 17
        %6859 = vst.msk [vmem:[%s6858] ss:$8 sm:$0x3] %vm2410, %v6856
        %6860 = vst.msk [vmem:[%s6858] ss:$8 sm:$0x0] %vm2410, %v6856
        %v6861 = vld [vmem:[#allocation2] sm:$0xff]
        %v6862 = vld [vmem:[#allocation2 + $0x8] sm:$0xff]
        %v6863 = vld [vmem:[#allocation2 + $0x10] sm:$0x3]
        %v6864 = vld [vmem:[#allocation2 + $0x18] sm:$0x3]
        %v6866 = vperm.slane %v1166, 0
        %v6867 = vperm.slane %v1166, 1
        %v6868 = vperm.slane %v1166, 2
        %v6869 = vperm.slane %v1166, 3
        %6874 = vmatpush.msra.mxu0 %v1034
        %6875 = vmatpush.msra.mxu0 %v1030
        %6876 = vmatpush.msra.mxu0 %v1026
        %6877 = vmatpush.msra.mxu0 %v1022
        %6878 = vmatpush.msra.mxu0 %v1018
        %6879 = vmatpush.msra.mxu0 %v1014
        %6880 = vmatpush.msra.mxu0 %v1010
        %6881 = vmatpush.msra.mxu0 %v1006
        %6882 = vmatpush.msra.mxu0 %v1002
        %6883 = vmatpush.msra.mxu0 %v998
        %6884 = vmatpush.msra.mxu0 %v994
        %6885 = vmatpush.msra.mxu0 %v990
        %6886 = vmatpush.msra.mxu0 %v986
        %6887 = vmatpush.msra.mxu0 %v982
        %6888 = vmatpush.msra.mxu0 %v978
        %6889 = vmatpush.msra.mxu0 %v974
        %6890 = vmatmul.f32.gmra.mxu0 %v6861
        %v6891 = vpop.f32.mrf.mxu0
        %v6892 = vadd.f32 %v6866, %v6891
        %6893 = vmatmul.f32.gmra.mxu0 %v6863
        %v6894 = vpop.f32.mrf.mxu0
        %v6895 = vadd.f32 %v6866, %v6894
        %6896 = vdwg.mxu0
        %6897 = vmatpush.msra.mxu0 %v1098
        %6898 = vmatpush.msra.mxu0 %v1094
        %6899 = vmatpush.msra.mxu0 %v1090
        %6900 = vmatpush.msra.mxu0 %v1086
        %6901 = vmatpush.msra.mxu0 %v1082
        %6902 = vmatpush.msra.mxu0 %v1078
        %6903 = vmatpush.msra.mxu0 %v1074
        %6904 = vmatpush.msra.mxu0 %v1070
        %6905 = vmatpush.msra.mxu0 %v1066
        %6906 = vmatpush.msra.mxu0 %v1062
        %6907 = vmatpush.msra.mxu0 %v1058
        %6908 = vmatpush.msra.mxu0 %v1054
        %6909 = vmatpush.msra.mxu0 %v1050
        %6910 = vmatpush.msra.mxu0 %v1046
        %6911 = vmatpush.msra.mxu0 %v1042
        %6912 = vmatpush.msra.mxu0 %v1038
        %6913 = vmatmul.f32.gmra.mxu0 %v6862
        %v6914 = vpop.f32.mrf.mxu0
        %v6915 = vadd.f32 %v6892, %v6914
        %6916 = vmatmul.f32.gmra.mxu0 %v6864
        %v6917 = vpop.f32.mrf.mxu0
        %v6918 = vadd.f32 %v6895, %v6917
        %6919 = vdwg.mxu0
        %6920 = vmatpush.msra.mxu0 %v1035
        %6921 = vmatpush.msra.mxu0 %v1031
        %6922 = vmatpush.msra.mxu0 %v1027
        %6923 = vmatpush.msra.mxu0 %v1023
        %6924 = vmatpush.msra.mxu0 %v1019
        %6925 = vmatpush.msra.mxu0 %v1015
        %6926 = vmatpush.msra.mxu0 %v1011
        %6927 = vmatpush.msra.mxu0 %v1007
        %6928 = vmatpush.msra.mxu0 %v1003
        %6929 = vmatpush.msra.mxu0 %v999
        %6930 = vmatpush.msra.mxu0 %v995
        %6931 = vmatpush.msra.mxu0 %v991
        %6932 = vmatpush.msra.mxu0 %v987
        %6933 = vmatpush.msra.mxu0 %v983
        %6934 = vmatpush.msra.mxu0 %v979
        %6935 = vmatpush.msra.mxu0 %v975
        %6936 = vmatmul.f32.gmra.mxu0 %v6861
        %v6937 = vpop.f32.mrf.mxu0
        %v6938 = vadd.f32 %v6867, %v6937
        %6939 = vmatmul.f32.gmra.mxu0 %v6863
        %v6940 = vpop.f32.mrf.mxu0
        %v6941 = vadd.f32 %v6867, %v6940
        %6942 = vdwg.mxu0
        %6943 = vmatpush.msra.mxu0 %v1099
        %6944 = vmatpush.msra.mxu0 %v1095
        %6945 = vmatpush.msra.mxu0 %v1091
        %6946 = vmatpush.msra.mxu0 %v1087
        %6947 = vmatpush.msra.mxu0 %v1083
        %6948 = vmatpush.msra.mxu0 %v1079
        %6949 = vmatpush.msra.mxu0 %v1075
        %6950 = vmatpush.msra.mxu0 %v1071
        %6951 = vmatpush.msra.mxu0 %v1067
        %6952 = vmatpush.msra.mxu0 %v1063
        %6953 = vmatpush.msra.mxu0 %v1059
        %6954 = vmatpush.msra.mxu0 %v1055
        %6955 = vmatpush.msra.mxu0 %v1051
        %6956 = vmatpush.msra.mxu0 %v1047
        %6957 = vmatpush.msra.mxu0 %v1043
        %6958 = vmatpush.msra.mxu0 %v1039
        %6959 = vmatmul.f32.gmra.mxu0 %v6862
        %v6960 = vpop.f32.mrf.mxu0
        %v6961 = vadd.f32 %v6938, %v6960
        %6962 = vmatmul.f32.gmra.mxu0 %v6864
        %v6963 = vpop.f32.mrf.mxu0
        %v6964 = vadd.f32 %v6941, %v6963
        %6965 = vdwg.mxu0
        %6966 = vmatpush.msra.mxu0 %v1036
        %6967 = vmatpush.msra.mxu0 %v1032
        %6968 = vmatpush.msra.mxu0 %v1028
        %6969 = vmatpush.msra.mxu0 %v1024
        %6970 = vmatpush.msra.mxu0 %v1020
        %6971 = vmatpush.msra.mxu0 %v1016
        %6972 = vmatpush.msra.mxu0 %v1012
        %6973 = vmatpush.msra.mxu0 %v1008
        %6974 = vmatpush.msra.mxu0 %v1004
        %6975 = vmatpush.msra.mxu0 %v1000
        %6976 = vmatpush.msra.mxu0 %v996
        %6977 = vmatpush.msra.mxu0 %v992
        %6978 = vmatpush.msra.mxu0 %v988
        %6979 = vmatpush.msra.mxu0 %v984
        %6980 = vmatpush.msra.mxu0 %v980
        %6981 = vmatpush.msra.mxu0 %v976
        %6982 = vmatmul.f32.gmra.mxu0 %v6861
        %v6983 = vpop.f32.mrf.mxu0
        %v6984 = vadd.f32 %v6868, %v6983
        %6985 = vmatmul.f32.gmra.mxu0 %v6863
        %v6986 = vpop.f32.mrf.mxu0
        %v6987 = vadd.f32 %v6868, %v6986
        %6988 = vdwg.mxu0
        %6989 = vmatpush.msra.mxu0 %v1100
        %6990 = vmatpush.msra.mxu0 %v1096
        %6991 = vmatpush.msra.mxu0 %v1092
        %6992 = vmatpush.msra.mxu0 %v1088
        %6993 = vmatpush.msra.mxu0 %v1084
        %6994 = vmatpush.msra.mxu0 %v1080
        %6995 = vmatpush.msra.mxu0 %v1076
        %6996 = vmatpush.msra.mxu0 %v1072
        %6997 = vmatpush.msra.mxu0 %v1068
        %6998 = vmatpush.msra.mxu0 %v1064
        %6999 = vmatpush.msra.mxu0 %v1060
        %7000 = vmatpush.msra.mxu0 %v1056
        %7001 = vmatpush.msra.mxu0 %v1052
        %7002 = vmatpush.msra.mxu0 %v1048
        %7003 = vmatpush.msra.mxu0 %v1044
        %7004 = vmatpush.msra.mxu0 %v1040
        %7005 = vmatmul.f32.gmra.mxu0 %v6862
        %v7006 = vpop.f32.mrf.mxu0
        %v7007 = vadd.f32 %v6984, %v7006
        %7008 = vmatmul.f32.gmra.mxu0 %v6864
        %v7009 = vpop.f32.mrf.mxu0
        %v7010 = vadd.f32 %v6987, %v7009
        %7011 = vdwg.mxu0
        %7012 = vmatpush.msra.mxu0 %v1037
        %7013 = vmatpush.msra.mxu0 %v1033
        %7014 = vmatpush.msra.mxu0 %v1029
        %7015 = vmatpush.msra.mxu0 %v1025
        %7016 = vmatpush.msra.mxu0 %v1021
        %7017 = vmatpush.msra.mxu0 %v1017
        %7018 = vmatpush.msra.mxu0 %v1013
        %7019 = vmatpush.msra.mxu0 %v1009
        %7020 = vmatpush.msra.mxu0 %v1005
        %7021 = vmatpush.msra.mxu0 %v1001
        %7022 = vmatpush.msra.mxu0 %v997
        %7023 = vmatpush.msra.mxu0 %v993
        %7024 = vmatpush.msra.mxu0 %v989
        %7025 = vmatpush.msra.mxu0 %v985
        %7026 = vmatpush.msra.mxu0 %v981
        %7027 = vmatpush.msra.mxu0 %v977
        %7028 = vmatmul.f32.gmra.mxu0 %v6861
        %v7029 = vpop.f32.mrf.mxu0
        %v7030 = vadd.f32 %v6869, %v7029
        %7031 = vmatmul.f32.gmra.mxu0 %v6863
        %v7032 = vpop.f32.mrf.mxu0
        %v7033 = vadd.f32 %v6869, %v7032
        %7034 = vdwg.mxu0
        %7035 = vmatpush.msra.mxu0 %v1101
        %7036 = vmatpush.msra.mxu0 %v1097
        %7037 = vmatpush.msra.mxu0 %v1093
        %7038 = vmatpush.msra.mxu0 %v1089
        %7039 = vmatpush.msra.mxu0 %v1085
        %7040 = vmatpush.msra.mxu0 %v1081
        %7041 = vmatpush.msra.mxu0 %v1077
        %7042 = vmatpush.msra.mxu0 %v1073
        %7043 = vmatpush.msra.mxu0 %v1069
        %7044 = vmatpush.msra.mxu0 %v1065
        %7045 = vmatpush.msra.mxu0 %v1061
        %7046 = vmatpush.msra.mxu0 %v1057
        %7047 = vmatpush.msra.mxu0 %v1053
        %7048 = vmatpush.msra.mxu0 %v1049
        %7049 = vmatpush.msra.mxu0 %v1045
        %7050 = vmatpush.msra.mxu0 %v1041
        %7051 = vmatmul.f32.gmra.mxu0 %v6862
        %v7052 = vpop.f32.mrf.mxu0
        %v7053 = vadd.f32 %v7030, %v7052
        %7054 = vmatmul.f32.gmra.mxu0 %v6864
        %v7055 = vpop.f32.mrf.mxu0
        %v7056 = vadd.f32 %v7033, %v7055
        %7057 = vdwg.mxu0
        %7058 = vmatpush.msra.mxu0 %v1162
        %7059 = vmatpush.msra.mxu0 %v1158
        %7060 = vmatpush.msra.mxu0 %v1154
        %7061 = vmatpush.msra.mxu0 %v1150
        %7062 = vmatpush.msra.mxu0 %v1146
        %7063 = vmatpush.msra.mxu0 %v1142
        %7064 = vmatpush.msra.mxu0 %v1138
        %7065 = vmatpush.msra.mxu0 %v1134
        %7066 = vmatpush.msra.mxu0 %v1130
        %7067 = vmatpush.msra.mxu0 %v1126
        %7068 = vmatpush.msra.mxu0 %v1122
        %7069 = vmatpush.msra.mxu0 %v1118
        %7070 = vmatpush.msra.mxu0 %v1114
        %7071 = vmatpush.msra.mxu0 %v1110
        %7072 = vmatpush.msra.mxu0 %v1106
        %7073 = vmatpush.msra.mxu0 %v1102
        %7074 = vmatmul.f32.gmra.mxu0 0.0
        %v7075 = vpop.f32.mrf.mxu0
        %v7076 = vadd.f32 0.0, %v7075
        %7077 = vdwg.mxu0
        %7078 = vmatpush.msra.mxu0 %v1163
        %7079 = vmatpush.msra.mxu0 %v1159
        %7080 = vmatpush.msra.mxu0 %v1155
        %7081 = vmatpush.msra.mxu0 %v1151
        %7082 = vmatpush.msra.mxu0 %v1147
        %7083 = vmatpush.msra.mxu0 %v1143
        %7084 = vmatpush.msra.mxu0 %v1139
        %7085 = vmatpush.msra.mxu0 %v1135
        %7086 = vmatpush.msra.mxu0 %v1131
        %7087 = vmatpush.msra.mxu0 %v1127
        %7088 = vmatpush.msra.mxu0 %v1123
        %7089 = vmatpush.msra.mxu0 %v1119
        %7090 = vmatpush.msra.mxu0 %v1115
        %7091 = vmatpush.msra.mxu0 %v1111
        %7092 = vmatpush.msra.mxu0 %v1107
        %7093 = vmatpush.msra.mxu0 %v1103
        %7094 = vmatmul.f32.gmra.mxu0 0.0
        %v7095 = vpop.f32.mrf.mxu0
        %v7096 = vadd.f32 0.0, %v7095
        %7097 = vdwg.mxu0
        %7098 = vmatpush.msra.mxu0 %v1164
        %7099 = vmatpush.msra.mxu0 %v1160
        %7100 = vmatpush.msra.mxu0 %v1156
        %7101 = vmatpush.msra.mxu0 %v1152
        %7102 = vmatpush.msra.mxu0 %v1148
        %7103 = vmatpush.msra.mxu0 %v1144
        %7104 = vmatpush.msra.mxu0 %v1140
        %7105 = vmatpush.msra.mxu0 %v1136
        %7106 = vmatpush.msra.mxu0 %v1132
        %7107 = vmatpush.msra.mxu0 %v1128
        %7108 = vmatpush.msra.mxu0 %v1124
        %7109 = vmatpush.msra.mxu0 %v1120
        %7110 = vmatpush.msra.mxu0 %v1116
        %7111 = vmatpush.msra.mxu0 %v1112
        %7112 = vmatpush.msra.mxu0 %v1108
        %7113 = vmatpush.msra.mxu0 %v1104
        %7114 = vmatmul.f32.gmra.mxu0 0.0
        %v7115 = vpop.f32.mrf.mxu0
        %v7116 = vadd.f32 0.0, %v7115
        %7117 = vdwg.mxu0
        %7118 = vmatpush.msra.mxu0 %v1165
        %7119 = vmatpush.msra.mxu0 %v1161
        %7120 = vmatpush.msra.mxu0 %v1157
        %7121 = vmatpush.msra.mxu0 %v1153
        %7122 = vmatpush.msra.mxu0 %v1149
        %7123 = vmatpush.msra.mxu0 %v1145
        %7124 = vmatpush.msra.mxu0 %v1141
        %7125 = vmatpush.msra.mxu0 %v1137
        %7126 = vmatpush.msra.mxu0 %v1133
        %7127 = vmatpush.msra.mxu0 %v1129
        %7128 = vmatpush.msra.mxu0 %v1125
        %7129 = vmatpush.msra.mxu0 %v1121
        %7130 = vmatpush.msra.mxu0 %v1117
        %7131 = vmatpush.msra.mxu0 %v1113
        %7132 = vmatpush.msra.mxu0 %v1109
        %7133 = vmatpush.msra.mxu0 %v1105
        %7134 = vmatmul.f32.gmra.mxu0 0.0
        %v7135 = vpop.f32.mrf.mxu0
        %v7136 = vadd.f32 0.0, %v7135
        %7137 = vdwg.mxu0
        %v7138 = vadd.f32 %v6915, %v7076
        %v7139 = vadd.f32 %v6961, %v7096
        %v7140 = vadd.f32 %v7007, %v7116
        %v7141 = vadd.f32 %v7053, %v7136
        %v7142 = vxor.u32 %v7138, 2147483648
        %v7143 = vmul.f32 %v7142, 1.442695
        %v7144 = vpow.pop %v7143
        %v7145 = vadd.f32 %v7144, 1.0
        %v7146 = vrcp.pop %v7145
        %v7147 = vmul.f32 %v7145, %v7146
        %v7148 = vsub.f32 1.0, %v7147
        %v7149 = vmul.f32 %v7146, %v7148
        %v7150 = vadd.f32 %v7146, %v7149
        %vm7151 = vweird.f32 %v7145
        %vm7152 = vweird.f32 %v7146
        %vm7153 = vmor %vm7151, %vm7152
        %v7154 = vsel %vm7153, %v7146, %v7150
        %v7155 = vand.u32 2147483647, %v7145
        %vm7156 = vcmp.eq.f32.partialorder %v7155, 8.507059e+37
        %v7157 = vand.u32 %v7145, 2147483648
        %v7158 = vor.u32 1.1754944e-38, %v7157
        %v7159 = vsel %vm7156, %v7158, %v7154
        %v7160 = vmul.f32 1.0, %v7159
        %v7161 = vxor.u32 %v7139, 2147483648
        %v7162 = vmul.f32 %v7161, 1.442695
        %v7163 = vpow.pop %v7162
        %v7164 = vadd.f32 %v7163, 1.0
        %v7165 = vrcp.pop %v7164
        %v7166 = vmul.f32 %v7164, %v7165
        %v7167 = vsub.f32 1.0, %v7166
        %v7168 = vmul.f32 %v7165, %v7167
        %v7169 = vadd.f32 %v7165, %v7168
        %vm7170 = vweird.f32 %v7164
        %vm7171 = vweird.f32 %v7165
        %vm7172 = vmor %vm7170, %vm7171
        %v7173 = vsel %vm7172, %v7165, %v7169
        %v7174 = vand.u32 2147483647, %v7164
        %vm7175 = vcmp.eq.f32.partialorder %v7174, 8.507059e+37
        %v7176 = vand.u32 %v7164, 2147483648
        %v7177 = vor.u32 1.1754944e-38, %v7176
        %v7178 = vsel %vm7175, %v7177, %v7173
        %v7179 = vmul.f32 1.0, %v7178
        %v7180 = vtanh.pop %v7140
        %v7181 = vxor.u32 %v7141, 2147483648
        %v7182 = vmul.f32 %v7181, 1.442695
        %v7183 = vpow.pop %v7182
        %v7184 = vadd.f32 %v7183, 1.0
        %v7185 = vrcp.pop %v7184
        %v7186 = vmul.f32 %v7184, %v7185
        %v7187 = vsub.f32 1.0, %v7186
        %v7188 = vmul.f32 %v7185, %v7187
        %v7189 = vadd.f32 %v7185, %v7188
        %vm7190 = vweird.f32 %v7184
        %vm7191 = vweird.f32 %v7185
        %vm7192 = vmor %vm7190, %vm7191
        %v7193 = vsel %vm7192, %v7185, %v7189
        %v7194 = vand.u32 2147483647, %v7184
        %vm7195 = vcmp.eq.f32.partialorder %v7194, 8.507059e+37
        %v7196 = vand.u32 %v7184, 2147483648
        %v7197 = vor.u32 1.1754944e-38, %v7196
        %v7198 = vsel %vm7195, %v7197, %v7193
        %v7199 = vmul.f32 1.0, %v7198
        %v7200 = vmul.f32 %v7179, 0.0
        %v7201 = vmul.f32 %v7160, %v7180
        %v7202 = vadd.f32 %v7200, %v7201
        %v7203 = vtanh.pop %v7202
        %v7204 = vmul.f32 %v7199, %v7203
        %7205 = vst [vmem:[#allocation3] sm:$0x1] %v7204
        %7206 = vmatpush.msra.mxu0 %v1162
        %7207 = vmatpush.msra.mxu0 %v1158
        %7208 = vmatpush.msra.mxu0 %v1154
        %7209 = vmatpush.msra.mxu0 %v1150
        %7210 = vmatpush.msra.mxu0 %v1146
        %7211 = vmatpush.msra.mxu0 %v1142
        %7212 = vmatpush.msra.mxu0 %v1138
        %7213 = vmatpush.msra.mxu0 %v1134
        %7214 = vmatpush.msra.mxu0 %v1130
        %7215 = vmatpush.msra.mxu0 %v1126
        %7216 = vmatpush.msra.mxu0 %v1122
        %7217 = vmatpush.msra.mxu0 %v1118
        %7218 = vmatpush.msra.mxu0 %v1114
        %7219 = vmatpush.msra.mxu0 %v1110
        %7220 = vmatpush.msra.mxu0 %v1106
        %7221 = vmatpush.msra.mxu0 %v1102
        %7222 = vmatmul.f32.gmra.mxu0 %v7204
        %v7223 = vpop.f32.mrf.mxu0
        %v7224 = vadd.f32 0.0, %v7223
        %7225 = vdwg.mxu0
        %7226 = vmatpush.msra.mxu0 %v1163
        %7227 = vmatpush.msra.mxu0 %v1159
        %7228 = vmatpush.msra.mxu0 %v1155
        %7229 = vmatpush.msra.mxu0 %v1151
        %7230 = vmatpush.msra.mxu0 %v1147
        %7231 = vmatpush.msra.mxu0 %v1143
        %7232 = vmatpush.msra.mxu0 %v1139
        %7233 = vmatpush.msra.mxu0 %v1135
        %7234 = vmatpush.msra.mxu0 %v1131
        %7235 = vmatpush.msra.mxu0 %v1127
        %7236 = vmatpush.msra.mxu0 %v1123
        %7237 = vmatpush.msra.mxu0 %v1119
        %7238 = vmatpush.msra.mxu0 %v1115
        %7239 = vmatpush.msra.mxu0 %v1111
        %7240 = vmatpush.msra.mxu0 %v1107
        %7241 = vmatpush.msra.mxu0 %v1103
        %7242 = vmatmul.f32.gmra.mxu0 %v7204
        %v7243 = vpop.f32.mrf.mxu0
        %v7244 = vadd.f32 0.0, %v7243
        %7245 = vdwg.mxu0
        %7246 = vmatpush.msra.mxu0 %v1164
        %7247 = vmatpush.msra.mxu0 %v1160
        %7248 = vmatpush.msra.mxu0 %v1156
        %7249 = vmatpush.msra.mxu0 %v1152
        %7250 = vmatpush.msra.mxu0 %v1148
        %7251 = vmatpush.msra.mxu0 %v1144
        %7252 = vmatpush.msra.mxu0 %v1140
        %7253 = vmatpush.msra.mxu0 %v1136
        %7254 = vmatpush.msra.mxu0 %v1132
        %7255 = vmatpush.msra.mxu0 %v1128
        %7256 = vmatpush.msra.mxu0 %v1124
        %7257 = vmatpush.msra.mxu0 %v1120
        %7258 = vmatpush.msra.mxu0 %v1116
        %7259 = vmatpush.msra.mxu0 %v1112
        %7260 = vmatpush.msra.mxu0 %v1108
        %7261 = vmatpush.msra.mxu0 %v1104
        %7262 = vmatmul.f32.gmra.mxu0 %v7204
        %v7263 = vpop.f32.mrf.mxu0
        %v7264 = vadd.f32 0.0, %v7263
        %7265 = vdwg.mxu0
        %7266 = vmatpush.msra.mxu0 %v1165
        %7267 = vmatpush.msra.mxu0 %v1161
        %7268 = vmatpush.msra.mxu0 %v1157
        %7269 = vmatpush.msra.mxu0 %v1153
        %7270 = vmatpush.msra.mxu0 %v1149
        %7271 = vmatpush.msra.mxu0 %v1145
        %7272 = vmatpush.msra.mxu0 %v1141
        %7273 = vmatpush.msra.mxu0 %v1137
        %7274 = vmatpush.msra.mxu0 %v1133
        %7275 = vmatpush.msra.mxu0 %v1129
        %7276 = vmatpush.msra.mxu0 %v1125
        %7277 = vmatpush.msra.mxu0 %v1121
        %7278 = vmatpush.msra.mxu0 %v1117
        %7279 = vmatpush.msra.mxu0 %v1113
        %7280 = vmatpush.msra.mxu0 %v1109
        %7281 = vmatpush.msra.mxu0 %v1105
        %7282 = vmatmul.f32.gmra.mxu0 %v7204
        %v7283 = vpop.f32.mrf.mxu0
        %v7284 = vadd.f32 0.0, %v7283
        %7285 = vdwg.mxu0
        %v7290 = vrot.slane %v7224, 7
        %v7291 = vrot.slane %v7244, 7
        %v7292 = vrot.slane %v7264, 7
        %v7293 = vrot.slane %v7284, 7
        %v7298 = vadd.f32 %v6915, %v7290
        %v7299 = vadd.f32 %v6961, %v7291
        %v7300 = vadd.f32 %v7007, %v7292
        %v7301 = vadd.f32 %v7053, %v7293
        %v7302 = vxor.u32 %v7298, 2147483648
        %v7303 = vmul.f32 %v7302, 1.442695
        %v7304 = vpow.pop %v7303
        %v7305 = vadd.f32 %v7304, 1.0
        %v7306 = vrcp.pop %v7305
        %v7307 = vmul.f32 %v7305, %v7306
        %v7308 = vsub.f32 1.0, %v7307
        %v7309 = vmul.f32 %v7306, %v7308
        %v7310 = vadd.f32 %v7306, %v7309
        %vm7311 = vweird.f32 %v7305
        %vm7312 = vweird.f32 %v7306
        %vm7313 = vmor %vm7311, %vm7312
        %v7314 = vsel %vm7313, %v7306, %v7310
        %v7315 = vand.u32 2147483647, %v7305
        %vm7316 = vcmp.eq.f32.partialorder %v7315, 8.507059e+37
        %v7317 = vand.u32 %v7305, 2147483648
        %v7318 = vor.u32 1.1754944e-38, %v7317
        %v7319 = vsel %vm7316, %v7318, %v7314
        %v7320 = vmul.f32 1.0, %v7319
        %v7321 = vxor.u32 %v7299, 2147483648
        %v7322 = vmul.f32 %v7321, 1.442695
        %v7323 = vpow.pop %v7322
        %v7324 = vadd.f32 %v7323, 1.0
        %v7325 = vrcp.pop %v7324
        %v7326 = vmul.f32 %v7324, %v7325
        %v7327 = vsub.f32 1.0, %v7326
        %v7328 = vmul.f32 %v7325, %v7327
        %v7329 = vadd.f32 %v7325, %v7328
        %vm7330 = vweird.f32 %v7324
        %vm7331 = vweird.f32 %v7325
        %vm7332 = vmor %vm7330, %vm7331
        %v7333 = vsel %vm7332, %v7325, %v7329
        %v7334 = vand.u32 2147483647, %v7324
        %vm7335 = vcmp.eq.f32.partialorder %v7334, 8.507059e+37
        %v7336 = vand.u32 %v7324, 2147483648
        %v7337 = vor.u32 1.1754944e-38, %v7336
        %v7338 = vsel %vm7335, %v7337, %v7333
        %v7339 = vmul.f32 1.0, %v7338
        %v7340 = vtanh.pop %v7300
        %v7341 = vxor.u32 %v7301, 2147483648
        %v7342 = vmul.f32 %v7341, 1.442695
        %v7343 = vpow.pop %v7342
        %v7344 = vadd.f32 %v7343, 1.0
        %v7345 = vrcp.pop %v7344
        %v7346 = vmul.f32 %v7344, %v7345
        %v7347 = vsub.f32 1.0, %v7346
        %v7348 = vmul.f32 %v7345, %v7347
        %v7349 = vadd.f32 %v7345, %v7348
        %vm7350 = vweird.f32 %v7344
        %vm7351 = vweird.f32 %v7345
        %vm7352 = vmor %vm7350, %vm7351
        %v7353 = vsel %vm7352, %v7345, %v7349
        %v7354 = vand.u32 2147483647, %v7344
        %vm7355 = vcmp.eq.f32.partialorder %v7354, 8.507059e+37
        %v7356 = vand.u32 %v7344, 2147483648
        %v7357 = vor.u32 1.1754944e-38, %v7356
        %v7358 = vsel %vm7355, %v7357, %v7353
        %v7359 = vmul.f32 1.0, %v7358
        %v7361 = vrot.slane %v7202, 7
        %v7363 = vmul.f32 %v7339, %v7361
        %v7364 = vmul.f32 %v7320, %v7340
        %v7365 = vadd.f32 %v7363, %v7364
        %v7366 = vtanh.pop %v7365
        %v7367 = vmul.f32 %v7359, %v7366
        %7368 = vst [vmem:[#allocation3] sm:$0x2] %v7367
        %v7370 = vrot.slane %v7367, 1
        %7372 = vmatpush.msra.mxu0 %v1162
        %7373 = vmatpush.msra.mxu0 %v1158
        %7374 = vmatpush.msra.mxu0 %v1154
        %7375 = vmatpush.msra.mxu0 %v1150
        %7376 = vmatpush.msra.mxu0 %v1146
        %7377 = vmatpush.msra.mxu0 %v1142
        %7378 = vmatpush.msra.mxu0 %v1138
        %7379 = vmatpush.msra.mxu0 %v1134
        %7380 = vmatpush.msra.mxu0 %v1130
        %7381 = vmatpush.msra.mxu0 %v1126
        %7382 = vmatpush.msra.mxu0 %v1122
        %7383 = vmatpush.msra.mxu0 %v1118
        %7384 = vmatpush.msra.mxu0 %v1114
        %7385 = vmatpush.msra.mxu0 %v1110
        %7386 = vmatpush.msra.mxu0 %v1106
        %7387 = vmatpush.msra.mxu0 %v1102
        %7388 = vmatmul.f32.gmra.mxu0 %v7370
        %v7389 = vpop.f32.mrf.mxu0
        %v7390 = vadd.f32 0.0, %v7389
        %7391 = vdwg.mxu0
        %7392 = vmatpush.msra.mxu0 %v1163
        %7393 = vmatpush.msra.mxu0 %v1159
        %7394 = vmatpush.msra.mxu0 %v1155
        %7395 = vmatpush.msra.mxu0 %v1151
        %7396 = vmatpush.msra.mxu0 %v1147
        %7397 = vmatpush.msra.mxu0 %v1143
        %7398 = vmatpush.msra.mxu0 %v1139
        %7399 = vmatpush.msra.mxu0 %v1135
        %7400 = vmatpush.msra.mxu0 %v1131
        %7401 = vmatpush.msra.mxu0 %v1127
        %7402 = vmatpush.msra.mxu0 %v1123
        %7403 = vmatpush.msra.mxu0 %v1119
        %7404 = vmatpush.msra.mxu0 %v1115
        %7405 = vmatpush.msra.mxu0 %v1111
        %7406 = vmatpush.msra.mxu0 %v1107
        %7407 = vmatpush.msra.mxu0 %v1103
        %7408 = vmatmul.f32.gmra.mxu0 %v7370
        %v7409 = vpop.f32.mrf.mxu0
        %v7410 = vadd.f32 0.0, %v7409
        %7411 = vdwg.mxu0
        %7412 = vmatpush.msra.mxu0 %v1164
        %7413 = vmatpush.msra.mxu0 %v1160
        %7414 = vmatpush.msra.mxu0 %v1156
        %7415 = vmatpush.msra.mxu0 %v1152
        %7416 = vmatpush.msra.mxu0 %v1148
        %7417 = vmatpush.msra.mxu0 %v1144
        %7418 = vmatpush.msra.mxu0 %v1140
        %7419 = vmatpush.msra.mxu0 %v1136
        %7420 = vmatpush.msra.mxu0 %v1132
        %7421 = vmatpush.msra.mxu0 %v1128
        %7422 = vmatpush.msra.mxu0 %v1124
        %7423 = vmatpush.msra.mxu0 %v1120
        %7424 = vmatpush.msra.mxu0 %v1116
        %7425 = vmatpush.msra.mxu0 %v1112
        %7426 = vmatpush.msra.mxu0 %v1108
        %7427 = vmatpush.msra.mxu0 %v1104
        %7428 = vmatmul.f32.gmra.mxu0 %v7370
        %v7429 = vpop.f32.mrf.mxu0
        %v7430 = vadd.f32 0.0, %v7429
        %7431 = vdwg.mxu0
        %7432 = vmatpush.msra.mxu0 %v1165
        %7433 = vmatpush.msra.mxu0 %v1161
        %7434 = vmatpush.msra.mxu0 %v1157
        %7435 = vmatpush.msra.mxu0 %v1153
        %7436 = vmatpush.msra.mxu0 %v1149
        %7437 = vmatpush.msra.mxu0 %v1145
        %7438 = vmatpush.msra.mxu0 %v1141
        %7439 = vmatpush.msra.mxu0 %v1137
        %7440 = vmatpush.msra.mxu0 %v1133
        %7441 = vmatpush.msra.mxu0 %v1129
        %7442 = vmatpush.msra.mxu0 %v1125
        %7443 = vmatpush.msra.mxu0 %v1121
        %7444 = vmatpush.msra.mxu0 %v1117
        %7445 = vmatpush.msra.mxu0 %v1113
        %7446 = vmatpush.msra.mxu0 %v1109
        %7447 = vmatpush.msra.mxu0 %v1105
        %7448 = vmatmul.f32.gmra.mxu0 %v7370
        %v7449 = vpop.f32.mrf.mxu0
        %v7450 = vadd.f32 0.0, %v7449
        %7451 = vdwg.mxu0
        %v7456 = vrot.slane %v7390, 6
        %v7457 = vrot.slane %v7410, 6
        %v7458 = vrot.slane %v7430, 6
        %v7459 = vrot.slane %v7450, 6
        %v7464 = vadd.f32 %v6915, %v7456
        %v7465 = vadd.f32 %v6961, %v7457
        %v7466 = vadd.f32 %v7007, %v7458
        %v7467 = vadd.f32 %v7053, %v7459
        %v7468 = vxor.u32 %v7464, 2147483648
        %v7469 = vmul.f32 %v7468, 1.442695
        %v7470 = vpow.pop %v7469
        %v7471 = vadd.f32 %v7470, 1.0
        %v7472 = vrcp.pop %v7471
        %v7473 = vmul.f32 %v7471, %v7472
        %v7474 = vsub.f32 1.0, %v7473
        %v7475 = vmul.f32 %v7472, %v7474
        %v7476 = vadd.f32 %v7472, %v7475
        %vm7477 = vweird.f32 %v7471
        %vm7478 = vweird.f32 %v7472
        %vm7479 = vmor %vm7477, %vm7478
        %v7480 = vsel %vm7479, %v7472, %v7476
        %v7481 = vand.u32 2147483647, %v7471
        %vm7482 = vcmp.eq.f32.partialorder %v7481, 8.507059e+37
        %v7483 = vand.u32 %v7471, 2147483648
        %v7484 = vor.u32 1.1754944e-38, %v7483
        %v7485 = vsel %vm7482, %v7484, %v7480
        %v7486 = vmul.f32 1.0, %v7485
        %v7487 = vxor.u32 %v7465, 2147483648
        %v7488 = vmul.f32 %v7487, 1.442695
        %v7489 = vpow.pop %v7488
        %v7490 = vadd.f32 %v7489, 1.0
        %v7491 = vrcp.pop %v7490
        %v7492 = vmul.f32 %v7490, %v7491
        %v7493 = vsub.f32 1.0, %v7492
        %v7494 = vmul.f32 %v7491, %v7493
        %v7495 = vadd.f32 %v7491, %v7494
        %vm7496 = vweird.f32 %v7490
        %vm7497 = vweird.f32 %v7491
        %vm7498 = vmor %vm7496, %vm7497
        %v7499 = vsel %vm7498, %v7491, %v7495
        %v7500 = vand.u32 2147483647, %v7490
        %vm7501 = vcmp.eq.f32.partialorder %v7500, 8.507059e+37
        %v7502 = vand.u32 %v7490, 2147483648
        %v7503 = vor.u32 1.1754944e-38, %v7502
        %v7504 = vsel %vm7501, %v7503, %v7499
        %v7505 = vmul.f32 1.0, %v7504
        %v7506 = vtanh.pop %v7466
        %v7507 = vxor.u32 %v7467, 2147483648
        %v7508 = vmul.f32 %v7507, 1.442695
        %v7509 = vpow.pop %v7508
        %v7510 = vadd.f32 %v7509, 1.0
        %v7511 = vrcp.pop %v7510
        %v7512 = vmul.f32 %v7510, %v7511
        %v7513 = vsub.f32 1.0, %v7512
        %v7514 = vmul.f32 %v7511, %v7513
        %v7515 = vadd.f32 %v7511, %v7514
        %vm7516 = vweird.f32 %v7510
        %vm7517 = vweird.f32 %v7511
        %vm7518 = vmor %vm7516, %vm7517
        %v7519 = vsel %vm7518, %v7511, %v7515
        %v7520 = vand.u32 2147483647, %v7510
        %vm7521 = vcmp.eq.f32.partialorder %v7520, 8.507059e+37
        %v7522 = vand.u32 %v7510, 2147483648
        %v7523 = vor.u32 1.1754944e-38, %v7522
        %v7524 = vsel %vm7521, %v7523, %v7519
        %v7525 = vmul.f32 1.0, %v7524
        %v7527 = vrot.slane %v7365, 7
        %v7529 = vmul.f32 %v7505, %v7527
        %v7530 = vmul.f32 %v7486, %v7506
        %v7531 = vadd.f32 %v7529, %v7530
        %v7532 = vtanh.pop %v7531
        %v7533 = vmul.f32 %v7525, %v7532
        %7534 = vst [vmem:[#allocation3] sm:$0x4] %v7533
        %v7536 = vrot.slane %v7533, 2
        %7538 = vmatpush.msra.mxu0 %v1162
        %7539 = vmatpush.msra.mxu0 %v1158
        %7540 = vmatpush.msra.mxu0 %v1154
        %7541 = vmatpush.msra.mxu0 %v1150
        %7542 = vmatpush.msra.mxu0 %v1146
        %7543 = vmatpush.msra.mxu0 %v1142
        %7544 = vmatpush.msra.mxu0 %v1138
        %7545 = vmatpush.msra.mxu0 %v1134
        %7546 = vmatpush.msra.mxu0 %v1130
        %7547 = vmatpush.msra.mxu0 %v1126
        %7548 = vmatpush.msra.mxu0 %v1122
        %7549 = vmatpush.msra.mxu0 %v1118
        %7550 = vmatpush.msra.mxu0 %v1114
        %7551 = vmatpush.msra.mxu0 %v1110
        %7552 = vmatpush.msra.mxu0 %v1106
        %7553 = vmatpush.msra.mxu0 %v1102
        %7554 = vmatmul.f32.gmra.mxu0 %v7536
        %v7555 = vpop.f32.mrf.mxu0
        %v7556 = vadd.f32 0.0, %v7555
        %7557 = vdwg.mxu0
        %7558 = vmatpush.msra.mxu0 %v1163
        %7559 = vmatpush.msra.mxu0 %v1159
        %7560 = vmatpush.msra.mxu0 %v1155
        %7561 = vmatpush.msra.mxu0 %v1151
        %7562 = vmatpush.msra.mxu0 %v1147
        %7563 = vmatpush.msra.mxu0 %v1143
        %7564 = vmatpush.msra.mxu0 %v1139
        %7565 = vmatpush.msra.mxu0 %v1135
        %7566 = vmatpush.msra.mxu0 %v1131
        %7567 = vmatpush.msra.mxu0 %v1127
        %7568 = vmatpush.msra.mxu0 %v1123
        %7569 = vmatpush.msra.mxu0 %v1119
        %7570 = vmatpush.msra.mxu0 %v1115
        %7571 = vmatpush.msra.mxu0 %v1111
        %7572 = vmatpush.msra.mxu0 %v1107
        %7573 = vmatpush.msra.mxu0 %v1103
        %7574 = vmatmul.f32.gmra.mxu0 %v7536
        %v7575 = vpop.f32.mrf.mxu0
        %v7576 = vadd.f32 0.0, %v7575
        %7577 = vdwg.mxu0
        %7578 = vmatpush.msra.mxu0 %v1164
        %7579 = vmatpush.msra.mxu0 %v1160
        %7580 = vmatpush.msra.mxu0 %v1156
        %7581 = vmatpush.msra.mxu0 %v1152
        %7582 = vmatpush.msra.mxu0 %v1148
        %7583 = vmatpush.msra.mxu0 %v1144
        %7584 = vmatpush.msra.mxu0 %v1140
        %7585 = vmatpush.msra.mxu0 %v1136
        %7586 = vmatpush.msra.mxu0 %v1132
        %7587 = vmatpush.msra.mxu0 %v1128
        %7588 = vmatpush.msra.mxu0 %v1124
        %7589 = vmatpush.msra.mxu0 %v1120
        %7590 = vmatpush.msra.mxu0 %v1116
        %7591 = vmatpush.msra.mxu0 %v1112
        %7592 = vmatpush.msra.mxu0 %v1108
        %7593 = vmatpush.msra.mxu0 %v1104
        %7594 = vmatmul.f32.gmra.mxu0 %v7536
        %v7595 = vpop.f32.mrf.mxu0
        %v7596 = vadd.f32 0.0, %v7595
        %7597 = vdwg.mxu0
        %7598 = vmatpush.msra.mxu0 %v1165
        %7599 = vmatpush.msra.mxu0 %v1161
        %7600 = vmatpush.msra.mxu0 %v1157
        %7601 = vmatpush.msra.mxu0 %v1153
        %7602 = vmatpush.msra.mxu0 %v1149
        %7603 = vmatpush.msra.mxu0 %v1145
        %7604 = vmatpush.msra.mxu0 %v1141
        %7605 = vmatpush.msra.mxu0 %v1137
        %7606 = vmatpush.msra.mxu0 %v1133
        %7607 = vmatpush.msra.mxu0 %v1129
        %7608 = vmatpush.msra.mxu0 %v1125
        %7609 = vmatpush.msra.mxu0 %v1121
        %7610 = vmatpush.msra.mxu0 %v1117
        %7611 = vmatpush.msra.mxu0 %v1113
        %7612 = vmatpush.msra.mxu0 %v1109
        %7613 = vmatpush.msra.mxu0 %v1105
        %7614 = vmatmul.f32.gmra.mxu0 %v7536
        %v7615 = vpop.f32.mrf.mxu0
        %v7616 = vadd.f32 0.0, %v7615
        %7617 = vdwg.mxu0
        %v7622 = vrot.slane %v7556, 5
        %v7623 = vrot.slane %v7576, 5
        %v7624 = vrot.slane %v7596, 5
        %v7625 = vrot.slane %v7616, 5
        %v7630 = vadd.f32 %v6915, %v7622
        %v7631 = vadd.f32 %v6961, %v7623
        %v7632 = vadd.f32 %v7007, %v7624
        %v7633 = vadd.f32 %v7053, %v7625
        %v7634 = vxor.u32 %v7630, 2147483648
        %v7635 = vmul.f32 %v7634, 1.442695
        %v7636 = vpow.pop %v7635
        %v7637 = vadd.f32 %v7636, 1.0
        %v7638 = vrcp.pop %v7637
        %v7639 = vmul.f32 %v7637, %v7638
        %v7640 = vsub.f32 1.0, %v7639
        %v7641 = vmul.f32 %v7638, %v7640
        %v7642 = vadd.f32 %v7638, %v7641
        %vm7643 = vweird.f32 %v7637
        %vm7644 = vweird.f32 %v7638
        %vm7645 = vmor %vm7643, %vm7644
        %v7646 = vsel %vm7645, %v7638, %v7642
        %v7647 = vand.u32 2147483647, %v7637
        %vm7648 = vcmp.eq.f32.partialorder %v7647, 8.507059e+37
        %v7649 = vand.u32 %v7637, 2147483648
        %v7650 = vor.u32 1.1754944e-38, %v7649
        %v7651 = vsel %vm7648, %v7650, %v7646
        %v7652 = vmul.f32 1.0, %v7651
        %v7653 = vxor.u32 %v7631, 2147483648
        %v7654 = vmul.f32 %v7653, 1.442695
        %v7655 = vpow.pop %v7654
        %v7656 = vadd.f32 %v7655, 1.0
        %v7657 = vrcp.pop %v7656
        %v7658 = vmul.f32 %v7656, %v7657
        %v7659 = vsub.f32 1.0, %v7658
        %v7660 = vmul.f32 %v7657, %v7659
        %v7661 = vadd.f32 %v7657, %v7660
        %vm7662 = vweird.f32 %v7656
        %vm7663 = vweird.f32 %v7657
        %vm7664 = vmor %vm7662, %vm7663
        %v7665 = vsel %vm7664, %v7657, %v7661
        %v7666 = vand.u32 2147483647, %v7656
        %vm7667 = vcmp.eq.f32.partialorder %v7666, 8.507059e+37
        %v7668 = vand.u32 %v7656, 2147483648
        %v7669 = vor.u32 1.1754944e-38, %v7668
        %v7670 = vsel %vm7667, %v7669, %v7665
        %v7671 = vmul.f32 1.0, %v7670
        %v7672 = vtanh.pop %v7632
        %v7673 = vxor.u32 %v7633, 2147483648
        %v7674 = vmul.f32 %v7673, 1.442695
        %v7675 = vpow.pop %v7674
        %v7676 = vadd.f32 %v7675, 1.0
        %v7677 = vrcp.pop %v7676
        %v7678 = vmul.f32 %v7676, %v7677
        %v7679 = vsub.f32 1.0, %v7678
        %v7680 = vmul.f32 %v7677, %v7679
        %v7681 = vadd.f32 %v7677, %v7680
        %vm7682 = vweird.f32 %v7676
        %vm7683 = vweird.f32 %v7677
        %vm7684 = vmor %vm7682, %vm7683
        %v7685 = vsel %vm7684, %v7677, %v7681
        %v7686 = vand.u32 2147483647, %v7676
        %vm7687 = vcmp.eq.f32.partialorder %v7686, 8.507059e+37
        %v7688 = vand.u32 %v7676, 2147483648
        %v7689 = vor.u32 1.1754944e-38, %v7688
        %v7690 = vsel %vm7687, %v7689, %v7685
        %v7691 = vmul.f32 1.0, %v7690
        %v7693 = vrot.slane %v7531, 7
        %v7695 = vmul.f32 %v7671, %v7693
        %v7696 = vmul.f32 %v7652, %v7672
        %v7697 = vadd.f32 %v7695, %v7696
        %v7698 = vtanh.pop %v7697
        %v7699 = vmul.f32 %v7691, %v7698
        %7700 = vst [vmem:[#allocation3] sm:$0x8] %v7699
        %v7702 = vrot.slane %v7699, 3
        %7704 = vmatpush.msra.mxu0 %v1162
        %7705 = vmatpush.msra.mxu0 %v1158
        %7706 = vmatpush.msra.mxu0 %v1154
        %7707 = vmatpush.msra.mxu0 %v1150
        %7708 = vmatpush.msra.mxu0 %v1146
        %7709 = vmatpush.msra.mxu0 %v1142
        %7710 = vmatpush.msra.mxu0 %v1138
        %7711 = vmatpush.msra.mxu0 %v1134
        %7712 = vmatpush.msra.mxu0 %v1130
        %7713 = vmatpush.msra.mxu0 %v1126
        %7714 = vmatpush.msra.mxu0 %v1122
        %7715 = vmatpush.msra.mxu0 %v1118
        %7716 = vmatpush.msra.mxu0 %v1114
        %7717 = vmatpush.msra.mxu0 %v1110
        %7718 = vmatpush.msra.mxu0 %v1106
        %7719 = vmatpush.msra.mxu0 %v1102
        %7720 = vmatmul.f32.gmra.mxu0 %v7702
        %v7721 = vpop.f32.mrf.mxu0
        %v7722 = vadd.f32 0.0, %v7721
        %7723 = vdwg.mxu0
        %7724 = vmatpush.msra.mxu0 %v1163
        %7725 = vmatpush.msra.mxu0 %v1159
        %7726 = vmatpush.msra.mxu0 %v1155
        %7727 = vmatpush.msra.mxu0 %v1151
        %7728 = vmatpush.msra.mxu0 %v1147
        %7729 = vmatpush.msra.mxu0 %v1143
        %7730 = vmatpush.msra.mxu0 %v1139
        %7731 = vmatpush.msra.mxu0 %v1135
        %7732 = vmatpush.msra.mxu0 %v1131
        %7733 = vmatpush.msra.mxu0 %v1127
        %7734 = vmatpush.msra.mxu0 %v1123
        %7735 = vmatpush.msra.mxu0 %v1119
        %7736 = vmatpush.msra.mxu0 %v1115
        %7737 = vmatpush.msra.mxu0 %v1111
        %7738 = vmatpush.msra.mxu0 %v1107
        %7739 = vmatpush.msra.mxu0 %v1103
        %7740 = vmatmul.f32.gmra.mxu0 %v7702
        %v7741 = vpop.f32.mrf.mxu0
        %v7742 = vadd.f32 0.0, %v7741
        %7743 = vdwg.mxu0
        %7744 = vmatpush.msra.mxu0 %v1164
        %7745 = vmatpush.msra.mxu0 %v1160
        %7746 = vmatpush.msra.mxu0 %v1156
        %7747 = vmatpush.msra.mxu0 %v1152
        %7748 = vmatpush.msra.mxu0 %v1148
        %7749 = vmatpush.msra.mxu0 %v1144
        %7750 = vmatpush.msra.mxu0 %v1140
        %7751 = vmatpush.msra.mxu0 %v1136
        %7752 = vmatpush.msra.mxu0 %v1132
        %7753 = vmatpush.msra.mxu0 %v1128
        %7754 = vmatpush.msra.mxu0 %v1124
        %7755 = vmatpush.msra.mxu0 %v1120
        %7756 = vmatpush.msra.mxu0 %v1116
        %7757 = vmatpush.msra.mxu0 %v1112
        %7758 = vmatpush.msra.mxu0 %v1108
        %7759 = vmatpush.msra.mxu0 %v1104
        %7760 = vmatmul.f32.gmra.mxu0 %v7702
        %v7761 = vpop.f32.mrf.mxu0
        %v7762 = vadd.f32 0.0, %v7761
        %7763 = vdwg.mxu0
        %7764 = vmatpush.msra.mxu0 %v1165
        %7765 = vmatpush.msra.mxu0 %v1161
        %7766 = vmatpush.msra.mxu0 %v1157
        %7767 = vmatpush.msra.mxu0 %v1153
        %7768 = vmatpush.msra.mxu0 %v1149
        %7769 = vmatpush.msra.mxu0 %v1145
        %7770 = vmatpush.msra.mxu0 %v1141
        %7771 = vmatpush.msra.mxu0 %v1137
        %7772 = vmatpush.msra.mxu0 %v1133
        %7773 = vmatpush.msra.mxu0 %v1129
        %7774 = vmatpush.msra.mxu0 %v1125
        %7775 = vmatpush.msra.mxu0 %v1121
        %7776 = vmatpush.msra.mxu0 %v1117
        %7777 = vmatpush.msra.mxu0 %v1113
        %7778 = vmatpush.msra.mxu0 %v1109
        %7779 = vmatpush.msra.mxu0 %v1105
        %7780 = vmatmul.f32.gmra.mxu0 %v7702
        %v7781 = vpop.f32.mrf.mxu0
        %v7782 = vadd.f32 0.0, %v7781
        %7783 = vdwg.mxu0
        %v7788 = vrot.slane %v7722, 4
        %v7789 = vrot.slane %v7742, 4
        %v7790 = vrot.slane %v7762, 4
        %v7791 = vrot.slane %v7782, 4
        %v7796 = vadd.f32 %v6915, %v7788
        %v7797 = vadd.f32 %v6961, %v7789
        %v7798 = vadd.f32 %v7007, %v7790
        %v7799 = vadd.f32 %v7053, %v7791
        %v7800 = vxor.u32 %v7796, 2147483648
        %v7801 = vmul.f32 %v7800, 1.442695
        %v7802 = vpow.pop %v7801
        %v7803 = vadd.f32 %v7802, 1.0
        %v7804 = vrcp.pop %v7803
        %v7805 = vmul.f32 %v7803, %v7804
        %v7806 = vsub.f32 1.0, %v7805
        %v7807 = vmul.f32 %v7804, %v7806
        %v7808 = vadd.f32 %v7804, %v7807
        %vm7809 = vweird.f32 %v7803
        %vm7810 = vweird.f32 %v7804
        %vm7811 = vmor %vm7809, %vm7810
        %v7812 = vsel %vm7811, %v7804, %v7808
        %v7813 = vand.u32 2147483647, %v7803
        %vm7814 = vcmp.eq.f32.partialorder %v7813, 8.507059e+37
        %v7815 = vand.u32 %v7803, 2147483648
        %v7816 = vor.u32 1.1754944e-38, %v7815
        %v7817 = vsel %vm7814, %v7816, %v7812
        %v7818 = vmul.f32 1.0, %v7817
        %v7819 = vxor.u32 %v7797, 2147483648
        %v7820 = vmul.f32 %v7819, 1.442695
        %v7821 = vpow.pop %v7820
        %v7822 = vadd.f32 %v7821, 1.0
        %v7823 = vrcp.pop %v7822
        %v7824 = vmul.f32 %v7822, %v7823
        %v7825 = vsub.f32 1.0, %v7824
        %v7826 = vmul.f32 %v7823, %v7825
        %v7827 = vadd.f32 %v7823, %v7826
        %vm7828 = vweird.f32 %v7822
        %vm7829 = vweird.f32 %v7823
        %vm7830 = vmor %vm7828, %vm7829
        %v7831 = vsel %vm7830, %v7823, %v7827
        %v7832 = vand.u32 2147483647, %v7822
        %vm7833 = vcmp.eq.f32.partialorder %v7832, 8.507059e+37
        %v7834 = vand.u32 %v7822, 2147483648
        %v7835 = vor.u32 1.1754944e-38, %v7834
        %v7836 = vsel %vm7833, %v7835, %v7831
        %v7837 = vmul.f32 1.0, %v7836
        %v7838 = vtanh.pop %v7798
        %v7839 = vxor.u32 %v7799, 2147483648
        %v7840 = vmul.f32 %v7839, 1.442695
        %v7841 = vpow.pop %v7840
        %v7842 = vadd.f32 %v7841, 1.0
        %v7843 = vrcp.pop %v7842
        %v7844 = vmul.f32 %v7842, %v7843
        %v7845 = vsub.f32 1.0, %v7844
        %v7846 = vmul.f32 %v7843, %v7845
        %v7847 = vadd.f32 %v7843, %v7846
        %vm7848 = vweird.f32 %v7842
        %vm7849 = vweird.f32 %v7843
        %vm7850 = vmor %vm7848, %vm7849
        %v7851 = vsel %vm7850, %v7843, %v7847
        %v7852 = vand.u32 2147483647, %v7842
        %vm7853 = vcmp.eq.f32.partialorder %v7852, 8.507059e+37
        %v7854 = vand.u32 %v7842, 2147483648
        %v7855 = vor.u32 1.1754944e-38, %v7854
        %v7856 = vsel %vm7853, %v7855, %v7851
        %v7857 = vmul.f32 1.0, %v7856
        %v7859 = vrot.slane %v7697, 7
        %v7861 = vmul.f32 %v7837, %v7859
        %v7862 = vmul.f32 %v7818, %v7838
        %v7863 = vadd.f32 %v7861, %v7862
        %v7864 = vtanh.pop %v7863
        %v7865 = vmul.f32 %v7857, %v7864
        %7866 = vst [vmem:[#allocation3] sm:$0x10] %v7865
        %v7868 = vrot.slane %v7865, 4
        %7870 = vmatpush.msra.mxu0 %v1162
        %7871 = vmatpush.msra.mxu0 %v1158
        %7872 = vmatpush.msra.mxu0 %v1154
        %7873 = vmatpush.msra.mxu0 %v1150
        %7874 = vmatpush.msra.mxu0 %v1146
        %7875 = vmatpush.msra.mxu0 %v1142
        %7876 = vmatpush.msra.mxu0 %v1138
        %7877 = vmatpush.msra.mxu0 %v1134
        %7878 = vmatpush.msra.mxu0 %v1130
        %7879 = vmatpush.msra.mxu0 %v1126
        %7880 = vmatpush.msra.mxu0 %v1122
        %7881 = vmatpush.msra.mxu0 %v1118
        %7882 = vmatpush.msra.mxu0 %v1114
        %7883 = vmatpush.msra.mxu0 %v1110
        %7884 = vmatpush.msra.mxu0 %v1106
        %7885 = vmatpush.msra.mxu0 %v1102
        %7886 = vmatmul.f32.gmra.mxu0 %v7868
        %v7887 = vpop.f32.mrf.mxu0
        %v7888 = vadd.f32 0.0, %v7887
        %7889 = vdwg.mxu0
        %7890 = vmatpush.msra.mxu0 %v1163
        %7891 = vmatpush.msra.mxu0 %v1159
        %7892 = vmatpush.msra.mxu0 %v1155
        %7893 = vmatpush.msra.mxu0 %v1151
        %7894 = vmatpush.msra.mxu0 %v1147
        %7895 = vmatpush.msra.mxu0 %v1143
        %7896 = vmatpush.msra.mxu0 %v1139
        %7897 = vmatpush.msra.mxu0 %v1135
        %7898 = vmatpush.msra.mxu0 %v1131
        %7899 = vmatpush.msra.mxu0 %v1127
        %7900 = vmatpush.msra.mxu0 %v1123
        %7901 = vmatpush.msra.mxu0 %v1119
        %7902 = vmatpush.msra.mxu0 %v1115
        %7903 = vmatpush.msra.mxu0 %v1111
        %7904 = vmatpush.msra.mxu0 %v1107
        %7905 = vmatpush.msra.mxu0 %v1103
        %7906 = vmatmul.f32.gmra.mxu0 %v7868
        %v7907 = vpop.f32.mrf.mxu0
        %v7908 = vadd.f32 0.0, %v7907
        %7909 = vdwg.mxu0
        %7910 = vmatpush.msra.mxu0 %v1164
        %7911 = vmatpush.msra.mxu0 %v1160
        %7912 = vmatpush.msra.mxu0 %v1156
        %7913 = vmatpush.msra.mxu0 %v1152
        %7914 = vmatpush.msra.mxu0 %v1148
        %7915 = vmatpush.msra.mxu0 %v1144
        %7916 = vmatpush.msra.mxu0 %v1140
        %7917 = vmatpush.msra.mxu0 %v1136
        %7918 = vmatpush.msra.mxu0 %v1132
        %7919 = vmatpush.msra.mxu0 %v1128
        %7920 = vmatpush.msra.mxu0 %v1124
        %7921 = vmatpush.msra.mxu0 %v1120
        %7922 = vmatpush.msra.mxu0 %v1116
        %7923 = vmatpush.msra.mxu0 %v1112
        %7924 = vmatpush.msra.mxu0 %v1108
        %7925 = vmatpush.msra.mxu0 %v1104
        %7926 = vmatmul.f32.gmra.mxu0 %v7868
        %v7927 = vpop.f32.mrf.mxu0
        %v7928 = vadd.f32 0.0, %v7927
        %7929 = vdwg.mxu0
        %7930 = vmatpush.msra.mxu0 %v1165
        %7931 = vmatpush.msra.mxu0 %v1161
        %7932 = vmatpush.msra.mxu0 %v1157
        %7933 = vmatpush.msra.mxu0 %v1153
        %7934 = vmatpush.msra.mxu0 %v1149
        %7935 = vmatpush.msra.mxu0 %v1145
        %7936 = vmatpush.msra.mxu0 %v1141
        %7937 = vmatpush.msra.mxu0 %v1137
        %7938 = vmatpush.msra.mxu0 %v1133
        %7939 = vmatpush.msra.mxu0 %v1129
        %7940 = vmatpush.msra.mxu0 %v1125
        %7941 = vmatpush.msra.mxu0 %v1121
        %7942 = vmatpush.msra.mxu0 %v1117
        %7943 = vmatpush.msra.mxu0 %v1113
        %7944 = vmatpush.msra.mxu0 %v1109
        %7945 = vmatpush.msra.mxu0 %v1105
        %7946 = vmatmul.f32.gmra.mxu0 %v7868
        %v7947 = vpop.f32.mrf.mxu0
        %v7948 = vadd.f32 0.0, %v7947
        %7949 = vdwg.mxu0
        %v7954 = vrot.slane %v7888, 3
        %v7955 = vrot.slane %v7908, 3
        %v7956 = vrot.slane %v7928, 3
        %v7957 = vrot.slane %v7948, 3
        %v7962 = vadd.f32 %v6915, %v7954
        %v7963 = vadd.f32 %v6961, %v7955
        %v7964 = vadd.f32 %v7007, %v7956
        %v7965 = vadd.f32 %v7053, %v7957
        %v7966 = vxor.u32 %v7962, 2147483648
        %v7967 = vmul.f32 %v7966, 1.442695
        %v7968 = vpow.pop %v7967
        %v7969 = vadd.f32 %v7968, 1.0
        %v7970 = vrcp.pop %v7969
        %v7971 = vmul.f32 %v7969, %v7970
        %v7972 = vsub.f32 1.0, %v7971
        %v7973 = vmul.f32 %v7970, %v7972
        %v7974 = vadd.f32 %v7970, %v7973
        %vm7975 = vweird.f32 %v7969
        %vm7976 = vweird.f32 %v7970
        %vm7977 = vmor %vm7975, %vm7976
        %v7978 = vsel %vm7977, %v7970, %v7974
        %v7979 = vand.u32 2147483647, %v7969
        %vm7980 = vcmp.eq.f32.partialorder %v7979, 8.507059e+37
        %v7981 = vand.u32 %v7969, 2147483648
        %v7982 = vor.u32 1.1754944e-38, %v7981
        %v7983 = vsel %vm7980, %v7982, %v7978
        %v7984 = vmul.f32 1.0, %v7983
        %v7985 = vxor.u32 %v7963, 2147483648
        %v7986 = vmul.f32 %v7985, 1.442695
        %v7987 = vpow.pop %v7986
        %v7988 = vadd.f32 %v7987, 1.0
        %v7989 = vrcp.pop %v7988
        %v7990 = vmul.f32 %v7988, %v7989
        %v7991 = vsub.f32 1.0, %v7990
        %v7992 = vmul.f32 %v7989, %v7991
        %v7993 = vadd.f32 %v7989, %v7992
        %vm7994 = vweird.f32 %v7988
        %vm7995 = vweird.f32 %v7989
        %vm7996 = vmor %vm7994, %vm7995
        %v7997 = vsel %vm7996, %v7989, %v7993
        %v7998 = vand.u32 2147483647, %v7988
        %vm7999 = vcmp.eq.f32.partialorder %v7998, 8.507059e+37
        %v8000 = vand.u32 %v7988, 2147483648
        %v8001 = vor.u32 1.1754944e-38, %v8000
        %v8002 = vsel %vm7999, %v8001, %v7997
        %v8003 = vmul.f32 1.0, %v8002
        %v8004 = vtanh.pop %v7964
        %v8005 = vxor.u32 %v7965, 2147483648
        %v8006 = vmul.f32 %v8005, 1.442695
        %v8007 = vpow.pop %v8006
        %v8008 = vadd.f32 %v8007, 1.0
        %v8009 = vrcp.pop %v8008
        %v8010 = vmul.f32 %v8008, %v8009
        %v8011 = vsub.f32 1.0, %v8010
        %v8012 = vmul.f32 %v8009, %v8011
        %v8013 = vadd.f32 %v8009, %v8012
        %vm8014 = vweird.f32 %v8008
        %vm8015 = vweird.f32 %v8009
        %vm8016 = vmor %vm8014, %vm8015
        %v8017 = vsel %vm8016, %v8009, %v8013
        %v8018 = vand.u32 2147483647, %v8008
        %vm8019 = vcmp.eq.f32.partialorder %v8018, 8.507059e+37
        %v8020 = vand.u32 %v8008, 2147483648
        %v8021 = vor.u32 1.1754944e-38, %v8020
        %v8022 = vsel %vm8019, %v8021, %v8017
        %v8023 = vmul.f32 1.0, %v8022
        %v8025 = vrot.slane %v7863, 7
        %v8027 = vmul.f32 %v8003, %v8025
        %v8028 = vmul.f32 %v7984, %v8004
        %v8029 = vadd.f32 %v8027, %v8028
        %v8030 = vtanh.pop %v8029
        %v8031 = vmul.f32 %v8023, %v8030
        %8032 = vst [vmem:[#allocation3] sm:$0x20] %v8031
        %v8034 = vrot.slane %v8031, 5
        %8036 = vmatpush.msra.mxu0 %v1162
        %8037 = vmatpush.msra.mxu0 %v1158
        %8038 = vmatpush.msra.mxu0 %v1154
        %8039 = vmatpush.msra.mxu0 %v1150
        %8040 = vmatpush.msra.mxu0 %v1146
        %8041 = vmatpush.msra.mxu0 %v1142
        %8042 = vmatpush.msra.mxu0 %v1138
        %8043 = vmatpush.msra.mxu0 %v1134
        %8044 = vmatpush.msra.mxu0 %v1130
        %8045 = vmatpush.msra.mxu0 %v1126
        %8046 = vmatpush.msra.mxu0 %v1122
        %8047 = vmatpush.msra.mxu0 %v1118
        %8048 = vmatpush.msra.mxu0 %v1114
        %8049 = vmatpush.msra.mxu0 %v1110
        %8050 = vmatpush.msra.mxu0 %v1106
        %8051 = vmatpush.msra.mxu0 %v1102
        %8052 = vmatmul.f32.gmra.mxu0 %v8034
        %v8053 = vpop.f32.mrf.mxu0
        %v8054 = vadd.f32 0.0, %v8053
        %8055 = vdwg.mxu0
        %8056 = vmatpush.msra.mxu0 %v1163
        %8057 = vmatpush.msra.mxu0 %v1159
        %8058 = vmatpush.msra.mxu0 %v1155
        %8059 = vmatpush.msra.mxu0 %v1151
        %8060 = vmatpush.msra.mxu0 %v1147
        %8061 = vmatpush.msra.mxu0 %v1143
        %8062 = vmatpush.msra.mxu0 %v1139
        %8063 = vmatpush.msra.mxu0 %v1135
        %8064 = vmatpush.msra.mxu0 %v1131
        %8065 = vmatpush.msra.mxu0 %v1127
        %8066 = vmatpush.msra.mxu0 %v1123
        %8067 = vmatpush.msra.mxu0 %v1119
        %8068 = vmatpush.msra.mxu0 %v1115
        %8069 = vmatpush.msra.mxu0 %v1111
        %8070 = vmatpush.msra.mxu0 %v1107
        %8071 = vmatpush.msra.mxu0 %v1103
        %8072 = vmatmul.f32.gmra.mxu0 %v8034
        %v8073 = vpop.f32.mrf.mxu0
        %v8074 = vadd.f32 0.0, %v8073
        %8075 = vdwg.mxu0
        %8076 = vmatpush.msra.mxu0 %v1164
        %8077 = vmatpush.msra.mxu0 %v1160
        %8078 = vmatpush.msra.mxu0 %v1156
        %8079 = vmatpush.msra.mxu0 %v1152
        %8080 = vmatpush.msra.mxu0 %v1148
        %8081 = vmatpush.msra.mxu0 %v1144
        %8082 = vmatpush.msra.mxu0 %v1140
        %8083 = vmatpush.msra.mxu0 %v1136
        %8084 = vmatpush.msra.mxu0 %v1132
        %8085 = vmatpush.msra.mxu0 %v1128
        %8086 = vmatpush.msra.mxu0 %v1124
        %8087 = vmatpush.msra.mxu0 %v1120
        %8088 = vmatpush.msra.mxu0 %v1116
        %8089 = vmatpush.msra.mxu0 %v1112
        %8090 = vmatpush.msra.mxu0 %v1108
        %8091 = vmatpush.msra.mxu0 %v1104
        %8092 = vmatmul.f32.gmra.mxu0 %v8034
        %v8093 = vpop.f32.mrf.mxu0
        %v8094 = vadd.f32 0.0, %v8093
        %8095 = vdwg.mxu0
        %8096 = vmatpush.msra.mxu0 %v1165
        %8097 = vmatpush.msra.mxu0 %v1161
        %8098 = vmatpush.msra.mxu0 %v1157
        %8099 = vmatpush.msra.mxu0 %v1153
        %8100 = vmatpush.msra.mxu0 %v1149
        %8101 = vmatpush.msra.mxu0 %v1145
        %8102 = vmatpush.msra.mxu0 %v1141
        %8103 = vmatpush.msra.mxu0 %v1137
        %8104 = vmatpush.msra.mxu0 %v1133
        %8105 = vmatpush.msra.mxu0 %v1129
        %8106 = vmatpush.msra.mxu0 %v1125
        %8107 = vmatpush.msra.mxu0 %v1121
        %8108 = vmatpush.msra.mxu0 %v1117
        %8109 = vmatpush.msra.mxu0 %v1113
        %8110 = vmatpush.msra.mxu0 %v1109
        %8111 = vmatpush.msra.mxu0 %v1105
        %8112 = vmatmul.f32.gmra.mxu0 %v8034
        %v8113 = vpop.f32.mrf.mxu0
        %v8114 = vadd.f32 0.0, %v8113
        %8115 = vdwg.mxu0
        %v8120 = vrot.slane %v8054, 2
        %v8121 = vrot.slane %v8074, 2
        %v8122 = vrot.slane %v8094, 2
        %v8123 = vrot.slane %v8114, 2
        %v8128 = vadd.f32 %v6915, %v8120
        %v8129 = vadd.f32 %v6961, %v8121
        %v8130 = vadd.f32 %v7007, %v8122
        %v8131 = vadd.f32 %v7053, %v8123
        %v8132 = vxor.u32 %v8128, 2147483648
        %v8133 = vmul.f32 %v8132, 1.442695
        %v8134 = vpow.pop %v8133
        %v8135 = vadd.f32 %v8134, 1.0
        %v8136 = vrcp.pop %v8135
        %v8137 = vmul.f32 %v8135, %v8136
        %v8138 = vsub.f32 1.0, %v8137
        %v8139 = vmul.f32 %v8136, %v8138
        %v8140 = vadd.f32 %v8136, %v8139
        %vm8141 = vweird.f32 %v8135
        %vm8142 = vweird.f32 %v8136
        %vm8143 = vmor %vm8141, %vm8142
        %v8144 = vsel %vm8143, %v8136, %v8140
        %v8145 = vand.u32 2147483647, %v8135
        %vm8146 = vcmp.eq.f32.partialorder %v8145, 8.507059e+37
        %v8147 = vand.u32 %v8135, 2147483648
        %v8148 = vor.u32 1.1754944e-38, %v8147
        %v8149 = vsel %vm8146, %v8148, %v8144
        %v8150 = vmul.f32 1.0, %v8149
        %v8151 = vxor.u32 %v8129, 2147483648
        %v8152 = vmul.f32 %v8151, 1.442695
        %v8153 = vpow.pop %v8152
        %v8154 = vadd.f32 %v8153, 1.0
        %v8155 = vrcp.pop %v8154
        %v8156 = vmul.f32 %v8154, %v8155
        %v8157 = vsub.f32 1.0, %v8156
        %v8158 = vmul.f32 %v8155, %v8157
        %v8159 = vadd.f32 %v8155, %v8158
        %vm8160 = vweird.f32 %v8154
        %vm8161 = vweird.f32 %v8155
        %vm8162 = vmor %vm8160, %vm8161
        %v8163 = vsel %vm8162, %v8155, %v8159
        %v8164 = vand.u32 2147483647, %v8154
        %vm8165 = vcmp.eq.f32.partialorder %v8164, 8.507059e+37
        %v8166 = vand.u32 %v8154, 2147483648
        %v8167 = vor.u32 1.1754944e-38, %v8166
        %v8168 = vsel %vm8165, %v8167, %v8163
        %v8169 = vmul.f32 1.0, %v8168
        %v8170 = vtanh.pop %v8130
        %v8171 = vxor.u32 %v8131, 2147483648
        %v8172 = vmul.f32 %v8171, 1.442695
        %v8173 = vpow.pop %v8172
        %v8174 = vadd.f32 %v8173, 1.0
        %v8175 = vrcp.pop %v8174
        %v8176 = vmul.f32 %v8174, %v8175
        %v8177 = vsub.f32 1.0, %v8176
        %v8178 = vmul.f32 %v8175, %v8177
        %v8179 = vadd.f32 %v8175, %v8178
        %vm8180 = vweird.f32 %v8174
        %vm8181 = vweird.f32 %v8175
        %vm8182 = vmor %vm8180, %vm8181
        %v8183 = vsel %vm8182, %v8175, %v8179
        %v8184 = vand.u32 2147483647, %v8174
        %vm8185 = vcmp.eq.f32.partialorder %v8184, 8.507059e+37
        %v8186 = vand.u32 %v8174, 2147483648
        %v8187 = vor.u32 1.1754944e-38, %v8186
        %v8188 = vsel %vm8185, %v8187, %v8183
        %v8189 = vmul.f32 1.0, %v8188
        %v8191 = vrot.slane %v8029, 7
        %v8193 = vmul.f32 %v8169, %v8191
        %v8194 = vmul.f32 %v8150, %v8170
        %v8195 = vadd.f32 %v8193, %v8194
        %v8196 = vtanh.pop %v8195
        %v8197 = vmul.f32 %v8189, %v8196
        %8198 = vst [vmem:[#allocation3] sm:$0x40] %v8197
        %v8200 = vrot.slane %v8197, 6
        %8202 = vmatpush.msra.mxu0 %v1162
        %8203 = vmatpush.msra.mxu0 %v1158
        %8204 = vmatpush.msra.mxu0 %v1154
        %8205 = vmatpush.msra.mxu0 %v1150
        %8206 = vmatpush.msra.mxu0 %v1146
        %8207 = vmatpush.msra.mxu0 %v1142
        %8208 = vmatpush.msra.mxu0 %v1138
        %8209 = vmatpush.msra.mxu0 %v1134
        %8210 = vmatpush.msra.mxu0 %v1130
        %8211 = vmatpush.msra.mxu0 %v1126
        %8212 = vmatpush.msra.mxu0 %v1122
        %8213 = vmatpush.msra.mxu0 %v1118
        %8214 = vmatpush.msra.mxu0 %v1114
        %8215 = vmatpush.msra.mxu0 %v1110
        %8216 = vmatpush.msra.mxu0 %v1106
        %8217 = vmatpush.msra.mxu0 %v1102
        %8218 = vmatmul.f32.gmra.mxu0 %v8200
        %v8219 = vpop.f32.mrf.mxu0
        %v8220 = vadd.f32 0.0, %v8219
        %8221 = vdwg.mxu0
        %8222 = vmatpush.msra.mxu0 %v1163
        %8223 = vmatpush.msra.mxu0 %v1159
        %8224 = vmatpush.msra.mxu0 %v1155
        %8225 = vmatpush.msra.mxu0 %v1151
        %8226 = vmatpush.msra.mxu0 %v1147
        %8227 = vmatpush.msra.mxu0 %v1143
        %8228 = vmatpush.msra.mxu0 %v1139
        %8229 = vmatpush.msra.mxu0 %v1135
        %8230 = vmatpush.msra.mxu0 %v1131
        %8231 = vmatpush.msra.mxu0 %v1127
        %8232 = vmatpush.msra.mxu0 %v1123
        %8233 = vmatpush.msra.mxu0 %v1119
        %8234 = vmatpush.msra.mxu0 %v1115
        %8235 = vmatpush.msra.mxu0 %v1111
        %8236 = vmatpush.msra.mxu0 %v1107
        %8237 = vmatpush.msra.mxu0 %v1103
        %8238 = vmatmul.f32.gmra.mxu0 %v8200
        %v8239 = vpop.f32.mrf.mxu0
        %v8240 = vadd.f32 0.0, %v8239
        %8241 = vdwg.mxu0
        %8242 = vmatpush.msra.mxu0 %v1164
        %8243 = vmatpush.msra.mxu0 %v1160
        %8244 = vmatpush.msra.mxu0 %v1156
        %8245 = vmatpush.msra.mxu0 %v1152
        %8246 = vmatpush.msra.mxu0 %v1148
        %8247 = vmatpush.msra.mxu0 %v1144
        %8248 = vmatpush.msra.mxu0 %v1140
        %8249 = vmatpush.msra.mxu0 %v1136
        %8250 = vmatpush.msra.mxu0 %v1132
        %8251 = vmatpush.msra.mxu0 %v1128
        %8252 = vmatpush.msra.mxu0 %v1124
        %8253 = vmatpush.msra.mxu0 %v1120
        %8254 = vmatpush.msra.mxu0 %v1116
        %8255 = vmatpush.msra.mxu0 %v1112
        %8256 = vmatpush.msra.mxu0 %v1108
        %8257 = vmatpush.msra.mxu0 %v1104
        %8258 = vmatmul.f32.gmra.mxu0 %v8200
        %v8259 = vpop.f32.mrf.mxu0
        %v8260 = vadd.f32 0.0, %v8259
        %8261 = vdwg.mxu0
        %8262 = vmatpush.msra.mxu0 %v1165
        %8263 = vmatpush.msra.mxu0 %v1161
        %8264 = vmatpush.msra.mxu0 %v1157
        %8265 = vmatpush.msra.mxu0 %v1153
        %8266 = vmatpush.msra.mxu0 %v1149
        %8267 = vmatpush.msra.mxu0 %v1145
        %8268 = vmatpush.msra.mxu0 %v1141
        %8269 = vmatpush.msra.mxu0 %v1137
        %8270 = vmatpush.msra.mxu0 %v1133
        %8271 = vmatpush.msra.mxu0 %v1129
        %8272 = vmatpush.msra.mxu0 %v1125
        %8273 = vmatpush.msra.mxu0 %v1121
        %8274 = vmatpush.msra.mxu0 %v1117
        %8275 = vmatpush.msra.mxu0 %v1113
        %8276 = vmatpush.msra.mxu0 %v1109
        %8277 = vmatpush.msra.mxu0 %v1105
        %8278 = vmatmul.f32.gmra.mxu0 %v8200
        %v8279 = vpop.f32.mrf.mxu0
        %v8280 = vadd.f32 0.0, %v8279
        %8281 = vdwg.mxu0
        %v8286 = vrot.slane %v8220, 1
        %v8287 = vrot.slane %v8240, 1
        %v8288 = vrot.slane %v8260, 1
        %v8289 = vrot.slane %v8280, 1
        %v8294 = vadd.f32 %v6915, %v8286
        %v8295 = vadd.f32 %v6961, %v8287
        %v8296 = vadd.f32 %v7007, %v8288
        %v8297 = vadd.f32 %v7053, %v8289
        %v8298 = vxor.u32 %v8294, 2147483648
        %v8299 = vmul.f32 %v8298, 1.442695
        %v8300 = vpow.pop %v8299
        %v8301 = vadd.f32 %v8300, 1.0
        %v8302 = vrcp.pop %v8301
        %v8303 = vmul.f32 %v8301, %v8302
        %v8304 = vsub.f32 1.0, %v8303
        %v8305 = vmul.f32 %v8302, %v8304
        %v8306 = vadd.f32 %v8302, %v8305
        %vm8307 = vweird.f32 %v8301
        %vm8308 = vweird.f32 %v8302
        %vm8309 = vmor %vm8307, %vm8308
        %v8310 = vsel %vm8309, %v8302, %v8306
        %v8311 = vand.u32 2147483647, %v8301
        %vm8312 = vcmp.eq.f32.partialorder %v8311, 8.507059e+37
        %v8313 = vand.u32 %v8301, 2147483648
        %v8314 = vor.u32 1.1754944e-38, %v8313
        %v8315 = vsel %vm8312, %v8314, %v8310
        %v8316 = vmul.f32 1.0, %v8315
        %v8317 = vxor.u32 %v8295, 2147483648
        %v8318 = vmul.f32 %v8317, 1.442695
        %v8319 = vpow.pop %v8318
        %v8320 = vadd.f32 %v8319, 1.0
        %v8321 = vrcp.pop %v8320
        %v8322 = vmul.f32 %v8320, %v8321
        %v8323 = vsub.f32 1.0, %v8322
        %v8324 = vmul.f32 %v8321, %v8323
        %v8325 = vadd.f32 %v8321, %v8324
        %vm8326 = vweird.f32 %v8320
        %vm8327 = vweird.f32 %v8321
        %vm8328 = vmor %vm8326, %vm8327
        %v8329 = vsel %vm8328, %v8321, %v8325
        %v8330 = vand.u32 2147483647, %v8320
        %vm8331 = vcmp.eq.f32.partialorder %v8330, 8.507059e+37
        %v8332 = vand.u32 %v8320, 2147483648
        %v8333 = vor.u32 1.1754944e-38, %v8332
        %v8334 = vsel %vm8331, %v8333, %v8329
        %v8335 = vmul.f32 1.0, %v8334
        %v8336 = vtanh.pop %v8296
        %v8337 = vxor.u32 %v8297, 2147483648
        %v8338 = vmul.f32 %v8337, 1.442695
        %v8339 = vpow.pop %v8338
        %v8340 = vadd.f32 %v8339, 1.0
        %v8341 = vrcp.pop %v8340
        %v8342 = vmul.f32 %v8340, %v8341
        %v8343 = vsub.f32 1.0, %v8342
        %v8344 = vmul.f32 %v8341, %v8343
        %v8345 = vadd.f32 %v8341, %v8344
        %vm8346 = vweird.f32 %v8340
        %vm8347 = vweird.f32 %v8341
        %vm8348 = vmor %vm8346, %vm8347
        %v8349 = vsel %vm8348, %v8341, %v8345
        %v8350 = vand.u32 2147483647, %v8340
        %vm8351 = vcmp.eq.f32.partialorder %v8350, 8.507059e+37
        %v8352 = vand.u32 %v8340, 2147483648
        %v8353 = vor.u32 1.1754944e-38, %v8352
        %v8354 = vsel %vm8351, %v8353, %v8349
        %v8355 = vmul.f32 1.0, %v8354
        %v8357 = vrot.slane %v8195, 7
        %v8359 = vmul.f32 %v8335, %v8357
        %v8360 = vmul.f32 %v8316, %v8336
        %v8361 = vadd.f32 %v8359, %v8360
        %v8362 = vtanh.pop %v8361
        %v8363 = vmul.f32 %v8355, %v8362
        %8364 = vst [vmem:[#allocation3] sm:$0x80] %v8363
        %v8366 = vrot.slane %v8363, 7
        %8368 = vmatpush.msra.mxu0 %v1162
        %8369 = vmatpush.msra.mxu0 %v1158
        %8370 = vmatpush.msra.mxu0 %v1154
        %8371 = vmatpush.msra.mxu0 %v1150
        %8372 = vmatpush.msra.mxu0 %v1146
        %8373 = vmatpush.msra.mxu0 %v1142
        %8374 = vmatpush.msra.mxu0 %v1138
        %8375 = vmatpush.msra.mxu0 %v1134
        %8376 = vmatpush.msra.mxu0 %v1130
        %8377 = vmatpush.msra.mxu0 %v1126
        %8378 = vmatpush.msra.mxu0 %v1122
        %8379 = vmatpush.msra.mxu0 %v1118
        %8380 = vmatpush.msra.mxu0 %v1114
        %8381 = vmatpush.msra.mxu0 %v1110
        %8382 = vmatpush.msra.mxu0 %v1106
        %8383 = vmatpush.msra.mxu0 %v1102
        %8384 = vmatmul.f32.gmra.mxu0 %v8366
        %v8385 = vpop.f32.mrf.mxu0
        %v8386 = vadd.f32 0.0, %v8385
        %8387 = vdwg.mxu0
        %8388 = vmatpush.msra.mxu0 %v1163
        %8389 = vmatpush.msra.mxu0 %v1159
        %8390 = vmatpush.msra.mxu0 %v1155
        %8391 = vmatpush.msra.mxu0 %v1151
        %8392 = vmatpush.msra.mxu0 %v1147
        %8393 = vmatpush.msra.mxu0 %v1143
        %8394 = vmatpush.msra.mxu0 %v1139
        %8395 = vmatpush.msra.mxu0 %v1135
        %8396 = vmatpush.msra.mxu0 %v1131
        %8397 = vmatpush.msra.mxu0 %v1127
        %8398 = vmatpush.msra.mxu0 %v1123
        %8399 = vmatpush.msra.mxu0 %v1119
        %8400 = vmatpush.msra.mxu0 %v1115
        %8401 = vmatpush.msra.mxu0 %v1111
        %8402 = vmatpush.msra.mxu0 %v1107
        %8403 = vmatpush.msra.mxu0 %v1103
        %8404 = vmatmul.f32.gmra.mxu0 %v8366
        %v8405 = vpop.f32.mrf.mxu0
        %v8406 = vadd.f32 0.0, %v8405
        %8407 = vdwg.mxu0
        %8408 = vmatpush.msra.mxu0 %v1164
        %8409 = vmatpush.msra.mxu0 %v1160
        %8410 = vmatpush.msra.mxu0 %v1156
        %8411 = vmatpush.msra.mxu0 %v1152
        %8412 = vmatpush.msra.mxu0 %v1148
        %8413 = vmatpush.msra.mxu0 %v1144
        %8414 = vmatpush.msra.mxu0 %v1140
        %8415 = vmatpush.msra.mxu0 %v1136
        %8416 = vmatpush.msra.mxu0 %v1132
        %8417 = vmatpush.msra.mxu0 %v1128
        %8418 = vmatpush.msra.mxu0 %v1124
        %8419 = vmatpush.msra.mxu0 %v1120
        %8420 = vmatpush.msra.mxu0 %v1116
        %8421 = vmatpush.msra.mxu0 %v1112
        %8422 = vmatpush.msra.mxu0 %v1108
        %8423 = vmatpush.msra.mxu0 %v1104
        %8424 = vmatmul.f32.gmra.mxu0 %v8366
        %v8425 = vpop.f32.mrf.mxu0
        %v8426 = vadd.f32 0.0, %v8425
        %8427 = vdwg.mxu0
        %8428 = vmatpush.msra.mxu0 %v1165
        %8429 = vmatpush.msra.mxu0 %v1161
        %8430 = vmatpush.msra.mxu0 %v1157
        %8431 = vmatpush.msra.mxu0 %v1153
        %8432 = vmatpush.msra.mxu0 %v1149
        %8433 = vmatpush.msra.mxu0 %v1145
        %8434 = vmatpush.msra.mxu0 %v1141
        %8435 = vmatpush.msra.mxu0 %v1137
        %8436 = vmatpush.msra.mxu0 %v1133
        %8437 = vmatpush.msra.mxu0 %v1129
        %8438 = vmatpush.msra.mxu0 %v1125
        %8439 = vmatpush.msra.mxu0 %v1121
        %8440 = vmatpush.msra.mxu0 %v1117
        %8441 = vmatpush.msra.mxu0 %v1113
        %8442 = vmatpush.msra.mxu0 %v1109
        %8443 = vmatpush.msra.mxu0 %v1105
        %8444 = vmatmul.f32.gmra.mxu0 %v8366
        %v8445 = vpop.f32.mrf.mxu0
        %v8446 = vadd.f32 0.0, %v8445
        %8447 = vdwg.mxu0
        %v8448 = vadd.f32 %v6918, %v8386
        %v8449 = vadd.f32 %v6964, %v8406
        %v8450 = vadd.f32 %v7010, %v8426
        %v8451 = vadd.f32 %v7056, %v8446
        %v8452 = vxor.u32 %v8448, 2147483648
        %v8453 = vmul.f32 %v8452, 1.442695
        %v8454 = vpow.pop %v8453
        %v8455 = vadd.f32 %v8454, 1.0
        %v8456 = vrcp.pop %v8455
        %v8457 = vmul.f32 %v8455, %v8456
        %v8458 = vsub.f32 1.0, %v8457
        %v8459 = vmul.f32 %v8456, %v8458
        %v8460 = vadd.f32 %v8456, %v8459
        %vm8461 = vweird.f32 %v8455
        %vm8462 = vweird.f32 %v8456
        %vm8463 = vmor %vm8461, %vm8462
        %v8464 = vsel %vm8463, %v8456, %v8460
        %v8465 = vand.u32 2147483647, %v8455
        %vm8466 = vcmp.eq.f32.partialorder %v8465, 8.507059e+37
        %v8467 = vand.u32 %v8455, 2147483648
        %v8468 = vor.u32 1.1754944e-38, %v8467
        %v8469 = vsel %vm8466, %v8468, %v8464
        %v8470 = vmul.f32 1.0, %v8469
        %v8471 = vxor.u32 %v8449, 2147483648
        %v8472 = vmul.f32 %v8471, 1.442695
        %v8473 = vpow.pop %v8472
        %v8474 = vadd.f32 %v8473, 1.0
        %v8475 = vrcp.pop %v8474
        %v8476 = vmul.f32 %v8474, %v8475
        %v8477 = vsub.f32 1.0, %v8476
        %v8478 = vmul.f32 %v8475, %v8477
        %v8479 = vadd.f32 %v8475, %v8478
        %vm8480 = vweird.f32 %v8474
        %vm8481 = vweird.f32 %v8475
        %vm8482 = vmor %vm8480, %vm8481
        %v8483 = vsel %vm8482, %v8475, %v8479
        %v8484 = vand.u32 2147483647, %v8474
        %vm8485 = vcmp.eq.f32.partialorder %v8484, 8.507059e+37
        %v8486 = vand.u32 %v8474, 2147483648
        %v8487 = vor.u32 1.1754944e-38, %v8486
        %v8488 = vsel %vm8485, %v8487, %v8483
        %v8489 = vmul.f32 1.0, %v8488
        %v8490 = vtanh.pop %v8450
        %v8491 = vxor.u32 %v8451, 2147483648
        %v8492 = vmul.f32 %v8491, 1.442695
        %v8493 = vpow.pop %v8492
        %v8494 = vadd.f32 %v8493, 1.0
        %v8495 = vrcp.pop %v8494
        %v8496 = vmul.f32 %v8494, %v8495
        %v8497 = vsub.f32 1.0, %v8496
        %v8498 = vmul.f32 %v8495, %v8497
        %v8499 = vadd.f32 %v8495, %v8498
        %vm8500 = vweird.f32 %v8494
        %vm8501 = vweird.f32 %v8495
        %vm8502 = vmor %vm8500, %vm8501
        %v8503 = vsel %vm8502, %v8495, %v8499
        %v8504 = vand.u32 2147483647, %v8494
        %vm8505 = vcmp.eq.f32.partialorder %v8504, 8.507059e+37
        %v8506 = vand.u32 %v8494, 2147483648
        %v8507 = vor.u32 1.1754944e-38, %v8506
        %v8508 = vsel %vm8505, %v8507, %v8503
        %v8509 = vmul.f32 1.0, %v8508
        %v8511 = vrot.slane %v8361, 7
        %v8513 = vmul.f32 %v8489, %v8511
        %v8514 = vmul.f32 %v8470, %v8490
        %v8515 = vadd.f32 %v8513, %v8514
        %v8516 = vtanh.pop %v8515
        %v8517 = vmul.f32 %v8509, %v8516
        %8518 = vst [vmem:[#allocation3 + $0x8] sm:$0x1] %v8517
        %8519 = vmatpush.msra.mxu0 %v1162
        %8520 = vmatpush.msra.mxu0 %v1158
        %8521 = vmatpush.msra.mxu0 %v1154
        %8522 = vmatpush.msra.mxu0 %v1150
        %8523 = vmatpush.msra.mxu0 %v1146
        %8524 = vmatpush.msra.mxu0 %v1142
        %8525 = vmatpush.msra.mxu0 %v1138
        %8526 = vmatpush.msra.mxu0 %v1134
        %8527 = vmatpush.msra.mxu0 %v1130
        %8528 = vmatpush.msra.mxu0 %v1126
        %8529 = vmatpush.msra.mxu0 %v1122
        %8530 = vmatpush.msra.mxu0 %v1118
        %8531 = vmatpush.msra.mxu0 %v1114
        %8532 = vmatpush.msra.mxu0 %v1110
        %8533 = vmatpush.msra.mxu0 %v1106
        %8534 = vmatpush.msra.mxu0 %v1102
        %8535 = vmatmul.f32.gmra.mxu0 %v8517
        %v8536 = vpop.f32.mrf.mxu0
        %v8537 = vadd.f32 0.0, %v8536
        %8538 = vdwg.mxu0
        %8539 = vmatpush.msra.mxu0 %v1163
        %8540 = vmatpush.msra.mxu0 %v1159
        %8541 = vmatpush.msra.mxu0 %v1155
        %8542 = vmatpush.msra.mxu0 %v1151
        %8543 = vmatpush.msra.mxu0 %v1147
        %8544 = vmatpush.msra.mxu0 %v1143
        %8545 = vmatpush.msra.mxu0 %v1139
        %8546 = vmatpush.msra.mxu0 %v1135
        %8547 = vmatpush.msra.mxu0 %v1131
        %8548 = vmatpush.msra.mxu0 %v1127
        %8549 = vmatpush.msra.mxu0 %v1123
        %8550 = vmatpush.msra.mxu0 %v1119
        %8551 = vmatpush.msra.mxu0 %v1115
        %8552 = vmatpush.msra.mxu0 %v1111
        %8553 = vmatpush.msra.mxu0 %v1107
        %8554 = vmatpush.msra.mxu0 %v1103
        %8555 = vmatmul.f32.gmra.mxu0 %v8517
        %v8556 = vpop.f32.mrf.mxu0
        %v8557 = vadd.f32 0.0, %v8556
        %8558 = vdwg.mxu0
        %8559 = vmatpush.msra.mxu0 %v1164
        %8560 = vmatpush.msra.mxu0 %v1160
        %8561 = vmatpush.msra.mxu0 %v1156
        %8562 = vmatpush.msra.mxu0 %v1152
        %8563 = vmatpush.msra.mxu0 %v1148
        %8564 = vmatpush.msra.mxu0 %v1144
        %8565 = vmatpush.msra.mxu0 %v1140
        %8566 = vmatpush.msra.mxu0 %v1136
        %8567 = vmatpush.msra.mxu0 %v1132
        %8568 = vmatpush.msra.mxu0 %v1128
        %8569 = vmatpush.msra.mxu0 %v1124
        %8570 = vmatpush.msra.mxu0 %v1120
        %8571 = vmatpush.msra.mxu0 %v1116
        %8572 = vmatpush.msra.mxu0 %v1112
        %8573 = vmatpush.msra.mxu0 %v1108
        %8574 = vmatpush.msra.mxu0 %v1104
        %8575 = vmatmul.f32.gmra.mxu0 %v8517
        %v8576 = vpop.f32.mrf.mxu0
        %v8577 = vadd.f32 0.0, %v8576
        %8578 = vdwg.mxu0
        %8579 = vmatpush.msra.mxu0 %v1165
        %8580 = vmatpush.msra.mxu0 %v1161
        %8581 = vmatpush.msra.mxu0 %v1157
        %8582 = vmatpush.msra.mxu0 %v1153
        %8583 = vmatpush.msra.mxu0 %v1149
        %8584 = vmatpush.msra.mxu0 %v1145
        %8585 = vmatpush.msra.mxu0 %v1141
        %8586 = vmatpush.msra.mxu0 %v1137
        %8587 = vmatpush.msra.mxu0 %v1133
        %8588 = vmatpush.msra.mxu0 %v1129
        %8589 = vmatpush.msra.mxu0 %v1125
        %8590 = vmatpush.msra.mxu0 %v1121
        %8591 = vmatpush.msra.mxu0 %v1117
        %8592 = vmatpush.msra.mxu0 %v1113
        %8593 = vmatpush.msra.mxu0 %v1109
        %8594 = vmatpush.msra.mxu0 %v1105
        %8595 = vmatmul.f32.gmra.mxu0 %v8517
        %v8596 = vpop.f32.mrf.mxu0
        %v8597 = vadd.f32 0.0, %v8596
        %8598 = vdwg.mxu0
        %v8603 = vrot.slane %v8537, 7
        %v8604 = vrot.slane %v8557, 7
        %v8605 = vrot.slane %v8577, 7
        %v8606 = vrot.slane %v8597, 7
        %v8611 = vadd.f32 %v6918, %v8603
        %v8612 = vadd.f32 %v6964, %v8604
        %v8613 = vadd.f32 %v7010, %v8605
        %v8614 = vadd.f32 %v7056, %v8606
        %v8615 = vxor.u32 %v8611, 2147483648
        %v8616 = vmul.f32 %v8615, 1.442695
        %v8617 = vpow.pop %v8616
        %v8618 = vadd.f32 %v8617, 1.0
        %v8619 = vrcp.pop %v8618
        %v8620 = vmul.f32 %v8618, %v8619
        %v8621 = vsub.f32 1.0, %v8620
        %v8622 = vmul.f32 %v8619, %v8621
        %v8623 = vadd.f32 %v8619, %v8622
        %vm8624 = vweird.f32 %v8618
        %vm8625 = vweird.f32 %v8619
        %vm8626 = vmor %vm8624, %vm8625
        %v8627 = vsel %vm8626, %v8619, %v8623
        %v8628 = vand.u32 2147483647, %v8618
        %vm8629 = vcmp.eq.f32.partialorder %v8628, 8.507059e+37
        %v8630 = vand.u32 %v8618, 2147483648
        %v8631 = vor.u32 1.1754944e-38, %v8630
        %v8632 = vsel %vm8629, %v8631, %v8627
        %v8633 = vmul.f32 1.0, %v8632
        %v8634 = vxor.u32 %v8612, 2147483648
        %v8635 = vmul.f32 %v8634, 1.442695
        %v8636 = vpow.pop %v8635
        %v8637 = vadd.f32 %v8636, 1.0
        %v8638 = vrcp.pop %v8637
        %v8639 = vmul.f32 %v8637, %v8638
        %v8640 = vsub.f32 1.0, %v8639
        %v8641 = vmul.f32 %v8638, %v8640
        %v8642 = vadd.f32 %v8638, %v8641
        %vm8643 = vweird.f32 %v8637
        %vm8644 = vweird.f32 %v8638
        %vm8645 = vmor %vm8643, %vm8644
        %v8646 = vsel %vm8645, %v8638, %v8642
        %v8647 = vand.u32 2147483647, %v8637
        %vm8648 = vcmp.eq.f32.partialorder %v8647, 8.507059e+37
        %v8649 = vand.u32 %v8637, 2147483648
        %v8650 = vor.u32 1.1754944e-38, %v8649
        %v8651 = vsel %vm8648, %v8650, %v8646
        %v8652 = vmul.f32 1.0, %v8651
        %v8653 = vtanh.pop %v8613
        %v8654 = vxor.u32 %v8614, 2147483648
        %v8655 = vmul.f32 %v8654, 1.442695
        %v8656 = vpow.pop %v8655
        %v8657 = vadd.f32 %v8656, 1.0
        %v8658 = vrcp.pop %v8657
        %v8659 = vmul.f32 %v8657, %v8658
        %v8660 = vsub.f32 1.0, %v8659
        %v8661 = vmul.f32 %v8658, %v8660
        %v8662 = vadd.f32 %v8658, %v8661
        %vm8663 = vweird.f32 %v8657
        %vm8664 = vweird.f32 %v8658
        %vm8665 = vmor %vm8663, %vm8664
        %v8666 = vsel %vm8665, %v8658, %v8662
        %v8667 = vand.u32 2147483647, %v8657
        %vm8668 = vcmp.eq.f32.partialorder %v8667, 8.507059e+37
        %v8669 = vand.u32 %v8657, 2147483648
        %v8670 = vor.u32 1.1754944e-38, %v8669
        %v8671 = vsel %vm8668, %v8670, %v8666
        %v8672 = vmul.f32 1.0, %v8671
        %v8674 = vrot.slane %v8515, 7
        %v8676 = vmul.f32 %v8652, %v8674
        %v8677 = vmul.f32 %v8633, %v8653
        %v8678 = vadd.f32 %v8676, %v8677
        %v8679 = vtanh.pop %v8678
        %v8680 = vmul.f32 %v8672, %v8679
        %8681 = vst [vmem:[#allocation3 + $0x8] sm:$0x2] %v8680
        %v8682 = vld [vmem:[#allocation3] sm:$0xff]
        %v8683 = vld [vmem:[#allocation3 + $0x8] sm:$0x3]
        %8684 = vmatpush.xpose.msra.mxu0 0.0
        %8685 = vmatpush.xpose.msra.mxu0 0.0
        %8686 = vmatpush.xpose.msra.mxu0 0.0
        %8687 = vmatpush.xpose.msra.mxu0 0.0
        %8688 = vmatpush.xpose.msra.mxu0 0.0
        %8689 = vmatpush.xpose.msra.mxu0 0.0
        %8690 = vmatpush.xpose.msra.mxu0 0.0
        %8691 = vmatpush.xpose.msra.mxu0 0.0
        %8692 = vmatpush.xpose.msra.mxu0 0.0
        %8693 = vmatpush.xpose.msra.mxu0 0.0
        %8694 = vmatpush.xpose.msra.mxu0 0.0
        %8695 = vmatpush.xpose.msra.mxu0 0.0
        %8696 = vmatpush.xpose.msra.mxu0 0.0
        %8697 = vmatpush.xpose.msra.mxu0 0.0
        %8698 = vmatpush.xpose.msra.mxu0 %v8683
        %8699 = vmatpush.xpose.msra.mxu0 %v8682
        %8700 = vmatmul.f32.gmra.mxu0 %v8682
        %v8701 = vpop.f32.mrf.mxu0
        %v8702 = vadd.f32 0.0, %v8701
        %8703 = vmatmul.f32.gmra.mxu0 %v8683
        %v8704 = vpop.f32.mrf.mxu0
        %v8705 = vadd.f32 0.0, %v8704
        %8706 = vdwg.mxu0
        %v8707 = vmul.f32 %v8702, 0.088388346
        %v8708 = vmul.f32 %v8705, 0.088388346
        %vm8709 = vcmask 80896
        %v8710 = vsel %vm8709, %v8707, -inf
        %8711 = vmax.xlane.f32.xlu0 %v8710
        %v8712 = vpop.xlane.xlu0 %8711
        %vm8713 = vcmask 74752
        %v8714 = vsel %vm8713, %v8708, -inf
        %8715 = vmax.xlane.f32.xlu0 %v8714
        %v8716 = vpop.xlane.xlu0 %8715
        %v8717 = vsub.f32 %v8707, %v8712
        %v8718 = vsub.f32 %v8708, %v8716
        %v8719 = vmul.f32 %v8717, 1.442695
        %v8720 = vpow.pop %v8719
        %v8721 = vmul.f32 %v8718, 1.442695
        %v8722 = vpow.pop %v8721
        %v8723 = vsel %vm8709, %v8720, 0.0
        %8724 = vadd.xlane.f32.xlu0 %v8723
        %v8725 = vpop.xlane.xlu0 %8724
        %v8726 = vsel %vm8713, %v8722, 0.0
        %8727 = vadd.xlane.f32.xlu0 %v8726
        %v8728 = vpop.xlane.xlu0 %8727
        %v8729 = vrcp.pop %v8725
        %v8730 = vmul.f32 %v8725, %v8729
        %v8731 = vsub.f32 1.0, %v8730
        %v8732 = vmul.f32 %v8729, %v8731
        %v8733 = vadd.f32 %v8729, %v8732
        %vm8734 = vweird.f32 %v8725
        %vm8735 = vweird.f32 %v8729
        %vm8736 = vmor %vm8734, %vm8735
        %v8737 = vsel %vm8736, %v8729, %v8733
        %v8738 = vand.u32 2147483647, %v8725
        %vm8739 = vcmp.eq.f32.partialorder %v8738, 8.507059e+37
        %v8740 = vand.u32 %v8725, 2147483648
        %v8741 = vor.u32 1.1754944e-38, %v8740
        %v8742 = vsel %vm8739, %v8741, %v8737
        %v8743 = vmul.f32 %v8720, %v8742
        %v8744 = vrcp.pop %v8728
        %v8745 = vmul.f32 %v8728, %v8744
        %v8746 = vsub.f32 1.0, %v8745
        %v8747 = vmul.f32 %v8744, %v8746
        %v8748 = vadd.f32 %v8744, %v8747
        %vm8749 = vweird.f32 %v8728
        %vm8750 = vweird.f32 %v8744
        %vm8751 = vmor %vm8749, %vm8750
        %v8752 = vsel %vm8751, %v8744, %v8748
        %v8753 = vand.u32 2147483647, %v8728
        %vm8754 = vcmp.eq.f32.partialorder %v8753, 8.507059e+37
        %v8755 = vand.u32 %v8728, 2147483648
        %v8756 = vor.u32 1.1754944e-38, %v8755
        %v8757 = vsel %vm8754, %v8756, %v8752
        %v8758 = vmul.f32 %v8722, %v8757
        %v8759 = vsel %vm8709, %v8743, 0.0
        %v8760 = vsel %vm8713, %v8758, 0.0
        %v8761 = vadd.f32 %v8759, %v8760
        %v8762 = vrot.slane %v8761, 4
        %v8763 = vadd.f32 %v8761, %v8762
        %v8764 = vrot.slane %v8763, 2
        %v8765 = vadd.f32 %v8763, %v8764
        %v8766 = vrot.slane %v8765, 1
        %v8767 = vadd.f32 %v8765, %v8766
        %v8769 = vsel %vm8709, %v8767, 0
        %v8772 = vsel %vm1200, %v8683, 0
        %8774 = vmatpush.msra.mxu0 0.0
        %8775 = vmatpush.msra.mxu0 0.0
        %8776 = vmatpush.msra.mxu0 0.0
        %8777 = vmatpush.msra.mxu0 0.0
        %8778 = vmatpush.msra.mxu0 0.0
        %8779 = vmatpush.msra.mxu0 0.0
        %8780 = vmatpush.msra.mxu0 0.0
        %8781 = vmatpush.msra.mxu0 0.0
        %8782 = vmatpush.msra.mxu0 0.0
        %8783 = vmatpush.msra.mxu0 0.0
        %8784 = vmatpush.msra.mxu0 0.0
        %8785 = vmatpush.msra.mxu0 0.0
        %8786 = vmatpush.msra.mxu0 0.0
        %8787 = vmatpush.msra.mxu0 0.0
        %8788 = vmatpush.msra.mxu0 %v8772
        %8789 = vmatpush.msra.mxu0 %v8682
        %8790 = vmatmul.f32.gmra.mxu0 %v8769
        %v8791 = vpop.f32.mrf.mxu0
        %v8792 = vadd.f32 0.0, %v8791
        %8793 = vdwg.mxu0
        %8794 = vmatpush.msra.mxu0 %v1182
        %8795 = vmatpush.msra.mxu0 %v1181
        %8796 = vmatpush.msra.mxu0 %v1180
        %8797 = vmatpush.msra.mxu0 %v1179
        %8798 = vmatpush.msra.mxu0 %v1178
        %8799 = vmatpush.msra.mxu0 %v1177
        %8800 = vmatpush.msra.mxu0 %v1176
        %8801 = vmatpush.msra.mxu0 %v1175
        %8802 = vmatpush.msra.mxu0 %v1174
        %8803 = vmatpush.msra.mxu0 %v1173
        %8804 = vmatpush.msra.mxu0 %v1172
        %8805 = vmatpush.msra.mxu0 %v1171
        %8806 = vmatpush.msra.mxu0 %v1170
        %8807 = vmatpush.msra.mxu0 %v1169
        %8808 = vmatpush.msra.mxu0 %v1168
        %8809 = vmatpush.msra.mxu0 %v1167
        %8810 = vmatmul.f32.gmra.mxu0 %v8792
        %v8811 = vpop.f32.mrf.mxu0
        %v8812 = vadd.f32 %v1183, %v8811
        %8813 = vdwg.mxu0
        %vm8814 = vcmask 516096
        %8815 = vst.msk [vmem:[%s515] sm:$0x1] %vm8814, %v8812
        %s8816 = sand.u32 %s316, 1
        %s8817 = scalar_lea.sflag [#allocation6], %s8816
        %s8818 = sand.u32 %s316, 1
        %s8819 = scalar_lea.vmem [#allocation13], %s8818
        // Predicated region
        $region93: #{cnn_lstm_forward.1} parent=71 // pred_check
          %p8820 = pneg %p326
        $region94: #{cnn_lstm_forward.1} parent=71 // pred_check_branch
          %8822 = sbr.rel (%p8820) target = $region96
        $region95: #{cnn_lstm_forward.1} parent=71 // pred_region
          %8824 = vsyncadd %s8817, 0
          %s8825 = scalar_lea.hbm %s13, %s30
          %s8827 = sshll.u32 %s8819, 4
          %s8828 = int_to_ptr.vmem [resolvable:$true] %s8827
          %s8829 = sshll.u32 %s8825, 4
          %s8830 = int_to_ptr.hbm [resolvable:$true] %s8829
          %8832 = dma.vmem_to_hbm [thread:$0]  %s8828, 16, %s8830, %s8817
        $region96: #{cnn_lstm_forward.1} parent=71 // pred_fallthru
          _
      $region72: #{cnn_lstm_forward.1} parent=5 // pred_fallthru
        _
      %p8833 = scmp.le.s32.totalorder 2, %s25
      // Predicated region
      $region97: #{cnn_lstm_forward.1} parent=5 // pred_check
        %p8834 = pneg %p8833
      $region98: #{cnn_lstm_forward.1} parent=5 // pred_check_branch
        %8836 = sbr.rel (%p8834) target = $region100
      $region99: #{cnn_lstm_forward.1} parent=5 // pred_region
        %s8837 = ssub.s32 %s25, 2
        // Predicated region
        $region101: #{cnn_lstm_forward.1} parent=99 // pred_check
          %p8838 = pneg %p332
        $region102: #{cnn_lstm_forward.1} parent=99 // pred_check_branch
          %8840 = sbr.rel (%p8838) target = $region104
        $region103: #{cnn_lstm_forward.1} parent=99 // pred_region
          %s8841 = sand.u32 %s317, 1
          %s8842 = scalar_lea.sflag [#allocation6], %s8841
          %s8843 = sand.u32 %s317, 1
          %s8844 = scalar_lea.vmem [#allocation13], %s8843
          %8846 = dma.done %s8842, 16
        $region104: #{cnn_lstm_forward.1} parent=99 // pred_fallthru
          _
      $region100: #{cnn_lstm_forward.1} parent=5 // pred_fallthru
        _
    $region6: #{cnn_lstm_forward.1} parent=1 // loop_footer
      %s29 = sadd.s32 1, %s25
    $region7: #{cnn_lstm_forward.1} parent=1 // loop_footer_branch
      %24 = sbr.rel target = $region3
    $region8: #{cnn_lstm_forward.1} parent=1 // loop_exit
      _
    %8847 = vsyncpa [#allocation5], 1
    %s8848 = scalar_lea.sflag [#allocation5], 1
    %8849 = vsyncpa %s8848, 1
    %8850 = vsyncpa [#allocation8], 1
    %8851 = vsyncpa [#allocation11], 1
    %8852 = vsyncpa [#allocation6], 1
    %s8853 = scalar_lea.sflag [#allocation6], 1
    %8854 = vsyncpa %s8853, 1

</llo_original>
